<compile_context>
chip_gen: v7x
topology: tpu7x:2x2x1
jax: 0.10.0
libtpu: 0.0.40
codegen_flags: <defaults>
</compile_context>

<pallas_src>
import functools
import math

import jax
import jax.numpy as jnp
from jax import lax
from jax.experimental import pallas as pl
from jax.experimental.pallas import tpu as pltpu

ADAPTER_DIM = 512            # ViT-B/32 branch of CustomCLIP.__init__
REDUCTION = 4                # Adapter(channel_in, reduction=4)
HID = ADAPTER_DIM // REDUCTION
NUM_DOMAINS = 3              # len(cfg.DATASET.SOURCE_DOMAINS) -> number of adapters
NUM_CLASSES = 7              # len(class_names)
ADAPTER_RATIO = 0.2          # hard-coded in forward()
EPS = 1e-12                  # guard against 0/0 in the L2 norms


def _round_up(x, m):
    return (x + m - 1) // m * m


def _custom_clip_kernel(scal_ref, img_ref, wenc_ref, w1_ref, w2_ref,
                        text_ref, out_ref, acc_ref, *, epi_rows):
    """Fused CustomCLIP forward (domain_labels=None branch).

    Grid: (batch tiles, K tiles); K (flattened-pixel axis) is the reduction.

    scal_ref (SMEM f32[1]):    beta * adapter_ratio (beta may be negative)
    img_ref  (TB, TK)   f32:   flattened image tile (cast to bf16 in-kernel)
    wenc_ref (TK, D)    bf16:  synthetic image-encoder projection tile
    w1_ref   (D, 3*HID) bf16:  the 3 adapter first Linears, concatenated
    w2_ref   (3, HID, D) bf16: adapter second Linears, pre-scaled by the
                               softmax(sim_scores) weights
    text_ref (D, 128)   bf16:  logit_scale.exp() * text_features['original'].T,
                               zero-padded to 128 lanes
    out_ref  (TB, 128)  f32:   logits (lane-dense; padded class columns ~ 0)
    acc_ref  (TB, D)    f32:   VMEM accumulator for the encoder matmul
    """
    k = pl.program_id(1)

    @pl.when(k == 0)
    def _():
        acc_ref[...] = jnp.zeros_like(acc_ref)

    # TODO(synk): the real clip_model.visual (pretrained ViT-B/32 tower) is an
    # external checkpoint; it is approximated here by one dense projection.
    acc_ref[...] += jnp.dot(img_ref[...].astype(jnp.bfloat16), wenc_ref[...],
                            preferred_element_type=jnp.float32)

    @pl.when(k == pl.num_programs(1) - 1)
    def _():
        beta_scaled = scal_ref[0]            # beta * adapter_ratio (sign kept)
        n_chunks = acc_ref.shape[0] // epi_rows

        def chunk(c, carry):
            r0 = pl.multiple_of(c * epi_rows, epi_rows)
            x = acc_ref[pl.ds(r0, epi_rows), :]                     # (R, D) f32
            # image_features /= image_features.norm(dim=-1, keepdim=True)
            f = x * lax.rsqrt(jnp.sum(x * x, axis=-1, keepdims=True) + EPS)

            # three adapters: first layers fused into a single MXU push
            h = jnp.maximum(
                jnp.dot(f.astype(jnp.bfloat16), w1_ref[...],
                        preferred_element_type=jnp.float32), 0.0)   # (R, 3*HID)
            h = h.astype(jnp.bfloat16)

            comb = jnp.zeros_like(f)
            for a in range(NUM_DOMAINS):                            # static unroll
                g = jnp.maximum(
                    jnp.dot(h[:, a * HID:(a + 1) * HID], w2_ref[a],
                            preferred_element_type=jnp.float32), 0.0)
                comb = comb + g      # softmax weight already folded into w2_ref

            feat = beta_scaled * comb + (1.0 - ADAPTER_RATIO) * f
            feat = feat * lax.rsqrt(jnp.sum(feat * feat, axis=-1, keepdims=True) + EPS)

            # logits = logit_scale.exp() * feat @ text.T (scale folded into text_ref)
            out_ref[pl.ds(r0, epi_rows), :] = jnp.dot(
                feat.astype(jnp.bfloat16), text_ref[...],
                preferred_element_type=jnp.float32)
            return carry

        lax.fori_loop(0, n_chunks, chunk, 0)

    # TODO(synk): the training branch (domain_labels is not None) with
    # per-sample adapter gather + concatenated per-domain logits is not
    # implemented in this kernel.


def pack_params(params):
    """One-time, init-time host-side folding of scalars into the weights."""
    # softmax(sim_scores) must be nonnegative for the relu(w*x) == w*relu(x)
    # folding below to be exact.
    assert bool(jnp.all(params["weights"] >= 0.0)), "softmax weights must be >= 0"
    # fuse the 3 adapter first layers into one (D, 3*HID) matrix
    w1_cat = jnp.concatenate([params["w1"][a] for a in range(NUM_DOMAINS)], axis=1)
    # fold nonnegative softmax weights into the second layers (exact under ReLU)
    w2_scaled = params["weights"][:, None, None] * params["w2"]
    # fold logit_scale.exp() into the (zero-padded, lane-dense, bf16) text matrix
    c_pad = _round_up(NUM_CLASSES, 128)
    text = params["logit_scale_exp"] * params["text_t"]              # (D, C)
    text = jnp.pad(text, ((0, 0), (0, c_pad - NUM_CLASSES)))
    # beta may be negative -> must stay outside the ReLUs; fold adapter_ratio in
    beta_scaled = (params["beta"] * ADAPTER_RATIO).reshape(1).astype(jnp.float32)
    return dict(
        w_enc=params["w_enc"].astype(jnp.bfloat16),
        w1_cat=w1_cat.astype(jnp.bfloat16),
        w2_scaled=w2_scaled.astype(jnp.bfloat16),
        text_pad=text.astype(jnp.bfloat16),
        beta_scaled=beta_scaled,
    )


def custom_clip_forward(image, packed):
    B = image.shape[0]
    img2d = image.reshape(B, -1).astype(jnp.float32)   # no bf16 round trip; cast in-kernel
    P = img2d.shape[1]
    D = ADAPTER_DIM
    c_pad = packed["text_pad"].shape[1]

    # batch tile: whole batch in one tile up to 256 rows (w_enc is re-streamed
    # once per batch tile, so bigger TB cuts the dominant HBM traffic)
    TB = min(256, _round_up(B, 8))
    B_pad = _round_up(B, TB)
    # K tile: large DMAs / few grid steps; total VMEM stays well under 32 MiB
    TK = min(2048, _round_up(P, 128))
    P_pad = _round_up(P, TK)

    # epilogue row-slab size (sublane-aligned) to bound vreg live ranges
    if TB % 32 == 0:
        epi_rows = 32
    elif TB % 16 == 0:
        epi_rows = 16
    else:
        epi_rows = 8

    if (B_pad, P_pad) != (B, P):
        img = jnp.pad(img2d, ((0, B_pad - B), (0, P_pad - P)))       # only when needed
    else:
        img = img2d
    w_enc = packed["w_enc"]
    if P_pad != w_enc.shape[0]:
        w_enc = jnp.pad(w_enc, ((0, P_pad - w_enc.shape[0]), (0, 0)))

    grid = (B_pad // TB, P_pad // TK)

    def make_call(const_weight_buffering):
        # constant-index weights don't benefit from double buffering
        wkw = {"pipeline_mode": pl.Buffered(1)} if const_weight_buffering else {}
        return pl.pallas_call(
            functools.partial(_custom_clip_kernel, epi_rows=epi_rows),
            out_shape=jax.ShapeDtypeStruct((B_pad, c_pad), jnp.float32),
            grid_spec=pltpu.PrefetchScalarGridSpec(
                num_scalar_prefetch=0,
                grid=grid,
                in_specs=[
                    pl.BlockSpec(memory_space=pltpu.MemorySpace.SMEM),            # beta*ratio
                    pl.BlockSpec((TB, TK), lambda i, k: (i, k)),                   # image tile
                    pl.BlockSpec((TK, D), lambda i, k: (k, 0)),                    # w_enc tile
                    pl.BlockSpec((D, NUM_DOMAINS * HID), lambda i, k: (0, 0), **wkw),     # fused w1
                    pl.BlockSpec((NUM_DOMAINS, HID, D), lambda i, k: (0, 0, 0), **wkw),   # scaled w2
                    pl.BlockSpec((D, c_pad), lambda i, k: (0, 0), **wkw),                 # scaled text
                ],
                out_specs=pl.BlockSpec((TB, c_pad), lambda i, k: (i, 0)),
                scratch_shapes=[pltpu.VMEM((TB, D), jnp.float32)],
            ),
            compiler_params=pltpu.CompilerParams(
                dimension_semantics=("parallel", "arbitrary"),
                vmem_limit_bytes=32 * 1024 * 1024,
            ),
        )

    args = (packed["beta_scaled"], img, w_enc, packed["w1_cat"],
            packed["w2_scaled"], packed["text_pad"])
    try:
        out = make_call(True)(*args)
    except Exception:
        # pl.Buffered(1) unsupported on this jax/Mosaic version -> default
        # double-buffered pipelining for the constant weights (still correct).
        out = make_call(False)(*args)

    return out[:B, :NUM_CLASSES]


def init_params(key, in_dim):
    """Deterministic synthetic parameters mirroring CustomCLIP.__init__ /
    initialize_text_features shapes."""
    k0, k1, k2, k3, k4 = jax.random.split(key, 5)

    # synthetic image-encoder projection (stand-in for clip_model.visual)
    w_enc = jax.random.normal(k0, (in_dim, ADAPTER_DIM), jnp.float32) / math.sqrt(in_dim)

    # one Adapter per source domain, bias-free Linears
    w1 = jax.random.normal(k1, (NUM_DOMAINS, ADAPTER_DIM, HID), jnp.float32) / math.sqrt(ADAPTER_DIM)
    w2 = jax.random.normal(k2, (NUM_DOMAINS, HID, ADAPTER_DIM), jnp.float32) / math.sqrt(HID)

    # synthetic, L2-normalized text features: 'original' + one per source domain
    tf = jax.random.normal(k3, (NUM_DOMAINS + 1, NUM_CLASSES, ADAPTER_DIM), jnp.float32)
    tf = tf / jnp.linalg.norm(tf, axis=-1, keepdims=True)
    # first target-domain text features
    tgt = jax.random.normal(k4, (NUM_CLASSES, ADAPTER_DIM), jnp.float32)
    tgt = tgt / jnp.linalg.norm(tgt, axis=-1, keepdims=True)

    # sim_scores = [cosine(v.flatten(), tar_f.flatten()) for v in text_features][1:]
    def cos(a, b):
        a = a.reshape(-1)
        b = b.reshape(-1)
        return jnp.dot(a, b) / (jnp.linalg.norm(a) * jnp.linalg.norm(b))

    sims = jnp.stack([cos(tf[i + 1], tgt) for i in range(NUM_DOMAINS)])
    weights = jax.nn.softmax(sims)                       # F.softmax(sim_scores, dim=0)
    beta = jnp.sum(sims) / NUM_DOMAINS                   # sum_sim / max_sim_sum

    logit_scale = jnp.float32(math.log(1.0 / 0.07))      # CLIP default init
    return dict(
        w_enc=w_enc,
        w1=w1,
        w2=w2,
        text_t=jnp.transpose(tf[0]),                     # text_features['original'].T -> (D, C)
        weights=weights,
        beta=beta,
        logit_scale_exp=jnp.exp(logit_scale),
    )


if __name__ == "__main__":
    key = jax.random.PRNGKey(0)
    k_img, k_par = jax.random.split(key)

    B, C, H, W = 2, 4, 16, 16                            # NCHW image input
    image = jax.random.normal(k_img, (B, C, H, W), jnp.float32)
    params = init_params(k_par, C * H * W)
    packed = pack_params(params)                         # init-time folding

    logits = custom_clip_forward(image, packed)
    logits = jax.block_until_ready(logits)
    assert logits.shape == (B, NUM_CLASSES), logits.shape
    assert bool(jnp.all(jnp.isfinite(logits)))
    print("KERNEL_OK")
</pallas_src>

<mosaic_0001>
module attributes {stable_mosaic.version = 11 : i64} {
  func.func @_custom_clip_kernel(%arg0: i32, %arg1: i32, %arg2: memref<1xf32, #tpu.memory_space<smem>>, %arg3: memref<8x1024xf32, #tpu.memory_space<vmem>>, %arg4: memref<1024x512xbf16, #tpu.memory_space<vmem>>, %arg5: memref<512x384xbf16, #tpu.memory_space<vmem>>, %arg6: memref<3x128x512xbf16, #tpu.memory_space<vmem>>, %arg7: memref<512x128xbf16, #tpu.memory_space<vmem>>, %arg8: memref<8x128xf32, #tpu.memory_space<vmem>>, %arg9: memref<8x512xf32, #tpu.memory_space<vmem>>) attributes {dimension_semantics = [#tpu.dimension_semantics<parallel>, #tpu.dimension_semantics<arbitrary>], iteration_bounds = array<i64: 1, 1>, scalar_prefetch = 0 : i64, scratch_operands = 1 : i64, tpu.core_type = #tpu.core_type<tc>, window_params = [{transform_indices = @transform_0, window_bounds = array<i64: 1>}, {transform_indices = @transform_1, window_bounds = array<i64: 8, 1024>}, {transform_indices = @transform_2, window_bounds = array<i64: 1024, 512>}, {pipeline_mode = #tpu.pipeline_mode<synchronous>, transform_indices = @transform_3, window_bounds = array<i64: 512, 384>}, {pipeline_mode = #tpu.pipeline_mode<synchronous>, transform_indices = @transform_4, window_bounds = array<i64: 3, 128, 512>}, {pipeline_mode = #tpu.pipeline_mode<synchronous>, transform_indices = @transform_5, window_bounds = array<i64: 512, 128>}, {transform_indices = @transform_6, window_bounds = array<i64: 8, 128>}]} {
    %c0_i32 = arith.constant 0 : i32
    %0 = arith.cmpi eq, %arg1, %c0_i32 : i32
    %1 = arith.extui %0 : i1 to i32
    %c0_i32_0 = arith.constant 0 : i32
    %2 = arith.cmpi ne, %1, %c0_i32_0 : i32
    scf.if %2 {
      %cst_10 = arith.constant 0.000000e+00 : f32
      %13 = vector.broadcast %cst_10 : f32 to vector<8x512xf32>
      %c0_11 = arith.constant 0 : index
      %c0_12 = arith.constant 0 : index
      %14 = vector.load %arg9[%c0_11, %c0_12] : memref<8x512xf32, #tpu.memory_space<vmem>>, vector<8x512xf32>
      tpu.vector_store %arg9[%c0_11, %c0_12], %13 {strides = array<i32>} : memref<8x512xf32, #tpu.memory_space<vmem>>, vector<8x512xf32>,
    } else {
    }
    %c0 = arith.constant 0 : index
    %c0_1 = arith.constant 0 : index
    %3 = vector.load %arg9[%c0, %c0_1] : memref<8x512xf32, #tpu.memory_space<vmem>>, vector<8x512xf32>
    %c0_2 = arith.constant 0 : index
    %c0_3 = arith.constant 0 : index
    %4 = vector.load %arg3[%c0_2, %c0_3] : memref<8x1024xf32, #tpu.memory_space<vmem>>, vector<8x1024xf32>
    %5 = arith.truncf %4 : vector<8x1024xf32> to vector<8x1024xbf16>
    %c0_4 = arith.constant 0 : index
    %c0_5 = arith.constant 0 : index
    %6 = vector.load %arg4[%c0_4, %c0_5] : memref<1024x512xbf16, #tpu.memory_space<vmem>>, vector<1024x512xbf16>
    %cst = arith.constant dense<0.000000e+00> : vector<8x512xf32>
    %7 = tpu.matmul %5, %6, %cst {dimension_numbers = #tpu.dot_dimension_numbers<[1], [0], [0], [1], [0, 0, 1, 1], [], []>} : vector<8x1024xbf16>, vector<1024x512xbf16>, vector<8x512xf32> -> vector<8x512xf32>
    %8 = arith.addf %3, %7 : vector<8x512xf32>
    %c0_6 = arith.constant 0 : index
    %c0_7 = arith.constant 0 : index
    %9 = vector.load %arg9[%c0_6, %c0_7] : memref<8x512xf32, #tpu.memory_space<vmem>>, vector<8x512xf32>
    tpu.vector_store %arg9[%c0_6, %c0_7], %8 {strides = array<i32>} : memref<8x512xf32, #tpu.memory_space<vmem>>, vector<8x512xf32>,
    %c0_i32_8 = arith.constant 0 : i32
    %10 = arith.cmpi eq, %arg1, %c0_i32_8 : i32
    %11 = arith.extui %10 : i1 to i32
    %c0_i32_9 = arith.constant 0 : i32
    %12 = arith.cmpi ne, %11, %c0_i32_9 : i32
    scf.if %12 {
      %c0_10 = arith.constant 0 : index
      %13 = memref.load %arg2[%c0_10] : memref<1xf32, #tpu.memory_space<smem>>
      %c0_i32_11 = arith.constant 0 : i32
      %c8_i32 = arith.constant 8 : i32
      %14 = arith.muli %c0_i32_11, %c8_i32 : i32
      %15 = tpu.assume_multiple %14, 8 : i32
      %16 = arith.index_cast %15 : i32 to index
      %c0_12 = arith.constant 0 : index
      %17 = vector.load %arg9[%16, %c0_12] : memref<8x512xf32, #tpu.memory_space<vmem>>, vector<8x512xf32>
      %18 = arith.mulf %17, %17 : vector<8x512xf32>
      %cst_13 = arith.constant dense<0.000000e+00> : vector<8xf32>
      %19 = vector.multi_reduction <add>, %18, %cst_13 [1] : vector<8x512xf32> to vector<8xf32>
      %20 = vector.shape_cast %19 : vector<8xf32> to vector<8x1xf32>
      %cst_14 = arith.constant 9.99999996E-13 : f32
      %21 = vector.broadcast %cst_14 : f32 to vector<8x1xf32>
      %22 = arith.addf %20, %21 : vector<8x1xf32>
      %23 = math.rsqrt %22 : vector<8x1xf32>
      %24 = vector.broadcast %23 : vector<8x1xf32> to vector<8x512xf32>
      %25 = arith.mulf %17, %24 : vector<8x512xf32>
      %26 = arith.truncf %25 : vector<8x512xf32> to vector<8x512xbf16>
      %c0_15 = arith.constant 0 : index
      %c0_16 = arith.constant 0 : index
      %27 = vector.load %arg5[%c0_15, %c0_16] : memref<512x384xbf16, #tpu.memory_space<vmem>>, vector<512x384xbf16>
      %cst_17 = arith.constant dense<0.000000e+00> : vector<8x384xf32>
      %28 = tpu.matmul %26, %27, %cst_17 {dimension_numbers = #tpu.dot_dimension_numbers<[1], [0], [0], [1], [0, 0, 1, 1], [], []>} : vector<8x512xbf16>, vector<512x384xbf16>, vector<8x384xf32> -> vector<8x384xf32>
      %cst_18 = arith.constant 0.000000e+00 : f32
      %29 = vector.broadcast %cst_18 : f32 to vector<8x384xf32>
      %30 = arith.maximumf %28, %29 : vector<8x384xf32>
      %31 = arith.truncf %30 : vector<8x384xf32> to vector<8x384xbf16>
      %cst_19 = arith.constant 0.000000e+00 : f32
      %32 = vector.broadcast %cst_19 : f32 to vector<8x512xf32>
      %33 = vector.extract_strided_slice %31 {offsets = [0, 0], sizes = [8, 128], strides = [1, 1]} : vector<8x384xbf16> to vector<8x128xbf16>
      %c0_20 = arith.constant 0 : index
      %c0_21 = arith.constant 0 : index
      %c0_22 = arith.constant 0 : index
      %34 = vector.load %arg6[%c0_20, %c0_21, %c0_22] : memref<3x128x512xbf16, #tpu.memory_space<vmem>>, vector<1x128x512xbf16>
      %35 = vector.shape_cast %34 : vector<1x128x512xbf16> to vector<128x512xbf16>
      %cst_23 = arith.constant dense<0.000000e+00> : vector<8x512xf32>
      %36 = tpu.matmul %33, %35, %cst_23 {dimension_numbers = #tpu.dot_dimension_numbers<[1], [0], [0], [1], [0, 0, 1, 1], [], []>} : vector<8x128xbf16>, vector<128x512xbf16>, vector<8x512xf32> -> vector<8x512xf32>
      %cst_24 = arith.constant 0.000000e+00 : f32
      %37 = vector.broadcast %cst_24 : f32 to vector<8x512xf32>
      %38 = arith.maximumf %36, %37 : vector<8x512xf32>
      %39 = arith.addf %32, %38 : vector<8x512xf32>
      %40 = vector.extract_strided_slice %31 {offsets = [0, 128], sizes = [8, 128], strides = [1, 1]} : vector<8x384xbf16> to vector<8x128xbf16>
      %c1 = arith.constant 1 : index
      %c0_25 = arith.constant 0 : index
      %c0_26 = arith.constant 0 : index
      %41 = vector.load %arg6[%c1, %c0_25, %c0_26] : memref<3x128x512xbf16, #tpu.memory_space<vmem>>, vector<1x128x512xbf16>
      %42 = vector.shape_cast %41 : vector<1x128x512xbf16> to vector<128x512xbf16>
      %cst_27 = arith.constant dense<0.000000e+00> : vector<8x512xf32>
      %43 = tpu.matmul %40, %42, %cst_27 {dimension_numbers = #tpu.dot_dimension_numbers<[1], [0], [0], [1], [0, 0, 1, 1], [], []>} : vector<8x128xbf16>, vector<128x512xbf16>, vector<8x512xf32> -> vector<8x512xf32>
      %cst_28 = arith.constant 0.000000e+00 : f32
      %44 = vector.broadcast %cst_28 : f32 to vector<8x512xf32>
      %45 = arith.maximumf %43, %44 : vector<8x512xf32>
      %46 = arith.addf %39, %45 : vector<8x512xf32>
      %47 = vector.extract_strided_slice %31 {offsets = [0, 256], sizes = [8, 128], strides = [1, 1]} : vector<8x384xbf16> to vector<8x128xbf16>
      %c2 = arith.constant 2 : index
      %c0_29 = arith.constant 0 : index
      %c0_30 = arith.constant 0 : index
      %48 = vector.load %arg6[%c2, %c0_29, %c0_30] : memref<3x128x512xbf16, #tpu.memory_space<vmem>>, vector<1x128x512xbf16>
      %49 = vector.shape_cast %48 : vector<1x128x512xbf16> to vector<128x512xbf16>
      %cst_31 = arith.constant dense<0.000000e+00> : vector<8x512xf32>
      %50 = tpu.matmul %47, %49, %cst_31 {dimension_numbers = #tpu.dot_dimension_numbers<[1], [0], [0], [1], [0, 0, 1, 1], [], []>} : vector<8x128xbf16>, vector<128x512xbf16>, vector<8x512xf32> -> vector<8x512xf32>
      %cst_32 = arith.constant 0.000000e+00 : f32
      %51 = vector.broadcast %cst_32 : f32 to vector<8x512xf32>
      %52 = arith.maximumf %50, %51 : vector<8x512xf32>
      %53 = arith.addf %46, %52 : vector<8x512xf32>
      %54 = vector.broadcast %13 : f32 to vector<8x512xf32>
      %55 = arith.mulf %54, %53 : vector<8x512xf32>
      %cst_33 = arith.constant 8.000000e-01 : f32
      %56 = vector.broadcast %cst_33 : f32 to vector<8x512xf32>
      %57 = arith.mulf %56, %25 : vector<8x512xf32>
      %58 = arith.addf %55, %57 : vector<8x512xf32>
      %59 = arith.mulf %58, %58 : vector<8x512xf32>
      %cst_34 = arith.constant dense<0.000000e+00> : vector<8xf32>
      %60 = vector.multi_reduction <add>, %59, %cst_34 [1] : vector<8x512xf32> to vector<8xf32>
      %61 = vector.shape_cast %60 : vector<8xf32> to vector<8x1xf32>
      %cst_35 = arith.constant 9.99999996E-13 : f32
      %62 = vector.broadcast %cst_35 : f32 to vector<8x1xf32>
      %63 = arith.addf %61, %62 : vector<8x1xf32>
      %64 = math.rsqrt %63 : vector<8x1xf32>
      %65 = vector.broadcast %64 : vector<8x1xf32> to vector<8x512xf32>
      %66 = arith.mulf %58, %65 : vector<8x512xf32>
      %67 = arith.truncf %66 : vector<8x512xf32> to vector<8x512xbf16>
      %c0_36 = arith.constant 0 : index
      %c0_37 = arith.constant 0 : index
      %68 = vector.load %arg7[%c0_36, %c0_37] : memref<512x128xbf16, #tpu.memory_space<vmem>>, vector<512x128xbf16>
      %cst_38 = arith.constant dense<0.000000e+00> : vector<8x128xf32>
      %69 = tpu.matmul %67, %68, %cst_38 {dimension_numbers = #tpu.dot_dimension_numbers<[1], [0], [0], [1], [0, 0, 1, 1], [], []>} : vector<8x512xbf16>, vector<512x128xbf16>, vector<8x128xf32> -> vector<8x128xf32>
      %70 = arith.index_cast %15 : i32 to index
      %c0_39 = arith.constant 0 : index
      %71 = vector.load %arg8[%70, %c0_39] : memref<8x128xf32, #tpu.memory_space<vmem>>, vector<8x128xf32>
      tpu.vector_store %arg8[%70, %c0_39], %69 {strides = array<i32>} : memref<8x128xf32, #tpu.memory_space<vmem>>, vector<8x128xf32>,
      %c1_i32 = arith.constant 1 : i32
    } else {
    }
    return
  }
  func.func @transform_0(%arg0: i32, %arg1: i32) -> i32 {
    %c0_i32 = arith.constant 0 : i32
    %c0_i32_0 = arith.constant 0 : i32
    return %c0_i32 : i32
  }
  func.func @transform_1(%arg0: i32, %arg1: i32) -> (i32, i32) {
    %c0_i32 = arith.constant 0 : i32
    return %arg0, %arg1 : i32, i32
  }
  func.func @transform_2(%arg0: i32, %arg1: i32) -> (i32, i32) {
    %c0_i32 = arith.constant 0 : i32
    %c0_i32_0 = arith.constant 0 : i32
    return %arg1, %c0_i32 : i32, i32
  }
  func.func @transform_3(%arg0: i32, %arg1: i32) -> (i32, i32) {
    %c0_i32 = arith.constant 0 : i32
    %c0_i32_0 = arith.constant 0 : i32
    %c0_i32_1 = arith.constant 0 : i32
    return %c0_i32, %c0_i32_0 : i32, i32
  }
  func.func @transform_4(%arg0: i32, %arg1: i32) -> (i32, i32, i32) {
    %c0_i32 = arith.constant 0 : i32
    %c0_i32_0 = arith.constant 0 : i32
    %c0_i32_1 = arith.constant 0 : i32
    %c0_i32_2 = arith.constant 0 : i32
    return %c0_i32, %c0_i32_0, %c0_i32_1 : i32, i32, i32
  }
  func.func @transform_5(%arg0: i32, %arg1: i32) -> (i32, i32) {
    %c0_i32 = arith.constant 0 : i32
    %c0_i32_0 = arith.constant 0 : i32
    %c0_i32_1 = arith.constant 0 : i32
    return %c0_i32, %c0_i32_0 : i32, i32
  }
  func.func @transform_6(%arg0: i32, %arg1: i32) -> (i32, i32) {
    %c0_i32 = arith.constant 0 : i32
    %c0_i32_0 = arith.constant 0 : i32
    return %arg0, %c0_i32 : i32, i32
  }
}

module attributes {stable_mosaic.version = 11 : i64} {
  func.func @_custom_clip_kernel(%arg0: i32, %arg1: i32, %arg2: memref<1xf32, #tpu.memory_space<smem>>, %arg3: memref<8x1024xf32, #tpu.memory_space<vmem>>, %arg4: memref<1024x512xbf16, #tpu.memory_space<vmem>>, %arg5: memref<512x384xbf16, #tpu.memory_space<vmem>>, %arg6: memref<3x128x512xbf16, #tpu.memory_space<vmem>>, %arg7: memref<512x128xbf16, #tpu.memory_space<vmem>>, %arg8: memref<8x128xf32, #tpu.memory_space<vmem>>, %arg9: memref<8x512xf32, #tpu.memory_space<vmem>>) attributes {dimension_semantics = [#tpu.dimension_semantics<parallel>, #tpu.dimension_semantics<arbitrary>], iteration_bounds = array<i64: 1, 1>, scalar_prefetch = 0 : i64, scratch_operands = 1 : i64, tpu.core_type = #tpu.core_type<tc>, window_params = [{transform_indices = @transform_0, window_bounds = array<i64: 1>}, {transform_indices = @transform_1, window_bounds = array<i64: 8, 1024>}, {transform_indices = @transform_2, window_bounds = array<i64: 1024, 512>}, {pipeline_mode = #tpu.pipeline_mode<synchronous>, transform_indices = @transform_3, window_bounds = array<i64: 512, 384>}, {pipeline_mode = #tpu.pipeline_mode<synchronous>, transform_indices = @transform_4, window_bounds = array<i64: 3, 128, 512>}, {pipeline_mode = #tpu.pipeline_mode<synchronous>, transform_indices = @transform_5, window_bounds = array<i64: 512, 128>}, {transform_indices = @transform_6, window_bounds = array<i64: 8, 128>}]} {
    %c0_i32 = arith.constant 0 : i32
    %0 = arith.cmpi eq, %arg1, %c0_i32 : i32
    %1 = arith.extui %0 : i1 to i32
    %c0_i32_0 = arith.constant 0 : i32
    %2 = arith.cmpi ne, %1, %c0_i32_0 : i32
    scf.if %2 {
      %cst_10 = arith.constant 0.000000e+00 : f32
      %13 = vector.broadcast %cst_10 : f32 to vector<8x512xf32>
      %c0_11 = arith.constant 0 : index
      %c0_12 = arith.constant 0 : index
      %14 = vector.load %arg9[%c0_11, %c0_12] : memref<8x512xf32, #tpu.memory_space<vmem>>, vector<8x512xf32>
      tpu.vector_store %arg9[%c0_11, %c0_12], %13 {strides = array<i32>} : memref<8x512xf32, #tpu.memory_space<vmem>>, vector<8x512xf32>,
    } else {
    }
    %c0 = arith.constant 0 : index
    %c0_1 = arith.constant 0 : index
    %3 = vector.load %arg9[%c0, %c0_1] : memref<8x512xf32, #tpu.memory_space<vmem>>, vector<8x512xf32>
    %c0_2 = arith.constant 0 : index
    %c0_3 = arith.constant 0 : index
    %4 = vector.load %arg3[%c0_2, %c0_3] : memref<8x1024xf32, #tpu.memory_space<vmem>>, vector<8x1024xf32>
    %5 = arith.truncf %4 : vector<8x1024xf32> to vector<8x1024xbf16>
    %c0_4 = arith.constant 0 : index
    %c0_5 = arith.constant 0 : index
    %6 = vector.load %arg4[%c0_4, %c0_5] : memref<1024x512xbf16, #tpu.memory_space<vmem>>, vector<1024x512xbf16>
    %cst = arith.constant dense<0.000000e+00> : vector<8x512xf32>
    %7 = tpu.matmul %5, %6, %cst {dimension_numbers = #tpu.dot_dimension_numbers<[1], [0], [0], [1], [0, 0, 1, 1], [], []>} : vector<8x1024xbf16>, vector<1024x512xbf16>, vector<8x512xf32> -> vector<8x512xf32>
    %8 = arith.addf %3, %7 : vector<8x512xf32>
    %c0_6 = arith.constant 0 : index
    %c0_7 = arith.constant 0 : index
    %9 = vector.load %arg9[%c0_6, %c0_7] : memref<8x512xf32, #tpu.memory_space<vmem>>, vector<8x512xf32>
    tpu.vector_store %arg9[%c0_6, %c0_7], %8 {strides = array<i32>} : memref<8x512xf32, #tpu.memory_space<vmem>>, vector<8x512xf32>,
    %c0_i32_8 = arith.constant 0 : i32
    %10 = arith.cmpi eq, %arg1, %c0_i32_8 : i32
    %11 = arith.extui %10 : i1 to i32
    %c0_i32_9 = arith.constant 0 : i32
    %12 = arith.cmpi ne, %11, %c0_i32_9 : i32
    scf.if %12 {
      %c0_10 = arith.constant 0 : index
      %13 = memref.load %arg2[%c0_10] : memref<1xf32, #tpu.memory_space<smem>>
      %c0_i32_11 = arith.constant 0 : i32
      %c8_i32 = arith.constant 8 : i32
      %14 = arith.muli %c0_i32_11, %c8_i32 : i32
      %15 = tpu.assume_multiple %14, 8 : i32
      %16 = arith.index_cast %15 : i32 to index
      %c0_12 = arith.constant 0 : index
      %17 = vector.load %arg9[%16, %c0_12] : memref<8x512xf32, #tpu.memory_space<vmem>>, vector<8x512xf32>
      %18 = arith.mulf %17, %17 : vector<8x512xf32>
      %cst_13 = arith.constant dense<0.000000e+00> : vector<8xf32>
      %19 = vector.multi_reduction <add>, %18, %cst_13 [1] : vector<8x512xf32> to vector<8xf32>
      %20 = vector.shape_cast %19 : vector<8xf32> to vector<8x1xf32>
      %cst_14 = arith.constant 9.99999996E-13 : f32
      %21 = vector.broadcast %cst_14 : f32 to vector<8x1xf32>
      %22 = arith.addf %20, %21 : vector<8x1xf32>
      %23 = math.rsqrt %22 : vector<8x1xf32>
      %24 = vector.broadcast %23 : vector<8x1xf32> to vector<8x512xf32>
      %25 = arith.mulf %17, %24 : vector<8x512xf32>
      %26 = arith.truncf %25 : vector<8x512xf32> to vector<8x512xbf16>
      %c0_15 = arith.constant 0 : index
      %c0_16 = arith.constant 0 : index
      %27 = vector.load %arg5[%c0_15, %c0_16] : memref<512x384xbf16, #tpu.memory_space<vmem>>, vector<512x384xbf16>
      %cst_17 = arith.constant dense<0.000000e+00> : vector<8x384xf32>
      %28 = tpu.matmul %26, %27, %cst_17 {dimension_numbers = #tpu.dot_dimension_numbers<[1], [0], [0], [1], [0, 0, 1, 1], [], []>} : vector<8x512xbf16>, vector<512x384xbf16>, vector<8x384xf32> -> vector<8x384xf32>
      %cst_18 = arith.constant 0.000000e+00 : f32
      %29 = vector.broadcast %cst_18 : f32 to vector<8x384xf32>
      %30 = arith.maximumf %28, %29 : vector<8x384xf32>
      %31 = arith.truncf %30 : vector<8x384xf32> to vector<8x384xbf16>
      %cst_19 = arith.constant 0.000000e+00 : f32
      %32 = vector.broadcast %cst_19 : f32 to vector<8x512xf32>
      %33 = vector.extract_strided_slice %31 {offsets = [0, 0], sizes = [8, 128], strides = [1, 1]} : vector<8x384xbf16> to vector<8x128xbf16>
      %c0_20 = arith.constant 0 : index
      %c0_21 = arith.constant 0 : index
      %c0_22 = arith.constant 0 : index
      %34 = vector.load %arg6[%c0_20, %c0_21, %c0_22] : memref<3x128x512xbf16, #tpu.memory_space<vmem>>, vector<1x128x512xbf16>
      %35 = vector.shape_cast %34 : vector<1x128x512xbf16> to vector<128x512xbf16>
      %cst_23 = arith.constant dense<0.000000e+00> : vector<8x512xf32>
      %36 = tpu.matmul %33, %35, %cst_23 {dimension_numbers = #tpu.dot_dimension_numbers<[1], [0], [0], [1], [0, 0, 1, 1], [], []>} : vector<8x128xbf16>, vector<128x512xbf16>, vector<8x512xf32> -> vector<8x512xf32>
      %cst_24 = arith.constant 0.000000e+00 : f32
      %37 = vector.broadcast %cst_24 : f32 to vector<8x512xf32>
      %38 = arith.maximumf %36, %37 : vector<8x512xf32>
      %39 = arith.addf %32, %38 : vector<8x512xf32>
      %40 = vector.extract_strided_slice %31 {offsets = [0, 128], sizes = [8, 128], strides = [1, 1]} : vector<8x384xbf16> to vector<8x128xbf16>
      %c1 = arith.constant 1 : index
      %c0_25 = arith.constant 0 : index
      %c0_26 = arith.constant 0 : index
      %41 = vector.load %arg6[%c1, %c0_25, %c0_26] : memref<3x128x512xbf16, #tpu.memory_space<vmem>>, vector<1x128x512xbf16>
      %42 = vector.shape_cast %41 : vector<1x128x512xbf16> to vector<128x512xbf16>
      %cst_27 = arith.constant dense<0.000000e+00> : vector<8x512xf32>
      %43 = tpu.matmul %40, %42, %cst_27 {dimension_numbers = #tpu.dot_dimension_numbers<[1], [0], [0], [1], [0, 0, 1, 1], [], []>} : vector<8x128xbf16>, vector<128x512xbf16>, vector<8x512xf32> -> vector<8x512xf32>
      %cst_28 = arith.constant 0.000000e+00 : f32
      %44 = vector.broadcast %cst_28 : f32 to vector<8x512xf32>
      %45 = arith.maximumf %43, %44 : vector<8x512xf32>
      %46 = arith.addf %39, %45 : vector<8x512xf32>
      %47 = vector.extract_strided_slice %31 {offsets = [0, 256], sizes = [8, 128], strides = [1, 1]} : vector<8x384xbf16> to vector<8x128xbf16>
      %c2 = arith.constant 2 : index
      %c0_29 = arith.constant 0 : index
      %c0_30 = arith.constant 0 : index
      %48 = vector.load %arg6[%c2, %c0_29, %c0_30] : memref<3x128x512xbf16, #tpu.memory_space<vmem>>, vector<1x128x512xbf16>
      %49 = vector.shape_cast %48 : vector<1x128x512xbf16> to vector<128x512xbf16>
      %cst_31 = arith.constant dense<0.000000e+00> : vector<8x512xf32>
      %50 = tpu.matmul %47, %49, %cst_31 {dimension_numbers = #tpu.dot_dimension_numbers<[1], [0], [0], [1], [0, 0, 1, 1], [], []>} : vector<8x128xbf16>, vector<128x512xbf16>, vector<8x512xf32> -> vector<8x512xf32>
      %cst_32 = arith.constant 0.000000e+00 : f32
      %51 = vector.broadcast %cst_32 : f32 to vector<8x512xf32>
      %52 = arith.maximumf %50, %51 : vector<8x512xf32>
      %53 = arith.addf %46, %52 : vector<8x512xf32>
      %54 = vector.broadcast %13 : f32 to vector<8x512xf32>
      %55 = arith.mulf %54, %53 : vector<8x512xf32>
      %cst_33 = arith.constant 8.000000e-01 : f32
      %56 = vector.broadcast %cst_33 : f32 to vector<8x512xf32>
      %57 = arith.mulf %56, %25 : vector<8x512xf32>
      %58 = arith.addf %55, %57 : vector<8x512xf32>
      %59 = arith.mulf %58, %58 : vector<8x512xf32>
      %cst_34 = arith.constant dense<0.000000e+00> : vector<8xf32>
      %60 = vector.multi_reduction <add>, %59, %cst_34 [1] : vector<8x512xf32> to vector<8xf32>
      %61 = vector.shape_cast %60 : vector<8xf32> to vector<8x1xf32>
      %cst_35 = arith.constant 9.99999996E-13 : f32
      %62 = vector.broadcast %cst_35 : f32 to vector<8x1xf32>
      %63 = arith.addf %61, %62 : vector<8x1xf32>
      %64 = math.rsqrt %63 : vector<8x1xf32>
      %65 = vector.broadcast %64 : vector<8x1xf32> to vector<8x512xf32>
      %66 = arith.mulf %58, %65 : vector<8x512xf32>
      %67 = arith.truncf %66 : vector<8x512xf32> to vector<8x512xbf16>
      %c0_36 = arith.constant 0 : index
      %c0_37 = arith.constant 0 : index
      %68 = vector.load %arg7[%c0_36, %c0_37] : memref<512x128xbf16, #tpu.memory_space<vmem>>, vector<512x128xbf16>
      %cst_38 = arith.constant dense<0.000000e+00> : vector<8x128xf32>
      %69 = tpu.matmul %67, %68, %cst_38 {dimension_numbers = #tpu.dot_dimension_numbers<[1], [0], [0], [1], [0, 0, 1, 1], [], []>} : vector<8x512xbf16>, vector<512x128xbf16>, vector<8x128xf32> -> vector<8x128xf32>
      %70 = arith.index_cast %15 : i32 to index
      %c0_39 = arith.constant 0 : index
      %71 = vector.load %arg8[%70, %c0_39] : memref<8x128xf32, #tpu.memory_space<vmem>>, vector<8x128xf32>
      tpu.vector_store %arg8[%70, %c0_39], %69 {strides = array<i32>} : memref<8x128xf32, #tpu.memory_space<vmem>>, vector<8x128xf32>,
      %c1_i32 = arith.constant 1 : i32
    } else {
    }
    return
  }
  func.func @transform_0(%arg0: i32, %arg1: i32) -> i32 {
    %c0_i32 = arith.constant 0 : i32
    %c0_i32_0 = arith.constant 0 : i32
    return %c0_i32 : i32
  }
  func.func @transform_1(%arg0: i32, %arg1: i32) -> (i32, i32) {
    %c0_i32 = arith.constant 0 : i32
    return %arg0, %arg1 : i32, i32
  }
  func.func @transform_2(%arg0: i32, %arg1: i32) -> (i32, i32) {
    %c0_i32 = arith.constant 0 : i32
    %c0_i32_0 = arith.constant 0 : i32
    return %arg1, %c0_i32 : i32, i32
  }
  func.func @transform_3(%arg0: i32, %arg1: i32) -> (i32, i32) {
    %c0_i32 = arith.constant 0 : i32
    %c0_i32_0 = arith.constant 0 : i32
    %c0_i32_1 = arith.constant 0 : i32
    return %c0_i32, %c0_i32_0 : i32, i32
  }
  func.func @transform_4(%arg0: i32, %arg1: i32) -> (i32, i32, i32) {
    %c0_i32 = arith.constant 0 : i32
    %c0_i32_0 = arith.constant 0 : i32
    %c0_i32_1 = arith.constant 0 : i32
    %c0_i32_2 = arith.constant 0 : i32
    return %c0_i32, %c0_i32_0, %c0_i32_1 : i32, i32, i32
  }
  func.func @transform_5(%arg0: i32, %arg1: i32) -> (i32, i32) {
    %c0_i32 = arith.constant 0 : i32
    %c0_i32_0 = arith.constant 0 : i32
    %c0_i32_1 = arith.constant 0 : i32
    return %c0_i32, %c0_i32_0 : i32, i32
  }
  func.func @transform_6(%arg0: i32, %arg1: i32) -> (i32, i32) {
    %c0_i32 = arith.constant 0 : i32
    %c0_i32_0 = arith.constant 0 : i32
    return %arg0, %c0_i32 : i32, i32
  }
}

</mosaic_0001>

<llo_original>
// kernel: tpu_custom_call.1
$region0: #{tpu_custom_call.1}
  #allocation0 [shape = 'u32[]', space=smem, size = 0x4, offset = 0x4, fixed_abs, tag = 'smem constant byte address 0x4 - core index']
  #allocation1 [shape = 'u32[144,128]{1,0:T(1,128)}', space=vmem, size = 0x12000, scoped, tag = 'internal scratch']
  #allocation2 [shape = 'f32[8,512]{1,0:T(8,128)}', space=vmem, size = 0x4000, scoped, tag = 'scratch operand']
  #allocation3 [shape = 'f32[1]{0:T(128)S(6)}', space=smem, size = 0x200, scoped, tag = 'scoped memory for tpu_custom_call.1']
  %s0 = inlined_call_operand.<no memory space> [shape: f32[1], index: 0, kind: input, shape index: {}]
  %s1 = inlined_call_operand.hbm [shape: f32[8,1024], index: 1, kind: input, shape index: {}]
  %s2 = inlined_call_operand.hbm [shape: bf16[1024,512], index: 2, kind: input, shape index: {}]
  %s3 = inlined_call_operand.hbm [shape: bf16[512,384], index: 3, kind: input, shape index: {}]
  %s4 = inlined_call_operand.hbm [shape: bf16[3,128,512], index: 4, kind: input, shape index: {}]
  %s5 = inlined_call_operand.hbm [shape: bf16[512,128], index: 5, kind: input, shape index: {}]
  %s6 = inlined_call_operand.hbm [shape: f32[8,128], index: 6, kind: output, shape index: {}]
  %s7 = sld [smem:[#allocation0]]
  $region62: #{tpu_custom_call.1} parent=0
    _
  %s9 = ssub.s32 1, %s7
  %s10 = scalar_select 0, %s9, %s7
  %11 = sst [smem:[#allocation3]] %s0
  $region1: #{tpu_custom_call.1} parent=0
    #allocation4 [shape = 'u8[32768]{0}', space=vmem, size = 0x8000, scoped, tag = 'input window, operand 1, single buffered']
    #allocation5 [shape = 's32[1]{0}', space=sflag, size = 0x4, scoped, tag = 'scoped memory for tpu_custom_call.1']
    #allocation6 [shape = 's32[1]{0}', space=sflag, size = 0x4, scoped, tag = 'scoped memory for tpu_custom_call.1']
    #allocation7 [shape = 'u8[1048576]{0}', space=vmem, size = 0x100000, scoped, tag = 'input window, operand 2, single buffered']
    #allocation8 [shape = 's32[1]{0}', space=sflag, size = 0x4, scoped, tag = 'scoped memory for tpu_custom_call.1']
    #allocation9 [shape = 'u8[393216]{0}', space=vmem, size = 0x60000, scoped, tag = 'input window, operand 3, single buffered']
    #allocation10 [shape = 'u8[393216]{0}', space=vmem, size = 0x60000, scoped, tag = 'input window, operand 4, single buffered']
    #allocation11 [shape = 's32[1]{0}', space=sflag, size = 0x4, scoped, tag = 'scoped memory for tpu_custom_call.1']
    #allocation12 [shape = 'u8[131072]{0}', space=vmem, size = 0x20000, scoped, tag = 'input window, operand 5, single buffered']
    #allocation13 [shape = 'u8[4096]{0}', space=vmem, size = 0x1000, scoped, tag = 'output window, operand 0, single buffered']
    %12 = vsyncpa [#allocation5], 0
    %13 = vsyncpa [#allocation8], 0
    %14 = vsyncpa [#allocation11], 0
    %15 = vsyncpa [#allocation6], 0
    // Predicated region
    $region2: #{tpu_custom_call.1} parent=1 // pred_check
      _
    $region3: #{tpu_custom_call.1} parent=1 // pred_check_branch
      %17 = sbr.rel (0) target = $region5
    $region4: #{tpu_custom_call.1} parent=1 // pred_region
      _
    $region5: #{tpu_custom_call.1} parent=1 // pred_fallthru
      _
    // Predicated region
    $region6: #{tpu_custom_call.1} parent=1 // pred_check
      _
    $region7: #{tpu_custom_call.1} parent=1 // pred_check_branch
      %19 = sbr.rel (0) target = $region9
    $region8: #{tpu_custom_call.1} parent=1 // pred_region
      %s21 = ssub.s32 1024, 1024
      %22 = vsyncadd [#allocation5], %s21
      %s24 = sshll.u32 [#allocation4], 4
      %s25 = int_to_ptr.vmem [resolvable:$true] %s24
      %27 = dma.hbm_to_vmem [thread:$0]  %s1, 1024, %s25, [#allocation5]
    $region9: #{tpu_custom_call.1} parent=1 // pred_fallthru
      _
    // Predicated region
    $region10: #{tpu_custom_call.1} parent=1 // pred_check
      _
    $region11: #{tpu_custom_call.1} parent=1 // pred_check_branch
      %29 = sbr.rel (0) target = $region13
    $region12: #{tpu_custom_call.1} parent=1 // pred_region
      %s31 = ssub.s32 32768, 32768
      %32 = vsyncadd [#allocation8], %s31
      %s33 = sshll.u32 [#allocation7], 4
      %s34 = int_to_ptr.vmem [resolvable:$true] %s33
      %39 = dma.hbm_to_vmem [thread:$0]  %s2, 32768, %s34, [#allocation8], 256, 256, 16
    $region13: #{tpu_custom_call.1} parent=1 // pred_fallthru
      _
    // Predicated region
    $region14: #{tpu_custom_call.1} parent=1 // pred_check
      _
    $region15: #{tpu_custom_call.1} parent=1 // pred_check_branch
      %41 = sbr.rel (0) target = $region17
    $region16: #{tpu_custom_call.1} parent=1 // pred_region
      %s43 = ssub.s32 12288, 12288
      %44 = vsyncadd [#allocation8], %s43
      %s45 = sshll.u32 [#allocation9], 4
      %s46 = int_to_ptr.vmem [resolvable:$true] %s45
      %51 = dma.hbm_to_vmem [thread:$0]  %s3, 12288, %s46, [#allocation8], 192, 192, 12
    $region17: #{tpu_custom_call.1} parent=1 // pred_fallthru
      _
    // Predicated region
    $region18: #{tpu_custom_call.1} parent=1 // pred_check
      _
    $region19: #{tpu_custom_call.1} parent=1 // pred_check_branch
      %53 = sbr.rel (0) target = $region21
    $region20: #{tpu_custom_call.1} parent=1 // pred_region
      %s55 = ssub.s32 12288, 12288
      %56 = vsyncadd [#allocation11], %s55
      %s57 = sshll.u32 [#allocation10], 4
      %s58 = int_to_ptr.vmem [resolvable:$true] %s57
      %63 = dma.hbm_to_vmem [thread:$0]  %s4, 12288, %s58, [#allocation11], 256, 256, 16
    $region21: #{tpu_custom_call.1} parent=1 // pred_fallthru
      _
    // Predicated region
    $region22: #{tpu_custom_call.1} parent=1 // pred_check
      _
    $region23: #{tpu_custom_call.1} parent=1 // pred_check_branch
      %65 = sbr.rel (0) target = $region25
    $region24: #{tpu_custom_call.1} parent=1 // pred_region
      %s67 = ssub.s32 4096, 4096
      %68 = vsyncadd [#allocation11], %s67
      %s69 = sshll.u32 [#allocation12], 4
      %s70 = int_to_ptr.vmem [resolvable:$true] %s69
      %75 = dma.hbm_to_vmem [thread:$0]  %s5, 4096, %s70, [#allocation11], 64, 64, 4
    $region25: #{tpu_custom_call.1} parent=1 // pred_fallthru
      _
    // Predicated region
    $region26: #{tpu_custom_call.1} parent=1 // pred_check
      _
    $region27: #{tpu_custom_call.1} parent=1 // pred_check_branch
      %77 = sbr.rel (0) target = $region29
    $region28: #{tpu_custom_call.1} parent=1 // pred_region
      %78 = dma.done [#allocation5], 1024
    $region29: #{tpu_custom_call.1} parent=1 // pred_fallthru
      _
    // Predicated region
    $region30: #{tpu_custom_call.1} parent=1 // pred_check
      _
    $region31: #{tpu_custom_call.1} parent=1 // pred_check_branch
      %80 = sbr.rel (0) target = $region33
    $region32: #{tpu_custom_call.1} parent=1 // pred_region
      %81 = dma.done [#allocation8], 32768
    $region33: #{tpu_custom_call.1} parent=1 // pred_fallthru
      _
    // Predicated region
    $region34: #{tpu_custom_call.1} parent=1 // pred_check
      _
    $region35: #{tpu_custom_call.1} parent=1 // pred_check_branch
      %83 = sbr.rel (0) target = $region37
    $region36: #{tpu_custom_call.1} parent=1 // pred_region
      %84 = dma.done [#allocation8], 12288
    $region37: #{tpu_custom_call.1} parent=1 // pred_fallthru
      _
    // Predicated region
    $region38: #{tpu_custom_call.1} parent=1 // pred_check
      _
    $region39: #{tpu_custom_call.1} parent=1 // pred_check_branch
      %86 = sbr.rel (0) target = $region41
    $region40: #{tpu_custom_call.1} parent=1 // pred_region
      %87 = dma.done [#allocation11], 12288
    $region41: #{tpu_custom_call.1} parent=1 // pred_fallthru
      _
    // Predicated region
    $region42: #{tpu_custom_call.1} parent=1 // pred_check
      _
    $region43: #{tpu_custom_call.1} parent=1 // pred_check_branch
      %89 = sbr.rel (0) target = $region45
    $region44: #{tpu_custom_call.1} parent=1 // pred_region
      %90 = dma.done [#allocation11], 4096
    $region45: #{tpu_custom_call.1} parent=1 // pred_fallthru
      _
    %p92 = scmp.eq.s32.totalorder 0, 0
    // Predicated region
    $region46: #{tpu_custom_call.1} parent=1 // pred_check
      %p93 = pneg %p92
    $region47: #{tpu_custom_call.1} parent=1 // pred_check_branch
      %95 = sbr.rel (%p93) target = $region49
    $region48: #{tpu_custom_call.1} parent=1 // pred_region
      %96 = vst [vmem:[#allocation2] sm:$0xff] 0.0
      %97 = vst [vmem:[#allocation2 + $0x8] sm:$0xff] 0.0
      %98 = vst [vmem:[#allocation2 + $0x10] sm:$0xff] 0.0
      %99 = vst [vmem:[#allocation2 + $0x18] sm:$0xff] 0.0
    $region49: #{tpu_custom_call.1} parent=1 // pred_fallthru
      _
    %v100 = vld [vmem:[#allocation2] sm:$0xff]
    %v101 = vld [vmem:[#allocation2 + $0x8] sm:$0xff]
    %v102 = vld [vmem:[#allocation2 + $0x10] sm:$0xff]
    %v103 = vld [vmem:[#allocation2 + $0x18] sm:$0xff]
    %v104 = vld [vmem:[#allocation4] sm:$0xff]
    %v105 = vld [vmem:[#allocation4 + $0x8] sm:$0xff]
    %v106 = vld [vmem:[#allocation4 + $0x10] sm:$0xff]
    %v107 = vld [vmem:[#allocation4 + $0x18] sm:$0xff]
    %v108 = vld [vmem:[#allocation4 + $0x20] sm:$0xff]
    %v109 = vld [vmem:[#allocation4 + $0x28] sm:$0xff]
    %v110 = vld [vmem:[#allocation4 + $0x30] sm:$0xff]
    %v111 = vld [vmem:[#allocation4 + $0x38] sm:$0xff]
    %v112 = vpack.c.bf16 %v104, %v104
    %v113 = vpack.c.bf16 %v105, %v105
    %v114 = vpack.c.bf16 %v106, %v106
    %v115 = vpack.c.bf16 %v107, %v107
    %v116 = vpack.c.bf16 %v108, %v108
    %v117 = vpack.c.bf16 %v109, %v109
    %v118 = vpack.c.bf16 %v110, %v110
    %v119 = vpack.c.bf16 %v111, %v111
    %v120 = vld [vmem:[#allocation7] sm:$0xff]
    %v121 = vld [vmem:[#allocation7 + $0x8] sm:$0xff]
    %v122 = vld [vmem:[#allocation7 + $0x10] sm:$0xff]
    %v123 = vld [vmem:[#allocation7 + $0x18] sm:$0xff]
    %v124 = vld [vmem:[#allocation7 + $0x20] sm:$0xff]
    %v125 = vld [vmem:[#allocation7 + $0x28] sm:$0xff]
    %v126 = vld [vmem:[#allocation7 + $0x30] sm:$0xff]
    %v127 = vld [vmem:[#allocation7 + $0x38] sm:$0xff]
    %v128 = vld [vmem:[#allocation7 + $0x40] sm:$0xff]
    %v129 = vld [vmem:[#allocation7 + $0x48] sm:$0xff]
    %v130 = vld [vmem:[#allocation7 + $0x50] sm:$0xff]
    %v131 = vld [vmem:[#allocation7 + $0x58] sm:$0xff]
    %v132 = vld [vmem:[#allocation7 + $0x60] sm:$0xff]
    %v133 = vld [vmem:[#allocation7 + $0x68] sm:$0xff]
    %v134 = vld [vmem:[#allocation7 + $0x70] sm:$0xff]
    %v135 = vld [vmem:[#allocation7 + $0x78] sm:$0xff]
    %v136 = vld [vmem:[#allocation7 + $0x80] sm:$0xff]
    %v137 = vld [vmem:[#allocation7 + $0x88] sm:$0xff]
    %v138 = vld [vmem:[#allocation7 + $0x90] sm:$0xff]
    %v139 = vld [vmem:[#allocation7 + $0x98] sm:$0xff]
    %v140 = vld [vmem:[#allocation7 + $0xa0] sm:$0xff]
    %v141 = vld [vmem:[#allocation7 + $0xa8] sm:$0xff]
    %v142 = vld [vmem:[#allocation7 + $0xb0] sm:$0xff]
    %v143 = vld [vmem:[#allocation7 + $0xb8] sm:$0xff]
    %v144 = vld [vmem:[#allocation7 + $0xc0] sm:$0xff]
    %v145 = vld [vmem:[#allocation7 + $0xc8] sm:$0xff]
    %v146 = vld [vmem:[#allocation7 + $0xd0] sm:$0xff]
    %v147 = vld [vmem:[#allocation7 + $0xd8] sm:$0xff]
    %v148 = vld [vmem:[#allocation7 + $0xe0] sm:$0xff]
    %v149 = vld [vmem:[#allocation7 + $0xe8] sm:$0xff]
    %v150 = vld [vmem:[#allocation7 + $0xf0] sm:$0xff]
    %v151 = vld [vmem:[#allocation7 + $0xf8] sm:$0xff]
    %v152 = vld [vmem:[#allocation7 + $0x100] sm:$0xff]
    %v153 = vld [vmem:[#allocation7 + $0x108] sm:$0xff]
    %v154 = vld [vmem:[#allocation7 + $0x110] sm:$0xff]
    %v155 = vld [vmem:[#allocation7 + $0x118] sm:$0xff]
    %v156 = vld [vmem:[#allocation7 + $0x120] sm:$0xff]
    %v157 = vld [vmem:[#allocation7 + $0x128] sm:$0xff]
    %v158 = vld [vmem:[#allocation7 + $0x130] sm:$0xff]
    %v159 = vld [vmem:[#allocation7 + $0x138] sm:$0xff]
    %v160 = vld [vmem:[#allocation7 + $0x140] sm:$0xff]
    %v161 = vld [vmem:[#allocation7 + $0x148] sm:$0xff]
    %v162 = vld [vmem:[#allocation7 + $0x150] sm:$0xff]
    %v163 = vld [vmem:[#allocation7 + $0x158] sm:$0xff]
    %v164 = vld [vmem:[#allocation7 + $0x160] sm:$0xff]
    %v165 = vld [vmem:[#allocation7 + $0x168] sm:$0xff]
    %v166 = vld [vmem:[#allocation7 + $0x170] sm:$0xff]
    %v167 = vld [vmem:[#allocation7 + $0x178] sm:$0xff]
    %v168 = vld [vmem:[#allocation7 + $0x180] sm:$0xff]
    %v169 = vld [vmem:[#allocation7 + $0x188] sm:$0xff]
    %v170 = vld [vmem:[#allocation7 + $0x190] sm:$0xff]
    %v171 = vld [vmem:[#allocation7 + $0x198] sm:$0xff]
    %v172 = vld [vmem:[#allocation7 + $0x1a0] sm:$0xff]
    %v173 = vld [vmem:[#allocation7 + $0x1a8] sm:$0xff]
    %v174 = vld [vmem:[#allocation7 + $0x1b0] sm:$0xff]
    %v175 = vld [vmem:[#allocation7 + $0x1b8] sm:$0xff]
    %v176 = vld [vmem:[#allocation7 + $0x1c0] sm:$0xff]
    %v177 = vld [vmem:[#allocation7 + $0x1c8] sm:$0xff]
    %v178 = vld [vmem:[#allocation7 + $0x1d0] sm:$0xff]
    %v179 = vld [vmem:[#allocation7 + $0x1d8] sm:$0xff]
    %v180 = vld [vmem:[#allocation7 + $0x1e0] sm:$0xff]
    %v181 = vld [vmem:[#allocation7 + $0x1e8] sm:$0xff]
    %v182 = vld [vmem:[#allocation7 + $0x1f0] sm:$0xff]
    %v183 = vld [vmem:[#allocation7 + $0x1f8] sm:$0xff]
    %v184 = vld [vmem:[#allocation7 + $0x200] sm:$0xff]
    %v185 = vld [vmem:[#allocation7 + $0x208] sm:$0xff]
    %v186 = vld [vmem:[#allocation7 + $0x210] sm:$0xff]
    %v187 = vld [vmem:[#allocation7 + $0x218] sm:$0xff]
    %v188 = vld [vmem:[#allocation7 + $0x220] sm:$0xff]
    %v189 = vld [vmem:[#allocation7 + $0x228] sm:$0xff]
    %v190 = vld [vmem:[#allocation7 + $0x230] sm:$0xff]
    %v191 = vld [vmem:[#allocation7 + $0x238] sm:$0xff]
    %v192 = vld [vmem:[#allocation7 + $0x240] sm:$0xff]
    %v193 = vld [vmem:[#allocation7 + $0x248] sm:$0xff]
    %v194 = vld [vmem:[#allocation7 + $0x250] sm:$0xff]
    %v195 = vld [vmem:[#allocation7 + $0x258] sm:$0xff]
    %v196 = vld [vmem:[#allocation7 + $0x260] sm:$0xff]
    %v197 = vld [vmem:[#allocation7 + $0x268] sm:$0xff]
    %v198 = vld [vmem:[#allocation7 + $0x270] sm:$0xff]
    %v199 = vld [vmem:[#allocation7 + $0x278] sm:$0xff]
    %v200 = vld [vmem:[#allocation7 + $0x280] sm:$0xff]
    %v201 = vld [vmem:[#allocation7 + $0x288] sm:$0xff]
    %v202 = vld [vmem:[#allocation7 + $0x290] sm:$0xff]
    %v203 = vld [vmem:[#allocation7 + $0x298] sm:$0xff]
    %v204 = vld [vmem:[#allocation7 + $0x2a0] sm:$0xff]
    %v205 = vld [vmem:[#allocation7 + $0x2a8] sm:$0xff]
    %v206 = vld [vmem:[#allocation7 + $0x2b0] sm:$0xff]
    %v207 = vld [vmem:[#allocation7 + $0x2b8] sm:$0xff]
    %v208 = vld [vmem:[#allocation7 + $0x2c0] sm:$0xff]
    %v209 = vld [vmem:[#allocation7 + $0x2c8] sm:$0xff]
    %v210 = vld [vmem:[#allocation7 + $0x2d0] sm:$0xff]
    %v211 = vld [vmem:[#allocation7 + $0x2d8] sm:$0xff]
    %v212 = vld [vmem:[#allocation7 + $0x2e0] sm:$0xff]
    %v213 = vld [vmem:[#allocation7 + $0x2e8] sm:$0xff]
    %v214 = vld [vmem:[#allocation7 + $0x2f0] sm:$0xff]
    %v215 = vld [vmem:[#allocation7 + $0x2f8] sm:$0xff]
    %v216 = vld [vmem:[#allocation7 + $0x300] sm:$0xff]
    %v217 = vld [vmem:[#allocation7 + $0x308] sm:$0xff]
    %v218 = vld [vmem:[#allocation7 + $0x310] sm:$0xff]
    %v219 = vld [vmem:[#allocation7 + $0x318] sm:$0xff]
    %v220 = vld [vmem:[#allocation7 + $0x320] sm:$0xff]
    %v221 = vld [vmem:[#allocation7 + $0x328] sm:$0xff]
    %v222 = vld [vmem:[#allocation7 + $0x330] sm:$0xff]
    %v223 = vld [vmem:[#allocation7 + $0x338] sm:$0xff]
    %v224 = vld [vmem:[#allocation7 + $0x340] sm:$0xff]
    %v225 = vld [vmem:[#allocation7 + $0x348] sm:$0xff]
    %v226 = vld [vmem:[#allocation7 + $0x350] sm:$0xff]
    %v227 = vld [vmem:[#allocation7 + $0x358] sm:$0xff]
    %v228 = vld [vmem:[#allocation7 + $0x360] sm:$0xff]
    %v229 = vld [vmem:[#allocation7 + $0x368] sm:$0xff]
    %v230 = vld [vmem:[#allocation7 + $0x370] sm:$0xff]
    %v231 = vld [vmem:[#allocation7 + $0x378] sm:$0xff]
    %v232 = vld [vmem:[#allocation7 + $0x380] sm:$0xff]
    %v233 = vld [vmem:[#allocation7 + $0x388] sm:$0xff]
    %v234 = vld [vmem:[#allocation7 + $0x390] sm:$0xff]
    %v235 = vld [vmem:[#allocation7 + $0x398] sm:$0xff]
    %v236 = vld [vmem:[#allocation7 + $0x3a0] sm:$0xff]
    %v237 = vld [vmem:[#allocation7 + $0x3a8] sm:$0xff]
    %v238 = vld [vmem:[#allocation7 + $0x3b0] sm:$0xff]
    %v239 = vld [vmem:[#allocation7 + $0x3b8] sm:$0xff]
    %v240 = vld [vmem:[#allocation7 + $0x3c0] sm:$0xff]
    %v241 = vld [vmem:[#allocation7 + $0x3c8] sm:$0xff]
    %v242 = vld [vmem:[#allocation7 + $0x3d0] sm:$0xff]
    %v243 = vld [vmem:[#allocation7 + $0x3d8] sm:$0xff]
    %v244 = vld [vmem:[#allocation7 + $0x3e0] sm:$0xff]
    %v245 = vld [vmem:[#allocation7 + $0x3e8] sm:$0xff]
    %v246 = vld [vmem:[#allocation7 + $0x3f0] sm:$0xff]
    %v247 = vld [vmem:[#allocation7 + $0x3f8] sm:$0xff]
    %v248 = vld [vmem:[#allocation7 + $0x400] sm:$0xff]
    %v249 = vld [vmem:[#allocation7 + $0x408] sm:$0xff]
    %v250 = vld [vmem:[#allocation7 + $0x410] sm:$0xff]
    %v251 = vld [vmem:[#allocation7 + $0x418] sm:$0xff]
    %v252 = vld [vmem:[#allocation7 + $0x420] sm:$0xff]
    %v253 = vld [vmem:[#allocation7 + $0x428] sm:$0xff]
    %v254 = vld [vmem:[#allocation7 + $0x430] sm:$0xff]
    %v255 = vld [vmem:[#allocation7 + $0x438] sm:$0xff]
    %v256 = vld [vmem:[#allocation7 + $0x440] sm:$0xff]
    %v257 = vld [vmem:[#allocation7 + $0x448] sm:$0xff]
    %v258 = vld [vmem:[#allocation7 + $0x450] sm:$0xff]
    %v259 = vld [vmem:[#allocation7 + $0x458] sm:$0xff]
    %v260 = vld [vmem:[#allocation7 + $0x460] sm:$0xff]
    %v261 = vld [vmem:[#allocation7 + $0x468] sm:$0xff]
    %v262 = vld [vmem:[#allocation7 + $0x470] sm:$0xff]
    %v263 = vld [vmem:[#allocation7 + $0x478] sm:$0xff]
    %v264 = vld [vmem:[#allocation7 + $0x480] sm:$0xff]
    %v265 = vld [vmem:[#allocation7 + $0x488] sm:$0xff]
    %v266 = vld [vmem:[#allocation7 + $0x490] sm:$0xff]
    %v267 = vld [vmem:[#allocation7 + $0x498] sm:$0xff]
    %v268 = vld [vmem:[#allocation7 + $0x4a0] sm:$0xff]
    %v269 = vld [vmem:[#allocation7 + $0x4a8] sm:$0xff]
    %v270 = vld [vmem:[#allocation7 + $0x4b0] sm:$0xff]
    %v271 = vld [vmem:[#allocation7 + $0x4b8] sm:$0xff]
    %v272 = vld [vmem:[#allocation7 + $0x4c0] sm:$0xff]
    %v273 = vld [vmem:[#allocation7 + $0x4c8] sm:$0xff]
    %v274 = vld [vmem:[#allocation7 + $0x4d0] sm:$0xff]
    %v275 = vld [vmem:[#allocation7 + $0x4d8] sm:$0xff]
    %v276 = vld [vmem:[#allocation7 + $0x4e0] sm:$0xff]
    %v277 = vld [vmem:[#allocation7 + $0x4e8] sm:$0xff]
    %v278 = vld [vmem:[#allocation7 + $0x4f0] sm:$0xff]
    %v279 = vld [vmem:[#allocation7 + $0x4f8] sm:$0xff]
    %v280 = vld [vmem:[#allocation7 + $0x500] sm:$0xff]
    %v281 = vld [vmem:[#allocation7 + $0x508] sm:$0xff]
    %v282 = vld [vmem:[#allocation7 + $0x510] sm:$0xff]
    %v283 = vld [vmem:[#allocation7 + $0x518] sm:$0xff]
    %v284 = vld [vmem:[#allocation7 + $0x520] sm:$0xff]
    %v285 = vld [vmem:[#allocation7 + $0x528] sm:$0xff]
    %v286 = vld [vmem:[#allocation7 + $0x530] sm:$0xff]
    %v287 = vld [vmem:[#allocation7 + $0x538] sm:$0xff]
    %v288 = vld [vmem:[#allocation7 + $0x540] sm:$0xff]
    %v289 = vld [vmem:[#allocation7 + $0x548] sm:$0xff]
    %v290 = vld [vmem:[#allocation7 + $0x550] sm:$0xff]
    %v291 = vld [vmem:[#allocation7 + $0x558] sm:$0xff]
    %v292 = vld [vmem:[#allocation7 + $0x560] sm:$0xff]
    %v293 = vld [vmem:[#allocation7 + $0x568] sm:$0xff]
    %v294 = vld [vmem:[#allocation7 + $0x570] sm:$0xff]
    %v295 = vld [vmem:[#allocation7 + $0x578] sm:$0xff]
    %v296 = vld [vmem:[#allocation7 + $0x580] sm:$0xff]
    %v297 = vld [vmem:[#allocation7 + $0x588] sm:$0xff]
    %v298 = vld [vmem:[#allocation7 + $0x590] sm:$0xff]
    %v299 = vld [vmem:[#allocation7 + $0x598] sm:$0xff]
    %v300 = vld [vmem:[#allocation7 + $0x5a0] sm:$0xff]
    %v301 = vld [vmem:[#allocation7 + $0x5a8] sm:$0xff]
    %v302 = vld [vmem:[#allocation7 + $0x5b0] sm:$0xff]
    %v303 = vld [vmem:[#allocation7 + $0x5b8] sm:$0xff]
    %v304 = vld [vmem:[#allocation7 + $0x5c0] sm:$0xff]
    %v305 = vld [vmem:[#allocation7 + $0x5c8] sm:$0xff]
    %v306 = vld [vmem:[#allocation7 + $0x5d0] sm:$0xff]
    %v307 = vld [vmem:[#allocation7 + $0x5d8] sm:$0xff]
    %v308 = vld [vmem:[#allocation7 + $0x5e0] sm:$0xff]
    %v309 = vld [vmem:[#allocation7 + $0x5e8] sm:$0xff]
    %v310 = vld [vmem:[#allocation7 + $0x5f0] sm:$0xff]
    %v311 = vld [vmem:[#allocation7 + $0x5f8] sm:$0xff]
    %v312 = vld [vmem:[#allocation7 + $0x600] sm:$0xff]
    %v313 = vld [vmem:[#allocation7 + $0x608] sm:$0xff]
    %v314 = vld [vmem:[#allocation7 + $0x610] sm:$0xff]
    %v315 = vld [vmem:[#allocation7 + $0x618] sm:$0xff]
    %v316 = vld [vmem:[#allocation7 + $0x620] sm:$0xff]
    %v317 = vld [vmem:[#allocation7 + $0x628] sm:$0xff]
    %v318 = vld [vmem:[#allocation7 + $0x630] sm:$0xff]
    %v319 = vld [vmem:[#allocation7 + $0x638] sm:$0xff]
    %v320 = vld [vmem:[#allocation7 + $0x640] sm:$0xff]
    %v321 = vld [vmem:[#allocation7 + $0x648] sm:$0xff]
    %v322 = vld [vmem:[#allocation7 + $0x650] sm:$0xff]
    %v323 = vld [vmem:[#allocation7 + $0x658] sm:$0xff]
    %v324 = vld [vmem:[#allocation7 + $0x660] sm:$0xff]
    %v325 = vld [vmem:[#allocation7 + $0x668] sm:$0xff]
    %v326 = vld [vmem:[#allocation7 + $0x670] sm:$0xff]
    %v327 = vld [vmem:[#allocation7 + $0x678] sm:$0xff]
    %v328 = vld [vmem:[#allocation7 + $0x680] sm:$0xff]
    %v329 = vld [vmem:[#allocation7 + $0x688] sm:$0xff]
    %v330 = vld [vmem:[#allocation7 + $0x690] sm:$0xff]
    %v331 = vld [vmem:[#allocation7 + $0x698] sm:$0xff]
    %v332 = vld [vmem:[#allocation7 + $0x6a0] sm:$0xff]
    %v333 = vld [vmem:[#allocation7 + $0x6a8] sm:$0xff]
    %v334 = vld [vmem:[#allocation7 + $0x6b0] sm:$0xff]
    %v335 = vld [vmem:[#allocation7 + $0x6b8] sm:$0xff]
    %v336 = vld [vmem:[#allocation7 + $0x6c0] sm:$0xff]
    %v337 = vld [vmem:[#allocation7 + $0x6c8] sm:$0xff]
    %v338 = vld [vmem:[#allocation7 + $0x6d0] sm:$0xff]
    %v339 = vld [vmem:[#allocation7 + $0x6d8] sm:$0xff]
    %v340 = vld [vmem:[#allocation7 + $0x6e0] sm:$0xff]
    %v341 = vld [vmem:[#allocation7 + $0x6e8] sm:$0xff]
    %v342 = vld [vmem:[#allocation7 + $0x6f0] sm:$0xff]
    %v343 = vld [vmem:[#allocation7 + $0x6f8] sm:$0xff]
    %v344 = vld [vmem:[#allocation7 + $0x700] sm:$0xff]
    %v345 = vld [vmem:[#allocation7 + $0x708] sm:$0xff]
    %v346 = vld [vmem:[#allocation7 + $0x710] sm:$0xff]
    %v347 = vld [vmem:[#allocation7 + $0x718] sm:$0xff]
    %v348 = vld [vmem:[#allocation7 + $0x720] sm:$0xff]
    %v349 = vld [vmem:[#allocation7 + $0x728] sm:$0xff]
    %v350 = vld [vmem:[#allocation7 + $0x730] sm:$0xff]
    %v351 = vld [vmem:[#allocation7 + $0x738] sm:$0xff]
    %v352 = vld [vmem:[#allocation7 + $0x740] sm:$0xff]
    %v353 = vld [vmem:[#allocation7 + $0x748] sm:$0xff]
    %v354 = vld [vmem:[#allocation7 + $0x750] sm:$0xff]
    %v355 = vld [vmem:[#allocation7 + $0x758] sm:$0xff]
    %v356 = vld [vmem:[#allocation7 + $0x760] sm:$0xff]
    %v357 = vld [vmem:[#allocation7 + $0x768] sm:$0xff]
    %v358 = vld [vmem:[#allocation7 + $0x770] sm:$0xff]
    %v359 = vld [vmem:[#allocation7 + $0x778] sm:$0xff]
    %v360 = vld [vmem:[#allocation7 + $0x780] sm:$0xff]
    %v361 = vld [vmem:[#allocation7 + $0x788] sm:$0xff]
    %v362 = vld [vmem:[#allocation7 + $0x790] sm:$0xff]
    %v363 = vld [vmem:[#allocation7 + $0x798] sm:$0xff]
    %v364 = vld [vmem:[#allocation7 + $0x7a0] sm:$0xff]
    %v365 = vld [vmem:[#allocation7 + $0x7a8] sm:$0xff]
    %v366 = vld [vmem:[#allocation7 + $0x7b0] sm:$0xff]
    %v367 = vld [vmem:[#allocation7 + $0x7b8] sm:$0xff]
    %v368 = vld [vmem:[#allocation7 + $0x7c0] sm:$0xff]
    %v369 = vld [vmem:[#allocation7 + $0x7c8] sm:$0xff]
    %v370 = vld [vmem:[#allocation7 + $0x7d0] sm:$0xff]
    %v371 = vld [vmem:[#allocation7 + $0x7d8] sm:$0xff]
    %v372 = vld [vmem:[#allocation7 + $0x7e0] sm:$0xff]
    %v373 = vld [vmem:[#allocation7 + $0x7e8] sm:$0xff]
    %v374 = vld [vmem:[#allocation7 + $0x7f0] sm:$0xff]
    %v375 = vld [vmem:[#allocation7 + $0x7f8] sm:$0xff]
    %v632 = vunpack.c.l.b16 %v120
    %v633 = vunpack.c.h.b16 %v120
    %v634 = vunpack.c.l.b16 %v121
    %v635 = vunpack.c.h.b16 %v121
    %v636 = vunpack.c.l.b16 %v122
    %v637 = vunpack.c.h.b16 %v122
    %v638 = vunpack.c.l.b16 %v123
    %v639 = vunpack.c.h.b16 %v123
    %v640 = vunpack.c.l.b16 %v124
    %v641 = vunpack.c.h.b16 %v124
    %v642 = vunpack.c.l.b16 %v125
    %v643 = vunpack.c.h.b16 %v125
    %v644 = vunpack.c.l.b16 %v126
    %v645 = vunpack.c.h.b16 %v126
    %v646 = vunpack.c.l.b16 %v127
    %v647 = vunpack.c.h.b16 %v127
    %v648 = vunpack.c.l.b16 %v128
    %v649 = vunpack.c.h.b16 %v128
    %v650 = vunpack.c.l.b16 %v129
    %v651 = vunpack.c.h.b16 %v129
    %v652 = vunpack.c.l.b16 %v130
    %v653 = vunpack.c.h.b16 %v130
    %v654 = vunpack.c.l.b16 %v131
    %v655 = vunpack.c.h.b16 %v131
    %v656 = vunpack.c.l.b16 %v132
    %v657 = vunpack.c.h.b16 %v132
    %v658 = vunpack.c.l.b16 %v133
    %v659 = vunpack.c.h.b16 %v133
    %v660 = vunpack.c.l.b16 %v134
    %v661 = vunpack.c.h.b16 %v134
    %v662 = vunpack.c.l.b16 %v135
    %v663 = vunpack.c.h.b16 %v135
    %v664 = vunpack.c.l.b16 %v136
    %v665 = vunpack.c.h.b16 %v136
    %v666 = vunpack.c.l.b16 %v137
    %v667 = vunpack.c.h.b16 %v137
    %v668 = vunpack.c.l.b16 %v138
    %v669 = vunpack.c.h.b16 %v138
    %v670 = vunpack.c.l.b16 %v139
    %v671 = vunpack.c.h.b16 %v139
    %v672 = vunpack.c.l.b16 %v140
    %v673 = vunpack.c.h.b16 %v140
    %v674 = vunpack.c.l.b16 %v141
    %v675 = vunpack.c.h.b16 %v141
    %v676 = vunpack.c.l.b16 %v142
    %v677 = vunpack.c.h.b16 %v142
    %v678 = vunpack.c.l.b16 %v143
    %v679 = vunpack.c.h.b16 %v143
    %v680 = vunpack.c.l.b16 %v144
    %v681 = vunpack.c.h.b16 %v144
    %v682 = vunpack.c.l.b16 %v145
    %v683 = vunpack.c.h.b16 %v145
    %v684 = vunpack.c.l.b16 %v146
    %v685 = vunpack.c.h.b16 %v146
    %v686 = vunpack.c.l.b16 %v147
    %v687 = vunpack.c.h.b16 %v147
    %v688 = vunpack.c.l.b16 %v148
    %v689 = vunpack.c.h.b16 %v148
    %v690 = vunpack.c.l.b16 %v149
    %v691 = vunpack.c.h.b16 %v149
    %v692 = vunpack.c.l.b16 %v150
    %v693 = vunpack.c.h.b16 %v150
    %v694 = vunpack.c.l.b16 %v151
    %v695 = vunpack.c.h.b16 %v151
    %v696 = vunpack.c.l.b16 %v152
    %v697 = vunpack.c.h.b16 %v152
    %v698 = vunpack.c.l.b16 %v153
    %v699 = vunpack.c.h.b16 %v153
    %v700 = vunpack.c.l.b16 %v154
    %v701 = vunpack.c.h.b16 %v154
    %v702 = vunpack.c.l.b16 %v155
    %v703 = vunpack.c.h.b16 %v155
    %v704 = vunpack.c.l.b16 %v156
    %v705 = vunpack.c.h.b16 %v156
    %v706 = vunpack.c.l.b16 %v157
    %v707 = vunpack.c.h.b16 %v157
    %v708 = vunpack.c.l.b16 %v158
    %v709 = vunpack.c.h.b16 %v158
    %v710 = vunpack.c.l.b16 %v159
    %v711 = vunpack.c.h.b16 %v159
    %v712 = vunpack.c.l.b16 %v160
    %v713 = vunpack.c.h.b16 %v160
    %v714 = vunpack.c.l.b16 %v161
    %v715 = vunpack.c.h.b16 %v161
    %v716 = vunpack.c.l.b16 %v162
    %v717 = vunpack.c.h.b16 %v162
    %v718 = vunpack.c.l.b16 %v163
    %v719 = vunpack.c.h.b16 %v163
    %v720 = vunpack.c.l.b16 %v164
    %v721 = vunpack.c.h.b16 %v164
    %v722 = vunpack.c.l.b16 %v165
    %v723 = vunpack.c.h.b16 %v165
    %v724 = vunpack.c.l.b16 %v166
    %v725 = vunpack.c.h.b16 %v166
    %v726 = vunpack.c.l.b16 %v167
    %v727 = vunpack.c.h.b16 %v167
    %v728 = vunpack.c.l.b16 %v168
    %v729 = vunpack.c.h.b16 %v168
    %v730 = vunpack.c.l.b16 %v169
    %v731 = vunpack.c.h.b16 %v169
    %v732 = vunpack.c.l.b16 %v170
    %v733 = vunpack.c.h.b16 %v170
    %v734 = vunpack.c.l.b16 %v171
    %v735 = vunpack.c.h.b16 %v171
    %v736 = vunpack.c.l.b16 %v172
    %v737 = vunpack.c.h.b16 %v172
    %v738 = vunpack.c.l.b16 %v173
    %v739 = vunpack.c.h.b16 %v173
    %v740 = vunpack.c.l.b16 %v174
    %v741 = vunpack.c.h.b16 %v174
    %v742 = vunpack.c.l.b16 %v175
    %v743 = vunpack.c.h.b16 %v175
    %v744 = vunpack.c.l.b16 %v176
    %v745 = vunpack.c.h.b16 %v176
    %v746 = vunpack.c.l.b16 %v177
    %v747 = vunpack.c.h.b16 %v177
    %v748 = vunpack.c.l.b16 %v178
    %v749 = vunpack.c.h.b16 %v178
    %v750 = vunpack.c.l.b16 %v179
    %v751 = vunpack.c.h.b16 %v179
    %v752 = vunpack.c.l.b16 %v180
    %v753 = vunpack.c.h.b16 %v180
    %v754 = vunpack.c.l.b16 %v181
    %v755 = vunpack.c.h.b16 %v181
    %v756 = vunpack.c.l.b16 %v182
    %v757 = vunpack.c.h.b16 %v182
    %v758 = vunpack.c.l.b16 %v183
    %v759 = vunpack.c.h.b16 %v183
    %v760 = vunpack.c.l.b16 %v184
    %v761 = vunpack.c.h.b16 %v184
    %v762 = vunpack.c.l.b16 %v185
    %v763 = vunpack.c.h.b16 %v185
    %v764 = vunpack.c.l.b16 %v186
    %v765 = vunpack.c.h.b16 %v186
    %v766 = vunpack.c.l.b16 %v187
    %v767 = vunpack.c.h.b16 %v187
    %v768 = vunpack.c.l.b16 %v188
    %v769 = vunpack.c.h.b16 %v188
    %v770 = vunpack.c.l.b16 %v189
    %v771 = vunpack.c.h.b16 %v189
    %v772 = vunpack.c.l.b16 %v190
    %v773 = vunpack.c.h.b16 %v190
    %v774 = vunpack.c.l.b16 %v191
    %v775 = vunpack.c.h.b16 %v191
    %v776 = vunpack.c.l.b16 %v192
    %v777 = vunpack.c.h.b16 %v192
    %v778 = vunpack.c.l.b16 %v193
    %v779 = vunpack.c.h.b16 %v193
    %v780 = vunpack.c.l.b16 %v194
    %v781 = vunpack.c.h.b16 %v194
    %v782 = vunpack.c.l.b16 %v195
    %v783 = vunpack.c.h.b16 %v195
    %v784 = vunpack.c.l.b16 %v196
    %v785 = vunpack.c.h.b16 %v196
    %v786 = vunpack.c.l.b16 %v197
    %v787 = vunpack.c.h.b16 %v197
    %v788 = vunpack.c.l.b16 %v198
    %v789 = vunpack.c.h.b16 %v198
    %v790 = vunpack.c.l.b16 %v199
    %v791 = vunpack.c.h.b16 %v199
    %v792 = vunpack.c.l.b16 %v200
    %v793 = vunpack.c.h.b16 %v200
    %v794 = vunpack.c.l.b16 %v201
    %v795 = vunpack.c.h.b16 %v201
    %v796 = vunpack.c.l.b16 %v202
    %v797 = vunpack.c.h.b16 %v202
    %v798 = vunpack.c.l.b16 %v203
    %v799 = vunpack.c.h.b16 %v203
    %v800 = vunpack.c.l.b16 %v204
    %v801 = vunpack.c.h.b16 %v204
    %v802 = vunpack.c.l.b16 %v205
    %v803 = vunpack.c.h.b16 %v205
    %v804 = vunpack.c.l.b16 %v206
    %v805 = vunpack.c.h.b16 %v206
    %v806 = vunpack.c.l.b16 %v207
    %v807 = vunpack.c.h.b16 %v207
    %v808 = vunpack.c.l.b16 %v208
    %v809 = vunpack.c.h.b16 %v208
    %v810 = vunpack.c.l.b16 %v209
    %v811 = vunpack.c.h.b16 %v209
    %v812 = vunpack.c.l.b16 %v210
    %v813 = vunpack.c.h.b16 %v210
    %v814 = vunpack.c.l.b16 %v211
    %v815 = vunpack.c.h.b16 %v211
    %v816 = vunpack.c.l.b16 %v212
    %v817 = vunpack.c.h.b16 %v212
    %v818 = vunpack.c.l.b16 %v213
    %v819 = vunpack.c.h.b16 %v213
    %v820 = vunpack.c.l.b16 %v214
    %v821 = vunpack.c.h.b16 %v214
    %v822 = vunpack.c.l.b16 %v215
    %v823 = vunpack.c.h.b16 %v215
    %v824 = vunpack.c.l.b16 %v216
    %v825 = vunpack.c.h.b16 %v216
    %v826 = vunpack.c.l.b16 %v217
    %v827 = vunpack.c.h.b16 %v217
    %v828 = vunpack.c.l.b16 %v218
    %v829 = vunpack.c.h.b16 %v218
    %v830 = vunpack.c.l.b16 %v219
    %v831 = vunpack.c.h.b16 %v219
    %v832 = vunpack.c.l.b16 %v220
    %v833 = vunpack.c.h.b16 %v220
    %v834 = vunpack.c.l.b16 %v221
    %v835 = vunpack.c.h.b16 %v221
    %v836 = vunpack.c.l.b16 %v222
    %v837 = vunpack.c.h.b16 %v222
    %v838 = vunpack.c.l.b16 %v223
    %v839 = vunpack.c.h.b16 %v223
    %v840 = vunpack.c.l.b16 %v224
    %v841 = vunpack.c.h.b16 %v224
    %v842 = vunpack.c.l.b16 %v225
    %v843 = vunpack.c.h.b16 %v225
    %v844 = vunpack.c.l.b16 %v226
    %v845 = vunpack.c.h.b16 %v226
    %v846 = vunpack.c.l.b16 %v227
    %v847 = vunpack.c.h.b16 %v227
    %v848 = vunpack.c.l.b16 %v228
    %v849 = vunpack.c.h.b16 %v228
    %v850 = vunpack.c.l.b16 %v229
    %v851 = vunpack.c.h.b16 %v229
    %v852 = vunpack.c.l.b16 %v230
    %v853 = vunpack.c.h.b16 %v230
    %v854 = vunpack.c.l.b16 %v231
    %v855 = vunpack.c.h.b16 %v231
    %v856 = vunpack.c.l.b16 %v232
    %v857 = vunpack.c.h.b16 %v232
    %v858 = vunpack.c.l.b16 %v233
    %v859 = vunpack.c.h.b16 %v233
    %v860 = vunpack.c.l.b16 %v234
    %v861 = vunpack.c.h.b16 %v234
    %v862 = vunpack.c.l.b16 %v235
    %v863 = vunpack.c.h.b16 %v235
    %v864 = vunpack.c.l.b16 %v236
    %v865 = vunpack.c.h.b16 %v236
    %v866 = vunpack.c.l.b16 %v237
    %v867 = vunpack.c.h.b16 %v237
    %v868 = vunpack.c.l.b16 %v238
    %v869 = vunpack.c.h.b16 %v238
    %v870 = vunpack.c.l.b16 %v239
    %v871 = vunpack.c.h.b16 %v239
    %v872 = vunpack.c.l.b16 %v240
    %v873 = vunpack.c.h.b16 %v240
    %v874 = vunpack.c.l.b16 %v241
    %v875 = vunpack.c.h.b16 %v241
    %v876 = vunpack.c.l.b16 %v242
    %v877 = vunpack.c.h.b16 %v242
    %v878 = vunpack.c.l.b16 %v243
    %v879 = vunpack.c.h.b16 %v243
    %v880 = vunpack.c.l.b16 %v244
    %v881 = vunpack.c.h.b16 %v244
    %v882 = vunpack.c.l.b16 %v245
    %v883 = vunpack.c.h.b16 %v245
    %v884 = vunpack.c.l.b16 %v246
    %v885 = vunpack.c.h.b16 %v246
    %v886 = vunpack.c.l.b16 %v247
    %v887 = vunpack.c.h.b16 %v247
    %v888 = vunpack.c.l.b16 %v248
    %v889 = vunpack.c.h.b16 %v248
    %v890 = vunpack.c.l.b16 %v249
    %v891 = vunpack.c.h.b16 %v249
    %v892 = vunpack.c.l.b16 %v250
    %v893 = vunpack.c.h.b16 %v250
    %v894 = vunpack.c.l.b16 %v251
    %v895 = vunpack.c.h.b16 %v251
    %v896 = vunpack.c.l.b16 %v252
    %v897 = vunpack.c.h.b16 %v252
    %v898 = vunpack.c.l.b16 %v253
    %v899 = vunpack.c.h.b16 %v253
    %v900 = vunpack.c.l.b16 %v254
    %v901 = vunpack.c.h.b16 %v254
    %v902 = vunpack.c.l.b16 %v255
    %v903 = vunpack.c.h.b16 %v255
    %v904 = vunpack.c.l.b16 %v256
    %v905 = vunpack.c.h.b16 %v256
    %v906 = vunpack.c.l.b16 %v257
    %v907 = vunpack.c.h.b16 %v257
    %v908 = vunpack.c.l.b16 %v258
    %v909 = vunpack.c.h.b16 %v258
    %v910 = vunpack.c.l.b16 %v259
    %v911 = vunpack.c.h.b16 %v259
    %v912 = vunpack.c.l.b16 %v260
    %v913 = vunpack.c.h.b16 %v260
    %v914 = vunpack.c.l.b16 %v261
    %v915 = vunpack.c.h.b16 %v261
    %v916 = vunpack.c.l.b16 %v262
    %v917 = vunpack.c.h.b16 %v262
    %v918 = vunpack.c.l.b16 %v263
    %v919 = vunpack.c.h.b16 %v263
    %v920 = vunpack.c.l.b16 %v264
    %v921 = vunpack.c.h.b16 %v264
    %v922 = vunpack.c.l.b16 %v265
    %v923 = vunpack.c.h.b16 %v265
    %v924 = vunpack.c.l.b16 %v266
    %v925 = vunpack.c.h.b16 %v266
    %v926 = vunpack.c.l.b16 %v267
    %v927 = vunpack.c.h.b16 %v267
    %v928 = vunpack.c.l.b16 %v268
    %v929 = vunpack.c.h.b16 %v268
    %v930 = vunpack.c.l.b16 %v269
    %v931 = vunpack.c.h.b16 %v269
    %v932 = vunpack.c.l.b16 %v270
    %v933 = vunpack.c.h.b16 %v270
    %v934 = vunpack.c.l.b16 %v271
    %v935 = vunpack.c.h.b16 %v271
    %v936 = vunpack.c.l.b16 %v272
    %v937 = vunpack.c.h.b16 %v272
    %v938 = vunpack.c.l.b16 %v273
    %v939 = vunpack.c.h.b16 %v273
    %v940 = vunpack.c.l.b16 %v274
    %v941 = vunpack.c.h.b16 %v274
    %v942 = vunpack.c.l.b16 %v275
    %v943 = vunpack.c.h.b16 %v275
    %v944 = vunpack.c.l.b16 %v276
    %v945 = vunpack.c.h.b16 %v276
    %v946 = vunpack.c.l.b16 %v277
    %v947 = vunpack.c.h.b16 %v277
    %v948 = vunpack.c.l.b16 %v278
    %v949 = vunpack.c.h.b16 %v278
    %v950 = vunpack.c.l.b16 %v279
    %v951 = vunpack.c.h.b16 %v279
    %v952 = vunpack.c.l.b16 %v280
    %v953 = vunpack.c.h.b16 %v280
    %v954 = vunpack.c.l.b16 %v281
    %v955 = vunpack.c.h.b16 %v281
    %v956 = vunpack.c.l.b16 %v282
    %v957 = vunpack.c.h.b16 %v282
    %v958 = vunpack.c.l.b16 %v283
    %v959 = vunpack.c.h.b16 %v283
    %v960 = vunpack.c.l.b16 %v284
    %v961 = vunpack.c.h.b16 %v284
    %v962 = vunpack.c.l.b16 %v285
    %v963 = vunpack.c.h.b16 %v285
    %v964 = vunpack.c.l.b16 %v286
    %v965 = vunpack.c.h.b16 %v286
    %v966 = vunpack.c.l.b16 %v287
    %v967 = vunpack.c.h.b16 %v287
    %v968 = vunpack.c.l.b16 %v288
    %v969 = vunpack.c.h.b16 %v288
    %v970 = vunpack.c.l.b16 %v289
    %v971 = vunpack.c.h.b16 %v289
    %v972 = vunpack.c.l.b16 %v290
    %v973 = vunpack.c.h.b16 %v290
    %v974 = vunpack.c.l.b16 %v291
    %v975 = vunpack.c.h.b16 %v291
    %v976 = vunpack.c.l.b16 %v292
    %v977 = vunpack.c.h.b16 %v292
    %v978 = vunpack.c.l.b16 %v293
    %v979 = vunpack.c.h.b16 %v293
    %v980 = vunpack.c.l.b16 %v294
    %v981 = vunpack.c.h.b16 %v294
    %v982 = vunpack.c.l.b16 %v295
    %v983 = vunpack.c.h.b16 %v295
    %v984 = vunpack.c.l.b16 %v296
    %v985 = vunpack.c.h.b16 %v296
    %v986 = vunpack.c.l.b16 %v297
    %v987 = vunpack.c.h.b16 %v297
    %v988 = vunpack.c.l.b16 %v298
    %v989 = vunpack.c.h.b16 %v298
    %v990 = vunpack.c.l.b16 %v299
    %v991 = vunpack.c.h.b16 %v299
    %v992 = vunpack.c.l.b16 %v300
    %v993 = vunpack.c.h.b16 %v300
    %v994 = vunpack.c.l.b16 %v301
    %v995 = vunpack.c.h.b16 %v301
    %v996 = vunpack.c.l.b16 %v302
    %v997 = vunpack.c.h.b16 %v302
    %v998 = vunpack.c.l.b16 %v303
    %v999 = vunpack.c.h.b16 %v303
    %v1000 = vunpack.c.l.b16 %v304
    %v1001 = vunpack.c.h.b16 %v304
    %v1002 = vunpack.c.l.b16 %v305
    %v1003 = vunpack.c.h.b16 %v305
    %v1004 = vunpack.c.l.b16 %v306
    %v1005 = vunpack.c.h.b16 %v306
    %v1006 = vunpack.c.l.b16 %v307
    %v1007 = vunpack.c.h.b16 %v307
    %v1008 = vunpack.c.l.b16 %v308
    %v1009 = vunpack.c.h.b16 %v308
    %v1010 = vunpack.c.l.b16 %v309
    %v1011 = vunpack.c.h.b16 %v309
    %v1012 = vunpack.c.l.b16 %v310
    %v1013 = vunpack.c.h.b16 %v310
    %v1014 = vunpack.c.l.b16 %v311
    %v1015 = vunpack.c.h.b16 %v311
    %v1016 = vunpack.c.l.b16 %v312
    %v1017 = vunpack.c.h.b16 %v312
    %v1018 = vunpack.c.l.b16 %v313
    %v1019 = vunpack.c.h.b16 %v313
    %v1020 = vunpack.c.l.b16 %v314
    %v1021 = vunpack.c.h.b16 %v314
    %v1022 = vunpack.c.l.b16 %v315
    %v1023 = vunpack.c.h.b16 %v315
    %v1024 = vunpack.c.l.b16 %v316
    %v1025 = vunpack.c.h.b16 %v316
    %v1026 = vunpack.c.l.b16 %v317
    %v1027 = vunpack.c.h.b16 %v317
    %v1028 = vunpack.c.l.b16 %v318
    %v1029 = vunpack.c.h.b16 %v318
    %v1030 = vunpack.c.l.b16 %v319
    %v1031 = vunpack.c.h.b16 %v319
    %v1032 = vunpack.c.l.b16 %v320
    %v1033 = vunpack.c.h.b16 %v320
    %v1034 = vunpack.c.l.b16 %v321
    %v1035 = vunpack.c.h.b16 %v321
    %v1036 = vunpack.c.l.b16 %v322
    %v1037 = vunpack.c.h.b16 %v322
    %v1038 = vunpack.c.l.b16 %v323
    %v1039 = vunpack.c.h.b16 %v323
    %v1040 = vunpack.c.l.b16 %v324
    %v1041 = vunpack.c.h.b16 %v324
    %v1042 = vunpack.c.l.b16 %v325
    %v1043 = vunpack.c.h.b16 %v325
    %v1044 = vunpack.c.l.b16 %v326
    %v1045 = vunpack.c.h.b16 %v326
    %v1046 = vunpack.c.l.b16 %v327
    %v1047 = vunpack.c.h.b16 %v327
    %v1048 = vunpack.c.l.b16 %v328
    %v1049 = vunpack.c.h.b16 %v328
    %v1050 = vunpack.c.l.b16 %v329
    %v1051 = vunpack.c.h.b16 %v329
    %v1052 = vunpack.c.l.b16 %v330
    %v1053 = vunpack.c.h.b16 %v330
    %v1054 = vunpack.c.l.b16 %v331
    %v1055 = vunpack.c.h.b16 %v331
    %v1056 = vunpack.c.l.b16 %v332
    %v1057 = vunpack.c.h.b16 %v332
    %v1058 = vunpack.c.l.b16 %v333
    %v1059 = vunpack.c.h.b16 %v333
    %v1060 = vunpack.c.l.b16 %v334
    %v1061 = vunpack.c.h.b16 %v334
    %v1062 = vunpack.c.l.b16 %v335
    %v1063 = vunpack.c.h.b16 %v335
    %v1064 = vunpack.c.l.b16 %v336
    %v1065 = vunpack.c.h.b16 %v336
    %v1066 = vunpack.c.l.b16 %v337
    %v1067 = vunpack.c.h.b16 %v337
    %v1068 = vunpack.c.l.b16 %v338
    %v1069 = vunpack.c.h.b16 %v338
    %v1070 = vunpack.c.l.b16 %v339
    %v1071 = vunpack.c.h.b16 %v339
    %v1072 = vunpack.c.l.b16 %v340
    %v1073 = vunpack.c.h.b16 %v340
    %v1074 = vunpack.c.l.b16 %v341
    %v1075 = vunpack.c.h.b16 %v341
    %v1076 = vunpack.c.l.b16 %v342
    %v1077 = vunpack.c.h.b16 %v342
    %v1078 = vunpack.c.l.b16 %v343
    %v1079 = vunpack.c.h.b16 %v343
    %v1080 = vunpack.c.l.b16 %v344
    %v1081 = vunpack.c.h.b16 %v344
    %v1082 = vunpack.c.l.b16 %v345
    %v1083 = vunpack.c.h.b16 %v345
    %v1084 = vunpack.c.l.b16 %v346
    %v1085 = vunpack.c.h.b16 %v346
    %v1086 = vunpack.c.l.b16 %v347
    %v1087 = vunpack.c.h.b16 %v347
    %v1088 = vunpack.c.l.b16 %v348
    %v1089 = vunpack.c.h.b16 %v348
    %v1090 = vunpack.c.l.b16 %v349
    %v1091 = vunpack.c.h.b16 %v349
    %v1092 = vunpack.c.l.b16 %v350
    %v1093 = vunpack.c.h.b16 %v350
    %v1094 = vunpack.c.l.b16 %v351
    %v1095 = vunpack.c.h.b16 %v351
    %v1096 = vunpack.c.l.b16 %v352
    %v1097 = vunpack.c.h.b16 %v352
    %v1098 = vunpack.c.l.b16 %v353
    %v1099 = vunpack.c.h.b16 %v353
    %v1100 = vunpack.c.l.b16 %v354
    %v1101 = vunpack.c.h.b16 %v354
    %v1102 = vunpack.c.l.b16 %v355
    %v1103 = vunpack.c.h.b16 %v355
    %v1104 = vunpack.c.l.b16 %v356
    %v1105 = vunpack.c.h.b16 %v356
    %v1106 = vunpack.c.l.b16 %v357
    %v1107 = vunpack.c.h.b16 %v357
    %v1108 = vunpack.c.l.b16 %v358
    %v1109 = vunpack.c.h.b16 %v358
    %v1110 = vunpack.c.l.b16 %v359
    %v1111 = vunpack.c.h.b16 %v359
    %v1112 = vunpack.c.l.b16 %v360
    %v1113 = vunpack.c.h.b16 %v360
    %v1114 = vunpack.c.l.b16 %v361
    %v1115 = vunpack.c.h.b16 %v361
    %v1116 = vunpack.c.l.b16 %v362
    %v1117 = vunpack.c.h.b16 %v362
    %v1118 = vunpack.c.l.b16 %v363
    %v1119 = vunpack.c.h.b16 %v363
    %v1120 = vunpack.c.l.b16 %v364
    %v1121 = vunpack.c.h.b16 %v364
    %v1122 = vunpack.c.l.b16 %v365
    %v1123 = vunpack.c.h.b16 %v365
    %v1124 = vunpack.c.l.b16 %v366
    %v1125 = vunpack.c.h.b16 %v366
    %v1126 = vunpack.c.l.b16 %v367
    %v1127 = vunpack.c.h.b16 %v367
    %v1128 = vunpack.c.l.b16 %v368
    %v1129 = vunpack.c.h.b16 %v368
    %v1130 = vunpack.c.l.b16 %v369
    %v1131 = vunpack.c.h.b16 %v369
    %v1132 = vunpack.c.l.b16 %v370
    %v1133 = vunpack.c.h.b16 %v370
    %v1134 = vunpack.c.l.b16 %v371
    %v1135 = vunpack.c.h.b16 %v371
    %v1136 = vunpack.c.l.b16 %v372
    %v1137 = vunpack.c.h.b16 %v372
    %v1138 = vunpack.c.l.b16 %v373
    %v1139 = vunpack.c.h.b16 %v373
    %v1140 = vunpack.c.l.b16 %v374
    %v1141 = vunpack.c.h.b16 %v374
    %v1142 = vunpack.c.l.b16 %v375
    %v1143 = vunpack.c.h.b16 %v375
    %v1144 = vpack.c.b16 %v636, %v632
    %v1145 = vpack.c.b16 %v637, %v633
    %v1146 = vpack.c.b16 %v638, %v634
    %v1147 = vpack.c.b16 %v639, %v635
    %v1148 = vpack.c.b16 %v644, %v640
    %v1149 = vpack.c.b16 %v645, %v641
    %v1150 = vpack.c.b16 %v646, %v642
    %v1151 = vpack.c.b16 %v647, %v643
    %v1152 = vpack.c.b16 %v652, %v648
    %v1153 = vpack.c.b16 %v653, %v649
    %v1154 = vpack.c.b16 %v654, %v650
    %v1155 = vpack.c.b16 %v655, %v651
    %v1156 = vpack.c.b16 %v660, %v656
    %v1157 = vpack.c.b16 %v661, %v657
    %v1158 = vpack.c.b16 %v662, %v658
    %v1159 = vpack.c.b16 %v663, %v659
    %v1160 = vpack.c.b16 %v668, %v664
    %v1161 = vpack.c.b16 %v669, %v665
    %v1162 = vpack.c.b16 %v670, %v666
    %v1163 = vpack.c.b16 %v671, %v667
    %v1164 = vpack.c.b16 %v676, %v672
    %v1165 = vpack.c.b16 %v677, %v673
    %v1166 = vpack.c.b16 %v678, %v674
    %v1167 = vpack.c.b16 %v679, %v675
    %v1168 = vpack.c.b16 %v684, %v680
    %v1169 = vpack.c.b16 %v685, %v681
    %v1170 = vpack.c.b16 %v686, %v682
    %v1171 = vpack.c.b16 %v687, %v683
    %v1172 = vpack.c.b16 %v692, %v688
    %v1173 = vpack.c.b16 %v693, %v689
    %v1174 = vpack.c.b16 %v694, %v690
    %v1175 = vpack.c.b16 %v695, %v691
    %v1176 = vpack.c.b16 %v700, %v696
    %v1177 = vpack.c.b16 %v701, %v697
    %v1178 = vpack.c.b16 %v702, %v698
    %v1179 = vpack.c.b16 %v703, %v699
    %v1180 = vpack.c.b16 %v708, %v704
    %v1181 = vpack.c.b16 %v709, %v705
    %v1182 = vpack.c.b16 %v710, %v706
    %v1183 = vpack.c.b16 %v711, %v707
    %v1184 = vpack.c.b16 %v716, %v712
    %v1185 = vpack.c.b16 %v717, %v713
    %v1186 = vpack.c.b16 %v718, %v714
    %v1187 = vpack.c.b16 %v719, %v715
    %v1188 = vpack.c.b16 %v724, %v720
    %v1189 = vpack.c.b16 %v725, %v721
    %v1190 = vpack.c.b16 %v726, %v722
    %v1191 = vpack.c.b16 %v727, %v723
    %v1192 = vpack.c.b16 %v732, %v728
    %v1193 = vpack.c.b16 %v733, %v729
    %v1194 = vpack.c.b16 %v734, %v730
    %v1195 = vpack.c.b16 %v735, %v731
    %v1196 = vpack.c.b16 %v740, %v736
    %v1197 = vpack.c.b16 %v741, %v737
    %v1198 = vpack.c.b16 %v742, %v738
    %v1199 = vpack.c.b16 %v743, %v739
    %v1200 = vpack.c.b16 %v748, %v744
    %v1201 = vpack.c.b16 %v749, %v745
    %v1202 = vpack.c.b16 %v750, %v746
    %v1203 = vpack.c.b16 %v751, %v747
    %v1204 = vpack.c.b16 %v756, %v752
    %v1205 = vpack.c.b16 %v757, %v753
    %v1206 = vpack.c.b16 %v758, %v754
    %v1207 = vpack.c.b16 %v759, %v755
    %v1208 = vpack.c.b16 %v764, %v760
    %v1209 = vpack.c.b16 %v765, %v761
    %v1210 = vpack.c.b16 %v766, %v762
    %v1211 = vpack.c.b16 %v767, %v763
    %v1212 = vpack.c.b16 %v772, %v768
    %v1213 = vpack.c.b16 %v773, %v769
    %v1214 = vpack.c.b16 %v774, %v770
    %v1215 = vpack.c.b16 %v775, %v771
    %v1216 = vpack.c.b16 %v780, %v776
    %v1217 = vpack.c.b16 %v781, %v777
    %v1218 = vpack.c.b16 %v782, %v778
    %v1219 = vpack.c.b16 %v783, %v779
    %v1220 = vpack.c.b16 %v788, %v784
    %v1221 = vpack.c.b16 %v789, %v785
    %v1222 = vpack.c.b16 %v790, %v786
    %v1223 = vpack.c.b16 %v791, %v787
    %v1224 = vpack.c.b16 %v796, %v792
    %v1225 = vpack.c.b16 %v797, %v793
    %v1226 = vpack.c.b16 %v798, %v794
    %v1227 = vpack.c.b16 %v799, %v795
    %v1228 = vpack.c.b16 %v804, %v800
    %v1229 = vpack.c.b16 %v805, %v801
    %v1230 = vpack.c.b16 %v806, %v802
    %v1231 = vpack.c.b16 %v807, %v803
    %v1232 = vpack.c.b16 %v812, %v808
    %v1233 = vpack.c.b16 %v813, %v809
    %v1234 = vpack.c.b16 %v814, %v810
    %v1235 = vpack.c.b16 %v815, %v811
    %v1236 = vpack.c.b16 %v820, %v816
    %v1237 = vpack.c.b16 %v821, %v817
    %v1238 = vpack.c.b16 %v822, %v818
    %v1239 = vpack.c.b16 %v823, %v819
    %v1240 = vpack.c.b16 %v828, %v824
    %v1241 = vpack.c.b16 %v829, %v825
    %v1242 = vpack.c.b16 %v830, %v826
    %v1243 = vpack.c.b16 %v831, %v827
    %v1244 = vpack.c.b16 %v836, %v832
    %v1245 = vpack.c.b16 %v837, %v833
    %v1246 = vpack.c.b16 %v838, %v834
    %v1247 = vpack.c.b16 %v839, %v835
    %v1248 = vpack.c.b16 %v844, %v840
    %v1249 = vpack.c.b16 %v845, %v841
    %v1250 = vpack.c.b16 %v846, %v842
    %v1251 = vpack.c.b16 %v847, %v843
    %v1252 = vpack.c.b16 %v852, %v848
    %v1253 = vpack.c.b16 %v853, %v849
    %v1254 = vpack.c.b16 %v854, %v850
    %v1255 = vpack.c.b16 %v855, %v851
    %v1256 = vpack.c.b16 %v860, %v856
    %v1257 = vpack.c.b16 %v861, %v857
    %v1258 = vpack.c.b16 %v862, %v858
    %v1259 = vpack.c.b16 %v863, %v859
    %v1260 = vpack.c.b16 %v868, %v864
    %v1261 = vpack.c.b16 %v869, %v865
    %v1262 = vpack.c.b16 %v870, %v866
    %v1263 = vpack.c.b16 %v871, %v867
    %v1264 = vpack.c.b16 %v876, %v872
    %v1265 = vpack.c.b16 %v877, %v873
    %v1266 = vpack.c.b16 %v878, %v874
    %v1267 = vpack.c.b16 %v879, %v875
    %v1268 = vpack.c.b16 %v884, %v880
    %v1269 = vpack.c.b16 %v885, %v881
    %v1270 = vpack.c.b16 %v886, %v882
    %v1271 = vpack.c.b16 %v887, %v883
    %v1272 = vpack.c.b16 %v892, %v888
    %v1273 = vpack.c.b16 %v893, %v889
    %v1274 = vpack.c.b16 %v894, %v890
    %v1275 = vpack.c.b16 %v895, %v891
    %v1276 = vpack.c.b16 %v900, %v896
    %v1277 = vpack.c.b16 %v901, %v897
    %v1278 = vpack.c.b16 %v902, %v898
    %v1279 = vpack.c.b16 %v903, %v899
    %v1280 = vpack.c.b16 %v908, %v904
    %v1281 = vpack.c.b16 %v909, %v905
    %v1282 = vpack.c.b16 %v910, %v906
    %v1283 = vpack.c.b16 %v911, %v907
    %v1284 = vpack.c.b16 %v916, %v912
    %v1285 = vpack.c.b16 %v917, %v913
    %v1286 = vpack.c.b16 %v918, %v914
    %v1287 = vpack.c.b16 %v919, %v915
    %v1288 = vpack.c.b16 %v924, %v920
    %v1289 = vpack.c.b16 %v925, %v921
    %v1290 = vpack.c.b16 %v926, %v922
    %v1291 = vpack.c.b16 %v927, %v923
    %v1292 = vpack.c.b16 %v932, %v928
    %v1293 = vpack.c.b16 %v933, %v929
    %v1294 = vpack.c.b16 %v934, %v930
    %v1295 = vpack.c.b16 %v935, %v931
    %v1296 = vpack.c.b16 %v940, %v936
    %v1297 = vpack.c.b16 %v941, %v937
    %v1298 = vpack.c.b16 %v942, %v938
    %v1299 = vpack.c.b16 %v943, %v939
    %v1300 = vpack.c.b16 %v948, %v944
    %v1301 = vpack.c.b16 %v949, %v945
    %v1302 = vpack.c.b16 %v950, %v946
    %v1303 = vpack.c.b16 %v951, %v947
    %v1304 = vpack.c.b16 %v956, %v952
    %v1305 = vpack.c.b16 %v957, %v953
    %v1306 = vpack.c.b16 %v958, %v954
    %v1307 = vpack.c.b16 %v959, %v955
    %v1308 = vpack.c.b16 %v964, %v960
    %v1309 = vpack.c.b16 %v965, %v961
    %v1310 = vpack.c.b16 %v966, %v962
    %v1311 = vpack.c.b16 %v967, %v963
    %v1312 = vpack.c.b16 %v972, %v968
    %v1313 = vpack.c.b16 %v973, %v969
    %v1314 = vpack.c.b16 %v974, %v970
    %v1315 = vpack.c.b16 %v975, %v971
    %v1316 = vpack.c.b16 %v980, %v976
    %v1317 = vpack.c.b16 %v981, %v977
    %v1318 = vpack.c.b16 %v982, %v978
    %v1319 = vpack.c.b16 %v983, %v979
    %v1320 = vpack.c.b16 %v988, %v984
    %v1321 = vpack.c.b16 %v989, %v985
    %v1322 = vpack.c.b16 %v990, %v986
    %v1323 = vpack.c.b16 %v991, %v987
    %v1324 = vpack.c.b16 %v996, %v992
    %v1325 = vpack.c.b16 %v997, %v993
    %v1326 = vpack.c.b16 %v998, %v994
    %v1327 = vpack.c.b16 %v999, %v995
    %v1328 = vpack.c.b16 %v1004, %v1000
    %v1329 = vpack.c.b16 %v1005, %v1001
    %v1330 = vpack.c.b16 %v1006, %v1002
    %v1331 = vpack.c.b16 %v1007, %v1003
    %v1332 = vpack.c.b16 %v1012, %v1008
    %v1333 = vpack.c.b16 %v1013, %v1009
    %v1334 = vpack.c.b16 %v1014, %v1010
    %v1335 = vpack.c.b16 %v1015, %v1011
    %v1336 = vpack.c.b16 %v1020, %v1016
    %v1337 = vpack.c.b16 %v1021, %v1017
    %v1338 = vpack.c.b16 %v1022, %v1018
    %v1339 = vpack.c.b16 %v1023, %v1019
    %v1340 = vpack.c.b16 %v1028, %v1024
    %v1341 = vpack.c.b16 %v1029, %v1025
    %v1342 = vpack.c.b16 %v1030, %v1026
    %v1343 = vpack.c.b16 %v1031, %v1027
    %v1344 = vpack.c.b16 %v1036, %v1032
    %v1345 = vpack.c.b16 %v1037, %v1033
    %v1346 = vpack.c.b16 %v1038, %v1034
    %v1347 = vpack.c.b16 %v1039, %v1035
    %v1348 = vpack.c.b16 %v1044, %v1040
    %v1349 = vpack.c.b16 %v1045, %v1041
    %v1350 = vpack.c.b16 %v1046, %v1042
    %v1351 = vpack.c.b16 %v1047, %v1043
    %v1352 = vpack.c.b16 %v1052, %v1048
    %v1353 = vpack.c.b16 %v1053, %v1049
    %v1354 = vpack.c.b16 %v1054, %v1050
    %v1355 = vpack.c.b16 %v1055, %v1051
    %v1356 = vpack.c.b16 %v1060, %v1056
    %v1357 = vpack.c.b16 %v1061, %v1057
    %v1358 = vpack.c.b16 %v1062, %v1058
    %v1359 = vpack.c.b16 %v1063, %v1059
    %v1360 = vpack.c.b16 %v1068, %v1064
    %v1361 = vpack.c.b16 %v1069, %v1065
    %v1362 = vpack.c.b16 %v1070, %v1066
    %v1363 = vpack.c.b16 %v1071, %v1067
    %v1364 = vpack.c.b16 %v1076, %v1072
    %v1365 = vpack.c.b16 %v1077, %v1073
    %v1366 = vpack.c.b16 %v1078, %v1074
    %v1367 = vpack.c.b16 %v1079, %v1075
    %v1368 = vpack.c.b16 %v1084, %v1080
    %v1369 = vpack.c.b16 %v1085, %v1081
    %v1370 = vpack.c.b16 %v1086, %v1082
    %v1371 = vpack.c.b16 %v1087, %v1083
    %v1372 = vpack.c.b16 %v1092, %v1088
    %v1373 = vpack.c.b16 %v1093, %v1089
    %v1374 = vpack.c.b16 %v1094, %v1090
    %v1375 = vpack.c.b16 %v1095, %v1091
    %v1376 = vpack.c.b16 %v1100, %v1096
    %v1377 = vpack.c.b16 %v1101, %v1097
    %v1378 = vpack.c.b16 %v1102, %v1098
    %v1379 = vpack.c.b16 %v1103, %v1099
    %v1380 = vpack.c.b16 %v1108, %v1104
    %v1381 = vpack.c.b16 %v1109, %v1105
    %v1382 = vpack.c.b16 %v1110, %v1106
    %v1383 = vpack.c.b16 %v1111, %v1107
    %v1384 = vpack.c.b16 %v1116, %v1112
    %v1385 = vpack.c.b16 %v1117, %v1113
    %v1386 = vpack.c.b16 %v1118, %v1114
    %v1387 = vpack.c.b16 %v1119, %v1115
    %v1388 = vpack.c.b16 %v1124, %v1120
    %v1389 = vpack.c.b16 %v1125, %v1121
    %v1390 = vpack.c.b16 %v1126, %v1122
    %v1391 = vpack.c.b16 %v1127, %v1123
    %v1392 = vpack.c.b16 %v1132, %v1128
    %v1393 = vpack.c.b16 %v1133, %v1129
    %v1394 = vpack.c.b16 %v1134, %v1130
    %v1395 = vpack.c.b16 %v1135, %v1131
    %v1396 = vpack.c.b16 %v1140, %v1136
    %v1397 = vpack.c.b16 %v1141, %v1137
    %v1398 = vpack.c.b16 %v1142, %v1138
    %v1399 = vpack.c.b16 %v1143, %v1139
    %1656 = vmatprep.subr.bf16.mxu0 %v1145
    %1657 = vmatpush1.bf16.msra.mxu0 %v1144
    %1658 = vmatprep.subr.bf16.mxu0 %v1149
    %1659 = vmatpush1.bf16.msra.mxu0 %v1148
    %1660 = vmatprep.subr.bf16.mxu0 %v1153
    %1661 = vmatpush1.bf16.msra.mxu0 %v1152
    %1662 = vmatprep.subr.bf16.mxu0 %v1157
    %1663 = vmatpush1.bf16.msra.mxu0 %v1156
    %1664 = vmatprep.subr.bf16.mxu0 %v1161
    %1665 = vmatpush1.bf16.msra.mxu0 %v1160
    %1666 = vmatprep.subr.bf16.mxu0 %v1165
    %1667 = vmatpush1.bf16.msra.mxu0 %v1164
    %1668 = vmatprep.subr.bf16.mxu0 %v1169
    %1669 = vmatpush1.bf16.msra.mxu0 %v1168
    %1670 = vmatprep.subr.bf16.mxu0 %v1173
    %1671 = vmatpush1.bf16.msra.mxu0 %v1172
    %1672 = vmatprep.subr.bf16.mxu0 %v1177
    %1673 = vmatpush1.bf16.msra.mxu0 %v1176
    %1674 = vmatprep.subr.bf16.mxu0 %v1181
    %1675 = vmatpush1.bf16.msra.mxu0 %v1180
    %1676 = vmatprep.subr.bf16.mxu0 %v1185
    %1677 = vmatpush1.bf16.msra.mxu0 %v1184
    %1678 = vmatprep.subr.bf16.mxu0 %v1189
    %1679 = vmatpush1.bf16.msra.mxu0 %v1188
    %1680 = vmatprep.subr.bf16.mxu0 %v1193
    %1681 = vmatpush1.bf16.msra.mxu0 %v1192
    %1682 = vmatprep.subr.bf16.mxu0 %v1197
    %1683 = vmatpush1.bf16.msra.mxu0 %v1196
    %1684 = vmatprep.subr.bf16.mxu0 %v1201
    %1685 = vmatpush1.bf16.msra.mxu0 %v1200
    %1686 = vmatprep.subr.bf16.mxu0 %v1205
    %1687 = vmatpush1.bf16.msra.mxu0 %v1204
    %1688 = vmatprep.mubr.bf16.mxu0 %v113
    %1689 = vmatmul.mubr.bf16.gmra.mrb[0].mxu0 %v112
    %v1690 = vpop.f32.mrb[0].mxu0
    %v1691 = vadd.f32 0.0, %v1690
    %v1692 = vpop.f32.mrb[0].mxu0
    %v1693 = vadd.f32 0.0, %v1692
    %v1694 = vpop.f32.mrb[0].mxu0
    %v1695 = vpop.f32.mrb[0].mxu0
    %1696 = vdwg.mxu0
    %1697 = vmatprep.subr.bf16.mxu0 %v1209
    %1698 = vmatpush1.bf16.msra.mxu0 %v1208
    %1699 = vmatprep.subr.bf16.mxu0 %v1213
    %1700 = vmatpush1.bf16.msra.mxu0 %v1212
    %1701 = vmatprep.subr.bf16.mxu0 %v1217
    %1702 = vmatpush1.bf16.msra.mxu0 %v1216
    %1703 = vmatprep.subr.bf16.mxu0 %v1221
    %1704 = vmatpush1.bf16.msra.mxu0 %v1220
    %1705 = vmatprep.subr.bf16.mxu0 %v1225
    %1706 = vmatpush1.bf16.msra.mxu0 %v1224
    %1707 = vmatprep.subr.bf16.mxu0 %v1229
    %1708 = vmatpush1.bf16.msra.mxu0 %v1228
    %1709 = vmatprep.subr.bf16.mxu0 %v1233
    %1710 = vmatpush1.bf16.msra.mxu0 %v1232
    %1711 = vmatprep.subr.bf16.mxu0 %v1237
    %1712 = vmatpush1.bf16.msra.mxu0 %v1236
    %1713 = vmatprep.subr.bf16.mxu0 %v1241
    %1714 = vmatpush1.bf16.msra.mxu0 %v1240
    %1715 = vmatprep.subr.bf16.mxu0 %v1245
    %1716 = vmatpush1.bf16.msra.mxu0 %v1244
    %1717 = vmatprep.subr.bf16.mxu0 %v1249
    %1718 = vmatpush1.bf16.msra.mxu0 %v1248
    %1719 = vmatprep.subr.bf16.mxu0 %v1253
    %1720 = vmatpush1.bf16.msra.mxu0 %v1252
    %1721 = vmatprep.subr.bf16.mxu0 %v1257
    %1722 = vmatpush1.bf16.msra.mxu0 %v1256
    %1723 = vmatprep.subr.bf16.mxu0 %v1261
    %1724 = vmatpush1.bf16.msra.mxu0 %v1260
    %1725 = vmatprep.subr.bf16.mxu0 %v1265
    %1726 = vmatpush1.bf16.msra.mxu0 %v1264
    %1727 = vmatprep.subr.bf16.mxu0 %v1269
    %1728 = vmatpush1.bf16.msra.mxu0 %v1268
    %1729 = vmatprep.mubr.bf16.mxu0 %v115
    %1730 = vmatmul.mubr.bf16.gmra.mrb[0].mxu0 %v114
    %v1731 = vpop.f32.mrb[0].mxu0
    %v1732 = vadd.f32 %v1691, %v1731
    %v1733 = vpop.f32.mrb[0].mxu0
    %v1734 = vadd.f32 %v1693, %v1733
    %v1735 = vpop.f32.mrb[0].mxu0
    %v1736 = vpop.f32.mrb[0].mxu0
    %1737 = vdwg.mxu0
    %1738 = vmatprep.subr.bf16.mxu0 %v1273
    %1739 = vmatpush1.bf16.msra.mxu0 %v1272
    %1740 = vmatprep.subr.bf16.mxu0 %v1277
    %1741 = vmatpush1.bf16.msra.mxu0 %v1276
    %1742 = vmatprep.subr.bf16.mxu0 %v1281
    %1743 = vmatpush1.bf16.msra.mxu0 %v1280
    %1744 = vmatprep.subr.bf16.mxu0 %v1285
    %1745 = vmatpush1.bf16.msra.mxu0 %v1284
    %1746 = vmatprep.subr.bf16.mxu0 %v1289
    %1747 = vmatpush1.bf16.msra.mxu0 %v1288
    %1748 = vmatprep.subr.bf16.mxu0 %v1293
    %1749 = vmatpush1.bf16.msra.mxu0 %v1292
    %1750 = vmatprep.subr.bf16.mxu0 %v1297
    %1751 = vmatpush1.bf16.msra.mxu0 %v1296
    %1752 = vmatprep.subr.bf16.mxu0 %v1301
    %1753 = vmatpush1.bf16.msra.mxu0 %v1300
    %1754 = vmatprep.subr.bf16.mxu0 %v1305
    %1755 = vmatpush1.bf16.msra.mxu0 %v1304
    %1756 = vmatprep.subr.bf16.mxu0 %v1309
    %1757 = vmatpush1.bf16.msra.mxu0 %v1308
    %1758 = vmatprep.subr.bf16.mxu0 %v1313
    %1759 = vmatpush1.bf16.msra.mxu0 %v1312
    %1760 = vmatprep.subr.bf16.mxu0 %v1317
    %1761 = vmatpush1.bf16.msra.mxu0 %v1316
    %1762 = vmatprep.subr.bf16.mxu0 %v1321
    %1763 = vmatpush1.bf16.msra.mxu0 %v1320
    %1764 = vmatprep.subr.bf16.mxu0 %v1325
    %1765 = vmatpush1.bf16.msra.mxu0 %v1324
    %1766 = vmatprep.subr.bf16.mxu0 %v1329
    %1767 = vmatpush1.bf16.msra.mxu0 %v1328
    %1768 = vmatprep.subr.bf16.mxu0 %v1333
    %1769 = vmatpush1.bf16.msra.mxu0 %v1332
    %1770 = vmatprep.mubr.bf16.mxu0 %v117
    %1771 = vmatmul.mubr.bf16.gmra.mrb[0].mxu0 %v116
    %v1772 = vpop.f32.mrb[0].mxu0
    %v1773 = vadd.f32 %v1732, %v1772
    %v1774 = vpop.f32.mrb[0].mxu0
    %v1775 = vadd.f32 %v1734, %v1774
    %v1776 = vpop.f32.mrb[0].mxu0
    %v1777 = vpop.f32.mrb[0].mxu0
    %1778 = vdwg.mxu0
    %1779 = vmatprep.subr.bf16.mxu0 %v1337
    %1780 = vmatpush1.bf16.msra.mxu0 %v1336
    %1781 = vmatprep.subr.bf16.mxu0 %v1341
    %1782 = vmatpush1.bf16.msra.mxu0 %v1340
    %1783 = vmatprep.subr.bf16.mxu0 %v1345
    %1784 = vmatpush1.bf16.msra.mxu0 %v1344
    %1785 = vmatprep.subr.bf16.mxu0 %v1349
    %1786 = vmatpush1.bf16.msra.mxu0 %v1348
    %1787 = vmatprep.subr.bf16.mxu0 %v1353
    %1788 = vmatpush1.bf16.msra.mxu0 %v1352
    %1789 = vmatprep.subr.bf16.mxu0 %v1357
    %1790 = vmatpush1.bf16.msra.mxu0 %v1356
    %1791 = vmatprep.subr.bf16.mxu0 %v1361
    %1792 = vmatpush1.bf16.msra.mxu0 %v1360
    %1793 = vmatprep.subr.bf16.mxu0 %v1365
    %1794 = vmatpush1.bf16.msra.mxu0 %v1364
    %1795 = vmatprep.subr.bf16.mxu0 %v1369
    %1796 = vmatpush1.bf16.msra.mxu0 %v1368
    %1797 = vmatprep.subr.bf16.mxu0 %v1373
    %1798 = vmatpush1.bf16.msra.mxu0 %v1372
    %1799 = vmatprep.subr.bf16.mxu0 %v1377
    %1800 = vmatpush1.bf16.msra.mxu0 %v1376
    %1801 = vmatprep.subr.bf16.mxu0 %v1381
    %1802 = vmatpush1.bf16.msra.mxu0 %v1380
    %1803 = vmatprep.subr.bf16.mxu0 %v1385
    %1804 = vmatpush1.bf16.msra.mxu0 %v1384
    %1805 = vmatprep.subr.bf16.mxu0 %v1389
    %1806 = vmatpush1.bf16.msra.mxu0 %v1388
    %1807 = vmatprep.subr.bf16.mxu0 %v1393
    %1808 = vmatpush1.bf16.msra.mxu0 %v1392
    %1809 = vmatprep.subr.bf16.mxu0 %v1397
    %1810 = vmatpush1.bf16.msra.mxu0 %v1396
    %1811 = vmatprep.mubr.bf16.mxu0 %v119
    %1812 = vmatmul.mubr.bf16.gmra.mrb[0].mxu0 %v118
    %v1813 = vpop.f32.mrb[0].mxu0
    %v1814 = vadd.f32 %v1773, %v1813
    %v1815 = vpop.f32.mrb[0].mxu0
    %v1816 = vadd.f32 %v1775, %v1815
    %v1817 = vpop.f32.mrb[0].mxu0
    %v1818 = vpop.f32.mrb[0].mxu0
    %1819 = vdwg.mxu0
    %1820 = vmatprep.subr.bf16.mxu0 %v1147
    %1821 = vmatpush1.bf16.msra.mxu0 %v1146
    %1822 = vmatprep.subr.bf16.mxu0 %v1151
    %1823 = vmatpush1.bf16.msra.mxu0 %v1150
    %1824 = vmatprep.subr.bf16.mxu0 %v1155
    %1825 = vmatpush1.bf16.msra.mxu0 %v1154
    %1826 = vmatprep.subr.bf16.mxu0 %v1159
    %1827 = vmatpush1.bf16.msra.mxu0 %v1158
    %1828 = vmatprep.subr.bf16.mxu0 %v1163
    %1829 = vmatpush1.bf16.msra.mxu0 %v1162
    %1830 = vmatprep.subr.bf16.mxu0 %v1167
    %1831 = vmatpush1.bf16.msra.mxu0 %v1166
    %1832 = vmatprep.subr.bf16.mxu0 %v1171
    %1833 = vmatpush1.bf16.msra.mxu0 %v1170
    %1834 = vmatprep.subr.bf16.mxu0 %v1175
    %1835 = vmatpush1.bf16.msra.mxu0 %v1174
    %1836 = vmatprep.subr.bf16.mxu0 %v1179
    %1837 = vmatpush1.bf16.msra.mxu0 %v1178
    %1838 = vmatprep.subr.bf16.mxu0 %v1183
    %1839 = vmatpush1.bf16.msra.mxu0 %v1182
    %1840 = vmatprep.subr.bf16.mxu0 %v1187
    %1841 = vmatpush1.bf16.msra.mxu0 %v1186
    %1842 = vmatprep.subr.bf16.mxu0 %v1191
    %1843 = vmatpush1.bf16.msra.mxu0 %v1190
    %1844 = vmatprep.subr.bf16.mxu0 %v1195
    %1845 = vmatpush1.bf16.msra.mxu0 %v1194
    %1846 = vmatprep.subr.bf16.mxu0 %v1199
    %1847 = vmatpush1.bf16.msra.mxu0 %v1198
    %1848 = vmatprep.subr.bf16.mxu0 %v1203
    %1849 = vmatpush1.bf16.msra.mxu0 %v1202
    %1850 = vmatprep.subr.bf16.mxu0 %v1207
    %1851 = vmatpush1.bf16.msra.mxu0 %v1206
    %1852 = vmatprep.mubr.bf16.mxu0 %v113
    %1853 = vmatmul.mubr.bf16.gmra.mrb[0].mxu0 %v112
    %v1854 = vpop.f32.mrb[0].mxu0
    %v1855 = vadd.f32 0.0, %v1854
    %v1856 = vpop.f32.mrb[0].mxu0
    %v1857 = vadd.f32 0.0, %v1856
    %v1858 = vpop.f32.mrb[0].mxu0
    %v1859 = vpop.f32.mrb[0].mxu0
    %1860 = vdwg.mxu0
    %1861 = vmatprep.subr.bf16.mxu0 %v1211
    %1862 = vmatpush1.bf16.msra.mxu0 %v1210
    %1863 = vmatprep.subr.bf16.mxu0 %v1215
    %1864 = vmatpush1.bf16.msra.mxu0 %v1214
    %1865 = vmatprep.subr.bf16.mxu0 %v1219
    %1866 = vmatpush1.bf16.msra.mxu0 %v1218
    %1867 = vmatprep.subr.bf16.mxu0 %v1223
    %1868 = vmatpush1.bf16.msra.mxu0 %v1222
    %1869 = vmatprep.subr.bf16.mxu0 %v1227
    %1870 = vmatpush1.bf16.msra.mxu0 %v1226
    %1871 = vmatprep.subr.bf16.mxu0 %v1231
    %1872 = vmatpush1.bf16.msra.mxu0 %v1230
    %1873 = vmatprep.subr.bf16.mxu0 %v1235
    %1874 = vmatpush1.bf16.msra.mxu0 %v1234
    %1875 = vmatprep.subr.bf16.mxu0 %v1239
    %1876 = vmatpush1.bf16.msra.mxu0 %v1238
    %1877 = vmatprep.subr.bf16.mxu0 %v1243
    %1878 = vmatpush1.bf16.msra.mxu0 %v1242
    %1879 = vmatprep.subr.bf16.mxu0 %v1247
    %1880 = vmatpush1.bf16.msra.mxu0 %v1246
    %1881 = vmatprep.subr.bf16.mxu0 %v1251
    %1882 = vmatpush1.bf16.msra.mxu0 %v1250
    %1883 = vmatprep.subr.bf16.mxu0 %v1255
    %1884 = vmatpush1.bf16.msra.mxu0 %v1254
    %1885 = vmatprep.subr.bf16.mxu0 %v1259
    %1886 = vmatpush1.bf16.msra.mxu0 %v1258
    %1887 = vmatprep.subr.bf16.mxu0 %v1263
    %1888 = vmatpush1.bf16.msra.mxu0 %v1262
    %1889 = vmatprep.subr.bf16.mxu0 %v1267
    %1890 = vmatpush1.bf16.msra.mxu0 %v1266
    %1891 = vmatprep.subr.bf16.mxu0 %v1271
    %1892 = vmatpush1.bf16.msra.mxu0 %v1270
    %1893 = vmatprep.mubr.bf16.mxu0 %v115
    %1894 = vmatmul.mubr.bf16.gmra.mrb[0].mxu0 %v114
    %v1895 = vpop.f32.mrb[0].mxu0
    %v1896 = vadd.f32 %v1855, %v1895
    %v1897 = vpop.f32.mrb[0].mxu0
    %v1898 = vadd.f32 %v1857, %v1897
    %v1899 = vpop.f32.mrb[0].mxu0
    %v1900 = vpop.f32.mrb[0].mxu0
    %1901 = vdwg.mxu0
    %1902 = vmatprep.subr.bf16.mxu0 %v1275
    %1903 = vmatpush1.bf16.msra.mxu0 %v1274
    %1904 = vmatprep.subr.bf16.mxu0 %v1279
    %1905 = vmatpush1.bf16.msra.mxu0 %v1278
    %1906 = vmatprep.subr.bf16.mxu0 %v1283
    %1907 = vmatpush1.bf16.msra.mxu0 %v1282
    %1908 = vmatprep.subr.bf16.mxu0 %v1287
    %1909 = vmatpush1.bf16.msra.mxu0 %v1286
    %1910 = vmatprep.subr.bf16.mxu0 %v1291
    %1911 = vmatpush1.bf16.msra.mxu0 %v1290
    %1912 = vmatprep.subr.bf16.mxu0 %v1295
    %1913 = vmatpush1.bf16.msra.mxu0 %v1294
    %1914 = vmatprep.subr.bf16.mxu0 %v1299
    %1915 = vmatpush1.bf16.msra.mxu0 %v1298
    %1916 = vmatprep.subr.bf16.mxu0 %v1303
    %1917 = vmatpush1.bf16.msra.mxu0 %v1302
    %1918 = vmatprep.subr.bf16.mxu0 %v1307
    %1919 = vmatpush1.bf16.msra.mxu0 %v1306
    %1920 = vmatprep.subr.bf16.mxu0 %v1311
    %1921 = vmatpush1.bf16.msra.mxu0 %v1310
    %1922 = vmatprep.subr.bf16.mxu0 %v1315
    %1923 = vmatpush1.bf16.msra.mxu0 %v1314
    %1924 = vmatprep.subr.bf16.mxu0 %v1319
    %1925 = vmatpush1.bf16.msra.mxu0 %v1318
    %1926 = vmatprep.subr.bf16.mxu0 %v1323
    %1927 = vmatpush1.bf16.msra.mxu0 %v1322
    %1928 = vmatprep.subr.bf16.mxu0 %v1327
    %1929 = vmatpush1.bf16.msra.mxu0 %v1326
    %1930 = vmatprep.subr.bf16.mxu0 %v1331
    %1931 = vmatpush1.bf16.msra.mxu0 %v1330
    %1932 = vmatprep.subr.bf16.mxu0 %v1335
    %1933 = vmatpush1.bf16.msra.mxu0 %v1334
    %1934 = vmatprep.mubr.bf16.mxu0 %v117
    %1935 = vmatmul.mubr.bf16.gmra.mrb[0].mxu0 %v116
    %v1936 = vpop.f32.mrb[0].mxu0
    %v1937 = vadd.f32 %v1896, %v1936
    %v1938 = vpop.f32.mrb[0].mxu0
    %v1939 = vadd.f32 %v1898, %v1938
    %v1940 = vpop.f32.mrb[0].mxu0
    %v1941 = vpop.f32.mrb[0].mxu0
    %1942 = vdwg.mxu0
    %1943 = vmatprep.subr.bf16.mxu0 %v1339
    %1944 = vmatpush1.bf16.msra.mxu0 %v1338
    %1945 = vmatprep.subr.bf16.mxu0 %v1343
    %1946 = vmatpush1.bf16.msra.mxu0 %v1342
    %1947 = vmatprep.subr.bf16.mxu0 %v1347
    %1948 = vmatpush1.bf16.msra.mxu0 %v1346
    %1949 = vmatprep.subr.bf16.mxu0 %v1351
    %1950 = vmatpush1.bf16.msra.mxu0 %v1350
    %1951 = vmatprep.subr.bf16.mxu0 %v1355
    %1952 = vmatpush1.bf16.msra.mxu0 %v1354
    %1953 = vmatprep.subr.bf16.mxu0 %v1359
    %1954 = vmatpush1.bf16.msra.mxu0 %v1358
    %1955 = vmatprep.subr.bf16.mxu0 %v1363
    %1956 = vmatpush1.bf16.msra.mxu0 %v1362
    %1957 = vmatprep.subr.bf16.mxu0 %v1367
    %1958 = vmatpush1.bf16.msra.mxu0 %v1366
    %1959 = vmatprep.subr.bf16.mxu0 %v1371
    %1960 = vmatpush1.bf16.msra.mxu0 %v1370
    %1961 = vmatprep.subr.bf16.mxu0 %v1375
    %1962 = vmatpush1.bf16.msra.mxu0 %v1374
    %1963 = vmatprep.subr.bf16.mxu0 %v1379
    %1964 = vmatpush1.bf16.msra.mxu0 %v1378
    %1965 = vmatprep.subr.bf16.mxu0 %v1383
    %1966 = vmatpush1.bf16.msra.mxu0 %v1382
    %1967 = vmatprep.subr.bf16.mxu0 %v1387
    %1968 = vmatpush1.bf16.msra.mxu0 %v1386
    %1969 = vmatprep.subr.bf16.mxu0 %v1391
    %1970 = vmatpush1.bf16.msra.mxu0 %v1390
    %1971 = vmatprep.subr.bf16.mxu0 %v1395
    %1972 = vmatpush1.bf16.msra.mxu0 %v1394
    %1973 = vmatprep.subr.bf16.mxu0 %v1399
    %1974 = vmatpush1.bf16.msra.mxu0 %v1398
    %1975 = vmatprep.mubr.bf16.mxu0 %v119
    %1976 = vmatmul.mubr.bf16.gmra.mrb[0].mxu0 %v118
    %v1977 = vpop.f32.mrb[0].mxu0
    %v1978 = vadd.f32 %v1937, %v1977
    %v1979 = vpop.f32.mrb[0].mxu0
    %v1980 = vadd.f32 %v1939, %v1979
    %v1981 = vpop.f32.mrb[0].mxu0
    %v1982 = vpop.f32.mrb[0].mxu0
    %1983 = vdwg.mxu0
    %v1984 = vadd.f32 %v100, %v1814
    %v1985 = vadd.f32 %v101, %v1816
    %v1986 = vadd.f32 %v102, %v1978
    %v1987 = vadd.f32 %v103, %v1980
    %1988 = vst [vmem:[#allocation2] sm:$0xff] %v1984
    %1989 = vst [vmem:[#allocation2 + $0x8] sm:$0xff] %v1985
    %1990 = vst [vmem:[#allocation2 + $0x10] sm:$0xff] %v1986
    %1991 = vst [vmem:[#allocation2 + $0x18] sm:$0xff] %v1987
    // Predicated region
    $region50: #{tpu_custom_call.1} parent=1 // pred_check
      %p1992 = pneg %p92
    $region51: #{tpu_custom_call.1} parent=1 // pred_check_branch
      %1994 = sbr.rel (%p1992) target = $region53
    $region52: #{tpu_custom_call.1} parent=1 // pred_region
      %s1995 = sld [smem:[#allocation3]]
      %s1996 = smul.u32 0, 4
      %s1997 = smul.addr %s1996, 8
      %s1998 = scalar_lea.vmem [#allocation2], %s1997
      %v1999 = vld [vmem:[%s1998] sm:$0xff]
      %v2000 = vld [vmem:[%s1998 + $0x8] sm:$0xff]
      %v2001 = vld [vmem:[%s1998 + $0x10] sm:$0xff]
      %v2002 = vld [vmem:[%s1998 + $0x18] sm:$0xff]
      %v2003 = vmul.f32 %v1999, %v1999
      %v2004 = vmul.f32 %v2000, %v2000
      %v2005 = vmul.f32 %v2001, %v2001
      %v2006 = vmul.f32 %v2002, %v2002
      %v2007 = vadd.f32 %v2003, %v2004
      %v2008 = vadd.f32 %v2007, %v2005
      %v2009 = vadd.f32 %v2008, %v2006
      %2010 = vadd.xlane.f32.xlu0 %v2009
      %v2011 = vpop.xlane.xlu0 %2010
      %v2012 = vadd.f32 %v2011, 1e-12
      %v2013 = vrsqrt.pop %v2012
      %v2014 = vmul.f32 %v1999, %v2013
      %v2015 = vmul.f32 %v2000, %v2013
      %v2016 = vmul.f32 %v2001, %v2013
      %v2017 = vmul.f32 %v2002, %v2013
      %v2018 = vpack.c.bf16 %v2014, %v2014
      %v2019 = vpack.c.bf16 %v2015, %v2015
      %v2020 = vpack.c.bf16 %v2016, %v2016
      %v2021 = vpack.c.bf16 %v2017, %v2017
      %v2022 = vld [vmem:[#allocation9] sm:$0xff]
      %v2023 = vld [vmem:[#allocation9 + $0x8] sm:$0xf]
      %v2024 = vld [vmem:[#allocation9 + $0xc] sm:$0xff]
      %v2025 = vld [vmem:[#allocation9 + $0x14] sm:$0xf]
      %v2026 = vld [vmem:[#allocation9 + $0x18] sm:$0xff]
      %v2027 = vld [vmem:[#allocation9 + $0x20] sm:$0xf]
      %v2028 = vld [vmem:[#allocation9 + $0x24] sm:$0xff]
      %v2029 = vld [vmem:[#allocation9 + $0x2c] sm:$0xf]
      %v2030 = vld [vmem:[#allocation9 + $0x30] sm:$0xff]
      %v2031 = vld [vmem:[#allocation9 + $0x38] sm:$0xf]
      %v2032 = vld [vmem:[#allocation9 + $0x3c] sm:$0xff]
      %v2033 = vld [vmem:[#allocation9 + $0x44] sm:$0xf]
      %v2034 = vld [vmem:[#allocation9 + $0x48] sm:$0xff]
      %v2035 = vld [vmem:[#allocation9 + $0x50] sm:$0xf]
      %v2036 = vld [vmem:[#allocation9 + $0x54] sm:$0xff]
      %v2037 = vld [vmem:[#allocation9 + $0x5c] sm:$0xf]
      %v2038 = vld [vmem:[#allocation9 + $0x60] sm:$0xff]
      %v2039 = vld [vmem:[#allocation9 + $0x68] sm:$0xf]
      %v2040 = vld [vmem:[#allocation9 + $0x6c] sm:$0xff]
      %v2041 = vld [vmem:[#allocation9 + $0x74] sm:$0xf]
      %v2042 = vld [vmem:[#allocation9 + $0x78] sm:$0xff]
      %v2043 = vld [vmem:[#allocation9 + $0x80] sm:$0xf]
      %v2044 = vld [vmem:[#allocation9 + $0x84] sm:$0xff]
      %v2045 = vld [vmem:[#allocation9 + $0x8c] sm:$0xf]
      %v2046 = vld [vmem:[#allocation9 + $0x90] sm:$0xff]
      %v2047 = vld [vmem:[#allocation9 + $0x98] sm:$0xf]
      %v2048 = vld [vmem:[#allocation9 + $0x9c] sm:$0xff]
      %v2049 = vld [vmem:[#allocation9 + $0xa4] sm:$0xf]
      %v2050 = vld [vmem:[#allocation9 + $0xa8] sm:$0xff]
      %v2051 = vld [vmem:[#allocation9 + $0xb0] sm:$0xf]
      %v2052 = vld [vmem:[#allocation9 + $0xb4] sm:$0xff]
      %v2053 = vld [vmem:[#allocation9 + $0xbc] sm:$0xf]
      %v2054 = vld [vmem:[#allocation9 + $0xc0] sm:$0xff]
      %v2055 = vld [vmem:[#allocation9 + $0xc8] sm:$0xf]
      %v2056 = vld [vmem:[#allocation9 + $0xcc] sm:$0xff]
      %v2057 = vld [vmem:[#allocation9 + $0xd4] sm:$0xf]
      %v2058 = vld [vmem:[#allocation9 + $0xd8] sm:$0xff]
      %v2059 = vld [vmem:[#allocation9 + $0xe0] sm:$0xf]
      %v2060 = vld [vmem:[#allocation9 + $0xe4] sm:$0xff]
      %v2061 = vld [vmem:[#allocation9 + $0xec] sm:$0xf]
      %v2062 = vld [vmem:[#allocation9 + $0xf0] sm:$0xff]
      %v2063 = vld [vmem:[#allocation9 + $0xf8] sm:$0xf]
      %v2064 = vld [vmem:[#allocation9 + $0xfc] sm:$0xff]
      %v2065 = vld [vmem:[#allocation9 + $0x104] sm:$0xf]
      %v2066 = vld [vmem:[#allocation9 + $0x108] sm:$0xff]
      %v2067 = vld [vmem:[#allocation9 + $0x110] sm:$0xf]
      %v2068 = vld [vmem:[#allocation9 + $0x114] sm:$0xff]
      %v2069 = vld [vmem:[#allocation9 + $0x11c] sm:$0xf]
      %v2070 = vld [vmem:[#allocation9 + $0x120] sm:$0xff]
      %v2071 = vld [vmem:[#allocation9 + $0x128] sm:$0xf]
      %v2072 = vld [vmem:[#allocation9 + $0x12c] sm:$0xff]
      %v2073 = vld [vmem:[#allocation9 + $0x134] sm:$0xf]
      %v2074 = vld [vmem:[#allocation9 + $0x138] sm:$0xff]
      %v2075 = vld [vmem:[#allocation9 + $0x140] sm:$0xf]
      %v2076 = vld [vmem:[#allocation9 + $0x144] sm:$0xff]
      %v2077 = vld [vmem:[#allocation9 + $0x14c] sm:$0xf]
      %v2078 = vld [vmem:[#allocation9 + $0x150] sm:$0xff]
      %v2079 = vld [vmem:[#allocation9 + $0x158] sm:$0xf]
      %v2080 = vld [vmem:[#allocation9 + $0x15c] sm:$0xff]
      %v2081 = vld [vmem:[#allocation9 + $0x164] sm:$0xf]
      %v2082 = vld [vmem:[#allocation9 + $0x168] sm:$0xff]
      %v2083 = vld [vmem:[#allocation9 + $0x170] sm:$0xf]
      %v2084 = vld [vmem:[#allocation9 + $0x174] sm:$0xff]
      %v2085 = vld [vmem:[#allocation9 + $0x17c] sm:$0xf]
      %v2086 = vld [vmem:[#allocation9 + $0x180] sm:$0xff]
      %v2087 = vld [vmem:[#allocation9 + $0x188] sm:$0xf]
      %v2088 = vld [vmem:[#allocation9 + $0x18c] sm:$0xff]
      %v2089 = vld [vmem:[#allocation9 + $0x194] sm:$0xf]
      %v2090 = vld [vmem:[#allocation9 + $0x198] sm:$0xff]
      %v2091 = vld [vmem:[#allocation9 + $0x1a0] sm:$0xf]
      %v2092 = vld [vmem:[#allocation9 + $0x1a4] sm:$0xff]
      %v2093 = vld [vmem:[#allocation9 + $0x1ac] sm:$0xf]
      %v2094 = vld [vmem:[#allocation9 + $0x1b0] sm:$0xff]
      %v2095 = vld [vmem:[#allocation9 + $0x1b8] sm:$0xf]
      %v2096 = vld [vmem:[#allocation9 + $0x1bc] sm:$0xff]
      %v2097 = vld [vmem:[#allocation9 + $0x1c4] sm:$0xf]
      %v2098 = vld [vmem:[#allocation9 + $0x1c8] sm:$0xff]
      %v2099 = vld [vmem:[#allocation9 + $0x1d0] sm:$0xf]
      %v2100 = vld [vmem:[#allocation9 + $0x1d4] sm:$0xff]
      %v2101 = vld [vmem:[#allocation9 + $0x1dc] sm:$0xf]
      %v2102 = vld [vmem:[#allocation9 + $0x1e0] sm:$0xff]
      %v2103 = vld [vmem:[#allocation9 + $0x1e8] sm:$0xf]
      %v2104 = vld [vmem:[#allocation9 + $0x1ec] sm:$0xff]
      %v2105 = vld [vmem:[#allocation9 + $0x1f4] sm:$0xf]
      %v2106 = vld [vmem:[#allocation9 + $0x1f8] sm:$0xff]
      %v2107 = vld [vmem:[#allocation9 + $0x200] sm:$0xf]
      %v2108 = vld [vmem:[#allocation9 + $0x204] sm:$0xff]
      %v2109 = vld [vmem:[#allocation9 + $0x20c] sm:$0xf]
      %v2110 = vld [vmem:[#allocation9 + $0x210] sm:$0xff]
      %v2111 = vld [vmem:[#allocation9 + $0x218] sm:$0xf]
      %v2112 = vld [vmem:[#allocation9 + $0x21c] sm:$0xff]
      %v2113 = vld [vmem:[#allocation9 + $0x224] sm:$0xf]
      %v2114 = vld [vmem:[#allocation9 + $0x228] sm:$0xff]
      %v2115 = vld [vmem:[#allocation9 + $0x230] sm:$0xf]
      %v2116 = vld [vmem:[#allocation9 + $0x234] sm:$0xff]
      %v2117 = vld [vmem:[#allocation9 + $0x23c] sm:$0xf]
      %v2118 = vld [vmem:[#allocation9 + $0x240] sm:$0xff]
      %v2119 = vld [vmem:[#allocation9 + $0x248] sm:$0xf]
      %v2120 = vld [vmem:[#allocation9 + $0x24c] sm:$0xff]
      %v2121 = vld [vmem:[#allocation9 + $0x254] sm:$0xf]
      %v2122 = vld [vmem:[#allocation9 + $0x258] sm:$0xff]
      %v2123 = vld [vmem:[#allocation9 + $0x260] sm:$0xf]
      %v2124 = vld [vmem:[#allocation9 + $0x264] sm:$0xff]
      %v2125 = vld [vmem:[#allocation9 + $0x26c] sm:$0xf]
      %v2126 = vld [vmem:[#allocation9 + $0x270] sm:$0xff]
      %v2127 = vld [vmem:[#allocation9 + $0x278] sm:$0xf]
      %v2128 = vld [vmem:[#allocation9 + $0x27c] sm:$0xff]
      %v2129 = vld [vmem:[#allocation9 + $0x284] sm:$0xf]
      %v2130 = vld [vmem:[#allocation9 + $0x288] sm:$0xff]
      %v2131 = vld [vmem:[#allocation9 + $0x290] sm:$0xf]
      %v2132 = vld [vmem:[#allocation9 + $0x294] sm:$0xff]
      %v2133 = vld [vmem:[#allocation9 + $0x29c] sm:$0xf]
      %v2134 = vld [vmem:[#allocation9 + $0x2a0] sm:$0xff]
      %v2135 = vld [vmem:[#allocation9 + $0x2a8] sm:$0xf]
      %v2136 = vld [vmem:[#allocation9 + $0x2ac] sm:$0xff]
      %v2137 = vld [vmem:[#allocation9 + $0x2b4] sm:$0xf]
      %v2138 = vld [vmem:[#allocation9 + $0x2b8] sm:$0xff]
      %v2139 = vld [vmem:[#allocation9 + $0x2c0] sm:$0xf]
      %v2140 = vld [vmem:[#allocation9 + $0x2c4] sm:$0xff]
      %v2141 = vld [vmem:[#allocation9 + $0x2cc] sm:$0xf]
      %v2142 = vld [vmem:[#allocation9 + $0x2d0] sm:$0xff]
      %v2143 = vld [vmem:[#allocation9 + $0x2d8] sm:$0xf]
      %v2144 = vld [vmem:[#allocation9 + $0x2dc] sm:$0xff]
      %v2145 = vld [vmem:[#allocation9 + $0x2e4] sm:$0xf]
      %v2146 = vld [vmem:[#allocation9 + $0x2e8] sm:$0xff]
      %v2147 = vld [vmem:[#allocation9 + $0x2f0] sm:$0xf]
      %v2148 = vld [vmem:[#allocation9 + $0x2f4] sm:$0xff]
      %v2149 = vld [vmem:[#allocation9 + $0x2fc] sm:$0xf]
      %v2278 = vunpack.c.l.b16 %v2022
      %v2279 = vunpack.c.h.b16 %v2022
      %v2280 = vunpack.c.l.b16 %v2023
      %v2281 = vunpack.c.l.b16 %v2024
      %v2282 = vunpack.c.h.b16 %v2024
      %v2283 = vunpack.c.l.b16 %v2025
      %v2284 = vunpack.c.l.b16 %v2026
      %v2285 = vunpack.c.h.b16 %v2026
      %v2286 = vunpack.c.l.b16 %v2027
      %v2287 = vunpack.c.l.b16 %v2028
      %v2288 = vunpack.c.h.b16 %v2028
      %v2289 = vunpack.c.l.b16 %v2029
      %v2290 = vunpack.c.l.b16 %v2030
      %v2291 = vunpack.c.h.b16 %v2030
      %v2292 = vunpack.c.l.b16 %v2031
      %v2293 = vunpack.c.l.b16 %v2032
      %v2294 = vunpack.c.h.b16 %v2032
      %v2295 = vunpack.c.l.b16 %v2033
      %v2296 = vunpack.c.l.b16 %v2034
      %v2297 = vunpack.c.h.b16 %v2034
      %v2298 = vunpack.c.l.b16 %v2035
      %v2299 = vunpack.c.l.b16 %v2036
      %v2300 = vunpack.c.h.b16 %v2036
      %v2301 = vunpack.c.l.b16 %v2037
      %v2302 = vunpack.c.l.b16 %v2038
      %v2303 = vunpack.c.h.b16 %v2038
      %v2304 = vunpack.c.l.b16 %v2039
      %v2305 = vunpack.c.l.b16 %v2040
      %v2306 = vunpack.c.h.b16 %v2040
      %v2307 = vunpack.c.l.b16 %v2041
      %v2308 = vunpack.c.l.b16 %v2042
      %v2309 = vunpack.c.h.b16 %v2042
      %v2310 = vunpack.c.l.b16 %v2043
      %v2311 = vunpack.c.l.b16 %v2044
      %v2312 = vunpack.c.h.b16 %v2044
      %v2313 = vunpack.c.l.b16 %v2045
      %v2314 = vunpack.c.l.b16 %v2046
      %v2315 = vunpack.c.h.b16 %v2046
      %v2316 = vunpack.c.l.b16 %v2047
      %v2317 = vunpack.c.l.b16 %v2048
      %v2318 = vunpack.c.h.b16 %v2048
      %v2319 = vunpack.c.l.b16 %v2049
      %v2320 = vunpack.c.l.b16 %v2050
      %v2321 = vunpack.c.h.b16 %v2050
      %v2322 = vunpack.c.l.b16 %v2051
      %v2323 = vunpack.c.l.b16 %v2052
      %v2324 = vunpack.c.h.b16 %v2052
      %v2325 = vunpack.c.l.b16 %v2053
      %v2326 = vunpack.c.l.b16 %v2054
      %v2327 = vunpack.c.h.b16 %v2054
      %v2328 = vunpack.c.l.b16 %v2055
      %v2329 = vunpack.c.l.b16 %v2056
      %v2330 = vunpack.c.h.b16 %v2056
      %v2331 = vunpack.c.l.b16 %v2057
      %v2332 = vunpack.c.l.b16 %v2058
      %v2333 = vunpack.c.h.b16 %v2058
      %v2334 = vunpack.c.l.b16 %v2059
      %v2335 = vunpack.c.l.b16 %v2060
      %v2336 = vunpack.c.h.b16 %v2060
      %v2337 = vunpack.c.l.b16 %v2061
      %v2338 = vunpack.c.l.b16 %v2062
      %v2339 = vunpack.c.h.b16 %v2062
      %v2340 = vunpack.c.l.b16 %v2063
      %v2341 = vunpack.c.l.b16 %v2064
      %v2342 = vunpack.c.h.b16 %v2064
      %v2343 = vunpack.c.l.b16 %v2065
      %v2344 = vunpack.c.l.b16 %v2066
      %v2345 = vunpack.c.h.b16 %v2066
      %v2346 = vunpack.c.l.b16 %v2067
      %v2347 = vunpack.c.l.b16 %v2068
      %v2348 = vunpack.c.h.b16 %v2068
      %v2349 = vunpack.c.l.b16 %v2069
      %v2350 = vunpack.c.l.b16 %v2070
      %v2351 = vunpack.c.h.b16 %v2070
      %v2352 = vunpack.c.l.b16 %v2071
      %v2353 = vunpack.c.l.b16 %v2072
      %v2354 = vunpack.c.h.b16 %v2072
      %v2355 = vunpack.c.l.b16 %v2073
      %v2356 = vunpack.c.l.b16 %v2074
      %v2357 = vunpack.c.h.b16 %v2074
      %v2358 = vunpack.c.l.b16 %v2075
      %v2359 = vunpack.c.l.b16 %v2076
      %v2360 = vunpack.c.h.b16 %v2076
      %v2361 = vunpack.c.l.b16 %v2077
      %v2362 = vunpack.c.l.b16 %v2078
      %v2363 = vunpack.c.h.b16 %v2078
      %v2364 = vunpack.c.l.b16 %v2079
      %v2365 = vunpack.c.l.b16 %v2080
      %v2366 = vunpack.c.h.b16 %v2080
      %v2367 = vunpack.c.l.b16 %v2081
      %v2368 = vunpack.c.l.b16 %v2082
      %v2369 = vunpack.c.h.b16 %v2082
      %v2370 = vunpack.c.l.b16 %v2083
      %v2371 = vunpack.c.l.b16 %v2084
      %v2372 = vunpack.c.h.b16 %v2084
      %v2373 = vunpack.c.l.b16 %v2085
      %v2374 = vunpack.c.l.b16 %v2086
      %v2375 = vunpack.c.h.b16 %v2086
      %v2376 = vunpack.c.l.b16 %v2087
      %v2377 = vunpack.c.l.b16 %v2088
      %v2378 = vunpack.c.h.b16 %v2088
      %v2379 = vunpack.c.l.b16 %v2089
      %v2380 = vunpack.c.l.b16 %v2090
      %v2381 = vunpack.c.h.b16 %v2090
      %v2382 = vunpack.c.l.b16 %v2091
      %v2383 = vunpack.c.l.b16 %v2092
      %v2384 = vunpack.c.h.b16 %v2092
      %v2385 = vunpack.c.l.b16 %v2093
      %v2386 = vunpack.c.l.b16 %v2094
      %v2387 = vunpack.c.h.b16 %v2094
      %v2388 = vunpack.c.l.b16 %v2095
      %v2389 = vunpack.c.l.b16 %v2096
      %v2390 = vunpack.c.h.b16 %v2096
      %v2391 = vunpack.c.l.b16 %v2097
      %v2392 = vunpack.c.l.b16 %v2098
      %v2393 = vunpack.c.h.b16 %v2098
      %v2394 = vunpack.c.l.b16 %v2099
      %v2395 = vunpack.c.l.b16 %v2100
      %v2396 = vunpack.c.h.b16 %v2100
      %v2397 = vunpack.c.l.b16 %v2101
      %v2398 = vunpack.c.l.b16 %v2102
      %v2399 = vunpack.c.h.b16 %v2102
      %v2400 = vunpack.c.l.b16 %v2103
      %v2401 = vunpack.c.l.b16 %v2104
      %v2402 = vunpack.c.h.b16 %v2104
      %v2403 = vunpack.c.l.b16 %v2105
      %v2404 = vunpack.c.l.b16 %v2106
      %v2405 = vunpack.c.h.b16 %v2106
      %v2406 = vunpack.c.l.b16 %v2107
      %v2407 = vunpack.c.l.b16 %v2108
      %v2408 = vunpack.c.h.b16 %v2108
      %v2409 = vunpack.c.l.b16 %v2109
      %v2410 = vunpack.c.l.b16 %v2110
      %v2411 = vunpack.c.h.b16 %v2110
      %v2412 = vunpack.c.l.b16 %v2111
      %v2413 = vunpack.c.l.b16 %v2112
      %v2414 = vunpack.c.h.b16 %v2112
      %v2415 = vunpack.c.l.b16 %v2113
      %v2416 = vunpack.c.l.b16 %v2114
      %v2417 = vunpack.c.h.b16 %v2114
      %v2418 = vunpack.c.l.b16 %v2115
      %v2419 = vunpack.c.l.b16 %v2116
      %v2420 = vunpack.c.h.b16 %v2116
      %v2421 = vunpack.c.l.b16 %v2117
      %v2422 = vunpack.c.l.b16 %v2118
      %v2423 = vunpack.c.h.b16 %v2118
      %v2424 = vunpack.c.l.b16 %v2119
      %v2425 = vunpack.c.l.b16 %v2120
      %v2426 = vunpack.c.h.b16 %v2120
      %v2427 = vunpack.c.l.b16 %v2121
      %v2428 = vunpack.c.l.b16 %v2122
      %v2429 = vunpack.c.h.b16 %v2122
      %v2430 = vunpack.c.l.b16 %v2123
      %v2431 = vunpack.c.l.b16 %v2124
      %v2432 = vunpack.c.h.b16 %v2124
      %v2433 = vunpack.c.l.b16 %v2125
      %v2434 = vunpack.c.l.b16 %v2126
      %v2435 = vunpack.c.h.b16 %v2126
      %v2436 = vunpack.c.l.b16 %v2127
      %v2437 = vunpack.c.l.b16 %v2128
      %v2438 = vunpack.c.h.b16 %v2128
      %v2439 = vunpack.c.l.b16 %v2129
      %v2440 = vunpack.c.l.b16 %v2130
      %v2441 = vunpack.c.h.b16 %v2130
      %v2442 = vunpack.c.l.b16 %v2131
      %v2443 = vunpack.c.l.b16 %v2132
      %v2444 = vunpack.c.h.b16 %v2132
      %v2445 = vunpack.c.l.b16 %v2133
      %v2446 = vunpack.c.l.b16 %v2134
      %v2447 = vunpack.c.h.b16 %v2134
      %v2448 = vunpack.c.l.b16 %v2135
      %v2449 = vunpack.c.l.b16 %v2136
      %v2450 = vunpack.c.h.b16 %v2136
      %v2451 = vunpack.c.l.b16 %v2137
      %v2452 = vunpack.c.l.b16 %v2138
      %v2453 = vunpack.c.h.b16 %v2138
      %v2454 = vunpack.c.l.b16 %v2139
      %v2455 = vunpack.c.l.b16 %v2140
      %v2456 = vunpack.c.h.b16 %v2140
      %v2457 = vunpack.c.l.b16 %v2141
      %v2458 = vunpack.c.l.b16 %v2142
      %v2459 = vunpack.c.h.b16 %v2142
      %v2460 = vunpack.c.l.b16 %v2143
      %v2461 = vunpack.c.l.b16 %v2144
      %v2462 = vunpack.c.h.b16 %v2144
      %v2463 = vunpack.c.l.b16 %v2145
      %v2464 = vunpack.c.l.b16 %v2146
      %v2465 = vunpack.c.h.b16 %v2146
      %v2466 = vunpack.c.l.b16 %v2147
      %v2467 = vunpack.c.l.b16 %v2148
      %v2468 = vunpack.c.h.b16 %v2148
      %v2469 = vunpack.c.l.b16 %v2149
      %v2470 = vpack.c.b16 %v2281, %v2278
      %v2471 = vpack.c.b16 %v2282, %v2279
      %v2472 = vpack.c.b16 %v2283, %v2280
      %v2473 = vpack.c.b16 %v2287, %v2284
      %v2474 = vpack.c.b16 %v2288, %v2285
      %v2475 = vpack.c.b16 %v2289, %v2286
      %v2476 = vpack.c.b16 %v2293, %v2290
      %v2477 = vpack.c.b16 %v2294, %v2291
      %v2478 = vpack.c.b16 %v2295, %v2292
      %v2479 = vpack.c.b16 %v2299, %v2296
      %v2480 = vpack.c.b16 %v2300, %v2297
      %v2481 = vpack.c.b16 %v2301, %v2298
      %v2482 = vpack.c.b16 %v2305, %v2302
      %v2483 = vpack.c.b16 %v2306, %v2303
      %v2484 = vpack.c.b16 %v2307, %v2304
      %v2485 = vpack.c.b16 %v2311, %v2308
      %v2486 = vpack.c.b16 %v2312, %v2309
      %v2487 = vpack.c.b16 %v2313, %v2310
      %v2488 = vpack.c.b16 %v2317, %v2314
      %v2489 = vpack.c.b16 %v2318, %v2315
      %v2490 = vpack.c.b16 %v2319, %v2316
      %v2491 = vpack.c.b16 %v2323, %v2320
      %v2492 = vpack.c.b16 %v2324, %v2321
      %v2493 = vpack.c.b16 %v2325, %v2322
      %v2494 = vpack.c.b16 %v2329, %v2326
      %v2495 = vpack.c.b16 %v2330, %v2327
      %v2496 = vpack.c.b16 %v2331, %v2328
      %v2497 = vpack.c.b16 %v2335, %v2332
      %v2498 = vpack.c.b16 %v2336, %v2333
      %v2499 = vpack.c.b16 %v2337, %v2334
      %v2500 = vpack.c.b16 %v2341, %v2338
      %v2501 = vpack.c.b16 %v2342, %v2339
      %v2502 = vpack.c.b16 %v2343, %v2340
      %v2503 = vpack.c.b16 %v2347, %v2344
      %v2504 = vpack.c.b16 %v2348, %v2345
      %v2505 = vpack.c.b16 %v2349, %v2346
      %v2506 = vpack.c.b16 %v2353, %v2350
      %v2507 = vpack.c.b16 %v2354, %v2351
      %v2508 = vpack.c.b16 %v2355, %v2352
      %v2509 = vpack.c.b16 %v2359, %v2356
      %v2510 = vpack.c.b16 %v2360, %v2357
      %v2511 = vpack.c.b16 %v2361, %v2358
      %v2512 = vpack.c.b16 %v2365, %v2362
      %v2513 = vpack.c.b16 %v2366, %v2363
      %v2514 = vpack.c.b16 %v2367, %v2364
      %v2515 = vpack.c.b16 %v2371, %v2368
      %v2516 = vpack.c.b16 %v2372, %v2369
      %v2517 = vpack.c.b16 %v2373, %v2370
      %v2518 = vpack.c.b16 %v2377, %v2374
      %v2519 = vpack.c.b16 %v2378, %v2375
      %v2520 = vpack.c.b16 %v2379, %v2376
      %v2521 = vpack.c.b16 %v2383, %v2380
      %v2522 = vpack.c.b16 %v2384, %v2381
      %v2523 = vpack.c.b16 %v2385, %v2382
      %v2524 = vpack.c.b16 %v2389, %v2386
      %v2525 = vpack.c.b16 %v2390, %v2387
      %v2526 = vpack.c.b16 %v2391, %v2388
      %v2527 = vpack.c.b16 %v2395, %v2392
      %v2528 = vpack.c.b16 %v2396, %v2393
      %v2529 = vpack.c.b16 %v2397, %v2394
      %v2530 = vpack.c.b16 %v2401, %v2398
      %v2531 = vpack.c.b16 %v2402, %v2399
      %v2532 = vpack.c.b16 %v2403, %v2400
      %v2533 = vpack.c.b16 %v2407, %v2404
      %v2534 = vpack.c.b16 %v2408, %v2405
      %v2535 = vpack.c.b16 %v2409, %v2406
      %v2536 = vpack.c.b16 %v2413, %v2410
      %v2537 = vpack.c.b16 %v2414, %v2411
      %v2538 = vpack.c.b16 %v2415, %v2412
      %v2539 = vpack.c.b16 %v2419, %v2416
      %v2540 = vpack.c.b16 %v2420, %v2417
      %v2541 = vpack.c.b16 %v2421, %v2418
      %v2542 = vpack.c.b16 %v2425, %v2422
      %v2543 = vpack.c.b16 %v2426, %v2423
      %v2544 = vpack.c.b16 %v2427, %v2424
      %v2545 = vpack.c.b16 %v2431, %v2428
      %v2546 = vpack.c.b16 %v2432, %v2429
      %v2547 = vpack.c.b16 %v2433, %v2430
      %v2548 = vpack.c.b16 %v2437, %v2434
      %v2549 = vpack.c.b16 %v2438, %v2435
      %v2550 = vpack.c.b16 %v2439, %v2436
      %v2551 = vpack.c.b16 %v2443, %v2440
      %v2552 = vpack.c.b16 %v2444, %v2441
      %v2553 = vpack.c.b16 %v2445, %v2442
      %v2554 = vpack.c.b16 %v2449, %v2446
      %v2555 = vpack.c.b16 %v2450, %v2447
      %v2556 = vpack.c.b16 %v2451, %v2448
      %v2557 = vpack.c.b16 %v2455, %v2452
      %v2558 = vpack.c.b16 %v2456, %v2453
      %v2559 = vpack.c.b16 %v2457, %v2454
      %v2560 = vpack.c.b16 %v2461, %v2458
      %v2561 = vpack.c.b16 %v2462, %v2459
      %v2562 = vpack.c.b16 %v2463, %v2460
      %v2563 = vpack.c.b16 %v2467, %v2464
      %v2564 = vpack.c.b16 %v2468, %v2465
      %v2565 = vpack.c.b16 %v2469, %v2466
      %2662 = vmatprep.subr.bf16.mxu0 %v2471
      %2663 = vmatpush1.bf16.msra.mxu0 %v2470
      %2664 = vmatprep.subr.bf16.mxu0 %v2474
      %2665 = vmatpush1.bf16.msra.mxu0 %v2473
      %2666 = vmatprep.subr.bf16.mxu0 %v2477
      %2667 = vmatpush1.bf16.msra.mxu0 %v2476
      %2668 = vmatprep.subr.bf16.mxu0 %v2480
      %2669 = vmatpush1.bf16.msra.mxu0 %v2479
      %2670 = vmatprep.subr.bf16.mxu0 %v2483
      %2671 = vmatpush1.bf16.msra.mxu0 %v2482
      %2672 = vmatprep.subr.bf16.mxu0 %v2486
      %2673 = vmatpush1.bf16.msra.mxu0 %v2485
      %2674 = vmatprep.subr.bf16.mxu0 %v2489
      %2675 = vmatpush1.bf16.msra.mxu0 %v2488
      %2676 = vmatprep.subr.bf16.mxu0 %v2492
      %2677 = vmatpush1.bf16.msra.mxu0 %v2491
      %2678 = vmatprep.subr.bf16.mxu0 %v2495
      %2679 = vmatpush1.bf16.msra.mxu0 %v2494
      %2680 = vmatprep.subr.bf16.mxu0 %v2498
      %2681 = vmatpush1.bf16.msra.mxu0 %v2497
      %2682 = vmatprep.subr.bf16.mxu0 %v2501
      %2683 = vmatpush1.bf16.msra.mxu0 %v2500
      %2684 = vmatprep.subr.bf16.mxu0 %v2504
      %2685 = vmatpush1.bf16.msra.mxu0 %v2503
      %2686 = vmatprep.subr.bf16.mxu0 %v2507
      %2687 = vmatpush1.bf16.msra.mxu0 %v2506
      %2688 = vmatprep.subr.bf16.mxu0 %v2510
      %2689 = vmatpush1.bf16.msra.mxu0 %v2509
      %2690 = vmatprep.subr.bf16.mxu0 %v2513
      %2691 = vmatpush1.bf16.msra.mxu0 %v2512
      %2692 = vmatprep.subr.bf16.mxu0 %v2516
      %2693 = vmatpush1.bf16.msra.mxu0 %v2515
      %2694 = vmatprep.mubr.bf16.mxu0 %v2019
      %2695 = vmatmul.mubr.bf16.gmra.mrb[0].mxu0 %v2018
      %v2696 = vpop.f32.mrb[0].mxu0
      %v2697 = vadd.f32 0.0, %v2696
      %v2698 = vpop.f32.mrb[0].mxu0
      %v2699 = vadd.f32 0.0, %v2698
      %v2700 = vpop.f32.mrb[0].mxu0
      %v2701 = vpop.f32.mrb[0].mxu0
      %2702 = vdwg.mxu0
      %2703 = vmatprep.subr.bf16.mxu0 %v2519
      %2704 = vmatpush1.bf16.msra.mxu0 %v2518
      %2705 = vmatprep.subr.bf16.mxu0 %v2522
      %2706 = vmatpush1.bf16.msra.mxu0 %v2521
      %2707 = vmatprep.subr.bf16.mxu0 %v2525
      %2708 = vmatpush1.bf16.msra.mxu0 %v2524
      %2709 = vmatprep.subr.bf16.mxu0 %v2528
      %2710 = vmatpush1.bf16.msra.mxu0 %v2527
      %2711 = vmatprep.subr.bf16.mxu0 %v2531
      %2712 = vmatpush1.bf16.msra.mxu0 %v2530
      %2713 = vmatprep.subr.bf16.mxu0 %v2534
      %2714 = vmatpush1.bf16.msra.mxu0 %v2533
      %2715 = vmatprep.subr.bf16.mxu0 %v2537
      %2716 = vmatpush1.bf16.msra.mxu0 %v2536
      %2717 = vmatprep.subr.bf16.mxu0 %v2540
      %2718 = vmatpush1.bf16.msra.mxu0 %v2539
      %2719 = vmatprep.subr.bf16.mxu0 %v2543
      %2720 = vmatpush1.bf16.msra.mxu0 %v2542
      %2721 = vmatprep.subr.bf16.mxu0 %v2546
      %2722 = vmatpush1.bf16.msra.mxu0 %v2545
      %2723 = vmatprep.subr.bf16.mxu0 %v2549
      %2724 = vmatpush1.bf16.msra.mxu0 %v2548
      %2725 = vmatprep.subr.bf16.mxu0 %v2552
      %2726 = vmatpush1.bf16.msra.mxu0 %v2551
      %2727 = vmatprep.subr.bf16.mxu0 %v2555
      %2728 = vmatpush1.bf16.msra.mxu0 %v2554
      %2729 = vmatprep.subr.bf16.mxu0 %v2558
      %2730 = vmatpush1.bf16.msra.mxu0 %v2557
      %2731 = vmatprep.subr.bf16.mxu0 %v2561
      %2732 = vmatpush1.bf16.msra.mxu0 %v2560
      %2733 = vmatprep.subr.bf16.mxu0 %v2564
      %2734 = vmatpush1.bf16.msra.mxu0 %v2563
      %2735 = vmatprep.mubr.bf16.mxu0 %v2021
      %2736 = vmatmul.mubr.bf16.gmra.mrb[0].mxu0 %v2020
      %v2737 = vpop.f32.mrb[0].mxu0
      %v2738 = vadd.f32 %v2697, %v2737
      %v2739 = vpop.f32.mrb[0].mxu0
      %v2740 = vadd.f32 %v2699, %v2739
      %v2741 = vpop.f32.mrb[0].mxu0
      %v2742 = vpop.f32.mrb[0].mxu0
      %2743 = vdwg.mxu0
      %2744 = vmatprep.subr.bf16.mxu0 0
      %2745 = vmatpush1.bf16.msra.mxu0 %v2472
      %2746 = vmatprep.subr.bf16.mxu0 0
      %2747 = vmatpush1.bf16.msra.mxu0 %v2475
      %2748 = vmatprep.subr.bf16.mxu0 0
      %2749 = vmatpush1.bf16.msra.mxu0 %v2478
      %2750 = vmatprep.subr.bf16.mxu0 0
      %2751 = vmatpush1.bf16.msra.mxu0 %v2481
      %2752 = vmatprep.subr.bf16.mxu0 0
      %2753 = vmatpush1.bf16.msra.mxu0 %v2484
      %2754 = vmatprep.subr.bf16.mxu0 0
      %2755 = vmatpush1.bf16.msra.mxu0 %v2487
      %2756 = vmatprep.subr.bf16.mxu0 0
      %2757 = vmatpush1.bf16.msra.mxu0 %v2490
      %2758 = vmatprep.subr.bf16.mxu0 0
      %2759 = vmatpush1.bf16.msra.mxu0 %v2493
      %2760 = vmatprep.subr.bf16.mxu0 0
      %2761 = vmatpush1.bf16.msra.mxu0 %v2496
      %2762 = vmatprep.subr.bf16.mxu0 0
      %2763 = vmatpush1.bf16.msra.mxu0 %v2499
      %2764 = vmatprep.subr.bf16.mxu0 0
      %2765 = vmatpush1.bf16.msra.mxu0 %v2502
      %2766 = vmatprep.subr.bf16.mxu0 0
      %2767 = vmatpush1.bf16.msra.mxu0 %v2505
      %2768 = vmatprep.subr.bf16.mxu0 0
      %2769 = vmatpush1.bf16.msra.mxu0 %v2508
      %2770 = vmatprep.subr.bf16.mxu0 0
      %2771 = vmatpush1.bf16.msra.mxu0 %v2511
      %2772 = vmatprep.subr.bf16.mxu0 0
      %2773 = vmatpush1.bf16.msra.mxu0 %v2514
      %2774 = vmatprep.subr.bf16.mxu0 0
      %2775 = vmatpush1.bf16.msra.mxu0 %v2517
      %2776 = vmatprep.mubr.bf16.mxu0 %v2019
      %2777 = vmatmul.mubr.bf16.gmra.mrb[0].mxu0 %v2018
      %v2778 = vpop.f32.mrb[0].mxu0
      %v2779 = vadd.f32 0.0, %v2778
      %v2780 = vpop.f32.mrb[0].mxu0
      %v2781 = vpop.f32.mrb[0].mxu0
      %v2782 = vpop.f32.mrb[0].mxu0
      %2783 = vdwg.mxu0
      %2784 = vmatprep.subr.bf16.mxu0 0
      %2785 = vmatpush1.bf16.msra.mxu0 %v2520
      %2786 = vmatprep.subr.bf16.mxu0 0
      %2787 = vmatpush1.bf16.msra.mxu0 %v2523
      %2788 = vmatprep.subr.bf16.mxu0 0
      %2789 = vmatpush1.bf16.msra.mxu0 %v2526
      %2790 = vmatprep.subr.bf16.mxu0 0
      %2791 = vmatpush1.bf16.msra.mxu0 %v2529
      %2792 = vmatprep.subr.bf16.mxu0 0
      %2793 = vmatpush1.bf16.msra.mxu0 %v2532
      %2794 = vmatprep.subr.bf16.mxu0 0
      %2795 = vmatpush1.bf16.msra.mxu0 %v2535
      %2796 = vmatprep.subr.bf16.mxu0 0
      %2797 = vmatpush1.bf16.msra.mxu0 %v2538
      %2798 = vmatprep.subr.bf16.mxu0 0
      %2799 = vmatpush1.bf16.msra.mxu0 %v2541
      %2800 = vmatprep.subr.bf16.mxu0 0
      %2801 = vmatpush1.bf16.msra.mxu0 %v2544
      %2802 = vmatprep.subr.bf16.mxu0 0
      %2803 = vmatpush1.bf16.msra.mxu0 %v2547
      %2804 = vmatprep.subr.bf16.mxu0 0
      %2805 = vmatpush1.bf16.msra.mxu0 %v2550
      %2806 = vmatprep.subr.bf16.mxu0 0
      %2807 = vmatpush1.bf16.msra.mxu0 %v2553
      %2808 = vmatprep.subr.bf16.mxu0 0
      %2809 = vmatpush1.bf16.msra.mxu0 %v2556
      %2810 = vmatprep.subr.bf16.mxu0 0
      %2811 = vmatpush1.bf16.msra.mxu0 %v2559
      %2812 = vmatprep.subr.bf16.mxu0 0
      %2813 = vmatpush1.bf16.msra.mxu0 %v2562
      %2814 = vmatprep.subr.bf16.mxu0 0
      %2815 = vmatpush1.bf16.msra.mxu0 %v2565
      %2816 = vmatprep.mubr.bf16.mxu0 %v2021
      %2817 = vmatmul.mubr.bf16.gmra.mrb[0].mxu0 %v2020
      %v2818 = vpop.f32.mrb[0].mxu0
      %v2819 = vadd.f32 %v2779, %v2818
      %v2820 = vpop.f32.mrb[0].mxu0
      %v2821 = vpop.f32.mrb[0].mxu0
      %v2822 = vpop.f32.mrb[0].mxu0
      %2823 = vdwg.mxu0
      %v2824 = vmax.f32 %v2738, 0.0
      %v2825 = vmax.f32 %v2740, 0.0
      %v2826 = vmax.f32 %v2819, 0.0
      %v2827 = vpack.c.bf16 %v2824, %v2824
      %v2828 = vpack.c.bf16 %v2825, %v2825
      %v2829 = vpack.c.bf16 %v2826, %v2826
      %v2830 = vld [vmem:[#allocation10] sm:$0xff]
      %v2831 = vld [vmem:[#allocation10 + $0x8] sm:$0xff]
      %v2832 = vld [vmem:[#allocation10 + $0x10] sm:$0xff]
      %v2833 = vld [vmem:[#allocation10 + $0x18] sm:$0xff]
      %v2834 = vld [vmem:[#allocation10 + $0x20] sm:$0xff]
      %v2835 = vld [vmem:[#allocation10 + $0x28] sm:$0xff]
      %v2836 = vld [vmem:[#allocation10 + $0x30] sm:$0xff]
      %v2837 = vld [vmem:[#allocation10 + $0x38] sm:$0xff]
      %v2838 = vld [vmem:[#allocation10 + $0x40] sm:$0xff]
      %v2839 = vld [vmem:[#allocation10 + $0x48] sm:$0xff]
      %v2840 = vld [vmem:[#allocation10 + $0x50] sm:$0xff]
      %v2841 = vld [vmem:[#allocation10 + $0x58] sm:$0xff]
      %v2842 = vld [vmem:[#allocation10 + $0x60] sm:$0xff]
      %v2843 = vld [vmem:[#allocation10 + $0x68] sm:$0xff]
      %v2844 = vld [vmem:[#allocation10 + $0x70] sm:$0xff]
      %v2845 = vld [vmem:[#allocation10 + $0x78] sm:$0xff]
      %v2846 = vld [vmem:[#allocation10 + $0x80] sm:$0xff]
      %v2847 = vld [vmem:[#allocation10 + $0x88] sm:$0xff]
      %v2848 = vld [vmem:[#allocation10 + $0x90] sm:$0xff]
      %v2849 = vld [vmem:[#allocation10 + $0x98] sm:$0xff]
      %v2850 = vld [vmem:[#allocation10 + $0xa0] sm:$0xff]
      %v2851 = vld [vmem:[#allocation10 + $0xa8] sm:$0xff]
      %v2852 = vld [vmem:[#allocation10 + $0xb0] sm:$0xff]
      %v2853 = vld [vmem:[#allocation10 + $0xb8] sm:$0xff]
      %v2854 = vld [vmem:[#allocation10 + $0xc0] sm:$0xff]
      %v2855 = vld [vmem:[#allocation10 + $0xc8] sm:$0xff]
      %v2856 = vld [vmem:[#allocation10 + $0xd0] sm:$0xff]
      %v2857 = vld [vmem:[#allocation10 + $0xd8] sm:$0xff]
      %v2858 = vld [vmem:[#allocation10 + $0xe0] sm:$0xff]
      %v2859 = vld [vmem:[#allocation10 + $0xe8] sm:$0xff]
      %v2860 = vld [vmem:[#allocation10 + $0xf0] sm:$0xff]
      %v2861 = vld [vmem:[#allocation10 + $0xf8] sm:$0xff]
      %v2894 = vunpack.c.l.b16 %v2830
      %v2895 = vunpack.c.h.b16 %v2830
      %v2896 = vunpack.c.l.b16 %v2831
      %v2897 = vunpack.c.h.b16 %v2831
      %v2898 = vunpack.c.l.b16 %v2832
      %v2899 = vunpack.c.h.b16 %v2832
      %v2900 = vunpack.c.l.b16 %v2833
      %v2901 = vunpack.c.h.b16 %v2833
      %v2902 = vunpack.c.l.b16 %v2834
      %v2903 = vunpack.c.h.b16 %v2834
      %v2904 = vunpack.c.l.b16 %v2835
      %v2905 = vunpack.c.h.b16 %v2835
      %v2906 = vunpack.c.l.b16 %v2836
      %v2907 = vunpack.c.h.b16 %v2836
      %v2908 = vunpack.c.l.b16 %v2837
      %v2909 = vunpack.c.h.b16 %v2837
      %v2910 = vunpack.c.l.b16 %v2838
      %v2911 = vunpack.c.h.b16 %v2838
      %v2912 = vunpack.c.l.b16 %v2839
      %v2913 = vunpack.c.h.b16 %v2839
      %v2914 = vunpack.c.l.b16 %v2840
      %v2915 = vunpack.c.h.b16 %v2840
      %v2916 = vunpack.c.l.b16 %v2841
      %v2917 = vunpack.c.h.b16 %v2841
      %v2918 = vunpack.c.l.b16 %v2842
      %v2919 = vunpack.c.h.b16 %v2842
      %v2920 = vunpack.c.l.b16 %v2843
      %v2921 = vunpack.c.h.b16 %v2843
      %v2922 = vunpack.c.l.b16 %v2844
      %v2923 = vunpack.c.h.b16 %v2844
      %v2924 = vunpack.c.l.b16 %v2845
      %v2925 = vunpack.c.h.b16 %v2845
      %v2926 = vunpack.c.l.b16 %v2846
      %v2927 = vunpack.c.h.b16 %v2846
      %v2928 = vunpack.c.l.b16 %v2847
      %v2929 = vunpack.c.h.b16 %v2847
      %v2930 = vunpack.c.l.b16 %v2848
      %v2931 = vunpack.c.h.b16 %v2848
      %v2932 = vunpack.c.l.b16 %v2849
      %v2933 = vunpack.c.h.b16 %v2849
      %v2934 = vunpack.c.l.b16 %v2850
      %v2935 = vunpack.c.h.b16 %v2850
      %v2936 = vunpack.c.l.b16 %v2851
      %v2937 = vunpack.c.h.b16 %v2851
      %v2938 = vunpack.c.l.b16 %v2852
      %v2939 = vunpack.c.h.b16 %v2852
      %v2940 = vunpack.c.l.b16 %v2853
      %v2941 = vunpack.c.h.b16 %v2853
      %v2942 = vunpack.c.l.b16 %v2854
      %v2943 = vunpack.c.h.b16 %v2854
      %v2944 = vunpack.c.l.b16 %v2855
      %v2945 = vunpack.c.h.b16 %v2855
      %v2946 = vunpack.c.l.b16 %v2856
      %v2947 = vunpack.c.h.b16 %v2856
      %v2948 = vunpack.c.l.b16 %v2857
      %v2949 = vunpack.c.h.b16 %v2857
      %v2950 = vunpack.c.l.b16 %v2858
      %v2951 = vunpack.c.h.b16 %v2858
      %v2952 = vunpack.c.l.b16 %v2859
      %v2953 = vunpack.c.h.b16 %v2859
      %v2954 = vunpack.c.l.b16 %v2860
      %v2955 = vunpack.c.h.b16 %v2860
      %v2956 = vunpack.c.l.b16 %v2861
      %v2957 = vunpack.c.h.b16 %v2861
      %v2958 = vpack.c.b16 %v2898, %v2894
      %v2959 = vpack.c.b16 %v2899, %v2895
      %v2960 = vpack.c.b16 %v2900, %v2896
      %v2961 = vpack.c.b16 %v2901, %v2897
      %v2962 = vpack.c.b16 %v2906, %v2902
      %v2963 = vpack.c.b16 %v2907, %v2903
      %v2964 = vpack.c.b16 %v2908, %v2904
      %v2965 = vpack.c.b16 %v2909, %v2905
      %v2966 = vpack.c.b16 %v2914, %v2910
      %v2967 = vpack.c.b16 %v2915, %v2911
      %v2968 = vpack.c.b16 %v2916, %v2912
      %v2969 = vpack.c.b16 %v2917, %v2913
      %v2970 = vpack.c.b16 %v2922, %v2918
      %v2971 = vpack.c.b16 %v2923, %v2919
      %v2972 = vpack.c.b16 %v2924, %v2920
      %v2973 = vpack.c.b16 %v2925, %v2921
      %v2974 = vpack.c.b16 %v2930, %v2926
      %v2975 = vpack.c.b16 %v2931, %v2927
      %v2976 = vpack.c.b16 %v2932, %v2928
      %v2977 = vpack.c.b16 %v2933, %v2929
      %v2978 = vpack.c.b16 %v2938, %v2934
      %v2979 = vpack.c.b16 %v2939, %v2935
      %v2980 = vpack.c.b16 %v2940, %v2936
      %v2981 = vpack.c.b16 %v2941, %v2937
      %v2982 = vpack.c.b16 %v2946, %v2942
      %v2983 = vpack.c.b16 %v2947, %v2943
      %v2984 = vpack.c.b16 %v2948, %v2944
      %v2985 = vpack.c.b16 %v2949, %v2945
      %v2986 = vpack.c.b16 %v2954, %v2950
      %v2987 = vpack.c.b16 %v2955, %v2951
      %v2988 = vpack.c.b16 %v2956, %v2952
      %v2989 = vpack.c.b16 %v2957, %v2953
      %3022 = vmatprep.subr.bf16.mxu0 %v2959
      %3023 = vmatpush1.bf16.msra.mxu0 %v2958
      %3024 = vmatprep.subr.bf16.mxu0 %v2963
      %3025 = vmatpush1.bf16.msra.mxu0 %v2962
      %3026 = vmatprep.subr.bf16.mxu0 %v2967
      %3027 = vmatpush1.bf16.msra.mxu0 %v2966
      %3028 = vmatprep.subr.bf16.mxu0 %v2971
      %3029 = vmatpush1.bf16.msra.mxu0 %v2970
      %3030 = vmatprep.subr.bf16.mxu0 %v2975
      %3031 = vmatpush1.bf16.msra.mxu0 %v2974
      %3032 = vmatprep.subr.bf16.mxu0 %v2979
      %3033 = vmatpush1.bf16.msra.mxu0 %v2978
      %3034 = vmatprep.subr.bf16.mxu0 %v2983
      %3035 = vmatpush1.bf16.msra.mxu0 %v2982
      %3036 = vmatprep.subr.bf16.mxu0 %v2987
      %3037 = vmatpush1.bf16.msra.mxu0 %v2986
      %3038 = vmatprep.subr.bf16.mxu0 0
      %3039 = vmatpush1.bf16.msra.mxu0 0
      %3040 = vmatprep.subr.bf16.mxu0 0
      %3041 = vmatpush1.bf16.msra.mxu0 0
      %3042 = vmatprep.subr.bf16.mxu0 0
      %3043 = vmatpush1.bf16.msra.mxu0 0
      %3044 = vmatprep.subr.bf16.mxu0 0
      %3045 = vmatpush1.bf16.msra.mxu0 0
      %3046 = vmatprep.subr.bf16.mxu0 0
      %3047 = vmatpush1.bf16.msra.mxu0 0
      %3048 = vmatprep.subr.bf16.mxu0 0
      %3049 = vmatpush1.bf16.msra.mxu0 0
      %3050 = vmatprep.subr.bf16.mxu0 0
      %3051 = vmatpush1.bf16.msra.mxu0 0
      %3052 = vmatprep.subr.bf16.mxu0 0
      %3053 = vmatpush1.bf16.msra.mxu0 0
      %3054 = vmatprep.mubr.bf16.mxu0 0
      %3055 = vmatmul.mubr.bf16.gmra.mrb[0].mxu0 %v2827
      %v3056 = vpop.f32.mrb[0].mxu0
      %v3057 = vadd.f32 0.0, %v3056
      %v3058 = vpop.f32.mrb[0].mxu0
      %v3059 = vadd.f32 0.0, %v3058
      %v3060 = vpop.f32.mrb[0].mxu0
      %v3061 = vpop.f32.mrb[0].mxu0
      %3062 = vdwg.mxu0
      %3063 = vmatprep.subr.bf16.mxu0 %v2961
      %3064 = vmatpush1.bf16.msra.mxu0 %v2960
      %3065 = vmatprep.subr.bf16.mxu0 %v2965
      %3066 = vmatpush1.bf16.msra.mxu0 %v2964
      %3067 = vmatprep.subr.bf16.mxu0 %v2969
      %3068 = vmatpush1.bf16.msra.mxu0 %v2968
      %3069 = vmatprep.subr.bf16.mxu0 %v2973
      %3070 = vmatpush1.bf16.msra.mxu0 %v2972
      %3071 = vmatprep.subr.bf16.mxu0 %v2977
      %3072 = vmatpush1.bf16.msra.mxu0 %v2976
      %3073 = vmatprep.subr.bf16.mxu0 %v2981
      %3074 = vmatpush1.bf16.msra.mxu0 %v2980
      %3075 = vmatprep.subr.bf16.mxu0 %v2985
      %3076 = vmatpush1.bf16.msra.mxu0 %v2984
      %3077 = vmatprep.subr.bf16.mxu0 %v2989
      %3078 = vmatpush1.bf16.msra.mxu0 %v2988
      %3079 = vmatprep.subr.bf16.mxu0 0
      %3080 = vmatpush1.bf16.msra.mxu0 0
      %3081 = vmatprep.subr.bf16.mxu0 0
      %3082 = vmatpush1.bf16.msra.mxu0 0
      %3083 = vmatprep.subr.bf16.mxu0 0
      %3084 = vmatpush1.bf16.msra.mxu0 0
      %3085 = vmatprep.subr.bf16.mxu0 0
      %3086 = vmatpush1.bf16.msra.mxu0 0
      %3087 = vmatprep.subr.bf16.mxu0 0
      %3088 = vmatpush1.bf16.msra.mxu0 0
      %3089 = vmatprep.subr.bf16.mxu0 0
      %3090 = vmatpush1.bf16.msra.mxu0 0
      %3091 = vmatprep.subr.bf16.mxu0 0
      %3092 = vmatpush1.bf16.msra.mxu0 0
      %3093 = vmatprep.subr.bf16.mxu0 0
      %3094 = vmatpush1.bf16.msra.mxu0 0
      %3095 = vmatprep.mubr.bf16.mxu0 0
      %3096 = vmatmul.mubr.bf16.gmra.mrb[0].mxu0 %v2827
      %v3097 = vpop.f32.mrb[0].mxu0
      %v3098 = vadd.f32 0.0, %v3097
      %v3099 = vpop.f32.mrb[0].mxu0
      %v3100 = vadd.f32 0.0, %v3099
      %v3101 = vpop.f32.mrb[0].mxu0
      %v3102 = vpop.f32.mrb[0].mxu0
      %3103 = vdwg.mxu0
      %v3104 = vmax.f32 %v3057, 0.0
      %v3105 = vmax.f32 %v3059, 0.0
      %v3106 = vmax.f32 %v3098, 0.0
      %v3107 = vmax.f32 %v3100, 0.0
      %v3108 = vadd.f32 %v3104, 0.0
      %v3109 = vadd.f32 %v3105, 0.0
      %v3110 = vadd.f32 %v3106, 0.0
      %v3111 = vadd.f32 %v3107, 0.0
      %s3112 = scalar_lea.vmem [#allocation10], 256
      %v3113 = vld [vmem:[%s3112] sm:$0xff]
      %v3114 = vld [vmem:[%s3112 + $0x8] sm:$0xff]
      %v3115 = vld [vmem:[%s3112 + $0x10] sm:$0xff]
      %v3116 = vld [vmem:[%s3112 + $0x18] sm:$0xff]
      %v3117 = vld [vmem:[%s3112 + $0x20] sm:$0xff]
      %v3118 = vld [vmem:[%s3112 + $0x28] sm:$0xff]
      %v3119 = vld [vmem:[%s3112 + $0x30] sm:$0xff]
      %v3120 = vld [vmem:[%s3112 + $0x38] sm:$0xff]
      %v3121 = vld [vmem:[%s3112 + $0x40] sm:$0xff]
      %v3122 = vld [vmem:[%s3112 + $0x48] sm:$0xff]
      %v3123 = vld [vmem:[%s3112 + $0x50] sm:$0xff]
      %v3124 = vld [vmem:[%s3112 + $0x58] sm:$0xff]
      %v3125 = vld [vmem:[%s3112 + $0x60] sm:$0xff]
      %v3126 = vld [vmem:[%s3112 + $0x68] sm:$0xff]
      %v3127 = vld [vmem:[%s3112 + $0x70] sm:$0xff]
      %v3128 = vld [vmem:[%s3112 + $0x78] sm:$0xff]
      %v3129 = vld [vmem:[%s3112 + $0x80] sm:$0xff]
      %v3130 = vld [vmem:[%s3112 + $0x88] sm:$0xff]
      %v3131 = vld [vmem:[%s3112 + $0x90] sm:$0xff]
      %v3132 = vld [vmem:[%s3112 + $0x98] sm:$0xff]
      %v3133 = vld [vmem:[%s3112 + $0xa0] sm:$0xff]
      %v3134 = vld [vmem:[%s3112 + $0xa8] sm:$0xff]
      %v3135 = vld [vmem:[%s3112 + $0xb0] sm:$0xff]
      %v3136 = vld [vmem:[%s3112 + $0xb8] sm:$0xff]
      %v3137 = vld [vmem:[%s3112 + $0xc0] sm:$0xff]
      %v3138 = vld [vmem:[%s3112 + $0xc8] sm:$0xff]
      %v3139 = vld [vmem:[%s3112 + $0xd0] sm:$0xff]
      %v3140 = vld [vmem:[%s3112 + $0xd8] sm:$0xff]
      %v3141 = vld [vmem:[%s3112 + $0xe0] sm:$0xff]
      %v3142 = vld [vmem:[%s3112 + $0xe8] sm:$0xff]
      %v3143 = vld [vmem:[%s3112 + $0xf0] sm:$0xff]
      %v3144 = vld [vmem:[%s3112 + $0xf8] sm:$0xff]
      %v3177 = vunpack.c.l.b16 %v3113
      %v3178 = vunpack.c.h.b16 %v3113
      %v3179 = vunpack.c.l.b16 %v3114
      %v3180 = vunpack.c.h.b16 %v3114
      %v3181 = vunpack.c.l.b16 %v3115
      %v3182 = vunpack.c.h.b16 %v3115
      %v3183 = vunpack.c.l.b16 %v3116
      %v3184 = vunpack.c.h.b16 %v3116
      %v3185 = vunpack.c.l.b16 %v3117
      %v3186 = vunpack.c.h.b16 %v3117
      %v3187 = vunpack.c.l.b16 %v3118
      %v3188 = vunpack.c.h.b16 %v3118
      %v3189 = vunpack.c.l.b16 %v3119
      %v3190 = vunpack.c.h.b16 %v3119
      %v3191 = vunpack.c.l.b16 %v3120
      %v3192 = vunpack.c.h.b16 %v3120
      %v3193 = vunpack.c.l.b16 %v3121
      %v3194 = vunpack.c.h.b16 %v3121
      %v3195 = vunpack.c.l.b16 %v3122
      %v3196 = vunpack.c.h.b16 %v3122
      %v3197 = vunpack.c.l.b16 %v3123
      %v3198 = vunpack.c.h.b16 %v3123
      %v3199 = vunpack.c.l.b16 %v3124
      %v3200 = vunpack.c.h.b16 %v3124
      %v3201 = vunpack.c.l.b16 %v3125
      %v3202 = vunpack.c.h.b16 %v3125
      %v3203 = vunpack.c.l.b16 %v3126
      %v3204 = vunpack.c.h.b16 %v3126
      %v3205 = vunpack.c.l.b16 %v3127
      %v3206 = vunpack.c.h.b16 %v3127
      %v3207 = vunpack.c.l.b16 %v3128
      %v3208 = vunpack.c.h.b16 %v3128
      %v3209 = vunpack.c.l.b16 %v3129
      %v3210 = vunpack.c.h.b16 %v3129
      %v3211 = vunpack.c.l.b16 %v3130
      %v3212 = vunpack.c.h.b16 %v3130
      %v3213 = vunpack.c.l.b16 %v3131
      %v3214 = vunpack.c.h.b16 %v3131
      %v3215 = vunpack.c.l.b16 %v3132
      %v3216 = vunpack.c.h.b16 %v3132
      %v3217 = vunpack.c.l.b16 %v3133
      %v3218 = vunpack.c.h.b16 %v3133
      %v3219 = vunpack.c.l.b16 %v3134
      %v3220 = vunpack.c.h.b16 %v3134
      %v3221 = vunpack.c.l.b16 %v3135
      %v3222 = vunpack.c.h.b16 %v3135
      %v3223 = vunpack.c.l.b16 %v3136
      %v3224 = vunpack.c.h.b16 %v3136
      %v3225 = vunpack.c.l.b16 %v3137
      %v3226 = vunpack.c.h.b16 %v3137
      %v3227 = vunpack.c.l.b16 %v3138
      %v3228 = vunpack.c.h.b16 %v3138
      %v3229 = vunpack.c.l.b16 %v3139
      %v3230 = vunpack.c.h.b16 %v3139
      %v3231 = vunpack.c.l.b16 %v3140
      %v3232 = vunpack.c.h.b16 %v3140
      %v3233 = vunpack.c.l.b16 %v3141
      %v3234 = vunpack.c.h.b16 %v3141
      %v3235 = vunpack.c.l.b16 %v3142
      %v3236 = vunpack.c.h.b16 %v3142
      %v3237 = vunpack.c.l.b16 %v3143
      %v3238 = vunpack.c.h.b16 %v3143
      %v3239 = vunpack.c.l.b16 %v3144
      %v3240 = vunpack.c.h.b16 %v3144
      %v3241 = vpack.c.b16 %v3181, %v3177
      %v3242 = vpack.c.b16 %v3182, %v3178
      %v3243 = vpack.c.b16 %v3183, %v3179
      %v3244 = vpack.c.b16 %v3184, %v3180
      %v3245 = vpack.c.b16 %v3189, %v3185
      %v3246 = vpack.c.b16 %v3190, %v3186
      %v3247 = vpack.c.b16 %v3191, %v3187
      %v3248 = vpack.c.b16 %v3192, %v3188
      %v3249 = vpack.c.b16 %v3197, %v3193
      %v3250 = vpack.c.b16 %v3198, %v3194
      %v3251 = vpack.c.b16 %v3199, %v3195
      %v3252 = vpack.c.b16 %v3200, %v3196
      %v3253 = vpack.c.b16 %v3205, %v3201
      %v3254 = vpack.c.b16 %v3206, %v3202
      %v3255 = vpack.c.b16 %v3207, %v3203
      %v3256 = vpack.c.b16 %v3208, %v3204
      %v3257 = vpack.c.b16 %v3213, %v3209
      %v3258 = vpack.c.b16 %v3214, %v3210
      %v3259 = vpack.c.b16 %v3215, %v3211
      %v3260 = vpack.c.b16 %v3216, %v3212
      %v3261 = vpack.c.b16 %v3221, %v3217
      %v3262 = vpack.c.b16 %v3222, %v3218
      %v3263 = vpack.c.b16 %v3223, %v3219
      %v3264 = vpack.c.b16 %v3224, %v3220
      %v3265 = vpack.c.b16 %v3229, %v3225
      %v3266 = vpack.c.b16 %v3230, %v3226
      %v3267 = vpack.c.b16 %v3231, %v3227
      %v3268 = vpack.c.b16 %v3232, %v3228
      %v3269 = vpack.c.b16 %v3237, %v3233
      %v3270 = vpack.c.b16 %v3238, %v3234
      %v3271 = vpack.c.b16 %v3239, %v3235
      %v3272 = vpack.c.b16 %v3240, %v3236
      %3305 = vmatprep.subr.bf16.mxu0 %v3242
      %3306 = vmatpush1.bf16.msra.mxu0 %v3241
      %3307 = vmatprep.subr.bf16.mxu0 %v3246
      %3308 = vmatpush1.bf16.msra.mxu0 %v3245
      %3309 = vmatprep.subr.bf16.mxu0 %v3250
      %3310 = vmatpush1.bf16.msra.mxu0 %v3249
      %3311 = vmatprep.subr.bf16.mxu0 %v3254
      %3312 = vmatpush1.bf16.msra.mxu0 %v3253
      %3313 = vmatprep.subr.bf16.mxu0 %v3258
      %3314 = vmatpush1.bf16.msra.mxu0 %v3257
      %3315 = vmatprep.subr.bf16.mxu0 %v3262
      %3316 = vmatpush1.bf16.msra.mxu0 %v3261
      %3317 = vmatprep.subr.bf16.mxu0 %v3266
      %3318 = vmatpush1.bf16.msra.mxu0 %v3265
      %3319 = vmatprep.subr.bf16.mxu0 %v3270
      %3320 = vmatpush1.bf16.msra.mxu0 %v3269
      %3321 = vmatprep.subr.bf16.mxu0 0
      %3322 = vmatpush1.bf16.msra.mxu0 0
      %3323 = vmatprep.subr.bf16.mxu0 0
      %3324 = vmatpush1.bf16.msra.mxu0 0
      %3325 = vmatprep.subr.bf16.mxu0 0
      %3326 = vmatpush1.bf16.msra.mxu0 0
      %3327 = vmatprep.subr.bf16.mxu0 0
      %3328 = vmatpush1.bf16.msra.mxu0 0
      %3329 = vmatprep.subr.bf16.mxu0 0
      %3330 = vmatpush1.bf16.msra.mxu0 0
      %3331 = vmatprep.subr.bf16.mxu0 0
      %3332 = vmatpush1.bf16.msra.mxu0 0
      %3333 = vmatprep.subr.bf16.mxu0 0
      %3334 = vmatpush1.bf16.msra.mxu0 0
      %3335 = vmatprep.subr.bf16.mxu0 0
      %3336 = vmatpush1.bf16.msra.mxu0 0
      %3337 = vmatprep.mubr.bf16.mxu0 0
      %3338 = vmatmul.mubr.bf16.gmra.mrb[0].mxu0 %v2828
      %v3339 = vpop.f32.mrb[0].mxu0
      %v3340 = vadd.f32 0.0, %v3339
      %v3341 = vpop.f32.mrb[0].mxu0
      %v3342 = vadd.f32 0.0, %v3341
      %v3343 = vpop.f32.mrb[0].mxu0
      %v3344 = vpop.f32.mrb[0].mxu0
      %3345 = vdwg.mxu0
      %3346 = vmatprep.subr.bf16.mxu0 %v3244
      %3347 = vmatpush1.bf16.msra.mxu0 %v3243
      %3348 = vmatprep.subr.bf16.mxu0 %v3248
      %3349 = vmatpush1.bf16.msra.mxu0 %v3247
      %3350 = vmatprep.subr.bf16.mxu0 %v3252
      %3351 = vmatpush1.bf16.msra.mxu0 %v3251
      %3352 = vmatprep.subr.bf16.mxu0 %v3256
      %3353 = vmatpush1.bf16.msra.mxu0 %v3255
      %3354 = vmatprep.subr.bf16.mxu0 %v3260
      %3355 = vmatpush1.bf16.msra.mxu0 %v3259
      %3356 = vmatprep.subr.bf16.mxu0 %v3264
      %3357 = vmatpush1.bf16.msra.mxu0 %v3263
      %3358 = vmatprep.subr.bf16.mxu0 %v3268
      %3359 = vmatpush1.bf16.msra.mxu0 %v3267
      %3360 = vmatprep.subr.bf16.mxu0 %v3272
      %3361 = vmatpush1.bf16.msra.mxu0 %v3271
      %3362 = vmatprep.subr.bf16.mxu0 0
      %3363 = vmatpush1.bf16.msra.mxu0 0
      %3364 = vmatprep.subr.bf16.mxu0 0
      %3365 = vmatpush1.bf16.msra.mxu0 0
      %3366 = vmatprep.subr.bf16.mxu0 0
      %3367 = vmatpush1.bf16.msra.mxu0 0
      %3368 = vmatprep.subr.bf16.mxu0 0
      %3369 = vmatpush1.bf16.msra.mxu0 0
      %3370 = vmatprep.subr.bf16.mxu0 0
      %3371 = vmatpush1.bf16.msra.mxu0 0
      %3372 = vmatprep.subr.bf16.mxu0 0
      %3373 = vmatpush1.bf16.msra.mxu0 0
      %3374 = vmatprep.subr.bf16.mxu0 0
      %3375 = vmatpush1.bf16.msra.mxu0 0
      %3376 = vmatprep.subr.bf16.mxu0 0
      %3377 = vmatpush1.bf16.msra.mxu0 0
      %3378 = vmatprep.mubr.bf16.mxu0 0
      %3379 = vmatmul.mubr.bf16.gmra.mrb[0].mxu0 %v2828
      %v3380 = vpop.f32.mrb[0].mxu0
      %v3381 = vadd.f32 0.0, %v3380
      %v3382 = vpop.f32.mrb[0].mxu0
      %v3383 = vadd.f32 0.0, %v3382
      %v3384 = vpop.f32.mrb[0].mxu0
      %v3385 = vpop.f32.mrb[0].mxu0
      %3386 = vdwg.mxu0
      %v3387 = vmax.f32 %v3340, 0.0
      %v3388 = vmax.f32 %v3342, 0.0
      %v3389 = vmax.f32 %v3381, 0.0
      %v3390 = vmax.f32 %v3383, 0.0
      %v3391 = vadd.f32 %v3108, %v3387
      %v3392 = vadd.f32 %v3109, %v3388
      %v3393 = vadd.f32 %v3110, %v3389
      %v3394 = vadd.f32 %v3111, %v3390
      %s3395 = scalar_lea.vmem [#allocation10], 512
      %v3396 = vld [vmem:[%s3395] sm:$0xff]
      %v3397 = vld [vmem:[%s3395 + $0x8] sm:$0xff]
      %v3398 = vld [vmem:[%s3395 + $0x10] sm:$0xff]
      %v3399 = vld [vmem:[%s3395 + $0x18] sm:$0xff]
      %v3400 = vld [vmem:[%s3395 + $0x20] sm:$0xff]
      %v3401 = vld [vmem:[%s3395 + $0x28] sm:$0xff]
      %v3402 = vld [vmem:[%s3395 + $0x30] sm:$0xff]
      %v3403 = vld [vmem:[%s3395 + $0x38] sm:$0xff]
      %v3404 = vld [vmem:[%s3395 + $0x40] sm:$0xff]
      %v3405 = vld [vmem:[%s3395 + $0x48] sm:$0xff]
      %v3406 = vld [vmem:[%s3395 + $0x50] sm:$0xff]
      %v3407 = vld [vmem:[%s3395 + $0x58] sm:$0xff]
      %v3408 = vld [vmem:[%s3395 + $0x60] sm:$0xff]
      %v3409 = vld [vmem:[%s3395 + $0x68] sm:$0xff]
      %v3410 = vld [vmem:[%s3395 + $0x70] sm:$0xff]
      %v3411 = vld [vmem:[%s3395 + $0x78] sm:$0xff]
      %v3412 = vld [vmem:[%s3395 + $0x80] sm:$0xff]
      %v3413 = vld [vmem:[%s3395 + $0x88] sm:$0xff]
      %v3414 = vld [vmem:[%s3395 + $0x90] sm:$0xff]
      %v3415 = vld [vmem:[%s3395 + $0x98] sm:$0xff]
      %v3416 = vld [vmem:[%s3395 + $0xa0] sm:$0xff]
      %v3417 = vld [vmem:[%s3395 + $0xa8] sm:$0xff]
      %v3418 = vld [vmem:[%s3395 + $0xb0] sm:$0xff]
      %v3419 = vld [vmem:[%s3395 + $0xb8] sm:$0xff]
      %v3420 = vld [vmem:[%s3395 + $0xc0] sm:$0xff]
      %v3421 = vld [vmem:[%s3395 + $0xc8] sm:$0xff]
      %v3422 = vld [vmem:[%s3395 + $0xd0] sm:$0xff]
      %v3423 = vld [vmem:[%s3395 + $0xd8] sm:$0xff]
      %v3424 = vld [vmem:[%s3395 + $0xe0] sm:$0xff]
      %v3425 = vld [vmem:[%s3395 + $0xe8] sm:$0xff]
      %v3426 = vld [vmem:[%s3395 + $0xf0] sm:$0xff]
      %v3427 = vld [vmem:[%s3395 + $0xf8] sm:$0xff]
      %v3460 = vunpack.c.l.b16 %v3396
      %v3461 = vunpack.c.h.b16 %v3396
      %v3462 = vunpack.c.l.b16 %v3397
      %v3463 = vunpack.c.h.b16 %v3397
      %v3464 = vunpack.c.l.b16 %v3398
      %v3465 = vunpack.c.h.b16 %v3398
      %v3466 = vunpack.c.l.b16 %v3399
      %v3467 = vunpack.c.h.b16 %v3399
      %v3468 = vunpack.c.l.b16 %v3400
      %v3469 = vunpack.c.h.b16 %v3400
      %v3470 = vunpack.c.l.b16 %v3401
      %v3471 = vunpack.c.h.b16 %v3401
      %v3472 = vunpack.c.l.b16 %v3402
      %v3473 = vunpack.c.h.b16 %v3402
      %v3474 = vunpack.c.l.b16 %v3403
      %v3475 = vunpack.c.h.b16 %v3403
      %v3476 = vunpack.c.l.b16 %v3404
      %v3477 = vunpack.c.h.b16 %v3404
      %v3478 = vunpack.c.l.b16 %v3405
      %v3479 = vunpack.c.h.b16 %v3405
      %v3480 = vunpack.c.l.b16 %v3406
      %v3481 = vunpack.c.h.b16 %v3406
      %v3482 = vunpack.c.l.b16 %v3407
      %v3483 = vunpack.c.h.b16 %v3407
      %v3484 = vunpack.c.l.b16 %v3408
      %v3485 = vunpack.c.h.b16 %v3408
      %v3486 = vunpack.c.l.b16 %v3409
      %v3487 = vunpack.c.h.b16 %v3409
      %v3488 = vunpack.c.l.b16 %v3410
      %v3489 = vunpack.c.h.b16 %v3410
      %v3490 = vunpack.c.l.b16 %v3411
      %v3491 = vunpack.c.h.b16 %v3411
      %v3492 = vunpack.c.l.b16 %v3412
      %v3493 = vunpack.c.h.b16 %v3412
      %v3494 = vunpack.c.l.b16 %v3413
      %v3495 = vunpack.c.h.b16 %v3413
      %v3496 = vunpack.c.l.b16 %v3414
      %v3497 = vunpack.c.h.b16 %v3414
      %v3498 = vunpack.c.l.b16 %v3415
      %v3499 = vunpack.c.h.b16 %v3415
      %v3500 = vunpack.c.l.b16 %v3416
      %v3501 = vunpack.c.h.b16 %v3416
      %v3502 = vunpack.c.l.b16 %v3417
      %v3503 = vunpack.c.h.b16 %v3417
      %v3504 = vunpack.c.l.b16 %v3418
      %v3505 = vunpack.c.h.b16 %v3418
      %v3506 = vunpack.c.l.b16 %v3419
      %v3507 = vunpack.c.h.b16 %v3419
      %v3508 = vunpack.c.l.b16 %v3420
      %v3509 = vunpack.c.h.b16 %v3420
      %v3510 = vunpack.c.l.b16 %v3421
      %v3511 = vunpack.c.h.b16 %v3421
      %v3512 = vunpack.c.l.b16 %v3422
      %v3513 = vunpack.c.h.b16 %v3422
      %v3514 = vunpack.c.l.b16 %v3423
      %v3515 = vunpack.c.h.b16 %v3423
      %v3516 = vunpack.c.l.b16 %v3424
      %v3517 = vunpack.c.h.b16 %v3424
      %v3518 = vunpack.c.l.b16 %v3425
      %v3519 = vunpack.c.h.b16 %v3425
      %v3520 = vunpack.c.l.b16 %v3426
      %v3521 = vunpack.c.h.b16 %v3426
      %v3522 = vunpack.c.l.b16 %v3427
      %v3523 = vunpack.c.h.b16 %v3427
      %v3524 = vpack.c.b16 %v3464, %v3460
      %v3525 = vpack.c.b16 %v3465, %v3461
      %v3526 = vpack.c.b16 %v3466, %v3462
      %v3527 = vpack.c.b16 %v3467, %v3463
      %v3528 = vpack.c.b16 %v3472, %v3468
      %v3529 = vpack.c.b16 %v3473, %v3469
      %v3530 = vpack.c.b16 %v3474, %v3470
      %v3531 = vpack.c.b16 %v3475, %v3471
      %v3532 = vpack.c.b16 %v3480, %v3476
      %v3533 = vpack.c.b16 %v3481, %v3477
      %v3534 = vpack.c.b16 %v3482, %v3478
      %v3535 = vpack.c.b16 %v3483, %v3479
      %v3536 = vpack.c.b16 %v3488, %v3484
      %v3537 = vpack.c.b16 %v3489, %v3485
      %v3538 = vpack.c.b16 %v3490, %v3486
      %v3539 = vpack.c.b16 %v3491, %v3487
      %v3540 = vpack.c.b16 %v3496, %v3492
      %v3541 = vpack.c.b16 %v3497, %v3493
      %v3542 = vpack.c.b16 %v3498, %v3494
      %v3543 = vpack.c.b16 %v3499, %v3495
      %v3544 = vpack.c.b16 %v3504, %v3500
      %v3545 = vpack.c.b16 %v3505, %v3501
      %v3546 = vpack.c.b16 %v3506, %v3502
      %v3547 = vpack.c.b16 %v3507, %v3503
      %v3548 = vpack.c.b16 %v3512, %v3508
      %v3549 = vpack.c.b16 %v3513, %v3509
      %v3550 = vpack.c.b16 %v3514, %v3510
      %v3551 = vpack.c.b16 %v3515, %v3511
      %v3552 = vpack.c.b16 %v3520, %v3516
      %v3553 = vpack.c.b16 %v3521, %v3517
      %v3554 = vpack.c.b16 %v3522, %v3518
      %v3555 = vpack.c.b16 %v3523, %v3519
      %3588 = vmatprep.subr.bf16.mxu0 %v3525
      %3589 = vmatpush1.bf16.msra.mxu0 %v3524
      %3590 = vmatprep.subr.bf16.mxu0 %v3529
      %3591 = vmatpush1.bf16.msra.mxu0 %v3528
      %3592 = vmatprep.subr.bf16.mxu0 %v3533
      %3593 = vmatpush1.bf16.msra.mxu0 %v3532
      %3594 = vmatprep.subr.bf16.mxu0 %v3537
      %3595 = vmatpush1.bf16.msra.mxu0 %v3536
      %3596 = vmatprep.subr.bf16.mxu0 %v3541
      %3597 = vmatpush1.bf16.msra.mxu0 %v3540
      %3598 = vmatprep.subr.bf16.mxu0 %v3545
      %3599 = vmatpush1.bf16.msra.mxu0 %v3544
      %3600 = vmatprep.subr.bf16.mxu0 %v3549
      %3601 = vmatpush1.bf16.msra.mxu0 %v3548
      %3602 = vmatprep.subr.bf16.mxu0 %v3553
      %3603 = vmatpush1.bf16.msra.mxu0 %v3552
      %3604 = vmatprep.subr.bf16.mxu0 0
      %3605 = vmatpush1.bf16.msra.mxu0 0
      %3606 = vmatprep.subr.bf16.mxu0 0
      %3607 = vmatpush1.bf16.msra.mxu0 0
      %3608 = vmatprep.subr.bf16.mxu0 0
      %3609 = vmatpush1.bf16.msra.mxu0 0
      %3610 = vmatprep.subr.bf16.mxu0 0
      %3611 = vmatpush1.bf16.msra.mxu0 0
      %3612 = vmatprep.subr.bf16.mxu0 0
      %3613 = vmatpush1.bf16.msra.mxu0 0
      %3614 = vmatprep.subr.bf16.mxu0 0
      %3615 = vmatpush1.bf16.msra.mxu0 0
      %3616 = vmatprep.subr.bf16.mxu0 0
      %3617 = vmatpush1.bf16.msra.mxu0 0
      %3618 = vmatprep.subr.bf16.mxu0 0
      %3619 = vmatpush1.bf16.msra.mxu0 0
      %3620 = vmatprep.mubr.bf16.mxu0 0
      %3621 = vmatmul.mubr.bf16.gmra.mrb[0].mxu0 %v2829
      %v3622 = vpop.f32.mrb[0].mxu0
      %v3623 = vadd.f32 0.0, %v3622
      %v3624 = vpop.f32.mrb[0].mxu0
      %v3625 = vadd.f32 0.0, %v3624
      %v3626 = vpop.f32.mrb[0].mxu0
      %v3627 = vpop.f32.mrb[0].mxu0
      %3628 = vdwg.mxu0
      %3629 = vmatprep.subr.bf16.mxu0 %v3527
      %3630 = vmatpush1.bf16.msra.mxu0 %v3526
      %3631 = vmatprep.subr.bf16.mxu0 %v3531
      %3632 = vmatpush1.bf16.msra.mxu0 %v3530
      %3633 = vmatprep.subr.bf16.mxu0 %v3535
      %3634 = vmatpush1.bf16.msra.mxu0 %v3534
      %3635 = vmatprep.subr.bf16.mxu0 %v3539
      %3636 = vmatpush1.bf16.msra.mxu0 %v3538
      %3637 = vmatprep.subr.bf16.mxu0 %v3543
      %3638 = vmatpush1.bf16.msra.mxu0 %v3542
      %3639 = vmatprep.subr.bf16.mxu0 %v3547
      %3640 = vmatpush1.bf16.msra.mxu0 %v3546
      %3641 = vmatprep.subr.bf16.mxu0 %v3551
      %3642 = vmatpush1.bf16.msra.mxu0 %v3550
      %3643 = vmatprep.subr.bf16.mxu0 %v3555
      %3644 = vmatpush1.bf16.msra.mxu0 %v3554
      %3645 = vmatprep.subr.bf16.mxu0 0
      %3646 = vmatpush1.bf16.msra.mxu0 0
      %3647 = vmatprep.subr.bf16.mxu0 0
      %3648 = vmatpush1.bf16.msra.mxu0 0
      %3649 = vmatprep.subr.bf16.mxu0 0
      %3650 = vmatpush1.bf16.msra.mxu0 0
      %3651 = vmatprep.subr.bf16.mxu0 0
      %3652 = vmatpush1.bf16.msra.mxu0 0
      %3653 = vmatprep.subr.bf16.mxu0 0
      %3654 = vmatpush1.bf16.msra.mxu0 0
      %3655 = vmatprep.subr.bf16.mxu0 0
      %3656 = vmatpush1.bf16.msra.mxu0 0
      %3657 = vmatprep.subr.bf16.mxu0 0
      %3658 = vmatpush1.bf16.msra.mxu0 0
      %3659 = vmatprep.subr.bf16.mxu0 0
      %3660 = vmatpush1.bf16.msra.mxu0 0
      %3661 = vmatprep.mubr.bf16.mxu0 0
      %3662 = vmatmul.mubr.bf16.gmra.mrb[0].mxu0 %v2829
      %v3663 = vpop.f32.mrb[0].mxu0
      %v3664 = vadd.f32 0.0, %v3663
      %v3665 = vpop.f32.mrb[0].mxu0
      %v3666 = vadd.f32 0.0, %v3665
      %v3667 = vpop.f32.mrb[0].mxu0
      %v3668 = vpop.f32.mrb[0].mxu0
      %3669 = vdwg.mxu0
      %v3670 = vmax.f32 %v3623, 0.0
      %v3671 = vmax.f32 %v3625, 0.0
      %v3672 = vmax.f32 %v3664, 0.0
      %v3673 = vmax.f32 %v3666, 0.0
      %v3674 = vadd.f32 %v3391, %v3670
      %v3675 = vadd.f32 %v3392, %v3671
      %v3676 = vadd.f32 %v3393, %v3672
      %v3677 = vadd.f32 %v3394, %v3673
      %v3678 = vstv %s1995
      %v3679 = vmul.f32 %v3678, %v3674
      %v3680 = vmul.f32 %v3678, %v3675
      %v3681 = vmul.f32 %v3678, %v3676
      %v3682 = vmul.f32 %v3678, %v3677
      %v3683 = vmul.f32 %v2014, 0.8
      %v3684 = vmul.f32 %v2015, 0.8
      %v3685 = vmul.f32 %v2016, 0.8
      %v3686 = vmul.f32 %v2017, 0.8
      %v3687 = vadd.f32 %v3679, %v3683
      %v3688 = vadd.f32 %v3680, %v3684
      %v3689 = vadd.f32 %v3681, %v3685
      %v3690 = vadd.f32 %v3682, %v3686
      %v3691 = vmul.f32 %v3687, %v3687
      %v3692 = vmul.f32 %v3688, %v3688
      %v3693 = vmul.f32 %v3689, %v3689
      %v3694 = vmul.f32 %v3690, %v3690
      %v3695 = vadd.f32 %v3691, %v3692
      %v3696 = vadd.f32 %v3695, %v3693
      %v3697 = vadd.f32 %v3696, %v3694
      %3698 = vadd.xlane.f32.xlu0 %v3697
      %v3699 = vpop.xlane.xlu0 %3698
      %v3700 = vadd.f32 %v3699, 1e-12
      %v3701 = vrsqrt.pop %v3700
      %v3702 = vmul.f32 %v3687, %v3701
      %v3703 = vmul.f32 %v3688, %v3701
      %v3704 = vmul.f32 %v3689, %v3701
      %v3705 = vmul.f32 %v3690, %v3701
      %v3706 = vpack.c.bf16 %v3702, %v3702
      %v3707 = vpack.c.bf16 %v3703, %v3703
      %v3708 = vpack.c.bf16 %v3704, %v3704
      %v3709 = vpack.c.bf16 %v3705, %v3705
      %v3710 = vld [vmem:[#allocation12] sm:$0xf]
      %v3711 = vld [vmem:[#allocation12 + $0x4] sm:$0xf]
      %v3712 = vld [vmem:[#allocation12 + $0x8] sm:$0xf]
      %v3713 = vld [vmem:[#allocation12 + $0xc] sm:$0xf]
      %v3714 = vld [vmem:[#allocation12 + $0x10] sm:$0xf]
      %v3715 = vld [vmem:[#allocation12 + $0x14] sm:$0xf]
      %v3716 = vld [vmem:[#allocation12 + $0x18] sm:$0xf]
      %v3717 = vld [vmem:[#allocation12 + $0x1c] sm:$0xf]
      %v3718 = vld [vmem:[#allocation12 + $0x20] sm:$0xf]
      %v3719 = vld [vmem:[#allocation12 + $0x24] sm:$0xf]
      %v3720 = vld [vmem:[#allocation12 + $0x28] sm:$0xf]
      %v3721 = vld [vmem:[#allocation12 + $0x2c] sm:$0xf]
      %v3722 = vld [vmem:[#allocation12 + $0x30] sm:$0xf]
      %v3723 = vld [vmem:[#allocation12 + $0x34] sm:$0xf]
      %v3724 = vld [vmem:[#allocation12 + $0x38] sm:$0xf]
      %v3725 = vld [vmem:[#allocation12 + $0x3c] sm:$0xf]
      %v3726 = vld [vmem:[#allocation12 + $0x40] sm:$0xf]
      %v3727 = vld [vmem:[#allocation12 + $0x44] sm:$0xf]
      %v3728 = vld [vmem:[#allocation12 + $0x48] sm:$0xf]
      %v3729 = vld [vmem:[#allocation12 + $0x4c] sm:$0xf]
      %v3730 = vld [vmem:[#allocation12 + $0x50] sm:$0xf]
      %v3731 = vld [vmem:[#allocation12 + $0x54] sm:$0xf]
      %v3732 = vld [vmem:[#allocation12 + $0x58] sm:$0xf]
      %v3733 = vld [vmem:[#allocation12 + $0x5c] sm:$0xf]
      %v3734 = vld [vmem:[#allocation12 + $0x60] sm:$0xf]
      %v3735 = vld [vmem:[#allocation12 + $0x64] sm:$0xf]
      %v3736 = vld [vmem:[#allocation12 + $0x68] sm:$0xf]
      %v3737 = vld [vmem:[#allocation12 + $0x6c] sm:$0xf]
      %v3738 = vld [vmem:[#allocation12 + $0x70] sm:$0xf]
      %v3739 = vld [vmem:[#allocation12 + $0x74] sm:$0xf]
      %v3740 = vld [vmem:[#allocation12 + $0x78] sm:$0xf]
      %v3741 = vld [vmem:[#allocation12 + $0x7c] sm:$0xf]
      %v3742 = vld [vmem:[#allocation12 + $0x80] sm:$0xf]
      %v3743 = vld [vmem:[#allocation12 + $0x84] sm:$0xf]
      %v3744 = vld [vmem:[#allocation12 + $0x88] sm:$0xf]
      %v3745 = vld [vmem:[#allocation12 + $0x8c] sm:$0xf]
      %v3746 = vld [vmem:[#allocation12 + $0x90] sm:$0xf]
      %v3747 = vld [vmem:[#allocation12 + $0x94] sm:$0xf]
      %v3748 = vld [vmem:[#allocation12 + $0x98] sm:$0xf]
      %v3749 = vld [vmem:[#allocation12 + $0x9c] sm:$0xf]
      %v3750 = vld [vmem:[#allocation12 + $0xa0] sm:$0xf]
      %v3751 = vld [vmem:[#allocation12 + $0xa4] sm:$0xf]
      %v3752 = vld [vmem:[#allocation12 + $0xa8] sm:$0xf]
      %v3753 = vld [vmem:[#allocation12 + $0xac] sm:$0xf]
      %v3754 = vld [vmem:[#allocation12 + $0xb0] sm:$0xf]
      %v3755 = vld [vmem:[#allocation12 + $0xb4] sm:$0xf]
      %v3756 = vld [vmem:[#allocation12 + $0xb8] sm:$0xf]
      %v3757 = vld [vmem:[#allocation12 + $0xbc] sm:$0xf]
      %v3758 = vld [vmem:[#allocation12 + $0xc0] sm:$0xf]
      %v3759 = vld [vmem:[#allocation12 + $0xc4] sm:$0xf]
      %v3760 = vld [vmem:[#allocation12 + $0xc8] sm:$0xf]
      %v3761 = vld [vmem:[#allocation12 + $0xcc] sm:$0xf]
      %v3762 = vld [vmem:[#allocation12 + $0xd0] sm:$0xf]
      %v3763 = vld [vmem:[#allocation12 + $0xd4] sm:$0xf]
      %v3764 = vld [vmem:[#allocation12 + $0xd8] sm:$0xf]
      %v3765 = vld [vmem:[#allocation12 + $0xdc] sm:$0xf]
      %v3766 = vld [vmem:[#allocation12 + $0xe0] sm:$0xf]
      %v3767 = vld [vmem:[#allocation12 + $0xe4] sm:$0xf]
      %v3768 = vld [vmem:[#allocation12 + $0xe8] sm:$0xf]
      %v3769 = vld [vmem:[#allocation12 + $0xec] sm:$0xf]
      %v3770 = vld [vmem:[#allocation12 + $0xf0] sm:$0xf]
      %v3771 = vld [vmem:[#allocation12 + $0xf4] sm:$0xf]
      %v3772 = vld [vmem:[#allocation12 + $0xf8] sm:$0xf]
      %v3773 = vld [vmem:[#allocation12 + $0xfc] sm:$0xf]
      %v3838 = vunpack.c.l.b16 %v3710
      %v3839 = vunpack.c.l.b16 %v3711
      %v3840 = vunpack.c.l.b16 %v3712
      %v3841 = vunpack.c.l.b16 %v3713
      %v3842 = vunpack.c.l.b16 %v3714
      %v3843 = vunpack.c.l.b16 %v3715
      %v3844 = vunpack.c.l.b16 %v3716
      %v3845 = vunpack.c.l.b16 %v3717
      %v3846 = vunpack.c.l.b16 %v3718
      %v3847 = vunpack.c.l.b16 %v3719
      %v3848 = vunpack.c.l.b16 %v3720
      %v3849 = vunpack.c.l.b16 %v3721
      %v3850 = vunpack.c.l.b16 %v3722
      %v3851 = vunpack.c.l.b16 %v3723
      %v3852 = vunpack.c.l.b16 %v3724
      %v3853 = vunpack.c.l.b16 %v3725
      %v3854 = vunpack.c.l.b16 %v3726
      %v3855 = vunpack.c.l.b16 %v3727
      %v3856 = vunpack.c.l.b16 %v3728
      %v3857 = vunpack.c.l.b16 %v3729
      %v3858 = vunpack.c.l.b16 %v3730
      %v3859 = vunpack.c.l.b16 %v3731
      %v3860 = vunpack.c.l.b16 %v3732
      %v3861 = vunpack.c.l.b16 %v3733
      %v3862 = vunpack.c.l.b16 %v3734
      %v3863 = vunpack.c.l.b16 %v3735
      %v3864 = vunpack.c.l.b16 %v3736
      %v3865 = vunpack.c.l.b16 %v3737
      %v3866 = vunpack.c.l.b16 %v3738
      %v3867 = vunpack.c.l.b16 %v3739
      %v3868 = vunpack.c.l.b16 %v3740
      %v3869 = vunpack.c.l.b16 %v3741
      %v3870 = vunpack.c.l.b16 %v3742
      %v3871 = vunpack.c.l.b16 %v3743
      %v3872 = vunpack.c.l.b16 %v3744
      %v3873 = vunpack.c.l.b16 %v3745
      %v3874 = vunpack.c.l.b16 %v3746
      %v3875 = vunpack.c.l.b16 %v3747
      %v3876 = vunpack.c.l.b16 %v3748
      %v3877 = vunpack.c.l.b16 %v3749
      %v3878 = vunpack.c.l.b16 %v3750
      %v3879 = vunpack.c.l.b16 %v3751
      %v3880 = vunpack.c.l.b16 %v3752
      %v3881 = vunpack.c.l.b16 %v3753
      %v3882 = vunpack.c.l.b16 %v3754
      %v3883 = vunpack.c.l.b16 %v3755
      %v3884 = vunpack.c.l.b16 %v3756
      %v3885 = vunpack.c.l.b16 %v3757
      %v3886 = vunpack.c.l.b16 %v3758
      %v3887 = vunpack.c.l.b16 %v3759
      %v3888 = vunpack.c.l.b16 %v3760
      %v3889 = vunpack.c.l.b16 %v3761
      %v3890 = vunpack.c.l.b16 %v3762
      %v3891 = vunpack.c.l.b16 %v3763
      %v3892 = vunpack.c.l.b16 %v3764
      %v3893 = vunpack.c.l.b16 %v3765
      %v3894 = vunpack.c.l.b16 %v3766
      %v3895 = vunpack.c.l.b16 %v3767
      %v3896 = vunpack.c.l.b16 %v3768
      %v3897 = vunpack.c.l.b16 %v3769
      %v3898 = vunpack.c.l.b16 %v3770
      %v3899 = vunpack.c.l.b16 %v3771
      %v3900 = vunpack.c.l.b16 %v3772
      %v3901 = vunpack.c.l.b16 %v3773
      %v3902 = vpack.c.b16 %v3839, %v3838
      %v3903 = vpack.c.b16 %v3841, %v3840
      %v3904 = vpack.c.b16 %v3843, %v3842
      %v3905 = vpack.c.b16 %v3845, %v3844
      %v3906 = vpack.c.b16 %v3847, %v3846
      %v3907 = vpack.c.b16 %v3849, %v3848
      %v3908 = vpack.c.b16 %v3851, %v3850
      %v3909 = vpack.c.b16 %v3853, %v3852
      %v3910 = vpack.c.b16 %v3855, %v3854
      %v3911 = vpack.c.b16 %v3857, %v3856
      %v3912 = vpack.c.b16 %v3859, %v3858
      %v3913 = vpack.c.b16 %v3861, %v3860
      %v3914 = vpack.c.b16 %v3863, %v3862
      %v3915 = vpack.c.b16 %v3865, %v3864
      %v3916 = vpack.c.b16 %v3867, %v3866
      %v3917 = vpack.c.b16 %v3869, %v3868
      %v3918 = vpack.c.b16 %v3871, %v3870
      %v3919 = vpack.c.b16 %v3873, %v3872
      %v3920 = vpack.c.b16 %v3875, %v3874
      %v3921 = vpack.c.b16 %v3877, %v3876
      %v3922 = vpack.c.b16 %v3879, %v3878
      %v3923 = vpack.c.b16 %v3881, %v3880
      %v3924 = vpack.c.b16 %v3883, %v3882
      %v3925 = vpack.c.b16 %v3885, %v3884
      %v3926 = vpack.c.b16 %v3887, %v3886
      %v3927 = vpack.c.b16 %v3889, %v3888
      %v3928 = vpack.c.b16 %v3891, %v3890
      %v3929 = vpack.c.b16 %v3893, %v3892
      %v3930 = vpack.c.b16 %v3895, %v3894
      %v3931 = vpack.c.b16 %v3897, %v3896
      %v3932 = vpack.c.b16 %v3899, %v3898
      %v3933 = vpack.c.b16 %v3901, %v3900
      %3966 = vmatprep.subr.bf16.mxu0 0
      %3967 = vmatpush1.bf16.msra.mxu0 %v3902
      %3968 = vmatprep.subr.bf16.mxu0 0
      %3969 = vmatpush1.bf16.msra.mxu0 %v3903
      %3970 = vmatprep.subr.bf16.mxu0 0
      %3971 = vmatpush1.bf16.msra.mxu0 %v3904
      %3972 = vmatprep.subr.bf16.mxu0 0
      %3973 = vmatpush1.bf16.msra.mxu0 %v3905
      %3974 = vmatprep.subr.bf16.mxu0 0
      %3975 = vmatpush1.bf16.msra.mxu0 %v3906
      %3976 = vmatprep.subr.bf16.mxu0 0
      %3977 = vmatpush1.bf16.msra.mxu0 %v3907
      %3978 = vmatprep.subr.bf16.mxu0 0
      %3979 = vmatpush1.bf16.msra.mxu0 %v3908
      %3980 = vmatprep.subr.bf16.mxu0 0
      %3981 = vmatpush1.bf16.msra.mxu0 %v3909
      %3982 = vmatprep.subr.bf16.mxu0 0
      %3983 = vmatpush1.bf16.msra.mxu0 %v3910
      %3984 = vmatprep.subr.bf16.mxu0 0
      %3985 = vmatpush1.bf16.msra.mxu0 %v3911
      %3986 = vmatprep.subr.bf16.mxu0 0
      %3987 = vmatpush1.bf16.msra.mxu0 %v3912
      %3988 = vmatprep.subr.bf16.mxu0 0
      %3989 = vmatpush1.bf16.msra.mxu0 %v3913
      %3990 = vmatprep.subr.bf16.mxu0 0
      %3991 = vmatpush1.bf16.msra.mxu0 %v3914
      %3992 = vmatprep.subr.bf16.mxu0 0
      %3993 = vmatpush1.bf16.msra.mxu0 %v3915
      %3994 = vmatprep.subr.bf16.mxu0 0
      %3995 = vmatpush1.bf16.msra.mxu0 %v3916
      %3996 = vmatprep.subr.bf16.mxu0 0
      %3997 = vmatpush1.bf16.msra.mxu0 %v3917
      %3998 = vmatprep.mubr.bf16.mxu0 %v3707
      %3999 = vmatmul.mubr.bf16.gmra.mrb[0].mxu0 %v3706
      %v4000 = vpop.f32.mrb[0].mxu0
      %v4001 = vadd.f32 0.0, %v4000
      %v4002 = vpop.f32.mrb[0].mxu0
      %v4003 = vpop.f32.mrb[0].mxu0
      %v4004 = vpop.f32.mrb[0].mxu0
      %4005 = vdwg.mxu0
      %4006 = vmatprep.subr.bf16.mxu0 0
      %4007 = vmatpush1.bf16.msra.mxu0 %v3918
      %4008 = vmatprep.subr.bf16.mxu0 0
      %4009 = vmatpush1.bf16.msra.mxu0 %v3919
      %4010 = vmatprep.subr.bf16.mxu0 0
      %4011 = vmatpush1.bf16.msra.mxu0 %v3920
      %4012 = vmatprep.subr.bf16.mxu0 0
      %4013 = vmatpush1.bf16.msra.mxu0 %v3921
      %4014 = vmatprep.subr.bf16.mxu0 0
      %4015 = vmatpush1.bf16.msra.mxu0 %v3922
      %4016 = vmatprep.subr.bf16.mxu0 0
      %4017 = vmatpush1.bf16.msra.mxu0 %v3923
      %4018 = vmatprep.subr.bf16.mxu0 0
      %4019 = vmatpush1.bf16.msra.mxu0 %v3924
      %4020 = vmatprep.subr.bf16.mxu0 0
      %4021 = vmatpush1.bf16.msra.mxu0 %v3925
      %4022 = vmatprep.subr.bf16.mxu0 0
      %4023 = vmatpush1.bf16.msra.mxu0 %v3926
      %4024 = vmatprep.subr.bf16.mxu0 0
      %4025 = vmatpush1.bf16.msra.mxu0 %v3927
      %4026 = vmatprep.subr.bf16.mxu0 0
      %4027 = vmatpush1.bf16.msra.mxu0 %v3928
      %4028 = vmatprep.subr.bf16.mxu0 0
      %4029 = vmatpush1.bf16.msra.mxu0 %v3929
      %4030 = vmatprep.subr.bf16.mxu0 0
      %4031 = vmatpush1.bf16.msra.mxu0 %v3930
      %4032 = vmatprep.subr.bf16.mxu0 0
      %4033 = vmatpush1.bf16.msra.mxu0 %v3931
      %4034 = vmatprep.subr.bf16.mxu0 0
      %4035 = vmatpush1.bf16.msra.mxu0 %v3932
      %4036 = vmatprep.subr.bf16.mxu0 0
      %4037 = vmatpush1.bf16.msra.mxu0 %v3933
      %4038 = vmatprep.mubr.bf16.mxu0 %v3709
      %4039 = vmatmul.mubr.bf16.gmra.mrb[0].mxu0 %v3708
      %v4040 = vpop.f32.mrb[0].mxu0
      %v4041 = vadd.f32 %v4001, %v4040
      %v4042 = vpop.f32.mrb[0].mxu0
      %v4043 = vpop.f32.mrb[0].mxu0
      %v4044 = vpop.f32.mrb[0].mxu0
      %4045 = vdwg.mxu0
      %4046 = vst [vmem:[#allocation13] sm:$0xff] %v4041
    $region53: #{tpu_custom_call.1} parent=1 // pred_fallthru
      _
    // Predicated region
    $region54: #{tpu_custom_call.1} parent=1 // pred_check
      _
    $region55: #{tpu_custom_call.1} parent=1 // pred_check_branch
      %4048 = sbr.rel (0) target = $region57
    $region56: #{tpu_custom_call.1} parent=1 // pred_region
      %s4050 = ssub.s32 128, 128
      %4051 = vsyncadd [#allocation6], %s4050
      %s4053 = sshll.u32 [#allocation13], 4
      %s4054 = int_to_ptr.vmem [resolvable:$true] %s4053
      %4056 = dma.vmem_to_hbm [thread:$0]  %s4054, 128, %s6, [#allocation6]
    $region57: #{tpu_custom_call.1} parent=1 // pred_fallthru
      _
    // Predicated region
    $region58: #{tpu_custom_call.1} parent=1 // pred_check
      _
    $region59: #{tpu_custom_call.1} parent=1 // pred_check_branch
      %4058 = sbr.rel (0) target = $region61
    $region60: #{tpu_custom_call.1} parent=1 // pred_region
      %4059 = dma.done [#allocation6], 128
    $region61: #{tpu_custom_call.1} parent=1 // pred_fallthru
      _
    %4060 = vsyncpa [#allocation5], 1
    %4061 = vsyncpa [#allocation8], 1
    %4062 = vsyncpa [#allocation11], 1
    %4063 = vsyncpa [#allocation6], 1

// kernel: tpu_custom_call.1
$region0: #{tpu_custom_call.1}
  #allocation0 [shape = 'u32[]', space=smem, size = 0x4, offset = 0x4, fixed_abs, tag = 'smem constant byte address 0x4 - core index']
  #allocation1 [shape = 'u32[144,128]{1,0:T(1,128)}', space=vmem, size = 0x12000, scoped, tag = 'internal scratch']
  #allocation2 [shape = 'f32[8,512]{1,0:T(8,128)}', space=vmem, size = 0x4000, scoped, tag = 'scratch operand']
  #allocation3 [shape = 'f32[1]{0:T(128)S(6)}', space=smem, size = 0x200, scoped, tag = 'scoped memory for tpu_custom_call.1']
  %s0 = inlined_call_operand.<no memory space> [shape: f32[1], index: 0, kind: input, shape index: {}]
  %s1 = inlined_call_operand.hbm [shape: f32[8,1024], index: 1, kind: input, shape index: {}]
  %s2 = inlined_call_operand.hbm [shape: bf16[1024,512], index: 2, kind: input, shape index: {}]
  %s3 = inlined_call_operand.hbm [shape: bf16[512,384], index: 3, kind: input, shape index: {}]
  %s4 = inlined_call_operand.hbm [shape: bf16[3,128,512], index: 4, kind: input, shape index: {}]
  %s5 = inlined_call_operand.hbm [shape: bf16[512,128], index: 5, kind: input, shape index: {}]
  %s6 = inlined_call_operand.hbm [shape: f32[8,128], index: 6, kind: output, shape index: {}]
  %s7 = sld [smem:[#allocation0]]
  $region62: #{tpu_custom_call.1} parent=0
    _
  %s9 = ssub.s32 1, %s7
  %s10 = scalar_select 0, %s9, %s7
  %11 = sst [smem:[#allocation3]] %s0
  $region1: #{tpu_custom_call.1} parent=0
    #allocation4 [shape = 'u8[32768]{0}', space=vmem, size = 0x8000, scoped, tag = 'input window, operand 1, single buffered']
    #allocation5 [shape = 's32[1]{0}', space=sflag, size = 0x4, scoped, tag = 'scoped memory for tpu_custom_call.1']
    #allocation6 [shape = 's32[1]{0}', space=sflag, size = 0x4, scoped, tag = 'scoped memory for tpu_custom_call.1']
    #allocation7 [shape = 'u8[1048576]{0}', space=vmem, size = 0x100000, scoped, tag = 'input window, operand 2, single buffered']
    #allocation8 [shape = 's32[1]{0}', space=sflag, size = 0x4, scoped, tag = 'scoped memory for tpu_custom_call.1']
    #allocation9 [shape = 'u8[393216]{0}', space=vmem, size = 0x60000, scoped, tag = 'input window, operand 3, single buffered']
    #allocation10 [shape = 'u8[393216]{0}', space=vmem, size = 0x60000, scoped, tag = 'input window, operand 4, single buffered']
    #allocation11 [shape = 's32[1]{0}', space=sflag, size = 0x4, scoped, tag = 'scoped memory for tpu_custom_call.1']
    #allocation12 [shape = 'u8[131072]{0}', space=vmem, size = 0x20000, scoped, tag = 'input window, operand 5, single buffered']
    #allocation13 [shape = 'u8[4096]{0}', space=vmem, size = 0x1000, scoped, tag = 'output window, operand 0, single buffered']
    %12 = vsyncpa [#allocation5], 0
    %13 = vsyncpa [#allocation8], 0
    %14 = vsyncpa [#allocation11], 0
    %15 = vsyncpa [#allocation6], 0
    // Predicated region
    $region2: #{tpu_custom_call.1} parent=1 // pred_check
      _
    $region3: #{tpu_custom_call.1} parent=1 // pred_check_branch
      %17 = sbr.rel (0) target = $region5
    $region4: #{tpu_custom_call.1} parent=1 // pred_region
      _
    $region5: #{tpu_custom_call.1} parent=1 // pred_fallthru
      _
    // Predicated region
    $region6: #{tpu_custom_call.1} parent=1 // pred_check
      _
    $region7: #{tpu_custom_call.1} parent=1 // pred_check_branch
      %19 = sbr.rel (0) target = $region9
    $region8: #{tpu_custom_call.1} parent=1 // pred_region
      %s21 = ssub.s32 1024, 1024
      %22 = vsyncadd [#allocation5], %s21
      %s24 = sshll.u32 [#allocation4], 4
      %s25 = int_to_ptr.vmem [resolvable:$true] %s24
      %27 = dma.hbm_to_vmem [thread:$0]  %s1, 1024, %s25, [#allocation5]
    $region9: #{tpu_custom_call.1} parent=1 // pred_fallthru
      _
    // Predicated region
    $region10: #{tpu_custom_call.1} parent=1 // pred_check
      _
    $region11: #{tpu_custom_call.1} parent=1 // pred_check_branch
      %29 = sbr.rel (0) target = $region13
    $region12: #{tpu_custom_call.1} parent=1 // pred_region
      %s31 = ssub.s32 32768, 32768
      %32 = vsyncadd [#allocation8], %s31
      %s33 = sshll.u32 [#allocation7], 4
      %s34 = int_to_ptr.vmem [resolvable:$true] %s33
      %39 = dma.hbm_to_vmem [thread:$0]  %s2, 32768, %s34, [#allocation8], 256, 256, 16
    $region13: #{tpu_custom_call.1} parent=1 // pred_fallthru
      _
    // Predicated region
    $region14: #{tpu_custom_call.1} parent=1 // pred_check
      _
    $region15: #{tpu_custom_call.1} parent=1 // pred_check_branch
      %41 = sbr.rel (0) target = $region17
    $region16: #{tpu_custom_call.1} parent=1 // pred_region
      %s43 = ssub.s32 12288, 12288
      %44 = vsyncadd [#allocation8], %s43
      %s45 = sshll.u32 [#allocation9], 4
      %s46 = int_to_ptr.vmem [resolvable:$true] %s45
      %51 = dma.hbm_to_vmem [thread:$0]  %s3, 12288, %s46, [#allocation8], 192, 192, 12
    $region17: #{tpu_custom_call.1} parent=1 // pred_fallthru
      _
    // Predicated region
    $region18: #{tpu_custom_call.1} parent=1 // pred_check
      _
    $region19: #{tpu_custom_call.1} parent=1 // pred_check_branch
      %53 = sbr.rel (0) target = $region21
    $region20: #{tpu_custom_call.1} parent=1 // pred_region
      %s55 = ssub.s32 12288, 12288
      %56 = vsyncadd [#allocation11], %s55
      %s57 = sshll.u32 [#allocation10], 4
      %s58 = int_to_ptr.vmem [resolvable:$true] %s57
      %63 = dma.hbm_to_vmem [thread:$0]  %s4, 12288, %s58, [#allocation11], 256, 256, 16
    $region21: #{tpu_custom_call.1} parent=1 // pred_fallthru
      _
    // Predicated region
    $region22: #{tpu_custom_call.1} parent=1 // pred_check
      _
    $region23: #{tpu_custom_call.1} parent=1 // pred_check_branch
      %65 = sbr.rel (0) target = $region25
    $region24: #{tpu_custom_call.1} parent=1 // pred_region
      %s67 = ssub.s32 4096, 4096
      %68 = vsyncadd [#allocation11], %s67
      %s69 = sshll.u32 [#allocation12], 4
      %s70 = int_to_ptr.vmem [resolvable:$true] %s69
      %75 = dma.hbm_to_vmem [thread:$0]  %s5, 4096, %s70, [#allocation11], 64, 64, 4
    $region25: #{tpu_custom_call.1} parent=1 // pred_fallthru
      _
    // Predicated region
    $region26: #{tpu_custom_call.1} parent=1 // pred_check
      _
    $region27: #{tpu_custom_call.1} parent=1 // pred_check_branch
      %77 = sbr.rel (0) target = $region29
    $region28: #{tpu_custom_call.1} parent=1 // pred_region
      %78 = dma.done [#allocation5], 1024
    $region29: #{tpu_custom_call.1} parent=1 // pred_fallthru
      _
    // Predicated region
    $region30: #{tpu_custom_call.1} parent=1 // pred_check
      _
    $region31: #{tpu_custom_call.1} parent=1 // pred_check_branch
      %80 = sbr.rel (0) target = $region33
    $region32: #{tpu_custom_call.1} parent=1 // pred_region
      %81 = dma.done [#allocation8], 32768
    $region33: #{tpu_custom_call.1} parent=1 // pred_fallthru
      _
    // Predicated region
    $region34: #{tpu_custom_call.1} parent=1 // pred_check
      _
    $region35: #{tpu_custom_call.1} parent=1 // pred_check_branch
      %83 = sbr.rel (0) target = $region37
    $region36: #{tpu_custom_call.1} parent=1 // pred_region
      %84 = dma.done [#allocation8], 12288
    $region37: #{tpu_custom_call.1} parent=1 // pred_fallthru
      _
    // Predicated region
    $region38: #{tpu_custom_call.1} parent=1 // pred_check
      _
    $region39: #{tpu_custom_call.1} parent=1 // pred_check_branch
      %86 = sbr.rel (0) target = $region41
    $region40: #{tpu_custom_call.1} parent=1 // pred_region
      %87 = dma.done [#allocation11], 12288
    $region41: #{tpu_custom_call.1} parent=1 // pred_fallthru
      _
    // Predicated region
    $region42: #{tpu_custom_call.1} parent=1 // pred_check
      _
    $region43: #{tpu_custom_call.1} parent=1 // pred_check_branch
      %89 = sbr.rel (0) target = $region45
    $region44: #{tpu_custom_call.1} parent=1 // pred_region
      %90 = dma.done [#allocation11], 4096
    $region45: #{tpu_custom_call.1} parent=1 // pred_fallthru
      _
    %p92 = scmp.eq.s32.totalorder 0, 0
    // Predicated region
    $region46: #{tpu_custom_call.1} parent=1 // pred_check
      %p93 = pneg %p92
    $region47: #{tpu_custom_call.1} parent=1 // pred_check_branch
      %95 = sbr.rel (%p93) target = $region49
    $region48: #{tpu_custom_call.1} parent=1 // pred_region
      %96 = vst [vmem:[#allocation2] sm:$0xff] 0.0
      %97 = vst [vmem:[#allocation2 + $0x8] sm:$0xff] 0.0
      %98 = vst [vmem:[#allocation2 + $0x10] sm:$0xff] 0.0
      %99 = vst [vmem:[#allocation2 + $0x18] sm:$0xff] 0.0
    $region49: #{tpu_custom_call.1} parent=1 // pred_fallthru
      _
    %v100 = vld [vmem:[#allocation2] sm:$0xff]
    %v101 = vld [vmem:[#allocation2 + $0x8] sm:$0xff]
    %v102 = vld [vmem:[#allocation2 + $0x10] sm:$0xff]
    %v103 = vld [vmem:[#allocation2 + $0x18] sm:$0xff]
    %v104 = vld [vmem:[#allocation4] sm:$0xff]
    %v105 = vld [vmem:[#allocation4 + $0x8] sm:$0xff]
    %v106 = vld [vmem:[#allocation4 + $0x10] sm:$0xff]
    %v107 = vld [vmem:[#allocation4 + $0x18] sm:$0xff]
    %v108 = vld [vmem:[#allocation4 + $0x20] sm:$0xff]
    %v109 = vld [vmem:[#allocation4 + $0x28] sm:$0xff]
    %v110 = vld [vmem:[#allocation4 + $0x30] sm:$0xff]
    %v111 = vld [vmem:[#allocation4 + $0x38] sm:$0xff]
    %v112 = vpack.c.bf16 %v104, %v104
    %v113 = vpack.c.bf16 %v105, %v105
    %v114 = vpack.c.bf16 %v106, %v106
    %v115 = vpack.c.bf16 %v107, %v107
    %v116 = vpack.c.bf16 %v108, %v108
    %v117 = vpack.c.bf16 %v109, %v109
    %v118 = vpack.c.bf16 %v110, %v110
    %v119 = vpack.c.bf16 %v111, %v111
    %v120 = vld [vmem:[#allocation7] sm:$0xff]
    %v121 = vld [vmem:[#allocation7 + $0x8] sm:$0xff]
    %v122 = vld [vmem:[#allocation7 + $0x10] sm:$0xff]
    %v123 = vld [vmem:[#allocation7 + $0x18] sm:$0xff]
    %v124 = vld [vmem:[#allocation7 + $0x20] sm:$0xff]
    %v125 = vld [vmem:[#allocation7 + $0x28] sm:$0xff]
    %v126 = vld [vmem:[#allocation7 + $0x30] sm:$0xff]
    %v127 = vld [vmem:[#allocation7 + $0x38] sm:$0xff]
    %v128 = vld [vmem:[#allocation7 + $0x40] sm:$0xff]
    %v129 = vld [vmem:[#allocation7 + $0x48] sm:$0xff]
    %v130 = vld [vmem:[#allocation7 + $0x50] sm:$0xff]
    %v131 = vld [vmem:[#allocation7 + $0x58] sm:$0xff]
    %v132 = vld [vmem:[#allocation7 + $0x60] sm:$0xff]
    %v133 = vld [vmem:[#allocation7 + $0x68] sm:$0xff]
    %v134 = vld [vmem:[#allocation7 + $0x70] sm:$0xff]
    %v135 = vld [vmem:[#allocation7 + $0x78] sm:$0xff]
    %v136 = vld [vmem:[#allocation7 + $0x80] sm:$0xff]
    %v137 = vld [vmem:[#allocation7 + $0x88] sm:$0xff]
    %v138 = vld [vmem:[#allocation7 + $0x90] sm:$0xff]
    %v139 = vld [vmem:[#allocation7 + $0x98] sm:$0xff]
    %v140 = vld [vmem:[#allocation7 + $0xa0] sm:$0xff]
    %v141 = vld [vmem:[#allocation7 + $0xa8] sm:$0xff]
    %v142 = vld [vmem:[#allocation7 + $0xb0] sm:$0xff]
    %v143 = vld [vmem:[#allocation7 + $0xb8] sm:$0xff]
    %v144 = vld [vmem:[#allocation7 + $0xc0] sm:$0xff]
    %v145 = vld [vmem:[#allocation7 + $0xc8] sm:$0xff]
    %v146 = vld [vmem:[#allocation7 + $0xd0] sm:$0xff]
    %v147 = vld [vmem:[#allocation7 + $0xd8] sm:$0xff]
    %v148 = vld [vmem:[#allocation7 + $0xe0] sm:$0xff]
    %v149 = vld [vmem:[#allocation7 + $0xe8] sm:$0xff]
    %v150 = vld [vmem:[#allocation7 + $0xf0] sm:$0xff]
    %v151 = vld [vmem:[#allocation7 + $0xf8] sm:$0xff]
    %v152 = vld [vmem:[#allocation7 + $0x100] sm:$0xff]
    %v153 = vld [vmem:[#allocation7 + $0x108] sm:$0xff]
    %v154 = vld [vmem:[#allocation7 + $0x110] sm:$0xff]
    %v155 = vld [vmem:[#allocation7 + $0x118] sm:$0xff]
    %v156 = vld [vmem:[#allocation7 + $0x120] sm:$0xff]
    %v157 = vld [vmem:[#allocation7 + $0x128] sm:$0xff]
    %v158 = vld [vmem:[#allocation7 + $0x130] sm:$0xff]
    %v159 = vld [vmem:[#allocation7 + $0x138] sm:$0xff]
    %v160 = vld [vmem:[#allocation7 + $0x140] sm:$0xff]
    %v161 = vld [vmem:[#allocation7 + $0x148] sm:$0xff]
    %v162 = vld [vmem:[#allocation7 + $0x150] sm:$0xff]
    %v163 = vld [vmem:[#allocation7 + $0x158] sm:$0xff]
    %v164 = vld [vmem:[#allocation7 + $0x160] sm:$0xff]
    %v165 = vld [vmem:[#allocation7 + $0x168] sm:$0xff]
    %v166 = vld [vmem:[#allocation7 + $0x170] sm:$0xff]
    %v167 = vld [vmem:[#allocation7 + $0x178] sm:$0xff]
    %v168 = vld [vmem:[#allocation7 + $0x180] sm:$0xff]
    %v169 = vld [vmem:[#allocation7 + $0x188] sm:$0xff]
    %v170 = vld [vmem:[#allocation7 + $0x190] sm:$0xff]
    %v171 = vld [vmem:[#allocation7 + $0x198] sm:$0xff]
    %v172 = vld [vmem:[#allocation7 + $0x1a0] sm:$0xff]
    %v173 = vld [vmem:[#allocation7 + $0x1a8] sm:$0xff]
    %v174 = vld [vmem:[#allocation7 + $0x1b0] sm:$0xff]
    %v175 = vld [vmem:[#allocation7 + $0x1b8] sm:$0xff]
    %v176 = vld [vmem:[#allocation7 + $0x1c0] sm:$0xff]
    %v177 = vld [vmem:[#allocation7 + $0x1c8] sm:$0xff]
    %v178 = vld [vmem:[#allocation7 + $0x1d0] sm:$0xff]
    %v179 = vld [vmem:[#allocation7 + $0x1d8] sm:$0xff]
    %v180 = vld [vmem:[#allocation7 + $0x1e0] sm:$0xff]
    %v181 = vld [vmem:[#allocation7 + $0x1e8] sm:$0xff]
    %v182 = vld [vmem:[#allocation7 + $0x1f0] sm:$0xff]
    %v183 = vld [vmem:[#allocation7 + $0x1f8] sm:$0xff]
    %v184 = vld [vmem:[#allocation7 + $0x200] sm:$0xff]
    %v185 = vld [vmem:[#allocation7 + $0x208] sm:$0xff]
    %v186 = vld [vmem:[#allocation7 + $0x210] sm:$0xff]
    %v187 = vld [vmem:[#allocation7 + $0x218] sm:$0xff]
    %v188 = vld [vmem:[#allocation7 + $0x220] sm:$0xff]
    %v189 = vld [vmem:[#allocation7 + $0x228] sm:$0xff]
    %v190 = vld [vmem:[#allocation7 + $0x230] sm:$0xff]
    %v191 = vld [vmem:[#allocation7 + $0x238] sm:$0xff]
    %v192 = vld [vmem:[#allocation7 + $0x240] sm:$0xff]
    %v193 = vld [vmem:[#allocation7 + $0x248] sm:$0xff]
    %v194 = vld [vmem:[#allocation7 + $0x250] sm:$0xff]
    %v195 = vld [vmem:[#allocation7 + $0x258] sm:$0xff]
    %v196 = vld [vmem:[#allocation7 + $0x260] sm:$0xff]
    %v197 = vld [vmem:[#allocation7 + $0x268] sm:$0xff]
    %v198 = vld [vmem:[#allocation7 + $0x270] sm:$0xff]
    %v199 = vld [vmem:[#allocation7 + $0x278] sm:$0xff]
    %v200 = vld [vmem:[#allocation7 + $0x280] sm:$0xff]
    %v201 = vld [vmem:[#allocation7 + $0x288] sm:$0xff]
    %v202 = vld [vmem:[#allocation7 + $0x290] sm:$0xff]
    %v203 = vld [vmem:[#allocation7 + $0x298] sm:$0xff]
    %v204 = vld [vmem:[#allocation7 + $0x2a0] sm:$0xff]
    %v205 = vld [vmem:[#allocation7 + $0x2a8] sm:$0xff]
    %v206 = vld [vmem:[#allocation7 + $0x2b0] sm:$0xff]
    %v207 = vld [vmem:[#allocation7 + $0x2b8] sm:$0xff]
    %v208 = vld [vmem:[#allocation7 + $0x2c0] sm:$0xff]
    %v209 = vld [vmem:[#allocation7 + $0x2c8] sm:$0xff]
    %v210 = vld [vmem:[#allocation7 + $0x2d0] sm:$0xff]
    %v211 = vld [vmem:[#allocation7 + $0x2d8] sm:$0xff]
    %v212 = vld [vmem:[#allocation7 + $0x2e0] sm:$0xff]
    %v213 = vld [vmem:[#allocation7 + $0x2e8] sm:$0xff]
    %v214 = vld [vmem:[#allocation7 + $0x2f0] sm:$0xff]
    %v215 = vld [vmem:[#allocation7 + $0x2f8] sm:$0xff]
    %v216 = vld [vmem:[#allocation7 + $0x300] sm:$0xff]
    %v217 = vld [vmem:[#allocation7 + $0x308] sm:$0xff]
    %v218 = vld [vmem:[#allocation7 + $0x310] sm:$0xff]
    %v219 = vld [vmem:[#allocation7 + $0x318] sm:$0xff]
    %v220 = vld [vmem:[#allocation7 + $0x320] sm:$0xff]
    %v221 = vld [vmem:[#allocation7 + $0x328] sm:$0xff]
    %v222 = vld [vmem:[#allocation7 + $0x330] sm:$0xff]
    %v223 = vld [vmem:[#allocation7 + $0x338] sm:$0xff]
    %v224 = vld [vmem:[#allocation7 + $0x340] sm:$0xff]
    %v225 = vld [vmem:[#allocation7 + $0x348] sm:$0xff]
    %v226 = vld [vmem:[#allocation7 + $0x350] sm:$0xff]
    %v227 = vld [vmem:[#allocation7 + $0x358] sm:$0xff]
    %v228 = vld [vmem:[#allocation7 + $0x360] sm:$0xff]
    %v229 = vld [vmem:[#allocation7 + $0x368] sm:$0xff]
    %v230 = vld [vmem:[#allocation7 + $0x370] sm:$0xff]
    %v231 = vld [vmem:[#allocation7 + $0x378] sm:$0xff]
    %v232 = vld [vmem:[#allocation7 + $0x380] sm:$0xff]
    %v233 = vld [vmem:[#allocation7 + $0x388] sm:$0xff]
    %v234 = vld [vmem:[#allocation7 + $0x390] sm:$0xff]
    %v235 = vld [vmem:[#allocation7 + $0x398] sm:$0xff]
    %v236 = vld [vmem:[#allocation7 + $0x3a0] sm:$0xff]
    %v237 = vld [vmem:[#allocation7 + $0x3a8] sm:$0xff]
    %v238 = vld [vmem:[#allocation7 + $0x3b0] sm:$0xff]
    %v239 = vld [vmem:[#allocation7 + $0x3b8] sm:$0xff]
    %v240 = vld [vmem:[#allocation7 + $0x3c0] sm:$0xff]
    %v241 = vld [vmem:[#allocation7 + $0x3c8] sm:$0xff]
    %v242 = vld [vmem:[#allocation7 + $0x3d0] sm:$0xff]
    %v243 = vld [vmem:[#allocation7 + $0x3d8] sm:$0xff]
    %v244 = vld [vmem:[#allocation7 + $0x3e0] sm:$0xff]
    %v245 = vld [vmem:[#allocation7 + $0x3e8] sm:$0xff]
    %v246 = vld [vmem:[#allocation7 + $0x3f0] sm:$0xff]
    %v247 = vld [vmem:[#allocation7 + $0x3f8] sm:$0xff]
    %v248 = vld [vmem:[#allocation7 + $0x400] sm:$0xff]
    %v249 = vld [vmem:[#allocation7 + $0x408] sm:$0xff]
    %v250 = vld [vmem:[#allocation7 + $0x410] sm:$0xff]
    %v251 = vld [vmem:[#allocation7 + $0x418] sm:$0xff]
    %v252 = vld [vmem:[#allocation7 + $0x420] sm:$0xff]
    %v253 = vld [vmem:[#allocation7 + $0x428] sm:$0xff]
    %v254 = vld [vmem:[#allocation7 + $0x430] sm:$0xff]
    %v255 = vld [vmem:[#allocation7 + $0x438] sm:$0xff]
    %v256 = vld [vmem:[#allocation7 + $0x440] sm:$0xff]
    %v257 = vld [vmem:[#allocation7 + $0x448] sm:$0xff]
    %v258 = vld [vmem:[#allocation7 + $0x450] sm:$0xff]
    %v259 = vld [vmem:[#allocation7 + $0x458] sm:$0xff]
    %v260 = vld [vmem:[#allocation7 + $0x460] sm:$0xff]
    %v261 = vld [vmem:[#allocation7 + $0x468] sm:$0xff]
    %v262 = vld [vmem:[#allocation7 + $0x470] sm:$0xff]
    %v263 = vld [vmem:[#allocation7 + $0x478] sm:$0xff]
    %v264 = vld [vmem:[#allocation7 + $0x480] sm:$0xff]
    %v265 = vld [vmem:[#allocation7 + $0x488] sm:$0xff]
    %v266 = vld [vmem:[#allocation7 + $0x490] sm:$0xff]
    %v267 = vld [vmem:[#allocation7 + $0x498] sm:$0xff]
    %v268 = vld [vmem:[#allocation7 + $0x4a0] sm:$0xff]
    %v269 = vld [vmem:[#allocation7 + $0x4a8] sm:$0xff]
    %v270 = vld [vmem:[#allocation7 + $0x4b0] sm:$0xff]
    %v271 = vld [vmem:[#allocation7 + $0x4b8] sm:$0xff]
    %v272 = vld [vmem:[#allocation7 + $0x4c0] sm:$0xff]
    %v273 = vld [vmem:[#allocation7 + $0x4c8] sm:$0xff]
    %v274 = vld [vmem:[#allocation7 + $0x4d0] sm:$0xff]
    %v275 = vld [vmem:[#allocation7 + $0x4d8] sm:$0xff]
    %v276 = vld [vmem:[#allocation7 + $0x4e0] sm:$0xff]
    %v277 = vld [vmem:[#allocation7 + $0x4e8] sm:$0xff]
    %v278 = vld [vmem:[#allocation7 + $0x4f0] sm:$0xff]
    %v279 = vld [vmem:[#allocation7 + $0x4f8] sm:$0xff]
    %v280 = vld [vmem:[#allocation7 + $0x500] sm:$0xff]
    %v281 = vld [vmem:[#allocation7 + $0x508] sm:$0xff]
    %v282 = vld [vmem:[#allocation7 + $0x510] sm:$0xff]
    %v283 = vld [vmem:[#allocation7 + $0x518] sm:$0xff]
    %v284 = vld [vmem:[#allocation7 + $0x520] sm:$0xff]
    %v285 = vld [vmem:[#allocation7 + $0x528] sm:$0xff]
    %v286 = vld [vmem:[#allocation7 + $0x530] sm:$0xff]
    %v287 = vld [vmem:[#allocation7 + $0x538] sm:$0xff]
    %v288 = vld [vmem:[#allocation7 + $0x540] sm:$0xff]
    %v289 = vld [vmem:[#allocation7 + $0x548] sm:$0xff]
    %v290 = vld [vmem:[#allocation7 + $0x550] sm:$0xff]
    %v291 = vld [vmem:[#allocation7 + $0x558] sm:$0xff]
    %v292 = vld [vmem:[#allocation7 + $0x560] sm:$0xff]
    %v293 = vld [vmem:[#allocation7 + $0x568] sm:$0xff]
    %v294 = vld [vmem:[#allocation7 + $0x570] sm:$0xff]
    %v295 = vld [vmem:[#allocation7 + $0x578] sm:$0xff]
    %v296 = vld [vmem:[#allocation7 + $0x580] sm:$0xff]
    %v297 = vld [vmem:[#allocation7 + $0x588] sm:$0xff]
    %v298 = vld [vmem:[#allocation7 + $0x590] sm:$0xff]
    %v299 = vld [vmem:[#allocation7 + $0x598] sm:$0xff]
    %v300 = vld [vmem:[#allocation7 + $0x5a0] sm:$0xff]
    %v301 = vld [vmem:[#allocation7 + $0x5a8] sm:$0xff]
    %v302 = vld [vmem:[#allocation7 + $0x5b0] sm:$0xff]
    %v303 = vld [vmem:[#allocation7 + $0x5b8] sm:$0xff]
    %v304 = vld [vmem:[#allocation7 + $0x5c0] sm:$0xff]
    %v305 = vld [vmem:[#allocation7 + $0x5c8] sm:$0xff]
    %v306 = vld [vmem:[#allocation7 + $0x5d0] sm:$0xff]
    %v307 = vld [vmem:[#allocation7 + $0x5d8] sm:$0xff]
    %v308 = vld [vmem:[#allocation7 + $0x5e0] sm:$0xff]
    %v309 = vld [vmem:[#allocation7 + $0x5e8] sm:$0xff]
    %v310 = vld [vmem:[#allocation7 + $0x5f0] sm:$0xff]
    %v311 = vld [vmem:[#allocation7 + $0x5f8] sm:$0xff]
    %v312 = vld [vmem:[#allocation7 + $0x600] sm:$0xff]
    %v313 = vld [vmem:[#allocation7 + $0x608] sm:$0xff]
    %v314 = vld [vmem:[#allocation7 + $0x610] sm:$0xff]
    %v315 = vld [vmem:[#allocation7 + $0x618] sm:$0xff]
    %v316 = vld [vmem:[#allocation7 + $0x620] sm:$0xff]
    %v317 = vld [vmem:[#allocation7 + $0x628] sm:$0xff]
    %v318 = vld [vmem:[#allocation7 + $0x630] sm:$0xff]
    %v319 = vld [vmem:[#allocation7 + $0x638] sm:$0xff]
    %v320 = vld [vmem:[#allocation7 + $0x640] sm:$0xff]
    %v321 = vld [vmem:[#allocation7 + $0x648] sm:$0xff]
    %v322 = vld [vmem:[#allocation7 + $0x650] sm:$0xff]
    %v323 = vld [vmem:[#allocation7 + $0x658] sm:$0xff]
    %v324 = vld [vmem:[#allocation7 + $0x660] sm:$0xff]
    %v325 = vld [vmem:[#allocation7 + $0x668] sm:$0xff]
    %v326 = vld [vmem:[#allocation7 + $0x670] sm:$0xff]
    %v327 = vld [vmem:[#allocation7 + $0x678] sm:$0xff]
    %v328 = vld [vmem:[#allocation7 + $0x680] sm:$0xff]
    %v329 = vld [vmem:[#allocation7 + $0x688] sm:$0xff]
    %v330 = vld [vmem:[#allocation7 + $0x690] sm:$0xff]
    %v331 = vld [vmem:[#allocation7 + $0x698] sm:$0xff]
    %v332 = vld [vmem:[#allocation7 + $0x6a0] sm:$0xff]
    %v333 = vld [vmem:[#allocation7 + $0x6a8] sm:$0xff]
    %v334 = vld [vmem:[#allocation7 + $0x6b0] sm:$0xff]
    %v335 = vld [vmem:[#allocation7 + $0x6b8] sm:$0xff]
    %v336 = vld [vmem:[#allocation7 + $0x6c0] sm:$0xff]
    %v337 = vld [vmem:[#allocation7 + $0x6c8] sm:$0xff]
    %v338 = vld [vmem:[#allocation7 + $0x6d0] sm:$0xff]
    %v339 = vld [vmem:[#allocation7 + $0x6d8] sm:$0xff]
    %v340 = vld [vmem:[#allocation7 + $0x6e0] sm:$0xff]
    %v341 = vld [vmem:[#allocation7 + $0x6e8] sm:$0xff]
    %v342 = vld [vmem:[#allocation7 + $0x6f0] sm:$0xff]
    %v343 = vld [vmem:[#allocation7 + $0x6f8] sm:$0xff]
    %v344 = vld [vmem:[#allocation7 + $0x700] sm:$0xff]
    %v345 = vld [vmem:[#allocation7 + $0x708] sm:$0xff]
    %v346 = vld [vmem:[#allocation7 + $0x710] sm:$0xff]
    %v347 = vld [vmem:[#allocation7 + $0x718] sm:$0xff]
    %v348 = vld [vmem:[#allocation7 + $0x720] sm:$0xff]
    %v349 = vld [vmem:[#allocation7 + $0x728] sm:$0xff]
    %v350 = vld [vmem:[#allocation7 + $0x730] sm:$0xff]
    %v351 = vld [vmem:[#allocation7 + $0x738] sm:$0xff]
    %v352 = vld [vmem:[#allocation7 + $0x740] sm:$0xff]
    %v353 = vld [vmem:[#allocation7 + $0x748] sm:$0xff]
    %v354 = vld [vmem:[#allocation7 + $0x750] sm:$0xff]
    %v355 = vld [vmem:[#allocation7 + $0x758] sm:$0xff]
    %v356 = vld [vmem:[#allocation7 + $0x760] sm:$0xff]
    %v357 = vld [vmem:[#allocation7 + $0x768] sm:$0xff]
    %v358 = vld [vmem:[#allocation7 + $0x770] sm:$0xff]
    %v359 = vld [vmem:[#allocation7 + $0x778] sm:$0xff]
    %v360 = vld [vmem:[#allocation7 + $0x780] sm:$0xff]
    %v361 = vld [vmem:[#allocation7 + $0x788] sm:$0xff]
    %v362 = vld [vmem:[#allocation7 + $0x790] sm:$0xff]
    %v363 = vld [vmem:[#allocation7 + $0x798] sm:$0xff]
    %v364 = vld [vmem:[#allocation7 + $0x7a0] sm:$0xff]
    %v365 = vld [vmem:[#allocation7 + $0x7a8] sm:$0xff]
    %v366 = vld [vmem:[#allocation7 + $0x7b0] sm:$0xff]
    %v367 = vld [vmem:[#allocation7 + $0x7b8] sm:$0xff]
    %v368 = vld [vmem:[#allocation7 + $0x7c0] sm:$0xff]
    %v369 = vld [vmem:[#allocation7 + $0x7c8] sm:$0xff]
    %v370 = vld [vmem:[#allocation7 + $0x7d0] sm:$0xff]
    %v371 = vld [vmem:[#allocation7 + $0x7d8] sm:$0xff]
    %v372 = vld [vmem:[#allocation7 + $0x7e0] sm:$0xff]
    %v373 = vld [vmem:[#allocation7 + $0x7e8] sm:$0xff]
    %v374 = vld [vmem:[#allocation7 + $0x7f0] sm:$0xff]
    %v375 = vld [vmem:[#allocation7 + $0x7f8] sm:$0xff]
    %v632 = vunpack.c.l.b16 %v120
    %v633 = vunpack.c.h.b16 %v120
    %v634 = vunpack.c.l.b16 %v121
    %v635 = vunpack.c.h.b16 %v121
    %v636 = vunpack.c.l.b16 %v122
    %v637 = vunpack.c.h.b16 %v122
    %v638 = vunpack.c.l.b16 %v123
    %v639 = vunpack.c.h.b16 %v123
    %v640 = vunpack.c.l.b16 %v124
    %v641 = vunpack.c.h.b16 %v124
    %v642 = vunpack.c.l.b16 %v125
    %v643 = vunpack.c.h.b16 %v125
    %v644 = vunpack.c.l.b16 %v126
    %v645 = vunpack.c.h.b16 %v126
    %v646 = vunpack.c.l.b16 %v127
    %v647 = vunpack.c.h.b16 %v127
    %v648 = vunpack.c.l.b16 %v128
    %v649 = vunpack.c.h.b16 %v128
    %v650 = vunpack.c.l.b16 %v129
    %v651 = vunpack.c.h.b16 %v129
    %v652 = vunpack.c.l.b16 %v130
    %v653 = vunpack.c.h.b16 %v130
    %v654 = vunpack.c.l.b16 %v131
    %v655 = vunpack.c.h.b16 %v131
    %v656 = vunpack.c.l.b16 %v132
    %v657 = vunpack.c.h.b16 %v132
    %v658 = vunpack.c.l.b16 %v133
    %v659 = vunpack.c.h.b16 %v133
    %v660 = vunpack.c.l.b16 %v134
    %v661 = vunpack.c.h.b16 %v134
    %v662 = vunpack.c.l.b16 %v135
    %v663 = vunpack.c.h.b16 %v135
    %v664 = vunpack.c.l.b16 %v136
    %v665 = vunpack.c.h.b16 %v136
    %v666 = vunpack.c.l.b16 %v137
    %v667 = vunpack.c.h.b16 %v137
    %v668 = vunpack.c.l.b16 %v138
    %v669 = vunpack.c.h.b16 %v138
    %v670 = vunpack.c.l.b16 %v139
    %v671 = vunpack.c.h.b16 %v139
    %v672 = vunpack.c.l.b16 %v140
    %v673 = vunpack.c.h.b16 %v140
    %v674 = vunpack.c.l.b16 %v141
    %v675 = vunpack.c.h.b16 %v141
    %v676 = vunpack.c.l.b16 %v142
    %v677 = vunpack.c.h.b16 %v142
    %v678 = vunpack.c.l.b16 %v143
    %v679 = vunpack.c.h.b16 %v143
    %v680 = vunpack.c.l.b16 %v144
    %v681 = vunpack.c.h.b16 %v144
    %v682 = vunpack.c.l.b16 %v145
    %v683 = vunpack.c.h.b16 %v145
    %v684 = vunpack.c.l.b16 %v146
    %v685 = vunpack.c.h.b16 %v146
    %v686 = vunpack.c.l.b16 %v147
    %v687 = vunpack.c.h.b16 %v147
    %v688 = vunpack.c.l.b16 %v148
    %v689 = vunpack.c.h.b16 %v148
    %v690 = vunpack.c.l.b16 %v149
    %v691 = vunpack.c.h.b16 %v149
    %v692 = vunpack.c.l.b16 %v150
    %v693 = vunpack.c.h.b16 %v150
    %v694 = vunpack.c.l.b16 %v151
    %v695 = vunpack.c.h.b16 %v151
    %v696 = vunpack.c.l.b16 %v152
    %v697 = vunpack.c.h.b16 %v152
    %v698 = vunpack.c.l.b16 %v153
    %v699 = vunpack.c.h.b16 %v153
    %v700 = vunpack.c.l.b16 %v154
    %v701 = vunpack.c.h.b16 %v154
    %v702 = vunpack.c.l.b16 %v155
    %v703 = vunpack.c.h.b16 %v155
    %v704 = vunpack.c.l.b16 %v156
    %v705 = vunpack.c.h.b16 %v156
    %v706 = vunpack.c.l.b16 %v157
    %v707 = vunpack.c.h.b16 %v157
    %v708 = vunpack.c.l.b16 %v158
    %v709 = vunpack.c.h.b16 %v158
    %v710 = vunpack.c.l.b16 %v159
    %v711 = vunpack.c.h.b16 %v159
    %v712 = vunpack.c.l.b16 %v160
    %v713 = vunpack.c.h.b16 %v160
    %v714 = vunpack.c.l.b16 %v161
    %v715 = vunpack.c.h.b16 %v161
    %v716 = vunpack.c.l.b16 %v162
    %v717 = vunpack.c.h.b16 %v162
    %v718 = vunpack.c.l.b16 %v163
    %v719 = vunpack.c.h.b16 %v163
    %v720 = vunpack.c.l.b16 %v164
    %v721 = vunpack.c.h.b16 %v164
    %v722 = vunpack.c.l.b16 %v165
    %v723 = vunpack.c.h.b16 %v165
    %v724 = vunpack.c.l.b16 %v166
    %v725 = vunpack.c.h.b16 %v166
    %v726 = vunpack.c.l.b16 %v167
    %v727 = vunpack.c.h.b16 %v167
    %v728 = vunpack.c.l.b16 %v168
    %v729 = vunpack.c.h.b16 %v168
    %v730 = vunpack.c.l.b16 %v169
    %v731 = vunpack.c.h.b16 %v169
    %v732 = vunpack.c.l.b16 %v170
    %v733 = vunpack.c.h.b16 %v170
    %v734 = vunpack.c.l.b16 %v171
    %v735 = vunpack.c.h.b16 %v171
    %v736 = vunpack.c.l.b16 %v172
    %v737 = vunpack.c.h.b16 %v172
    %v738 = vunpack.c.l.b16 %v173
    %v739 = vunpack.c.h.b16 %v173
    %v740 = vunpack.c.l.b16 %v174
    %v741 = vunpack.c.h.b16 %v174
    %v742 = vunpack.c.l.b16 %v175
    %v743 = vunpack.c.h.b16 %v175
    %v744 = vunpack.c.l.b16 %v176
    %v745 = vunpack.c.h.b16 %v176
    %v746 = vunpack.c.l.b16 %v177
    %v747 = vunpack.c.h.b16 %v177
    %v748 = vunpack.c.l.b16 %v178
    %v749 = vunpack.c.h.b16 %v178
    %v750 = vunpack.c.l.b16 %v179
    %v751 = vunpack.c.h.b16 %v179
    %v752 = vunpack.c.l.b16 %v180
    %v753 = vunpack.c.h.b16 %v180
    %v754 = vunpack.c.l.b16 %v181
    %v755 = vunpack.c.h.b16 %v181
    %v756 = vunpack.c.l.b16 %v182
    %v757 = vunpack.c.h.b16 %v182
    %v758 = vunpack.c.l.b16 %v183
    %v759 = vunpack.c.h.b16 %v183
    %v760 = vunpack.c.l.b16 %v184
    %v761 = vunpack.c.h.b16 %v184
    %v762 = vunpack.c.l.b16 %v185
    %v763 = vunpack.c.h.b16 %v185
    %v764 = vunpack.c.l.b16 %v186
    %v765 = vunpack.c.h.b16 %v186
    %v766 = vunpack.c.l.b16 %v187
    %v767 = vunpack.c.h.b16 %v187
    %v768 = vunpack.c.l.b16 %v188
    %v769 = vunpack.c.h.b16 %v188
    %v770 = vunpack.c.l.b16 %v189
    %v771 = vunpack.c.h.b16 %v189
    %v772 = vunpack.c.l.b16 %v190
    %v773 = vunpack.c.h.b16 %v190
    %v774 = vunpack.c.l.b16 %v191
    %v775 = vunpack.c.h.b16 %v191
    %v776 = vunpack.c.l.b16 %v192
    %v777 = vunpack.c.h.b16 %v192
    %v778 = vunpack.c.l.b16 %v193
    %v779 = vunpack.c.h.b16 %v193
    %v780 = vunpack.c.l.b16 %v194
    %v781 = vunpack.c.h.b16 %v194
    %v782 = vunpack.c.l.b16 %v195
    %v783 = vunpack.c.h.b16 %v195
    %v784 = vunpack.c.l.b16 %v196
    %v785 = vunpack.c.h.b16 %v196
    %v786 = vunpack.c.l.b16 %v197
    %v787 = vunpack.c.h.b16 %v197
    %v788 = vunpack.c.l.b16 %v198
    %v789 = vunpack.c.h.b16 %v198
    %v790 = vunpack.c.l.b16 %v199
    %v791 = vunpack.c.h.b16 %v199
    %v792 = vunpack.c.l.b16 %v200
    %v793 = vunpack.c.h.b16 %v200
    %v794 = vunpack.c.l.b16 %v201
    %v795 = vunpack.c.h.b16 %v201
    %v796 = vunpack.c.l.b16 %v202
    %v797 = vunpack.c.h.b16 %v202
    %v798 = vunpack.c.l.b16 %v203
    %v799 = vunpack.c.h.b16 %v203
    %v800 = vunpack.c.l.b16 %v204
    %v801 = vunpack.c.h.b16 %v204
    %v802 = vunpack.c.l.b16 %v205
    %v803 = vunpack.c.h.b16 %v205
    %v804 = vunpack.c.l.b16 %v206
    %v805 = vunpack.c.h.b16 %v206
    %v806 = vunpack.c.l.b16 %v207
    %v807 = vunpack.c.h.b16 %v207
    %v808 = vunpack.c.l.b16 %v208
    %v809 = vunpack.c.h.b16 %v208
    %v810 = vunpack.c.l.b16 %v209
    %v811 = vunpack.c.h.b16 %v209
    %v812 = vunpack.c.l.b16 %v210
    %v813 = vunpack.c.h.b16 %v210
    %v814 = vunpack.c.l.b16 %v211
    %v815 = vunpack.c.h.b16 %v211
    %v816 = vunpack.c.l.b16 %v212
    %v817 = vunpack.c.h.b16 %v212
    %v818 = vunpack.c.l.b16 %v213
    %v819 = vunpack.c.h.b16 %v213
    %v820 = vunpack.c.l.b16 %v214
    %v821 = vunpack.c.h.b16 %v214
    %v822 = vunpack.c.l.b16 %v215
    %v823 = vunpack.c.h.b16 %v215
    %v824 = vunpack.c.l.b16 %v216
    %v825 = vunpack.c.h.b16 %v216
    %v826 = vunpack.c.l.b16 %v217
    %v827 = vunpack.c.h.b16 %v217
    %v828 = vunpack.c.l.b16 %v218
    %v829 = vunpack.c.h.b16 %v218
    %v830 = vunpack.c.l.b16 %v219
    %v831 = vunpack.c.h.b16 %v219
    %v832 = vunpack.c.l.b16 %v220
    %v833 = vunpack.c.h.b16 %v220
    %v834 = vunpack.c.l.b16 %v221
    %v835 = vunpack.c.h.b16 %v221
    %v836 = vunpack.c.l.b16 %v222
    %v837 = vunpack.c.h.b16 %v222
    %v838 = vunpack.c.l.b16 %v223
    %v839 = vunpack.c.h.b16 %v223
    %v840 = vunpack.c.l.b16 %v224
    %v841 = vunpack.c.h.b16 %v224
    %v842 = vunpack.c.l.b16 %v225
    %v843 = vunpack.c.h.b16 %v225
    %v844 = vunpack.c.l.b16 %v226
    %v845 = vunpack.c.h.b16 %v226
    %v846 = vunpack.c.l.b16 %v227
    %v847 = vunpack.c.h.b16 %v227
    %v848 = vunpack.c.l.b16 %v228
    %v849 = vunpack.c.h.b16 %v228
    %v850 = vunpack.c.l.b16 %v229
    %v851 = vunpack.c.h.b16 %v229
    %v852 = vunpack.c.l.b16 %v230
    %v853 = vunpack.c.h.b16 %v230
    %v854 = vunpack.c.l.b16 %v231
    %v855 = vunpack.c.h.b16 %v231
    %v856 = vunpack.c.l.b16 %v232
    %v857 = vunpack.c.h.b16 %v232
    %v858 = vunpack.c.l.b16 %v233
    %v859 = vunpack.c.h.b16 %v233
    %v860 = vunpack.c.l.b16 %v234
    %v861 = vunpack.c.h.b16 %v234
    %v862 = vunpack.c.l.b16 %v235
    %v863 = vunpack.c.h.b16 %v235
    %v864 = vunpack.c.l.b16 %v236
    %v865 = vunpack.c.h.b16 %v236
    %v866 = vunpack.c.l.b16 %v237
    %v867 = vunpack.c.h.b16 %v237
    %v868 = vunpack.c.l.b16 %v238
    %v869 = vunpack.c.h.b16 %v238
    %v870 = vunpack.c.l.b16 %v239
    %v871 = vunpack.c.h.b16 %v239
    %v872 = vunpack.c.l.b16 %v240
    %v873 = vunpack.c.h.b16 %v240
    %v874 = vunpack.c.l.b16 %v241
    %v875 = vunpack.c.h.b16 %v241
    %v876 = vunpack.c.l.b16 %v242
    %v877 = vunpack.c.h.b16 %v242
    %v878 = vunpack.c.l.b16 %v243
    %v879 = vunpack.c.h.b16 %v243
    %v880 = vunpack.c.l.b16 %v244
    %v881 = vunpack.c.h.b16 %v244
    %v882 = vunpack.c.l.b16 %v245
    %v883 = vunpack.c.h.b16 %v245
    %v884 = vunpack.c.l.b16 %v246
    %v885 = vunpack.c.h.b16 %v246
    %v886 = vunpack.c.l.b16 %v247
    %v887 = vunpack.c.h.b16 %v247
    %v888 = vunpack.c.l.b16 %v248
    %v889 = vunpack.c.h.b16 %v248
    %v890 = vunpack.c.l.b16 %v249
    %v891 = vunpack.c.h.b16 %v249
    %v892 = vunpack.c.l.b16 %v250
    %v893 = vunpack.c.h.b16 %v250
    %v894 = vunpack.c.l.b16 %v251
    %v895 = vunpack.c.h.b16 %v251
    %v896 = vunpack.c.l.b16 %v252
    %v897 = vunpack.c.h.b16 %v252
    %v898 = vunpack.c.l.b16 %v253
    %v899 = vunpack.c.h.b16 %v253
    %v900 = vunpack.c.l.b16 %v254
    %v901 = vunpack.c.h.b16 %v254
    %v902 = vunpack.c.l.b16 %v255
    %v903 = vunpack.c.h.b16 %v255
    %v904 = vunpack.c.l.b16 %v256
    %v905 = vunpack.c.h.b16 %v256
    %v906 = vunpack.c.l.b16 %v257
    %v907 = vunpack.c.h.b16 %v257
    %v908 = vunpack.c.l.b16 %v258
    %v909 = vunpack.c.h.b16 %v258
    %v910 = vunpack.c.l.b16 %v259
    %v911 = vunpack.c.h.b16 %v259
    %v912 = vunpack.c.l.b16 %v260
    %v913 = vunpack.c.h.b16 %v260
    %v914 = vunpack.c.l.b16 %v261
    %v915 = vunpack.c.h.b16 %v261
    %v916 = vunpack.c.l.b16 %v262
    %v917 = vunpack.c.h.b16 %v262
    %v918 = vunpack.c.l.b16 %v263
    %v919 = vunpack.c.h.b16 %v263
    %v920 = vunpack.c.l.b16 %v264
    %v921 = vunpack.c.h.b16 %v264
    %v922 = vunpack.c.l.b16 %v265
    %v923 = vunpack.c.h.b16 %v265
    %v924 = vunpack.c.l.b16 %v266
    %v925 = vunpack.c.h.b16 %v266
    %v926 = vunpack.c.l.b16 %v267
    %v927 = vunpack.c.h.b16 %v267
    %v928 = vunpack.c.l.b16 %v268
    %v929 = vunpack.c.h.b16 %v268
    %v930 = vunpack.c.l.b16 %v269
    %v931 = vunpack.c.h.b16 %v269
    %v932 = vunpack.c.l.b16 %v270
    %v933 = vunpack.c.h.b16 %v270
    %v934 = vunpack.c.l.b16 %v271
    %v935 = vunpack.c.h.b16 %v271
    %v936 = vunpack.c.l.b16 %v272
    %v937 = vunpack.c.h.b16 %v272
    %v938 = vunpack.c.l.b16 %v273
    %v939 = vunpack.c.h.b16 %v273
    %v940 = vunpack.c.l.b16 %v274
    %v941 = vunpack.c.h.b16 %v274
    %v942 = vunpack.c.l.b16 %v275
    %v943 = vunpack.c.h.b16 %v275
    %v944 = vunpack.c.l.b16 %v276
    %v945 = vunpack.c.h.b16 %v276
    %v946 = vunpack.c.l.b16 %v277
    %v947 = vunpack.c.h.b16 %v277
    %v948 = vunpack.c.l.b16 %v278
    %v949 = vunpack.c.h.b16 %v278
    %v950 = vunpack.c.l.b16 %v279
    %v951 = vunpack.c.h.b16 %v279
    %v952 = vunpack.c.l.b16 %v280
    %v953 = vunpack.c.h.b16 %v280
    %v954 = vunpack.c.l.b16 %v281
    %v955 = vunpack.c.h.b16 %v281
    %v956 = vunpack.c.l.b16 %v282
    %v957 = vunpack.c.h.b16 %v282
    %v958 = vunpack.c.l.b16 %v283
    %v959 = vunpack.c.h.b16 %v283
    %v960 = vunpack.c.l.b16 %v284
    %v961 = vunpack.c.h.b16 %v284
    %v962 = vunpack.c.l.b16 %v285
    %v963 = vunpack.c.h.b16 %v285
    %v964 = vunpack.c.l.b16 %v286
    %v965 = vunpack.c.h.b16 %v286
    %v966 = vunpack.c.l.b16 %v287
    %v967 = vunpack.c.h.b16 %v287
    %v968 = vunpack.c.l.b16 %v288
    %v969 = vunpack.c.h.b16 %v288
    %v970 = vunpack.c.l.b16 %v289
    %v971 = vunpack.c.h.b16 %v289
    %v972 = vunpack.c.l.b16 %v290
    %v973 = vunpack.c.h.b16 %v290
    %v974 = vunpack.c.l.b16 %v291
    %v975 = vunpack.c.h.b16 %v291
    %v976 = vunpack.c.l.b16 %v292
    %v977 = vunpack.c.h.b16 %v292
    %v978 = vunpack.c.l.b16 %v293
    %v979 = vunpack.c.h.b16 %v293
    %v980 = vunpack.c.l.b16 %v294
    %v981 = vunpack.c.h.b16 %v294
    %v982 = vunpack.c.l.b16 %v295
    %v983 = vunpack.c.h.b16 %v295
    %v984 = vunpack.c.l.b16 %v296
    %v985 = vunpack.c.h.b16 %v296
    %v986 = vunpack.c.l.b16 %v297
    %v987 = vunpack.c.h.b16 %v297
    %v988 = vunpack.c.l.b16 %v298
    %v989 = vunpack.c.h.b16 %v298
    %v990 = vunpack.c.l.b16 %v299
    %v991 = vunpack.c.h.b16 %v299
    %v992 = vunpack.c.l.b16 %v300
    %v993 = vunpack.c.h.b16 %v300
    %v994 = vunpack.c.l.b16 %v301
    %v995 = vunpack.c.h.b16 %v301
    %v996 = vunpack.c.l.b16 %v302
    %v997 = vunpack.c.h.b16 %v302
    %v998 = vunpack.c.l.b16 %v303
    %v999 = vunpack.c.h.b16 %v303
    %v1000 = vunpack.c.l.b16 %v304
    %v1001 = vunpack.c.h.b16 %v304
    %v1002 = vunpack.c.l.b16 %v305
    %v1003 = vunpack.c.h.b16 %v305
    %v1004 = vunpack.c.l.b16 %v306
    %v1005 = vunpack.c.h.b16 %v306
    %v1006 = vunpack.c.l.b16 %v307
    %v1007 = vunpack.c.h.b16 %v307
    %v1008 = vunpack.c.l.b16 %v308
    %v1009 = vunpack.c.h.b16 %v308
    %v1010 = vunpack.c.l.b16 %v309
    %v1011 = vunpack.c.h.b16 %v309
    %v1012 = vunpack.c.l.b16 %v310
    %v1013 = vunpack.c.h.b16 %v310
    %v1014 = vunpack.c.l.b16 %v311
    %v1015 = vunpack.c.h.b16 %v311
    %v1016 = vunpack.c.l.b16 %v312
    %v1017 = vunpack.c.h.b16 %v312
    %v1018 = vunpack.c.l.b16 %v313
    %v1019 = vunpack.c.h.b16 %v313
    %v1020 = vunpack.c.l.b16 %v314
    %v1021 = vunpack.c.h.b16 %v314
    %v1022 = vunpack.c.l.b16 %v315
    %v1023 = vunpack.c.h.b16 %v315
    %v1024 = vunpack.c.l.b16 %v316
    %v1025 = vunpack.c.h.b16 %v316
    %v1026 = vunpack.c.l.b16 %v317
    %v1027 = vunpack.c.h.b16 %v317
    %v1028 = vunpack.c.l.b16 %v318
    %v1029 = vunpack.c.h.b16 %v318
    %v1030 = vunpack.c.l.b16 %v319
    %v1031 = vunpack.c.h.b16 %v319
    %v1032 = vunpack.c.l.b16 %v320
    %v1033 = vunpack.c.h.b16 %v320
    %v1034 = vunpack.c.l.b16 %v321
    %v1035 = vunpack.c.h.b16 %v321
    %v1036 = vunpack.c.l.b16 %v322
    %v1037 = vunpack.c.h.b16 %v322
    %v1038 = vunpack.c.l.b16 %v323
    %v1039 = vunpack.c.h.b16 %v323
    %v1040 = vunpack.c.l.b16 %v324
    %v1041 = vunpack.c.h.b16 %v324
    %v1042 = vunpack.c.l.b16 %v325
    %v1043 = vunpack.c.h.b16 %v325
    %v1044 = vunpack.c.l.b16 %v326
    %v1045 = vunpack.c.h.b16 %v326
    %v1046 = vunpack.c.l.b16 %v327
    %v1047 = vunpack.c.h.b16 %v327
    %v1048 = vunpack.c.l.b16 %v328
    %v1049 = vunpack.c.h.b16 %v328
    %v1050 = vunpack.c.l.b16 %v329
    %v1051 = vunpack.c.h.b16 %v329
    %v1052 = vunpack.c.l.b16 %v330
    %v1053 = vunpack.c.h.b16 %v330
    %v1054 = vunpack.c.l.b16 %v331
    %v1055 = vunpack.c.h.b16 %v331
    %v1056 = vunpack.c.l.b16 %v332
    %v1057 = vunpack.c.h.b16 %v332
    %v1058 = vunpack.c.l.b16 %v333
    %v1059 = vunpack.c.h.b16 %v333
    %v1060 = vunpack.c.l.b16 %v334
    %v1061 = vunpack.c.h.b16 %v334
    %v1062 = vunpack.c.l.b16 %v335
    %v1063 = vunpack.c.h.b16 %v335
    %v1064 = vunpack.c.l.b16 %v336
    %v1065 = vunpack.c.h.b16 %v336
    %v1066 = vunpack.c.l.b16 %v337
    %v1067 = vunpack.c.h.b16 %v337
    %v1068 = vunpack.c.l.b16 %v338
    %v1069 = vunpack.c.h.b16 %v338
    %v1070 = vunpack.c.l.b16 %v339
    %v1071 = vunpack.c.h.b16 %v339
    %v1072 = vunpack.c.l.b16 %v340
    %v1073 = vunpack.c.h.b16 %v340
    %v1074 = vunpack.c.l.b16 %v341
    %v1075 = vunpack.c.h.b16 %v341
    %v1076 = vunpack.c.l.b16 %v342
    %v1077 = vunpack.c.h.b16 %v342
    %v1078 = vunpack.c.l.b16 %v343
    %v1079 = vunpack.c.h.b16 %v343
    %v1080 = vunpack.c.l.b16 %v344
    %v1081 = vunpack.c.h.b16 %v344
    %v1082 = vunpack.c.l.b16 %v345
    %v1083 = vunpack.c.h.b16 %v345
    %v1084 = vunpack.c.l.b16 %v346
    %v1085 = vunpack.c.h.b16 %v346
    %v1086 = vunpack.c.l.b16 %v347
    %v1087 = vunpack.c.h.b16 %v347
    %v1088 = vunpack.c.l.b16 %v348
    %v1089 = vunpack.c.h.b16 %v348
    %v1090 = vunpack.c.l.b16 %v349
    %v1091 = vunpack.c.h.b16 %v349
    %v1092 = vunpack.c.l.b16 %v350
    %v1093 = vunpack.c.h.b16 %v350
    %v1094 = vunpack.c.l.b16 %v351
    %v1095 = vunpack.c.h.b16 %v351
    %v1096 = vunpack.c.l.b16 %v352
    %v1097 = vunpack.c.h.b16 %v352
    %v1098 = vunpack.c.l.b16 %v353
    %v1099 = vunpack.c.h.b16 %v353
    %v1100 = vunpack.c.l.b16 %v354
    %v1101 = vunpack.c.h.b16 %v354
    %v1102 = vunpack.c.l.b16 %v355
    %v1103 = vunpack.c.h.b16 %v355
    %v1104 = vunpack.c.l.b16 %v356
    %v1105 = vunpack.c.h.b16 %v356
    %v1106 = vunpack.c.l.b16 %v357
    %v1107 = vunpack.c.h.b16 %v357
    %v1108 = vunpack.c.l.b16 %v358
    %v1109 = vunpack.c.h.b16 %v358
    %v1110 = vunpack.c.l.b16 %v359
    %v1111 = vunpack.c.h.b16 %v359
    %v1112 = vunpack.c.l.b16 %v360
    %v1113 = vunpack.c.h.b16 %v360
    %v1114 = vunpack.c.l.b16 %v361
    %v1115 = vunpack.c.h.b16 %v361
    %v1116 = vunpack.c.l.b16 %v362
    %v1117 = vunpack.c.h.b16 %v362
    %v1118 = vunpack.c.l.b16 %v363
    %v1119 = vunpack.c.h.b16 %v363
    %v1120 = vunpack.c.l.b16 %v364
    %v1121 = vunpack.c.h.b16 %v364
    %v1122 = vunpack.c.l.b16 %v365
    %v1123 = vunpack.c.h.b16 %v365
    %v1124 = vunpack.c.l.b16 %v366
    %v1125 = vunpack.c.h.b16 %v366
    %v1126 = vunpack.c.l.b16 %v367
    %v1127 = vunpack.c.h.b16 %v367
    %v1128 = vunpack.c.l.b16 %v368
    %v1129 = vunpack.c.h.b16 %v368
    %v1130 = vunpack.c.l.b16 %v369
    %v1131 = vunpack.c.h.b16 %v369
    %v1132 = vunpack.c.l.b16 %v370
    %v1133 = vunpack.c.h.b16 %v370
    %v1134 = vunpack.c.l.b16 %v371
    %v1135 = vunpack.c.h.b16 %v371
    %v1136 = vunpack.c.l.b16 %v372
    %v1137 = vunpack.c.h.b16 %v372
    %v1138 = vunpack.c.l.b16 %v373
    %v1139 = vunpack.c.h.b16 %v373
    %v1140 = vunpack.c.l.b16 %v374
    %v1141 = vunpack.c.h.b16 %v374
    %v1142 = vunpack.c.l.b16 %v375
    %v1143 = vunpack.c.h.b16 %v375
    %v1144 = vpack.c.b16 %v636, %v632
    %v1145 = vpack.c.b16 %v637, %v633
    %v1146 = vpack.c.b16 %v638, %v634
    %v1147 = vpack.c.b16 %v639, %v635
    %v1148 = vpack.c.b16 %v644, %v640
    %v1149 = vpack.c.b16 %v645, %v641
    %v1150 = vpack.c.b16 %v646, %v642
    %v1151 = vpack.c.b16 %v647, %v643
    %v1152 = vpack.c.b16 %v652, %v648
    %v1153 = vpack.c.b16 %v653, %v649
    %v1154 = vpack.c.b16 %v654, %v650
    %v1155 = vpack.c.b16 %v655, %v651
    %v1156 = vpack.c.b16 %v660, %v656
    %v1157 = vpack.c.b16 %v661, %v657
    %v1158 = vpack.c.b16 %v662, %v658
    %v1159 = vpack.c.b16 %v663, %v659
    %v1160 = vpack.c.b16 %v668, %v664
    %v1161 = vpack.c.b16 %v669, %v665
    %v1162 = vpack.c.b16 %v670, %v666
    %v1163 = vpack.c.b16 %v671, %v667
    %v1164 = vpack.c.b16 %v676, %v672
    %v1165 = vpack.c.b16 %v677, %v673
    %v1166 = vpack.c.b16 %v678, %v674
    %v1167 = vpack.c.b16 %v679, %v675
    %v1168 = vpack.c.b16 %v684, %v680
    %v1169 = vpack.c.b16 %v685, %v681
    %v1170 = vpack.c.b16 %v686, %v682
    %v1171 = vpack.c.b16 %v687, %v683
    %v1172 = vpack.c.b16 %v692, %v688
    %v1173 = vpack.c.b16 %v693, %v689
    %v1174 = vpack.c.b16 %v694, %v690
    %v1175 = vpack.c.b16 %v695, %v691
    %v1176 = vpack.c.b16 %v700, %v696
    %v1177 = vpack.c.b16 %v701, %v697
    %v1178 = vpack.c.b16 %v702, %v698
    %v1179 = vpack.c.b16 %v703, %v699
    %v1180 = vpack.c.b16 %v708, %v704
    %v1181 = vpack.c.b16 %v709, %v705
    %v1182 = vpack.c.b16 %v710, %v706
    %v1183 = vpack.c.b16 %v711, %v707
    %v1184 = vpack.c.b16 %v716, %v712
    %v1185 = vpack.c.b16 %v717, %v713
    %v1186 = vpack.c.b16 %v718, %v714
    %v1187 = vpack.c.b16 %v719, %v715
    %v1188 = vpack.c.b16 %v724, %v720
    %v1189 = vpack.c.b16 %v725, %v721
    %v1190 = vpack.c.b16 %v726, %v722
    %v1191 = vpack.c.b16 %v727, %v723
    %v1192 = vpack.c.b16 %v732, %v728
    %v1193 = vpack.c.b16 %v733, %v729
    %v1194 = vpack.c.b16 %v734, %v730
    %v1195 = vpack.c.b16 %v735, %v731
    %v1196 = vpack.c.b16 %v740, %v736
    %v1197 = vpack.c.b16 %v741, %v737
    %v1198 = vpack.c.b16 %v742, %v738
    %v1199 = vpack.c.b16 %v743, %v739
    %v1200 = vpack.c.b16 %v748, %v744
    %v1201 = vpack.c.b16 %v749, %v745
    %v1202 = vpack.c.b16 %v750, %v746
    %v1203 = vpack.c.b16 %v751, %v747
    %v1204 = vpack.c.b16 %v756, %v752
    %v1205 = vpack.c.b16 %v757, %v753
    %v1206 = vpack.c.b16 %v758, %v754
    %v1207 = vpack.c.b16 %v759, %v755
    %v1208 = vpack.c.b16 %v764, %v760
    %v1209 = vpack.c.b16 %v765, %v761
    %v1210 = vpack.c.b16 %v766, %v762
    %v1211 = vpack.c.b16 %v767, %v763
    %v1212 = vpack.c.b16 %v772, %v768
    %v1213 = vpack.c.b16 %v773, %v769
    %v1214 = vpack.c.b16 %v774, %v770
    %v1215 = vpack.c.b16 %v775, %v771
    %v1216 = vpack.c.b16 %v780, %v776
    %v1217 = vpack.c.b16 %v781, %v777
    %v1218 = vpack.c.b16 %v782, %v778
    %v1219 = vpack.c.b16 %v783, %v779
    %v1220 = vpack.c.b16 %v788, %v784
    %v1221 = vpack.c.b16 %v789, %v785
    %v1222 = vpack.c.b16 %v790, %v786
    %v1223 = vpack.c.b16 %v791, %v787
    %v1224 = vpack.c.b16 %v796, %v792
    %v1225 = vpack.c.b16 %v797, %v793
    %v1226 = vpack.c.b16 %v798, %v794
    %v1227 = vpack.c.b16 %v799, %v795
    %v1228 = vpack.c.b16 %v804, %v800
    %v1229 = vpack.c.b16 %v805, %v801
    %v1230 = vpack.c.b16 %v806, %v802
    %v1231 = vpack.c.b16 %v807, %v803
    %v1232 = vpack.c.b16 %v812, %v808
    %v1233 = vpack.c.b16 %v813, %v809
    %v1234 = vpack.c.b16 %v814, %v810
    %v1235 = vpack.c.b16 %v815, %v811
    %v1236 = vpack.c.b16 %v820, %v816
    %v1237 = vpack.c.b16 %v821, %v817
    %v1238 = vpack.c.b16 %v822, %v818
    %v1239 = vpack.c.b16 %v823, %v819
    %v1240 = vpack.c.b16 %v828, %v824
    %v1241 = vpack.c.b16 %v829, %v825
    %v1242 = vpack.c.b16 %v830, %v826
    %v1243 = vpack.c.b16 %v831, %v827
    %v1244 = vpack.c.b16 %v836, %v832
    %v1245 = vpack.c.b16 %v837, %v833
    %v1246 = vpack.c.b16 %v838, %v834
    %v1247 = vpack.c.b16 %v839, %v835
    %v1248 = vpack.c.b16 %v844, %v840
    %v1249 = vpack.c.b16 %v845, %v841
    %v1250 = vpack.c.b16 %v846, %v842
    %v1251 = vpack.c.b16 %v847, %v843
    %v1252 = vpack.c.b16 %v852, %v848
    %v1253 = vpack.c.b16 %v853, %v849
    %v1254 = vpack.c.b16 %v854, %v850
    %v1255 = vpack.c.b16 %v855, %v851
    %v1256 = vpack.c.b16 %v860, %v856
    %v1257 = vpack.c.b16 %v861, %v857
    %v1258 = vpack.c.b16 %v862, %v858
    %v1259 = vpack.c.b16 %v863, %v859
    %v1260 = vpack.c.b16 %v868, %v864
    %v1261 = vpack.c.b16 %v869, %v865
    %v1262 = vpack.c.b16 %v870, %v866
    %v1263 = vpack.c.b16 %v871, %v867
    %v1264 = vpack.c.b16 %v876, %v872
    %v1265 = vpack.c.b16 %v877, %v873
    %v1266 = vpack.c.b16 %v878, %v874
    %v1267 = vpack.c.b16 %v879, %v875
    %v1268 = vpack.c.b16 %v884, %v880
    %v1269 = vpack.c.b16 %v885, %v881
    %v1270 = vpack.c.b16 %v886, %v882
    %v1271 = vpack.c.b16 %v887, %v883
    %v1272 = vpack.c.b16 %v892, %v888
    %v1273 = vpack.c.b16 %v893, %v889
    %v1274 = vpack.c.b16 %v894, %v890
    %v1275 = vpack.c.b16 %v895, %v891
    %v1276 = vpack.c.b16 %v900, %v896
    %v1277 = vpack.c.b16 %v901, %v897
    %v1278 = vpack.c.b16 %v902, %v898
    %v1279 = vpack.c.b16 %v903, %v899
    %v1280 = vpack.c.b16 %v908, %v904
    %v1281 = vpack.c.b16 %v909, %v905
    %v1282 = vpack.c.b16 %v910, %v906
    %v1283 = vpack.c.b16 %v911, %v907
    %v1284 = vpack.c.b16 %v916, %v912
    %v1285 = vpack.c.b16 %v917, %v913
    %v1286 = vpack.c.b16 %v918, %v914
    %v1287 = vpack.c.b16 %v919, %v915
    %v1288 = vpack.c.b16 %v924, %v920
    %v1289 = vpack.c.b16 %v925, %v921
    %v1290 = vpack.c.b16 %v926, %v922
    %v1291 = vpack.c.b16 %v927, %v923
    %v1292 = vpack.c.b16 %v932, %v928
    %v1293 = vpack.c.b16 %v933, %v929
    %v1294 = vpack.c.b16 %v934, %v930
    %v1295 = vpack.c.b16 %v935, %v931
    %v1296 = vpack.c.b16 %v940, %v936
    %v1297 = vpack.c.b16 %v941, %v937
    %v1298 = vpack.c.b16 %v942, %v938
    %v1299 = vpack.c.b16 %v943, %v939
    %v1300 = vpack.c.b16 %v948, %v944
    %v1301 = vpack.c.b16 %v949, %v945
    %v1302 = vpack.c.b16 %v950, %v946
    %v1303 = vpack.c.b16 %v951, %v947
    %v1304 = vpack.c.b16 %v956, %v952
    %v1305 = vpack.c.b16 %v957, %v953
    %v1306 = vpack.c.b16 %v958, %v954
    %v1307 = vpack.c.b16 %v959, %v955
    %v1308 = vpack.c.b16 %v964, %v960
    %v1309 = vpack.c.b16 %v965, %v961
    %v1310 = vpack.c.b16 %v966, %v962
    %v1311 = vpack.c.b16 %v967, %v963
    %v1312 = vpack.c.b16 %v972, %v968
    %v1313 = vpack.c.b16 %v973, %v969
    %v1314 = vpack.c.b16 %v974, %v970
    %v1315 = vpack.c.b16 %v975, %v971
    %v1316 = vpack.c.b16 %v980, %v976
    %v1317 = vpack.c.b16 %v981, %v977
    %v1318 = vpack.c.b16 %v982, %v978
    %v1319 = vpack.c.b16 %v983, %v979
    %v1320 = vpack.c.b16 %v988, %v984
    %v1321 = vpack.c.b16 %v989, %v985
    %v1322 = vpack.c.b16 %v990, %v986
    %v1323 = vpack.c.b16 %v991, %v987
    %v1324 = vpack.c.b16 %v996, %v992
    %v1325 = vpack.c.b16 %v997, %v993
    %v1326 = vpack.c.b16 %v998, %v994
    %v1327 = vpack.c.b16 %v999, %v995
    %v1328 = vpack.c.b16 %v1004, %v1000
    %v1329 = vpack.c.b16 %v1005, %v1001
    %v1330 = vpack.c.b16 %v1006, %v1002
    %v1331 = vpack.c.b16 %v1007, %v1003
    %v1332 = vpack.c.b16 %v1012, %v1008
    %v1333 = vpack.c.b16 %v1013, %v1009
    %v1334 = vpack.c.b16 %v1014, %v1010
    %v1335 = vpack.c.b16 %v1015, %v1011
    %v1336 = vpack.c.b16 %v1020, %v1016
    %v1337 = vpack.c.b16 %v1021, %v1017
    %v1338 = vpack.c.b16 %v1022, %v1018
    %v1339 = vpack.c.b16 %v1023, %v1019
    %v1340 = vpack.c.b16 %v1028, %v1024
    %v1341 = vpack.c.b16 %v1029, %v1025
    %v1342 = vpack.c.b16 %v1030, %v1026
    %v1343 = vpack.c.b16 %v1031, %v1027
    %v1344 = vpack.c.b16 %v1036, %v1032
    %v1345 = vpack.c.b16 %v1037, %v1033
    %v1346 = vpack.c.b16 %v1038, %v1034
    %v1347 = vpack.c.b16 %v1039, %v1035
    %v1348 = vpack.c.b16 %v1044, %v1040
    %v1349 = vpack.c.b16 %v1045, %v1041
    %v1350 = vpack.c.b16 %v1046, %v1042
    %v1351 = vpack.c.b16 %v1047, %v1043
    %v1352 = vpack.c.b16 %v1052, %v1048
    %v1353 = vpack.c.b16 %v1053, %v1049
    %v1354 = vpack.c.b16 %v1054, %v1050
    %v1355 = vpack.c.b16 %v1055, %v1051
    %v1356 = vpack.c.b16 %v1060, %v1056
    %v1357 = vpack.c.b16 %v1061, %v1057
    %v1358 = vpack.c.b16 %v1062, %v1058
    %v1359 = vpack.c.b16 %v1063, %v1059
    %v1360 = vpack.c.b16 %v1068, %v1064
    %v1361 = vpack.c.b16 %v1069, %v1065
    %v1362 = vpack.c.b16 %v1070, %v1066
    %v1363 = vpack.c.b16 %v1071, %v1067
    %v1364 = vpack.c.b16 %v1076, %v1072
    %v1365 = vpack.c.b16 %v1077, %v1073
    %v1366 = vpack.c.b16 %v1078, %v1074
    %v1367 = vpack.c.b16 %v1079, %v1075
    %v1368 = vpack.c.b16 %v1084, %v1080
    %v1369 = vpack.c.b16 %v1085, %v1081
    %v1370 = vpack.c.b16 %v1086, %v1082
    %v1371 = vpack.c.b16 %v1087, %v1083
    %v1372 = vpack.c.b16 %v1092, %v1088
    %v1373 = vpack.c.b16 %v1093, %v1089
    %v1374 = vpack.c.b16 %v1094, %v1090
    %v1375 = vpack.c.b16 %v1095, %v1091
    %v1376 = vpack.c.b16 %v1100, %v1096
    %v1377 = vpack.c.b16 %v1101, %v1097
    %v1378 = vpack.c.b16 %v1102, %v1098
    %v1379 = vpack.c.b16 %v1103, %v1099
    %v1380 = vpack.c.b16 %v1108, %v1104
    %v1381 = vpack.c.b16 %v1109, %v1105
    %v1382 = vpack.c.b16 %v1110, %v1106
    %v1383 = vpack.c.b16 %v1111, %v1107
    %v1384 = vpack.c.b16 %v1116, %v1112
    %v1385 = vpack.c.b16 %v1117, %v1113
    %v1386 = vpack.c.b16 %v1118, %v1114
    %v1387 = vpack.c.b16 %v1119, %v1115
    %v1388 = vpack.c.b16 %v1124, %v1120
    %v1389 = vpack.c.b16 %v1125, %v1121
    %v1390 = vpack.c.b16 %v1126, %v1122
    %v1391 = vpack.c.b16 %v1127, %v1123
    %v1392 = vpack.c.b16 %v1132, %v1128
    %v1393 = vpack.c.b16 %v1133, %v1129
    %v1394 = vpack.c.b16 %v1134, %v1130
    %v1395 = vpack.c.b16 %v1135, %v1131
    %v1396 = vpack.c.b16 %v1140, %v1136
    %v1397 = vpack.c.b16 %v1141, %v1137
    %v1398 = vpack.c.b16 %v1142, %v1138
    %v1399 = vpack.c.b16 %v1143, %v1139
    %1656 = vmatprep.subr.bf16.mxu0 %v1145
    %1657 = vmatpush1.bf16.msra.mxu0 %v1144
    %1658 = vmatprep.subr.bf16.mxu0 %v1149
    %1659 = vmatpush1.bf16.msra.mxu0 %v1148
    %1660 = vmatprep.subr.bf16.mxu0 %v1153
    %1661 = vmatpush1.bf16.msra.mxu0 %v1152
    %1662 = vmatprep.subr.bf16.mxu0 %v1157
    %1663 = vmatpush1.bf16.msra.mxu0 %v1156
    %1664 = vmatprep.subr.bf16.mxu0 %v1161
    %1665 = vmatpush1.bf16.msra.mxu0 %v1160
    %1666 = vmatprep.subr.bf16.mxu0 %v1165
    %1667 = vmatpush1.bf16.msra.mxu0 %v1164
    %1668 = vmatprep.subr.bf16.mxu0 %v1169
    %1669 = vmatpush1.bf16.msra.mxu0 %v1168
    %1670 = vmatprep.subr.bf16.mxu0 %v1173
    %1671 = vmatpush1.bf16.msra.mxu0 %v1172
    %1672 = vmatprep.subr.bf16.mxu0 %v1177
    %1673 = vmatpush1.bf16.msra.mxu0 %v1176
    %1674 = vmatprep.subr.bf16.mxu0 %v1181
    %1675 = vmatpush1.bf16.msra.mxu0 %v1180
    %1676 = vmatprep.subr.bf16.mxu0 %v1185
    %1677 = vmatpush1.bf16.msra.mxu0 %v1184
    %1678 = vmatprep.subr.bf16.mxu0 %v1189
    %1679 = vmatpush1.bf16.msra.mxu0 %v1188
    %1680 = vmatprep.subr.bf16.mxu0 %v1193
    %1681 = vmatpush1.bf16.msra.mxu0 %v1192
    %1682 = vmatprep.subr.bf16.mxu0 %v1197
    %1683 = vmatpush1.bf16.msra.mxu0 %v1196
    %1684 = vmatprep.subr.bf16.mxu0 %v1201
    %1685 = vmatpush1.bf16.msra.mxu0 %v1200
    %1686 = vmatprep.subr.bf16.mxu0 %v1205
    %1687 = vmatpush1.bf16.msra.mxu0 %v1204
    %1688 = vmatprep.mubr.bf16.mxu0 %v113
    %1689 = vmatmul.mubr.bf16.gmra.mrb[0].mxu0 %v112
    %v1690 = vpop.f32.mrb[0].mxu0
    %v1691 = vadd.f32 0.0, %v1690
    %v1692 = vpop.f32.mrb[0].mxu0
    %v1693 = vadd.f32 0.0, %v1692
    %v1694 = vpop.f32.mrb[0].mxu0
    %v1695 = vpop.f32.mrb[0].mxu0
    %1696 = vdwg.mxu0
    %1697 = vmatprep.subr.bf16.mxu0 %v1209
    %1698 = vmatpush1.bf16.msra.mxu0 %v1208
    %1699 = vmatprep.subr.bf16.mxu0 %v1213
    %1700 = vmatpush1.bf16.msra.mxu0 %v1212
    %1701 = vmatprep.subr.bf16.mxu0 %v1217
    %1702 = vmatpush1.bf16.msra.mxu0 %v1216
    %1703 = vmatprep.subr.bf16.mxu0 %v1221
    %1704 = vmatpush1.bf16.msra.mxu0 %v1220
    %1705 = vmatprep.subr.bf16.mxu0 %v1225
    %1706 = vmatpush1.bf16.msra.mxu0 %v1224
    %1707 = vmatprep.subr.bf16.mxu0 %v1229
    %1708 = vmatpush1.bf16.msra.mxu0 %v1228
    %1709 = vmatprep.subr.bf16.mxu0 %v1233
    %1710 = vmatpush1.bf16.msra.mxu0 %v1232
    %1711 = vmatprep.subr.bf16.mxu0 %v1237
    %1712 = vmatpush1.bf16.msra.mxu0 %v1236
    %1713 = vmatprep.subr.bf16.mxu0 %v1241
    %1714 = vmatpush1.bf16.msra.mxu0 %v1240
    %1715 = vmatprep.subr.bf16.mxu0 %v1245
    %1716 = vmatpush1.bf16.msra.mxu0 %v1244
    %1717 = vmatprep.subr.bf16.mxu0 %v1249
    %1718 = vmatpush1.bf16.msra.mxu0 %v1248
    %1719 = vmatprep.subr.bf16.mxu0 %v1253
    %1720 = vmatpush1.bf16.msra.mxu0 %v1252
    %1721 = vmatprep.subr.bf16.mxu0 %v1257
    %1722 = vmatpush1.bf16.msra.mxu0 %v1256
    %1723 = vmatprep.subr.bf16.mxu0 %v1261
    %1724 = vmatpush1.bf16.msra.mxu0 %v1260
    %1725 = vmatprep.subr.bf16.mxu0 %v1265
    %1726 = vmatpush1.bf16.msra.mxu0 %v1264
    %1727 = vmatprep.subr.bf16.mxu0 %v1269
    %1728 = vmatpush1.bf16.msra.mxu0 %v1268
    %1729 = vmatprep.mubr.bf16.mxu0 %v115
    %1730 = vmatmul.mubr.bf16.gmra.mrb[0].mxu0 %v114
    %v1731 = vpop.f32.mrb[0].mxu0
    %v1732 = vadd.f32 %v1691, %v1731
    %v1733 = vpop.f32.mrb[0].mxu0
    %v1734 = vadd.f32 %v1693, %v1733
    %v1735 = vpop.f32.mrb[0].mxu0
    %v1736 = vpop.f32.mrb[0].mxu0
    %1737 = vdwg.mxu0
    %1738 = vmatprep.subr.bf16.mxu0 %v1273
    %1739 = vmatpush1.bf16.msra.mxu0 %v1272
    %1740 = vmatprep.subr.bf16.mxu0 %v1277
    %1741 = vmatpush1.bf16.msra.mxu0 %v1276
    %1742 = vmatprep.subr.bf16.mxu0 %v1281
    %1743 = vmatpush1.bf16.msra.mxu0 %v1280
    %1744 = vmatprep.subr.bf16.mxu0 %v1285
    %1745 = vmatpush1.bf16.msra.mxu0 %v1284
    %1746 = vmatprep.subr.bf16.mxu0 %v1289
    %1747 = vmatpush1.bf16.msra.mxu0 %v1288
    %1748 = vmatprep.subr.bf16.mxu0 %v1293
    %1749 = vmatpush1.bf16.msra.mxu0 %v1292
    %1750 = vmatprep.subr.bf16.mxu0 %v1297
    %1751 = vmatpush1.bf16.msra.mxu0 %v1296
    %1752 = vmatprep.subr.bf16.mxu0 %v1301
    %1753 = vmatpush1.bf16.msra.mxu0 %v1300
    %1754 = vmatprep.subr.bf16.mxu0 %v1305
    %1755 = vmatpush1.bf16.msra.mxu0 %v1304
    %1756 = vmatprep.subr.bf16.mxu0 %v1309
    %1757 = vmatpush1.bf16.msra.mxu0 %v1308
    %1758 = vmatprep.subr.bf16.mxu0 %v1313
    %1759 = vmatpush1.bf16.msra.mxu0 %v1312
    %1760 = vmatprep.subr.bf16.mxu0 %v1317
    %1761 = vmatpush1.bf16.msra.mxu0 %v1316
    %1762 = vmatprep.subr.bf16.mxu0 %v1321
    %1763 = vmatpush1.bf16.msra.mxu0 %v1320
    %1764 = vmatprep.subr.bf16.mxu0 %v1325
    %1765 = vmatpush1.bf16.msra.mxu0 %v1324
    %1766 = vmatprep.subr.bf16.mxu0 %v1329
    %1767 = vmatpush1.bf16.msra.mxu0 %v1328
    %1768 = vmatprep.subr.bf16.mxu0 %v1333
    %1769 = vmatpush1.bf16.msra.mxu0 %v1332
    %1770 = vmatprep.mubr.bf16.mxu0 %v117
    %1771 = vmatmul.mubr.bf16.gmra.mrb[0].mxu0 %v116
    %v1772 = vpop.f32.mrb[0].mxu0
    %v1773 = vadd.f32 %v1732, %v1772
    %v1774 = vpop.f32.mrb[0].mxu0
    %v1775 = vadd.f32 %v1734, %v1774
    %v1776 = vpop.f32.mrb[0].mxu0
    %v1777 = vpop.f32.mrb[0].mxu0
    %1778 = vdwg.mxu0
    %1779 = vmatprep.subr.bf16.mxu0 %v1337
    %1780 = vmatpush1.bf16.msra.mxu0 %v1336
    %1781 = vmatprep.subr.bf16.mxu0 %v1341
    %1782 = vmatpush1.bf16.msra.mxu0 %v1340
    %1783 = vmatprep.subr.bf16.mxu0 %v1345
    %1784 = vmatpush1.bf16.msra.mxu0 %v1344
    %1785 = vmatprep.subr.bf16.mxu0 %v1349
    %1786 = vmatpush1.bf16.msra.mxu0 %v1348
    %1787 = vmatprep.subr.bf16.mxu0 %v1353
    %1788 = vmatpush1.bf16.msra.mxu0 %v1352
    %1789 = vmatprep.subr.bf16.mxu0 %v1357
    %1790 = vmatpush1.bf16.msra.mxu0 %v1356
    %1791 = vmatprep.subr.bf16.mxu0 %v1361
    %1792 = vmatpush1.bf16.msra.mxu0 %v1360
    %1793 = vmatprep.subr.bf16.mxu0 %v1365
    %1794 = vmatpush1.bf16.msra.mxu0 %v1364
    %1795 = vmatprep.subr.bf16.mxu0 %v1369
    %1796 = vmatpush1.bf16.msra.mxu0 %v1368
    %1797 = vmatprep.subr.bf16.mxu0 %v1373
    %1798 = vmatpush1.bf16.msra.mxu0 %v1372
    %1799 = vmatprep.subr.bf16.mxu0 %v1377
    %1800 = vmatpush1.bf16.msra.mxu0 %v1376
    %1801 = vmatprep.subr.bf16.mxu0 %v1381
    %1802 = vmatpush1.bf16.msra.mxu0 %v1380
    %1803 = vmatprep.subr.bf16.mxu0 %v1385
    %1804 = vmatpush1.bf16.msra.mxu0 %v1384
    %1805 = vmatprep.subr.bf16.mxu0 %v1389
    %1806 = vmatpush1.bf16.msra.mxu0 %v1388
    %1807 = vmatprep.subr.bf16.mxu0 %v1393
    %1808 = vmatpush1.bf16.msra.mxu0 %v1392
    %1809 = vmatprep.subr.bf16.mxu0 %v1397
    %1810 = vmatpush1.bf16.msra.mxu0 %v1396
    %1811 = vmatprep.mubr.bf16.mxu0 %v119
    %1812 = vmatmul.mubr.bf16.gmra.mrb[0].mxu0 %v118
    %v1813 = vpop.f32.mrb[0].mxu0
    %v1814 = vadd.f32 %v1773, %v1813
    %v1815 = vpop.f32.mrb[0].mxu0
    %v1816 = vadd.f32 %v1775, %v1815
    %v1817 = vpop.f32.mrb[0].mxu0
    %v1818 = vpop.f32.mrb[0].mxu0
    %1819 = vdwg.mxu0
    %1820 = vmatprep.subr.bf16.mxu0 %v1147
    %1821 = vmatpush1.bf16.msra.mxu0 %v1146
    %1822 = vmatprep.subr.bf16.mxu0 %v1151
    %1823 = vmatpush1.bf16.msra.mxu0 %v1150
    %1824 = vmatprep.subr.bf16.mxu0 %v1155
    %1825 = vmatpush1.bf16.msra.mxu0 %v1154
    %1826 = vmatprep.subr.bf16.mxu0 %v1159
    %1827 = vmatpush1.bf16.msra.mxu0 %v1158
    %1828 = vmatprep.subr.bf16.mxu0 %v1163
    %1829 = vmatpush1.bf16.msra.mxu0 %v1162
    %1830 = vmatprep.subr.bf16.mxu0 %v1167
    %1831 = vmatpush1.bf16.msra.mxu0 %v1166
    %1832 = vmatprep.subr.bf16.mxu0 %v1171
    %1833 = vmatpush1.bf16.msra.mxu0 %v1170
    %1834 = vmatprep.subr.bf16.mxu0 %v1175
    %1835 = vmatpush1.bf16.msra.mxu0 %v1174
    %1836 = vmatprep.subr.bf16.mxu0 %v1179
    %1837 = vmatpush1.bf16.msra.mxu0 %v1178
    %1838 = vmatprep.subr.bf16.mxu0 %v1183
    %1839 = vmatpush1.bf16.msra.mxu0 %v1182
    %1840 = vmatprep.subr.bf16.mxu0 %v1187
    %1841 = vmatpush1.bf16.msra.mxu0 %v1186
    %1842 = vmatprep.subr.bf16.mxu0 %v1191
    %1843 = vmatpush1.bf16.msra.mxu0 %v1190
    %1844 = vmatprep.subr.bf16.mxu0 %v1195
    %1845 = vmatpush1.bf16.msra.mxu0 %v1194
    %1846 = vmatprep.subr.bf16.mxu0 %v1199
    %1847 = vmatpush1.bf16.msra.mxu0 %v1198
    %1848 = vmatprep.subr.bf16.mxu0 %v1203
    %1849 = vmatpush1.bf16.msra.mxu0 %v1202
    %1850 = vmatprep.subr.bf16.mxu0 %v1207
    %1851 = vmatpush1.bf16.msra.mxu0 %v1206
    %1852 = vmatprep.mubr.bf16.mxu0 %v113
    %1853 = vmatmul.mubr.bf16.gmra.mrb[0].mxu0 %v112
    %v1854 = vpop.f32.mrb[0].mxu0
    %v1855 = vadd.f32 0.0, %v1854
    %v1856 = vpop.f32.mrb[0].mxu0
    %v1857 = vadd.f32 0.0, %v1856
    %v1858 = vpop.f32.mrb[0].mxu0
    %v1859 = vpop.f32.mrb[0].mxu0
    %1860 = vdwg.mxu0
    %1861 = vmatprep.subr.bf16.mxu0 %v1211
    %1862 = vmatpush1.bf16.msra.mxu0 %v1210
    %1863 = vmatprep.subr.bf16.mxu0 %v1215
    %1864 = vmatpush1.bf16.msra.mxu0 %v1214
    %1865 = vmatprep.subr.bf16.mxu0 %v1219
    %1866 = vmatpush1.bf16.msra.mxu0 %v1218
    %1867 = vmatprep.subr.bf16.mxu0 %v1223
    %1868 = vmatpush1.bf16.msra.mxu0 %v1222
    %1869 = vmatprep.subr.bf16.mxu0 %v1227
    %1870 = vmatpush1.bf16.msra.mxu0 %v1226
    %1871 = vmatprep.subr.bf16.mxu0 %v1231
    %1872 = vmatpush1.bf16.msra.mxu0 %v1230
    %1873 = vmatprep.subr.bf16.mxu0 %v1235
    %1874 = vmatpush1.bf16.msra.mxu0 %v1234
    %1875 = vmatprep.subr.bf16.mxu0 %v1239
    %1876 = vmatpush1.bf16.msra.mxu0 %v1238
    %1877 = vmatprep.subr.bf16.mxu0 %v1243
    %1878 = vmatpush1.bf16.msra.mxu0 %v1242
    %1879 = vmatprep.subr.bf16.mxu0 %v1247
    %1880 = vmatpush1.bf16.msra.mxu0 %v1246
    %1881 = vmatprep.subr.bf16.mxu0 %v1251
    %1882 = vmatpush1.bf16.msra.mxu0 %v1250
    %1883 = vmatprep.subr.bf16.mxu0 %v1255
    %1884 = vmatpush1.bf16.msra.mxu0 %v1254
    %1885 = vmatprep.subr.bf16.mxu0 %v1259
    %1886 = vmatpush1.bf16.msra.mxu0 %v1258
    %1887 = vmatprep.subr.bf16.mxu0 %v1263
    %1888 = vmatpush1.bf16.msra.mxu0 %v1262
    %1889 = vmatprep.subr.bf16.mxu0 %v1267
    %1890 = vmatpush1.bf16.msra.mxu0 %v1266
    %1891 = vmatprep.subr.bf16.mxu0 %v1271
    %1892 = vmatpush1.bf16.msra.mxu0 %v1270
    %1893 = vmatprep.mubr.bf16.mxu0 %v115
    %1894 = vmatmul.mubr.bf16.gmra.mrb[0].mxu0 %v114
    %v1895 = vpop.f32.mrb[0].mxu0
    %v1896 = vadd.f32 %v1855, %v1895
    %v1897 = vpop.f32.mrb[0].mxu0
    %v1898 = vadd.f32 %v1857, %v1897
    %v1899 = vpop.f32.mrb[0].mxu0
    %v1900 = vpop.f32.mrb[0].mxu0
    %1901 = vdwg.mxu0
    %1902 = vmatprep.subr.bf16.mxu0 %v1275
    %1903 = vmatpush1.bf16.msra.mxu0 %v1274
    %1904 = vmatprep.subr.bf16.mxu0 %v1279
    %1905 = vmatpush1.bf16.msra.mxu0 %v1278
    %1906 = vmatprep.subr.bf16.mxu0 %v1283
    %1907 = vmatpush1.bf16.msra.mxu0 %v1282
    %1908 = vmatprep.subr.bf16.mxu0 %v1287
    %1909 = vmatpush1.bf16.msra.mxu0 %v1286
    %1910 = vmatprep.subr.bf16.mxu0 %v1291
    %1911 = vmatpush1.bf16.msra.mxu0 %v1290
    %1912 = vmatprep.subr.bf16.mxu0 %v1295
    %1913 = vmatpush1.bf16.msra.mxu0 %v1294
    %1914 = vmatprep.subr.bf16.mxu0 %v1299
    %1915 = vmatpush1.bf16.msra.mxu0 %v1298
    %1916 = vmatprep.subr.bf16.mxu0 %v1303
    %1917 = vmatpush1.bf16.msra.mxu0 %v1302
    %1918 = vmatprep.subr.bf16.mxu0 %v1307
    %1919 = vmatpush1.bf16.msra.mxu0 %v1306
    %1920 = vmatprep.subr.bf16.mxu0 %v1311
    %1921 = vmatpush1.bf16.msra.mxu0 %v1310
    %1922 = vmatprep.subr.bf16.mxu0 %v1315
    %1923 = vmatpush1.bf16.msra.mxu0 %v1314
    %1924 = vmatprep.subr.bf16.mxu0 %v1319
    %1925 = vmatpush1.bf16.msra.mxu0 %v1318
    %1926 = vmatprep.subr.bf16.mxu0 %v1323
    %1927 = vmatpush1.bf16.msra.mxu0 %v1322
    %1928 = vmatprep.subr.bf16.mxu0 %v1327
    %1929 = vmatpush1.bf16.msra.mxu0 %v1326
    %1930 = vmatprep.subr.bf16.mxu0 %v1331
    %1931 = vmatpush1.bf16.msra.mxu0 %v1330
    %1932 = vmatprep.subr.bf16.mxu0 %v1335
    %1933 = vmatpush1.bf16.msra.mxu0 %v1334
    %1934 = vmatprep.mubr.bf16.mxu0 %v117
    %1935 = vmatmul.mubr.bf16.gmra.mrb[0].mxu0 %v116
    %v1936 = vpop.f32.mrb[0].mxu0
    %v1937 = vadd.f32 %v1896, %v1936
    %v1938 = vpop.f32.mrb[0].mxu0
    %v1939 = vadd.f32 %v1898, %v1938
    %v1940 = vpop.f32.mrb[0].mxu0
    %v1941 = vpop.f32.mrb[0].mxu0
    %1942 = vdwg.mxu0
    %1943 = vmatprep.subr.bf16.mxu0 %v1339
    %1944 = vmatpush1.bf16.msra.mxu0 %v1338
    %1945 = vmatprep.subr.bf16.mxu0 %v1343
    %1946 = vmatpush1.bf16.msra.mxu0 %v1342
    %1947 = vmatprep.subr.bf16.mxu0 %v1347
    %1948 = vmatpush1.bf16.msra.mxu0 %v1346
    %1949 = vmatprep.subr.bf16.mxu0 %v1351
    %1950 = vmatpush1.bf16.msra.mxu0 %v1350
    %1951 = vmatprep.subr.bf16.mxu0 %v1355
    %1952 = vmatpush1.bf16.msra.mxu0 %v1354
    %1953 = vmatprep.subr.bf16.mxu0 %v1359
    %1954 = vmatpush1.bf16.msra.mxu0 %v1358
    %1955 = vmatprep.subr.bf16.mxu0 %v1363
    %1956 = vmatpush1.bf16.msra.mxu0 %v1362
    %1957 = vmatprep.subr.bf16.mxu0 %v1367
    %1958 = vmatpush1.bf16.msra.mxu0 %v1366
    %1959 = vmatprep.subr.bf16.mxu0 %v1371
    %1960 = vmatpush1.bf16.msra.mxu0 %v1370
    %1961 = vmatprep.subr.bf16.mxu0 %v1375
    %1962 = vmatpush1.bf16.msra.mxu0 %v1374
    %1963 = vmatprep.subr.bf16.mxu0 %v1379
    %1964 = vmatpush1.bf16.msra.mxu0 %v1378
    %1965 = vmatprep.subr.bf16.mxu0 %v1383
    %1966 = vmatpush1.bf16.msra.mxu0 %v1382
    %1967 = vmatprep.subr.bf16.mxu0 %v1387
    %1968 = vmatpush1.bf16.msra.mxu0 %v1386
    %1969 = vmatprep.subr.bf16.mxu0 %v1391
    %1970 = vmatpush1.bf16.msra.mxu0 %v1390
    %1971 = vmatprep.subr.bf16.mxu0 %v1395
    %1972 = vmatpush1.bf16.msra.mxu0 %v1394
    %1973 = vmatprep.subr.bf16.mxu0 %v1399
    %1974 = vmatpush1.bf16.msra.mxu0 %v1398
    %1975 = vmatprep.mubr.bf16.mxu0 %v119
    %1976 = vmatmul.mubr.bf16.gmra.mrb[0].mxu0 %v118
    %v1977 = vpop.f32.mrb[0].mxu0
    %v1978 = vadd.f32 %v1937, %v1977
    %v1979 = vpop.f32.mrb[0].mxu0
    %v1980 = vadd.f32 %v1939, %v1979
    %v1981 = vpop.f32.mrb[0].mxu0
    %v1982 = vpop.f32.mrb[0].mxu0
    %1983 = vdwg.mxu0
    %v1984 = vadd.f32 %v100, %v1814
    %v1985 = vadd.f32 %v101, %v1816
    %v1986 = vadd.f32 %v102, %v1978
    %v1987 = vadd.f32 %v103, %v1980
    %1988 = vst [vmem:[#allocation2] sm:$0xff] %v1984
    %1989 = vst [vmem:[#allocation2 + $0x8] sm:$0xff] %v1985
    %1990 = vst [vmem:[#allocation2 + $0x10] sm:$0xff] %v1986
    %1991 = vst [vmem:[#allocation2 + $0x18] sm:$0xff] %v1987
    // Predicated region
    $region50: #{tpu_custom_call.1} parent=1 // pred_check
      %p1992 = pneg %p92
    $region51: #{tpu_custom_call.1} parent=1 // pred_check_branch
      %1994 = sbr.rel (%p1992) target = $region53
    $region52: #{tpu_custom_call.1} parent=1 // pred_region
      %s1995 = sld [smem:[#allocation3]]
      %s1996 = smul.u32 0, 4
      %s1997 = smul.addr %s1996, 8
      %s1998 = scalar_lea.vmem [#allocation2], %s1997
      %v1999 = vld [vmem:[%s1998] sm:$0xff]
      %v2000 = vld [vmem:[%s1998 + $0x8] sm:$0xff]
      %v2001 = vld [vmem:[%s1998 + $0x10] sm:$0xff]
      %v2002 = vld [vmem:[%s1998 + $0x18] sm:$0xff]
      %v2003 = vmul.f32 %v1999, %v1999
      %v2004 = vmul.f32 %v2000, %v2000
      %v2005 = vmul.f32 %v2001, %v2001
      %v2006 = vmul.f32 %v2002, %v2002
      %v2007 = vadd.f32 %v2003, %v2004
      %v2008 = vadd.f32 %v2007, %v2005
      %v2009 = vadd.f32 %v2008, %v2006
      %2010 = vadd.xlane.f32.xlu0 %v2009
      %v2011 = vpop.xlane.xlu0 %2010
      %v2012 = vadd.f32 %v2011, 1e-12
      %v2013 = vrsqrt.pop %v2012
      %v2014 = vmul.f32 %v1999, %v2013
      %v2015 = vmul.f32 %v2000, %v2013
      %v2016 = vmul.f32 %v2001, %v2013
      %v2017 = vmul.f32 %v2002, %v2013
      %v2018 = vpack.c.bf16 %v2014, %v2014
      %v2019 = vpack.c.bf16 %v2015, %v2015
      %v2020 = vpack.c.bf16 %v2016, %v2016
      %v2021 = vpack.c.bf16 %v2017, %v2017
      %v2022 = vld [vmem:[#allocation9] sm:$0xff]
      %v2023 = vld [vmem:[#allocation9 + $0x8] sm:$0xf]
      %v2024 = vld [vmem:[#allocation9 + $0xc] sm:$0xff]
      %v2025 = vld [vmem:[#allocation9 + $0x14] sm:$0xf]
      %v2026 = vld [vmem:[#allocation9 + $0x18] sm:$0xff]
      %v2027 = vld [vmem:[#allocation9 + $0x20] sm:$0xf]
      %v2028 = vld [vmem:[#allocation9 + $0x24] sm:$0xff]
      %v2029 = vld [vmem:[#allocation9 + $0x2c] sm:$0xf]
      %v2030 = vld [vmem:[#allocation9 + $0x30] sm:$0xff]
      %v2031 = vld [vmem:[#allocation9 + $0x38] sm:$0xf]
      %v2032 = vld [vmem:[#allocation9 + $0x3c] sm:$0xff]
      %v2033 = vld [vmem:[#allocation9 + $0x44] sm:$0xf]
      %v2034 = vld [vmem:[#allocation9 + $0x48] sm:$0xff]
      %v2035 = vld [vmem:[#allocation9 + $0x50] sm:$0xf]
      %v2036 = vld [vmem:[#allocation9 + $0x54] sm:$0xff]
      %v2037 = vld [vmem:[#allocation9 + $0x5c] sm:$0xf]
      %v2038 = vld [vmem:[#allocation9 + $0x60] sm:$0xff]
      %v2039 = vld [vmem:[#allocation9 + $0x68] sm:$0xf]
      %v2040 = vld [vmem:[#allocation9 + $0x6c] sm:$0xff]
      %v2041 = vld [vmem:[#allocation9 + $0x74] sm:$0xf]
      %v2042 = vld [vmem:[#allocation9 + $0x78] sm:$0xff]
      %v2043 = vld [vmem:[#allocation9 + $0x80] sm:$0xf]
      %v2044 = vld [vmem:[#allocation9 + $0x84] sm:$0xff]
      %v2045 = vld [vmem:[#allocation9 + $0x8c] sm:$0xf]
      %v2046 = vld [vmem:[#allocation9 + $0x90] sm:$0xff]
      %v2047 = vld [vmem:[#allocation9 + $0x98] sm:$0xf]
      %v2048 = vld [vmem:[#allocation9 + $0x9c] sm:$0xff]
      %v2049 = vld [vmem:[#allocation9 + $0xa4] sm:$0xf]
      %v2050 = vld [vmem:[#allocation9 + $0xa8] sm:$0xff]
      %v2051 = vld [vmem:[#allocation9 + $0xb0] sm:$0xf]
      %v2052 = vld [vmem:[#allocation9 + $0xb4] sm:$0xff]
      %v2053 = vld [vmem:[#allocation9 + $0xbc] sm:$0xf]
      %v2054 = vld [vmem:[#allocation9 + $0xc0] sm:$0xff]
      %v2055 = vld [vmem:[#allocation9 + $0xc8] sm:$0xf]
      %v2056 = vld [vmem:[#allocation9 + $0xcc] sm:$0xff]
      %v2057 = vld [vmem:[#allocation9 + $0xd4] sm:$0xf]
      %v2058 = vld [vmem:[#allocation9 + $0xd8] sm:$0xff]
      %v2059 = vld [vmem:[#allocation9 + $0xe0] sm:$0xf]
      %v2060 = vld [vmem:[#allocation9 + $0xe4] sm:$0xff]
      %v2061 = vld [vmem:[#allocation9 + $0xec] sm:$0xf]
      %v2062 = vld [vmem:[#allocation9 + $0xf0] sm:$0xff]
      %v2063 = vld [vmem:[#allocation9 + $0xf8] sm:$0xf]
      %v2064 = vld [vmem:[#allocation9 + $0xfc] sm:$0xff]
      %v2065 = vld [vmem:[#allocation9 + $0x104] sm:$0xf]
      %v2066 = vld [vmem:[#allocation9 + $0x108] sm:$0xff]
      %v2067 = vld [vmem:[#allocation9 + $0x110] sm:$0xf]
      %v2068 = vld [vmem:[#allocation9 + $0x114] sm:$0xff]
      %v2069 = vld [vmem:[#allocation9 + $0x11c] sm:$0xf]
      %v2070 = vld [vmem:[#allocation9 + $0x120] sm:$0xff]
      %v2071 = vld [vmem:[#allocation9 + $0x128] sm:$0xf]
      %v2072 = vld [vmem:[#allocation9 + $0x12c] sm:$0xff]
      %v2073 = vld [vmem:[#allocation9 + $0x134] sm:$0xf]
      %v2074 = vld [vmem:[#allocation9 + $0x138] sm:$0xff]
      %v2075 = vld [vmem:[#allocation9 + $0x140] sm:$0xf]
      %v2076 = vld [vmem:[#allocation9 + $0x144] sm:$0xff]
      %v2077 = vld [vmem:[#allocation9 + $0x14c] sm:$0xf]
      %v2078 = vld [vmem:[#allocation9 + $0x150] sm:$0xff]
      %v2079 = vld [vmem:[#allocation9 + $0x158] sm:$0xf]
      %v2080 = vld [vmem:[#allocation9 + $0x15c] sm:$0xff]
      %v2081 = vld [vmem:[#allocation9 + $0x164] sm:$0xf]
      %v2082 = vld [vmem:[#allocation9 + $0x168] sm:$0xff]
      %v2083 = vld [vmem:[#allocation9 + $0x170] sm:$0xf]
      %v2084 = vld [vmem:[#allocation9 + $0x174] sm:$0xff]
      %v2085 = vld [vmem:[#allocation9 + $0x17c] sm:$0xf]
      %v2086 = vld [vmem:[#allocation9 + $0x180] sm:$0xff]
      %v2087 = vld [vmem:[#allocation9 + $0x188] sm:$0xf]
      %v2088 = vld [vmem:[#allocation9 + $0x18c] sm:$0xff]
      %v2089 = vld [vmem:[#allocation9 + $0x194] sm:$0xf]
      %v2090 = vld [vmem:[#allocation9 + $0x198] sm:$0xff]
      %v2091 = vld [vmem:[#allocation9 + $0x1a0] sm:$0xf]
      %v2092 = vld [vmem:[#allocation9 + $0x1a4] sm:$0xff]
      %v2093 = vld [vmem:[#allocation9 + $0x1ac] sm:$0xf]
      %v2094 = vld [vmem:[#allocation9 + $0x1b0] sm:$0xff]
      %v2095 = vld [vmem:[#allocation9 + $0x1b8] sm:$0xf]
      %v2096 = vld [vmem:[#allocation9 + $0x1bc] sm:$0xff]
      %v2097 = vld [vmem:[#allocation9 + $0x1c4] sm:$0xf]
      %v2098 = vld [vmem:[#allocation9 + $0x1c8] sm:$0xff]
      %v2099 = vld [vmem:[#allocation9 + $0x1d0] sm:$0xf]
      %v2100 = vld [vmem:[#allocation9 + $0x1d4] sm:$0xff]
      %v2101 = vld [vmem:[#allocation9 + $0x1dc] sm:$0xf]
      %v2102 = vld [vmem:[#allocation9 + $0x1e0] sm:$0xff]
      %v2103 = vld [vmem:[#allocation9 + $0x1e8] sm:$0xf]
      %v2104 = vld [vmem:[#allocation9 + $0x1ec] sm:$0xff]
      %v2105 = vld [vmem:[#allocation9 + $0x1f4] sm:$0xf]
      %v2106 = vld [vmem:[#allocation9 + $0x1f8] sm:$0xff]
      %v2107 = vld [vmem:[#allocation9 + $0x200] sm:$0xf]
      %v2108 = vld [vmem:[#allocation9 + $0x204] sm:$0xff]
      %v2109 = vld [vmem:[#allocation9 + $0x20c] sm:$0xf]
      %v2110 = vld [vmem:[#allocation9 + $0x210] sm:$0xff]
      %v2111 = vld [vmem:[#allocation9 + $0x218] sm:$0xf]
      %v2112 = vld [vmem:[#allocation9 + $0x21c] sm:$0xff]
      %v2113 = vld [vmem:[#allocation9 + $0x224] sm:$0xf]
      %v2114 = vld [vmem:[#allocation9 + $0x228] sm:$0xff]
      %v2115 = vld [vmem:[#allocation9 + $0x230] sm:$0xf]
      %v2116 = vld [vmem:[#allocation9 + $0x234] sm:$0xff]
      %v2117 = vld [vmem:[#allocation9 + $0x23c] sm:$0xf]
      %v2118 = vld [vmem:[#allocation9 + $0x240] sm:$0xff]
      %v2119 = vld [vmem:[#allocation9 + $0x248] sm:$0xf]
      %v2120 = vld [vmem:[#allocation9 + $0x24c] sm:$0xff]
      %v2121 = vld [vmem:[#allocation9 + $0x254] sm:$0xf]
      %v2122 = vld [vmem:[#allocation9 + $0x258] sm:$0xff]
      %v2123 = vld [vmem:[#allocation9 + $0x260] sm:$0xf]
      %v2124 = vld [vmem:[#allocation9 + $0x264] sm:$0xff]
      %v2125 = vld [vmem:[#allocation9 + $0x26c] sm:$0xf]
      %v2126 = vld [vmem:[#allocation9 + $0x270] sm:$0xff]
      %v2127 = vld [vmem:[#allocation9 + $0x278] sm:$0xf]
      %v2128 = vld [vmem:[#allocation9 + $0x27c] sm:$0xff]
      %v2129 = vld [vmem:[#allocation9 + $0x284] sm:$0xf]
      %v2130 = vld [vmem:[#allocation9 + $0x288] sm:$0xff]
      %v2131 = vld [vmem:[#allocation9 + $0x290] sm:$0xf]
      %v2132 = vld [vmem:[#allocation9 + $0x294] sm:$0xff]
      %v2133 = vld [vmem:[#allocation9 + $0x29c] sm:$0xf]
      %v2134 = vld [vmem:[#allocation9 + $0x2a0] sm:$0xff]
      %v2135 = vld [vmem:[#allocation9 + $0x2a8] sm:$0xf]
      %v2136 = vld [vmem:[#allocation9 + $0x2ac] sm:$0xff]
      %v2137 = vld [vmem:[#allocation9 + $0x2b4] sm:$0xf]
      %v2138 = vld [vmem:[#allocation9 + $0x2b8] sm:$0xff]
      %v2139 = vld [vmem:[#allocation9 + $0x2c0] sm:$0xf]
      %v2140 = vld [vmem:[#allocation9 + $0x2c4] sm:$0xff]
      %v2141 = vld [vmem:[#allocation9 + $0x2cc] sm:$0xf]
      %v2142 = vld [vmem:[#allocation9 + $0x2d0] sm:$0xff]
      %v2143 = vld [vmem:[#allocation9 + $0x2d8] sm:$0xf]
      %v2144 = vld [vmem:[#allocation9 + $0x2dc] sm:$0xff]
      %v2145 = vld [vmem:[#allocation9 + $0x2e4] sm:$0xf]
      %v2146 = vld [vmem:[#allocation9 + $0x2e8] sm:$0xff]
      %v2147 = vld [vmem:[#allocation9 + $0x2f0] sm:$0xf]
      %v2148 = vld [vmem:[#allocation9 + $0x2f4] sm:$0xff]
      %v2149 = vld [vmem:[#allocation9 + $0x2fc] sm:$0xf]
      %v2278 = vunpack.c.l.b16 %v2022
      %v2279 = vunpack.c.h.b16 %v2022
      %v2280 = vunpack.c.l.b16 %v2023
      %v2281 = vunpack.c.l.b16 %v2024
      %v2282 = vunpack.c.h.b16 %v2024
      %v2283 = vunpack.c.l.b16 %v2025
      %v2284 = vunpack.c.l.b16 %v2026
      %v2285 = vunpack.c.h.b16 %v2026
      %v2286 = vunpack.c.l.b16 %v2027
      %v2287 = vunpack.c.l.b16 %v2028
      %v2288 = vunpack.c.h.b16 %v2028
      %v2289 = vunpack.c.l.b16 %v2029
      %v2290 = vunpack.c.l.b16 %v2030
      %v2291 = vunpack.c.h.b16 %v2030
      %v2292 = vunpack.c.l.b16 %v2031
      %v2293 = vunpack.c.l.b16 %v2032
      %v2294 = vunpack.c.h.b16 %v2032
      %v2295 = vunpack.c.l.b16 %v2033
      %v2296 = vunpack.c.l.b16 %v2034
      %v2297 = vunpack.c.h.b16 %v2034
      %v2298 = vunpack.c.l.b16 %v2035
      %v2299 = vunpack.c.l.b16 %v2036
      %v2300 = vunpack.c.h.b16 %v2036
      %v2301 = vunpack.c.l.b16 %v2037
      %v2302 = vunpack.c.l.b16 %v2038
      %v2303 = vunpack.c.h.b16 %v2038
      %v2304 = vunpack.c.l.b16 %v2039
      %v2305 = vunpack.c.l.b16 %v2040
      %v2306 = vunpack.c.h.b16 %v2040
      %v2307 = vunpack.c.l.b16 %v2041
      %v2308 = vunpack.c.l.b16 %v2042
      %v2309 = vunpack.c.h.b16 %v2042
      %v2310 = vunpack.c.l.b16 %v2043
      %v2311 = vunpack.c.l.b16 %v2044
      %v2312 = vunpack.c.h.b16 %v2044
      %v2313 = vunpack.c.l.b16 %v2045
      %v2314 = vunpack.c.l.b16 %v2046
      %v2315 = vunpack.c.h.b16 %v2046
      %v2316 = vunpack.c.l.b16 %v2047
      %v2317 = vunpack.c.l.b16 %v2048
      %v2318 = vunpack.c.h.b16 %v2048
      %v2319 = vunpack.c.l.b16 %v2049
      %v2320 = vunpack.c.l.b16 %v2050
      %v2321 = vunpack.c.h.b16 %v2050
      %v2322 = vunpack.c.l.b16 %v2051
      %v2323 = vunpack.c.l.b16 %v2052
      %v2324 = vunpack.c.h.b16 %v2052
      %v2325 = vunpack.c.l.b16 %v2053
      %v2326 = vunpack.c.l.b16 %v2054
      %v2327 = vunpack.c.h.b16 %v2054
      %v2328 = vunpack.c.l.b16 %v2055
      %v2329 = vunpack.c.l.b16 %v2056
      %v2330 = vunpack.c.h.b16 %v2056
      %v2331 = vunpack.c.l.b16 %v2057
      %v2332 = vunpack.c.l.b16 %v2058
      %v2333 = vunpack.c.h.b16 %v2058
      %v2334 = vunpack.c.l.b16 %v2059
      %v2335 = vunpack.c.l.b16 %v2060
      %v2336 = vunpack.c.h.b16 %v2060
      %v2337 = vunpack.c.l.b16 %v2061
      %v2338 = vunpack.c.l.b16 %v2062
      %v2339 = vunpack.c.h.b16 %v2062
      %v2340 = vunpack.c.l.b16 %v2063
      %v2341 = vunpack.c.l.b16 %v2064
      %v2342 = vunpack.c.h.b16 %v2064
      %v2343 = vunpack.c.l.b16 %v2065
      %v2344 = vunpack.c.l.b16 %v2066
      %v2345 = vunpack.c.h.b16 %v2066
      %v2346 = vunpack.c.l.b16 %v2067
      %v2347 = vunpack.c.l.b16 %v2068
      %v2348 = vunpack.c.h.b16 %v2068
      %v2349 = vunpack.c.l.b16 %v2069
      %v2350 = vunpack.c.l.b16 %v2070
      %v2351 = vunpack.c.h.b16 %v2070
      %v2352 = vunpack.c.l.b16 %v2071
      %v2353 = vunpack.c.l.b16 %v2072
      %v2354 = vunpack.c.h.b16 %v2072
      %v2355 = vunpack.c.l.b16 %v2073
      %v2356 = vunpack.c.l.b16 %v2074
      %v2357 = vunpack.c.h.b16 %v2074
      %v2358 = vunpack.c.l.b16 %v2075
      %v2359 = vunpack.c.l.b16 %v2076
      %v2360 = vunpack.c.h.b16 %v2076
      %v2361 = vunpack.c.l.b16 %v2077
      %v2362 = vunpack.c.l.b16 %v2078
      %v2363 = vunpack.c.h.b16 %v2078
      %v2364 = vunpack.c.l.b16 %v2079
      %v2365 = vunpack.c.l.b16 %v2080
      %v2366 = vunpack.c.h.b16 %v2080
      %v2367 = vunpack.c.l.b16 %v2081
      %v2368 = vunpack.c.l.b16 %v2082
      %v2369 = vunpack.c.h.b16 %v2082
      %v2370 = vunpack.c.l.b16 %v2083
      %v2371 = vunpack.c.l.b16 %v2084
      %v2372 = vunpack.c.h.b16 %v2084
      %v2373 = vunpack.c.l.b16 %v2085
      %v2374 = vunpack.c.l.b16 %v2086
      %v2375 = vunpack.c.h.b16 %v2086
      %v2376 = vunpack.c.l.b16 %v2087
      %v2377 = vunpack.c.l.b16 %v2088
      %v2378 = vunpack.c.h.b16 %v2088
      %v2379 = vunpack.c.l.b16 %v2089
      %v2380 = vunpack.c.l.b16 %v2090
      %v2381 = vunpack.c.h.b16 %v2090
      %v2382 = vunpack.c.l.b16 %v2091
      %v2383 = vunpack.c.l.b16 %v2092
      %v2384 = vunpack.c.h.b16 %v2092
      %v2385 = vunpack.c.l.b16 %v2093
      %v2386 = vunpack.c.l.b16 %v2094
      %v2387 = vunpack.c.h.b16 %v2094
      %v2388 = vunpack.c.l.b16 %v2095
      %v2389 = vunpack.c.l.b16 %v2096
      %v2390 = vunpack.c.h.b16 %v2096
      %v2391 = vunpack.c.l.b16 %v2097
      %v2392 = vunpack.c.l.b16 %v2098
      %v2393 = vunpack.c.h.b16 %v2098
      %v2394 = vunpack.c.l.b16 %v2099
      %v2395 = vunpack.c.l.b16 %v2100
      %v2396 = vunpack.c.h.b16 %v2100
      %v2397 = vunpack.c.l.b16 %v2101
      %v2398 = vunpack.c.l.b16 %v2102
      %v2399 = vunpack.c.h.b16 %v2102
      %v2400 = vunpack.c.l.b16 %v2103
      %v2401 = vunpack.c.l.b16 %v2104
      %v2402 = vunpack.c.h.b16 %v2104
      %v2403 = vunpack.c.l.b16 %v2105
      %v2404 = vunpack.c.l.b16 %v2106
      %v2405 = vunpack.c.h.b16 %v2106
      %v2406 = vunpack.c.l.b16 %v2107
      %v2407 = vunpack.c.l.b16 %v2108
      %v2408 = vunpack.c.h.b16 %v2108
      %v2409 = vunpack.c.l.b16 %v2109
      %v2410 = vunpack.c.l.b16 %v2110
      %v2411 = vunpack.c.h.b16 %v2110
      %v2412 = vunpack.c.l.b16 %v2111
      %v2413 = vunpack.c.l.b16 %v2112
      %v2414 = vunpack.c.h.b16 %v2112
      %v2415 = vunpack.c.l.b16 %v2113
      %v2416 = vunpack.c.l.b16 %v2114
      %v2417 = vunpack.c.h.b16 %v2114
      %v2418 = vunpack.c.l.b16 %v2115
      %v2419 = vunpack.c.l.b16 %v2116
      %v2420 = vunpack.c.h.b16 %v2116
      %v2421 = vunpack.c.l.b16 %v2117
      %v2422 = vunpack.c.l.b16 %v2118
      %v2423 = vunpack.c.h.b16 %v2118
      %v2424 = vunpack.c.l.b16 %v2119
      %v2425 = vunpack.c.l.b16 %v2120
      %v2426 = vunpack.c.h.b16 %v2120
      %v2427 = vunpack.c.l.b16 %v2121
      %v2428 = vunpack.c.l.b16 %v2122
      %v2429 = vunpack.c.h.b16 %v2122
      %v2430 = vunpack.c.l.b16 %v2123
      %v2431 = vunpack.c.l.b16 %v2124
      %v2432 = vunpack.c.h.b16 %v2124
      %v2433 = vunpack.c.l.b16 %v2125
      %v2434 = vunpack.c.l.b16 %v2126
      %v2435 = vunpack.c.h.b16 %v2126
      %v2436 = vunpack.c.l.b16 %v2127
      %v2437 = vunpack.c.l.b16 %v2128
      %v2438 = vunpack.c.h.b16 %v2128
      %v2439 = vunpack.c.l.b16 %v2129
      %v2440 = vunpack.c.l.b16 %v2130
      %v2441 = vunpack.c.h.b16 %v2130
      %v2442 = vunpack.c.l.b16 %v2131
      %v2443 = vunpack.c.l.b16 %v2132
      %v2444 = vunpack.c.h.b16 %v2132
      %v2445 = vunpack.c.l.b16 %v2133
      %v2446 = vunpack.c.l.b16 %v2134
      %v2447 = vunpack.c.h.b16 %v2134
      %v2448 = vunpack.c.l.b16 %v2135
      %v2449 = vunpack.c.l.b16 %v2136
      %v2450 = vunpack.c.h.b16 %v2136
      %v2451 = vunpack.c.l.b16 %v2137
      %v2452 = vunpack.c.l.b16 %v2138
      %v2453 = vunpack.c.h.b16 %v2138
      %v2454 = vunpack.c.l.b16 %v2139
      %v2455 = vunpack.c.l.b16 %v2140
      %v2456 = vunpack.c.h.b16 %v2140
      %v2457 = vunpack.c.l.b16 %v2141
      %v2458 = vunpack.c.l.b16 %v2142
      %v2459 = vunpack.c.h.b16 %v2142
      %v2460 = vunpack.c.l.b16 %v2143
      %v2461 = vunpack.c.l.b16 %v2144
      %v2462 = vunpack.c.h.b16 %v2144
      %v2463 = vunpack.c.l.b16 %v2145
      %v2464 = vunpack.c.l.b16 %v2146
      %v2465 = vunpack.c.h.b16 %v2146
      %v2466 = vunpack.c.l.b16 %v2147
      %v2467 = vunpack.c.l.b16 %v2148
      %v2468 = vunpack.c.h.b16 %v2148
      %v2469 = vunpack.c.l.b16 %v2149
      %v2470 = vpack.c.b16 %v2281, %v2278
      %v2471 = vpack.c.b16 %v2282, %v2279
      %v2472 = vpack.c.b16 %v2283, %v2280
      %v2473 = vpack.c.b16 %v2287, %v2284
      %v2474 = vpack.c.b16 %v2288, %v2285
      %v2475 = vpack.c.b16 %v2289, %v2286
      %v2476 = vpack.c.b16 %v2293, %v2290
      %v2477 = vpack.c.b16 %v2294, %v2291
      %v2478 = vpack.c.b16 %v2295, %v2292
      %v2479 = vpack.c.b16 %v2299, %v2296
      %v2480 = vpack.c.b16 %v2300, %v2297
      %v2481 = vpack.c.b16 %v2301, %v2298
      %v2482 = vpack.c.b16 %v2305, %v2302
      %v2483 = vpack.c.b16 %v2306, %v2303
      %v2484 = vpack.c.b16 %v2307, %v2304
      %v2485 = vpack.c.b16 %v2311, %v2308
      %v2486 = vpack.c.b16 %v2312, %v2309
      %v2487 = vpack.c.b16 %v2313, %v2310
      %v2488 = vpack.c.b16 %v2317, %v2314
      %v2489 = vpack.c.b16 %v2318, %v2315
      %v2490 = vpack.c.b16 %v2319, %v2316
      %v2491 = vpack.c.b16 %v2323, %v2320
      %v2492 = vpack.c.b16 %v2324, %v2321
      %v2493 = vpack.c.b16 %v2325, %v2322
      %v2494 = vpack.c.b16 %v2329, %v2326
      %v2495 = vpack.c.b16 %v2330, %v2327
      %v2496 = vpack.c.b16 %v2331, %v2328
      %v2497 = vpack.c.b16 %v2335, %v2332
      %v2498 = vpack.c.b16 %v2336, %v2333
      %v2499 = vpack.c.b16 %v2337, %v2334
      %v2500 = vpack.c.b16 %v2341, %v2338
      %v2501 = vpack.c.b16 %v2342, %v2339
      %v2502 = vpack.c.b16 %v2343, %v2340
      %v2503 = vpack.c.b16 %v2347, %v2344
      %v2504 = vpack.c.b16 %v2348, %v2345
      %v2505 = vpack.c.b16 %v2349, %v2346
      %v2506 = vpack.c.b16 %v2353, %v2350
      %v2507 = vpack.c.b16 %v2354, %v2351
      %v2508 = vpack.c.b16 %v2355, %v2352
      %v2509 = vpack.c.b16 %v2359, %v2356
      %v2510 = vpack.c.b16 %v2360, %v2357
      %v2511 = vpack.c.b16 %v2361, %v2358
      %v2512 = vpack.c.b16 %v2365, %v2362
      %v2513 = vpack.c.b16 %v2366, %v2363
      %v2514 = vpack.c.b16 %v2367, %v2364
      %v2515 = vpack.c.b16 %v2371, %v2368
      %v2516 = vpack.c.b16 %v2372, %v2369
      %v2517 = vpack.c.b16 %v2373, %v2370
      %v2518 = vpack.c.b16 %v2377, %v2374
      %v2519 = vpack.c.b16 %v2378, %v2375
      %v2520 = vpack.c.b16 %v2379, %v2376
      %v2521 = vpack.c.b16 %v2383, %v2380
      %v2522 = vpack.c.b16 %v2384, %v2381
      %v2523 = vpack.c.b16 %v2385, %v2382
      %v2524 = vpack.c.b16 %v2389, %v2386
      %v2525 = vpack.c.b16 %v2390, %v2387
      %v2526 = vpack.c.b16 %v2391, %v2388
      %v2527 = vpack.c.b16 %v2395, %v2392
      %v2528 = vpack.c.b16 %v2396, %v2393
      %v2529 = vpack.c.b16 %v2397, %v2394
      %v2530 = vpack.c.b16 %v2401, %v2398
      %v2531 = vpack.c.b16 %v2402, %v2399
      %v2532 = vpack.c.b16 %v2403, %v2400
      %v2533 = vpack.c.b16 %v2407, %v2404
      %v2534 = vpack.c.b16 %v2408, %v2405
      %v2535 = vpack.c.b16 %v2409, %v2406
      %v2536 = vpack.c.b16 %v2413, %v2410
      %v2537 = vpack.c.b16 %v2414, %v2411
      %v2538 = vpack.c.b16 %v2415, %v2412
      %v2539 = vpack.c.b16 %v2419, %v2416
      %v2540 = vpack.c.b16 %v2420, %v2417
      %v2541 = vpack.c.b16 %v2421, %v2418
      %v2542 = vpack.c.b16 %v2425, %v2422
      %v2543 = vpack.c.b16 %v2426, %v2423
      %v2544 = vpack.c.b16 %v2427, %v2424
      %v2545 = vpack.c.b16 %v2431, %v2428
      %v2546 = vpack.c.b16 %v2432, %v2429
      %v2547 = vpack.c.b16 %v2433, %v2430
      %v2548 = vpack.c.b16 %v2437, %v2434
      %v2549 = vpack.c.b16 %v2438, %v2435
      %v2550 = vpack.c.b16 %v2439, %v2436
      %v2551 = vpack.c.b16 %v2443, %v2440
      %v2552 = vpack.c.b16 %v2444, %v2441
      %v2553 = vpack.c.b16 %v2445, %v2442
      %v2554 = vpack.c.b16 %v2449, %v2446
      %v2555 = vpack.c.b16 %v2450, %v2447
      %v2556 = vpack.c.b16 %v2451, %v2448
      %v2557 = vpack.c.b16 %v2455, %v2452
      %v2558 = vpack.c.b16 %v2456, %v2453
      %v2559 = vpack.c.b16 %v2457, %v2454
      %v2560 = vpack.c.b16 %v2461, %v2458
      %v2561 = vpack.c.b16 %v2462, %v2459
      %v2562 = vpack.c.b16 %v2463, %v2460
      %v2563 = vpack.c.b16 %v2467, %v2464
      %v2564 = vpack.c.b16 %v2468, %v2465
      %v2565 = vpack.c.b16 %v2469, %v2466
      %2662 = vmatprep.subr.bf16.mxu0 %v2471
      %2663 = vmatpush1.bf16.msra.mxu0 %v2470
      %2664 = vmatprep.subr.bf16.mxu0 %v2474
      %2665 = vmatpush1.bf16.msra.mxu0 %v2473
      %2666 = vmatprep.subr.bf16.mxu0 %v2477
      %2667 = vmatpush1.bf16.msra.mxu0 %v2476
      %2668 = vmatprep.subr.bf16.mxu0 %v2480
      %2669 = vmatpush1.bf16.msra.mxu0 %v2479
      %2670 = vmatprep.subr.bf16.mxu0 %v2483
      %2671 = vmatpush1.bf16.msra.mxu0 %v2482
      %2672 = vmatprep.subr.bf16.mxu0 %v2486
      %2673 = vmatpush1.bf16.msra.mxu0 %v2485
      %2674 = vmatprep.subr.bf16.mxu0 %v2489
      %2675 = vmatpush1.bf16.msra.mxu0 %v2488
      %2676 = vmatprep.subr.bf16.mxu0 %v2492
      %2677 = vmatpush1.bf16.msra.mxu0 %v2491
      %2678 = vmatprep.subr.bf16.mxu0 %v2495
      %2679 = vmatpush1.bf16.msra.mxu0 %v2494
      %2680 = vmatprep.subr.bf16.mxu0 %v2498
      %2681 = vmatpush1.bf16.msra.mxu0 %v2497
      %2682 = vmatprep.subr.bf16.mxu0 %v2501
      %2683 = vmatpush1.bf16.msra.mxu0 %v2500
      %2684 = vmatprep.subr.bf16.mxu0 %v2504
      %2685 = vmatpush1.bf16.msra.mxu0 %v2503
      %2686 = vmatprep.subr.bf16.mxu0 %v2507
      %2687 = vmatpush1.bf16.msra.mxu0 %v2506
      %2688 = vmatprep.subr.bf16.mxu0 %v2510
      %2689 = vmatpush1.bf16.msra.mxu0 %v2509
      %2690 = vmatprep.subr.bf16.mxu0 %v2513
      %2691 = vmatpush1.bf16.msra.mxu0 %v2512
      %2692 = vmatprep.subr.bf16.mxu0 %v2516
      %2693 = vmatpush1.bf16.msra.mxu0 %v2515
      %2694 = vmatprep.mubr.bf16.mxu0 %v2019
      %2695 = vmatmul.mubr.bf16.gmra.mrb[0].mxu0 %v2018
      %v2696 = vpop.f32.mrb[0].mxu0
      %v2697 = vadd.f32 0.0, %v2696
      %v2698 = vpop.f32.mrb[0].mxu0
      %v2699 = vadd.f32 0.0, %v2698
      %v2700 = vpop.f32.mrb[0].mxu0
      %v2701 = vpop.f32.mrb[0].mxu0
      %2702 = vdwg.mxu0
      %2703 = vmatprep.subr.bf16.mxu0 %v2519
      %2704 = vmatpush1.bf16.msra.mxu0 %v2518
      %2705 = vmatprep.subr.bf16.mxu0 %v2522
      %2706 = vmatpush1.bf16.msra.mxu0 %v2521
      %2707 = vmatprep.subr.bf16.mxu0 %v2525
      %2708 = vmatpush1.bf16.msra.mxu0 %v2524
      %2709 = vmatprep.subr.bf16.mxu0 %v2528
      %2710 = vmatpush1.bf16.msra.mxu0 %v2527
      %2711 = vmatprep.subr.bf16.mxu0 %v2531
      %2712 = vmatpush1.bf16.msra.mxu0 %v2530
      %2713 = vmatprep.subr.bf16.mxu0 %v2534
      %2714 = vmatpush1.bf16.msra.mxu0 %v2533
      %2715 = vmatprep.subr.bf16.mxu0 %v2537
      %2716 = vmatpush1.bf16.msra.mxu0 %v2536
      %2717 = vmatprep.subr.bf16.mxu0 %v2540
      %2718 = vmatpush1.bf16.msra.mxu0 %v2539
      %2719 = vmatprep.subr.bf16.mxu0 %v2543
      %2720 = vmatpush1.bf16.msra.mxu0 %v2542
      %2721 = vmatprep.subr.bf16.mxu0 %v2546
      %2722 = vmatpush1.bf16.msra.mxu0 %v2545
      %2723 = vmatprep.subr.bf16.mxu0 %v2549
      %2724 = vmatpush1.bf16.msra.mxu0 %v2548
      %2725 = vmatprep.subr.bf16.mxu0 %v2552
      %2726 = vmatpush1.bf16.msra.mxu0 %v2551
      %2727 = vmatprep.subr.bf16.mxu0 %v2555
      %2728 = vmatpush1.bf16.msra.mxu0 %v2554
      %2729 = vmatprep.subr.bf16.mxu0 %v2558
      %2730 = vmatpush1.bf16.msra.mxu0 %v2557
      %2731 = vmatprep.subr.bf16.mxu0 %v2561
      %2732 = vmatpush1.bf16.msra.mxu0 %v2560
      %2733 = vmatprep.subr.bf16.mxu0 %v2564
      %2734 = vmatpush1.bf16.msra.mxu0 %v2563
      %2735 = vmatprep.mubr.bf16.mxu0 %v2021
      %2736 = vmatmul.mubr.bf16.gmra.mrb[0].mxu0 %v2020
      %v2737 = vpop.f32.mrb[0].mxu0
      %v2738 = vadd.f32 %v2697, %v2737
      %v2739 = vpop.f32.mrb[0].mxu0
      %v2740 = vadd.f32 %v2699, %v2739
      %v2741 = vpop.f32.mrb[0].mxu0
      %v2742 = vpop.f32.mrb[0].mxu0
      %2743 = vdwg.mxu0
      %2744 = vmatprep.subr.bf16.mxu0 0
      %2745 = vmatpush1.bf16.msra.mxu0 %v2472
      %2746 = vmatprep.subr.bf16.mxu0 0
      %2747 = vmatpush1.bf16.msra.mxu0 %v2475
      %2748 = vmatprep.subr.bf16.mxu0 0
      %2749 = vmatpush1.bf16.msra.mxu0 %v2478
      %2750 = vmatprep.subr.bf16.mxu0 0
      %2751 = vmatpush1.bf16.msra.mxu0 %v2481
      %2752 = vmatprep.subr.bf16.mxu0 0
      %2753 = vmatpush1.bf16.msra.mxu0 %v2484
      %2754 = vmatprep.subr.bf16.mxu0 0
      %2755 = vmatpush1.bf16.msra.mxu0 %v2487
      %2756 = vmatprep.subr.bf16.mxu0 0
      %2757 = vmatpush1.bf16.msra.mxu0 %v2490
      %2758 = vmatprep.subr.bf16.mxu0 0
      %2759 = vmatpush1.bf16.msra.mxu0 %v2493
      %2760 = vmatprep.subr.bf16.mxu0 0
      %2761 = vmatpush1.bf16.msra.mxu0 %v2496
      %2762 = vmatprep.subr.bf16.mxu0 0
      %2763 = vmatpush1.bf16.msra.mxu0 %v2499
      %2764 = vmatprep.subr.bf16.mxu0 0
      %2765 = vmatpush1.bf16.msra.mxu0 %v2502
      %2766 = vmatprep.subr.bf16.mxu0 0
      %2767 = vmatpush1.bf16.msra.mxu0 %v2505
      %2768 = vmatprep.subr.bf16.mxu0 0
      %2769 = vmatpush1.bf16.msra.mxu0 %v2508
      %2770 = vmatprep.subr.bf16.mxu0 0
      %2771 = vmatpush1.bf16.msra.mxu0 %v2511
      %2772 = vmatprep.subr.bf16.mxu0 0
      %2773 = vmatpush1.bf16.msra.mxu0 %v2514
      %2774 = vmatprep.subr.bf16.mxu0 0
      %2775 = vmatpush1.bf16.msra.mxu0 %v2517
      %2776 = vmatprep.mubr.bf16.mxu0 %v2019
      %2777 = vmatmul.mubr.bf16.gmra.mrb[0].mxu0 %v2018
      %v2778 = vpop.f32.mrb[0].mxu0
      %v2779 = vadd.f32 0.0, %v2778
      %v2780 = vpop.f32.mrb[0].mxu0
      %v2781 = vpop.f32.mrb[0].mxu0
      %v2782 = vpop.f32.mrb[0].mxu0
      %2783 = vdwg.mxu0
      %2784 = vmatprep.subr.bf16.mxu0 0
      %2785 = vmatpush1.bf16.msra.mxu0 %v2520
      %2786 = vmatprep.subr.bf16.mxu0 0
      %2787 = vmatpush1.bf16.msra.mxu0 %v2523
      %2788 = vmatprep.subr.bf16.mxu0 0
      %2789 = vmatpush1.bf16.msra.mxu0 %v2526
      %2790 = vmatprep.subr.bf16.mxu0 0
      %2791 = vmatpush1.bf16.msra.mxu0 %v2529
      %2792 = vmatprep.subr.bf16.mxu0 0
      %2793 = vmatpush1.bf16.msra.mxu0 %v2532
      %2794 = vmatprep.subr.bf16.mxu0 0
      %2795 = vmatpush1.bf16.msra.mxu0 %v2535
      %2796 = vmatprep.subr.bf16.mxu0 0
      %2797 = vmatpush1.bf16.msra.mxu0 %v2538
      %2798 = vmatprep.subr.bf16.mxu0 0
      %2799 = vmatpush1.bf16.msra.mxu0 %v2541
      %2800 = vmatprep.subr.bf16.mxu0 0
      %2801 = vmatpush1.bf16.msra.mxu0 %v2544
      %2802 = vmatprep.subr.bf16.mxu0 0
      %2803 = vmatpush1.bf16.msra.mxu0 %v2547
      %2804 = vmatprep.subr.bf16.mxu0 0
      %2805 = vmatpush1.bf16.msra.mxu0 %v2550
      %2806 = vmatprep.subr.bf16.mxu0 0
      %2807 = vmatpush1.bf16.msra.mxu0 %v2553
      %2808 = vmatprep.subr.bf16.mxu0 0
      %2809 = vmatpush1.bf16.msra.mxu0 %v2556
      %2810 = vmatprep.subr.bf16.mxu0 0
      %2811 = vmatpush1.bf16.msra.mxu0 %v2559
      %2812 = vmatprep.subr.bf16.mxu0 0
      %2813 = vmatpush1.bf16.msra.mxu0 %v2562
      %2814 = vmatprep.subr.bf16.mxu0 0
      %2815 = vmatpush1.bf16.msra.mxu0 %v2565
      %2816 = vmatprep.mubr.bf16.mxu0 %v2021
      %2817 = vmatmul.mubr.bf16.gmra.mrb[0].mxu0 %v2020
      %v2818 = vpop.f32.mrb[0].mxu0
      %v2819 = vadd.f32 %v2779, %v2818
      %v2820 = vpop.f32.mrb[0].mxu0
      %v2821 = vpop.f32.mrb[0].mxu0
      %v2822 = vpop.f32.mrb[0].mxu0
      %2823 = vdwg.mxu0
      %v2824 = vmax.f32 %v2738, 0.0
      %v2825 = vmax.f32 %v2740, 0.0
      %v2826 = vmax.f32 %v2819, 0.0
      %v2827 = vpack.c.bf16 %v2824, %v2824
      %v2828 = vpack.c.bf16 %v2825, %v2825
      %v2829 = vpack.c.bf16 %v2826, %v2826
      %v2830 = vld [vmem:[#allocation10] sm:$0xff]
      %v2831 = vld [vmem:[#allocation10 + $0x8] sm:$0xff]
      %v2832 = vld [vmem:[#allocation10 + $0x10] sm:$0xff]
      %v2833 = vld [vmem:[#allocation10 + $0x18] sm:$0xff]
      %v2834 = vld [vmem:[#allocation10 + $0x20] sm:$0xff]
      %v2835 = vld [vmem:[#allocation10 + $0x28] sm:$0xff]
      %v2836 = vld [vmem:[#allocation10 + $0x30] sm:$0xff]
      %v2837 = vld [vmem:[#allocation10 + $0x38] sm:$0xff]
      %v2838 = vld [vmem:[#allocation10 + $0x40] sm:$0xff]
      %v2839 = vld [vmem:[#allocation10 + $0x48] sm:$0xff]
      %v2840 = vld [vmem:[#allocation10 + $0x50] sm:$0xff]
      %v2841 = vld [vmem:[#allocation10 + $0x58] sm:$0xff]
      %v2842 = vld [vmem:[#allocation10 + $0x60] sm:$0xff]
      %v2843 = vld [vmem:[#allocation10 + $0x68] sm:$0xff]
      %v2844 = vld [vmem:[#allocation10 + $0x70] sm:$0xff]
      %v2845 = vld [vmem:[#allocation10 + $0x78] sm:$0xff]
      %v2846 = vld [vmem:[#allocation10 + $0x80] sm:$0xff]
      %v2847 = vld [vmem:[#allocation10 + $0x88] sm:$0xff]
      %v2848 = vld [vmem:[#allocation10 + $0x90] sm:$0xff]
      %v2849 = vld [vmem:[#allocation10 + $0x98] sm:$0xff]
      %v2850 = vld [vmem:[#allocation10 + $0xa0] sm:$0xff]
      %v2851 = vld [vmem:[#allocation10 + $0xa8] sm:$0xff]
      %v2852 = vld [vmem:[#allocation10 + $0xb0] sm:$0xff]
      %v2853 = vld [vmem:[#allocation10 + $0xb8] sm:$0xff]
      %v2854 = vld [vmem:[#allocation10 + $0xc0] sm:$0xff]
      %v2855 = vld [vmem:[#allocation10 + $0xc8] sm:$0xff]
      %v2856 = vld [vmem:[#allocation10 + $0xd0] sm:$0xff]
      %v2857 = vld [vmem:[#allocation10 + $0xd8] sm:$0xff]
      %v2858 = vld [vmem:[#allocation10 + $0xe0] sm:$0xff]
      %v2859 = vld [vmem:[#allocation10 + $0xe8] sm:$0xff]
      %v2860 = vld [vmem:[#allocation10 + $0xf0] sm:$0xff]
      %v2861 = vld [vmem:[#allocation10 + $0xf8] sm:$0xff]
      %v2894 = vunpack.c.l.b16 %v2830
      %v2895 = vunpack.c.h.b16 %v2830
      %v2896 = vunpack.c.l.b16 %v2831
      %v2897 = vunpack.c.h.b16 %v2831
      %v2898 = vunpack.c.l.b16 %v2832
      %v2899 = vunpack.c.h.b16 %v2832
      %v2900 = vunpack.c.l.b16 %v2833
      %v2901 = vunpack.c.h.b16 %v2833
      %v2902 = vunpack.c.l.b16 %v2834
      %v2903 = vunpack.c.h.b16 %v2834
      %v2904 = vunpack.c.l.b16 %v2835
      %v2905 = vunpack.c.h.b16 %v2835
      %v2906 = vunpack.c.l.b16 %v2836
      %v2907 = vunpack.c.h.b16 %v2836
      %v2908 = vunpack.c.l.b16 %v2837
      %v2909 = vunpack.c.h.b16 %v2837
      %v2910 = vunpack.c.l.b16 %v2838
      %v2911 = vunpack.c.h.b16 %v2838
      %v2912 = vunpack.c.l.b16 %v2839
      %v2913 = vunpack.c.h.b16 %v2839
      %v2914 = vunpack.c.l.b16 %v2840
      %v2915 = vunpack.c.h.b16 %v2840
      %v2916 = vunpack.c.l.b16 %v2841
      %v2917 = vunpack.c.h.b16 %v2841
      %v2918 = vunpack.c.l.b16 %v2842
      %v2919 = vunpack.c.h.b16 %v2842
      %v2920 = vunpack.c.l.b16 %v2843
      %v2921 = vunpack.c.h.b16 %v2843
      %v2922 = vunpack.c.l.b16 %v2844
      %v2923 = vunpack.c.h.b16 %v2844
      %v2924 = vunpack.c.l.b16 %v2845
      %v2925 = vunpack.c.h.b16 %v2845
      %v2926 = vunpack.c.l.b16 %v2846
      %v2927 = vunpack.c.h.b16 %v2846
      %v2928 = vunpack.c.l.b16 %v2847
      %v2929 = vunpack.c.h.b16 %v2847
      %v2930 = vunpack.c.l.b16 %v2848
      %v2931 = vunpack.c.h.b16 %v2848
      %v2932 = vunpack.c.l.b16 %v2849
      %v2933 = vunpack.c.h.b16 %v2849
      %v2934 = vunpack.c.l.b16 %v2850
      %v2935 = vunpack.c.h.b16 %v2850
      %v2936 = vunpack.c.l.b16 %v2851
      %v2937 = vunpack.c.h.b16 %v2851
      %v2938 = vunpack.c.l.b16 %v2852
      %v2939 = vunpack.c.h.b16 %v2852
      %v2940 = vunpack.c.l.b16 %v2853
      %v2941 = vunpack.c.h.b16 %v2853
      %v2942 = vunpack.c.l.b16 %v2854
      %v2943 = vunpack.c.h.b16 %v2854
      %v2944 = vunpack.c.l.b16 %v2855
      %v2945 = vunpack.c.h.b16 %v2855
      %v2946 = vunpack.c.l.b16 %v2856
      %v2947 = vunpack.c.h.b16 %v2856
      %v2948 = vunpack.c.l.b16 %v2857
      %v2949 = vunpack.c.h.b16 %v2857
      %v2950 = vunpack.c.l.b16 %v2858
      %v2951 = vunpack.c.h.b16 %v2858
      %v2952 = vunpack.c.l.b16 %v2859
      %v2953 = vunpack.c.h.b16 %v2859
      %v2954 = vunpack.c.l.b16 %v2860
      %v2955 = vunpack.c.h.b16 %v2860
      %v2956 = vunpack.c.l.b16 %v2861
      %v2957 = vunpack.c.h.b16 %v2861
      %v2958 = vpack.c.b16 %v2898, %v2894
      %v2959 = vpack.c.b16 %v2899, %v2895
      %v2960 = vpack.c.b16 %v2900, %v2896
      %v2961 = vpack.c.b16 %v2901, %v2897
      %v2962 = vpack.c.b16 %v2906, %v2902
      %v2963 = vpack.c.b16 %v2907, %v2903
      %v2964 = vpack.c.b16 %v2908, %v2904
      %v2965 = vpack.c.b16 %v2909, %v2905
      %v2966 = vpack.c.b16 %v2914, %v2910
      %v2967 = vpack.c.b16 %v2915, %v2911
      %v2968 = vpack.c.b16 %v2916, %v2912
      %v2969 = vpack.c.b16 %v2917, %v2913
      %v2970 = vpack.c.b16 %v2922, %v2918
      %v2971 = vpack.c.b16 %v2923, %v2919
      %v2972 = vpack.c.b16 %v2924, %v2920
      %v2973 = vpack.c.b16 %v2925, %v2921
      %v2974 = vpack.c.b16 %v2930, %v2926
      %v2975 = vpack.c.b16 %v2931, %v2927
      %v2976 = vpack.c.b16 %v2932, %v2928
      %v2977 = vpack.c.b16 %v2933, %v2929
      %v2978 = vpack.c.b16 %v2938, %v2934
      %v2979 = vpack.c.b16 %v2939, %v2935
      %v2980 = vpack.c.b16 %v2940, %v2936
      %v2981 = vpack.c.b16 %v2941, %v2937
      %v2982 = vpack.c.b16 %v2946, %v2942
      %v2983 = vpack.c.b16 %v2947, %v2943
      %v2984 = vpack.c.b16 %v2948, %v2944
      %v2985 = vpack.c.b16 %v2949, %v2945
      %v2986 = vpack.c.b16 %v2954, %v2950
      %v2987 = vpack.c.b16 %v2955, %v2951
      %v2988 = vpack.c.b16 %v2956, %v2952
      %v2989 = vpack.c.b16 %v2957, %v2953
      %3022 = vmatprep.subr.bf16.mxu0 %v2959
      %3023 = vmatpush1.bf16.msra.mxu0 %v2958
      %3024 = vmatprep.subr.bf16.mxu0 %v2963
      %3025 = vmatpush1.bf16.msra.mxu0 %v2962
      %3026 = vmatprep.subr.bf16.mxu0 %v2967
      %3027 = vmatpush1.bf16.msra.mxu0 %v2966
      %3028 = vmatprep.subr.bf16.mxu0 %v2971
      %3029 = vmatpush1.bf16.msra.mxu0 %v2970
      %3030 = vmatprep.subr.bf16.mxu0 %v2975
      %3031 = vmatpush1.bf16.msra.mxu0 %v2974
      %3032 = vmatprep.subr.bf16.mxu0 %v2979
      %3033 = vmatpush1.bf16.msra.mxu0 %v2978
      %3034 = vmatprep.subr.bf16.mxu0 %v2983
      %3035 = vmatpush1.bf16.msra.mxu0 %v2982
      %3036 = vmatprep.subr.bf16.mxu0 %v2987
      %3037 = vmatpush1.bf16.msra.mxu0 %v2986
      %3038 = vmatprep.subr.bf16.mxu0 0
      %3039 = vmatpush1.bf16.msra.mxu0 0
      %3040 = vmatprep.subr.bf16.mxu0 0
      %3041 = vmatpush1.bf16.msra.mxu0 0
      %3042 = vmatprep.subr.bf16.mxu0 0
      %3043 = vmatpush1.bf16.msra.mxu0 0
      %3044 = vmatprep.subr.bf16.mxu0 0
      %3045 = vmatpush1.bf16.msra.mxu0 0
      %3046 = vmatprep.subr.bf16.mxu0 0
      %3047 = vmatpush1.bf16.msra.mxu0 0
      %3048 = vmatprep.subr.bf16.mxu0 0
      %3049 = vmatpush1.bf16.msra.mxu0 0
      %3050 = vmatprep.subr.bf16.mxu0 0
      %3051 = vmatpush1.bf16.msra.mxu0 0
      %3052 = vmatprep.subr.bf16.mxu0 0
      %3053 = vmatpush1.bf16.msra.mxu0 0
      %3054 = vmatprep.mubr.bf16.mxu0 0
      %3055 = vmatmul.mubr.bf16.gmra.mrb[0].mxu0 %v2827
      %v3056 = vpop.f32.mrb[0].mxu0
      %v3057 = vadd.f32 0.0, %v3056
      %v3058 = vpop.f32.mrb[0].mxu0
      %v3059 = vadd.f32 0.0, %v3058
      %v3060 = vpop.f32.mrb[0].mxu0
      %v3061 = vpop.f32.mrb[0].mxu0
      %3062 = vdwg.mxu0
      %3063 = vmatprep.subr.bf16.mxu0 %v2961
      %3064 = vmatpush1.bf16.msra.mxu0 %v2960
      %3065 = vmatprep.subr.bf16.mxu0 %v2965
      %3066 = vmatpush1.bf16.msra.mxu0 %v2964
      %3067 = vmatprep.subr.bf16.mxu0 %v2969
      %3068 = vmatpush1.bf16.msra.mxu0 %v2968
      %3069 = vmatprep.subr.bf16.mxu0 %v2973
      %3070 = vmatpush1.bf16.msra.mxu0 %v2972
      %3071 = vmatprep.subr.bf16.mxu0 %v2977
      %3072 = vmatpush1.bf16.msra.mxu0 %v2976
      %3073 = vmatprep.subr.bf16.mxu0 %v2981
      %3074 = vmatpush1.bf16.msra.mxu0 %v2980
      %3075 = vmatprep.subr.bf16.mxu0 %v2985
      %3076 = vmatpush1.bf16.msra.mxu0 %v2984
      %3077 = vmatprep.subr.bf16.mxu0 %v2989
      %3078 = vmatpush1.bf16.msra.mxu0 %v2988
      %3079 = vmatprep.subr.bf16.mxu0 0
      %3080 = vmatpush1.bf16.msra.mxu0 0
      %3081 = vmatprep.subr.bf16.mxu0 0
      %3082 = vmatpush1.bf16.msra.mxu0 0
      %3083 = vmatprep.subr.bf16.mxu0 0
      %3084 = vmatpush1.bf16.msra.mxu0 0
      %3085 = vmatprep.subr.bf16.mxu0 0
      %3086 = vmatpush1.bf16.msra.mxu0 0
      %3087 = vmatprep.subr.bf16.mxu0 0
      %3088 = vmatpush1.bf16.msra.mxu0 0
      %3089 = vmatprep.subr.bf16.mxu0 0
      %3090 = vmatpush1.bf16.msra.mxu0 0
      %3091 = vmatprep.subr.bf16.mxu0 0
      %3092 = vmatpush1.bf16.msra.mxu0 0
      %3093 = vmatprep.subr.bf16.mxu0 0
      %3094 = vmatpush1.bf16.msra.mxu0 0
      %3095 = vmatprep.mubr.bf16.mxu0 0
      %3096 = vmatmul.mubr.bf16.gmra.mrb[0].mxu0 %v2827
      %v3097 = vpop.f32.mrb[0].mxu0
      %v3098 = vadd.f32 0.0, %v3097
      %v3099 = vpop.f32.mrb[0].mxu0
      %v3100 = vadd.f32 0.0, %v3099
      %v3101 = vpop.f32.mrb[0].mxu0
      %v3102 = vpop.f32.mrb[0].mxu0
      %3103 = vdwg.mxu0
      %v3104 = vmax.f32 %v3057, 0.0
      %v3105 = vmax.f32 %v3059, 0.0
      %v3106 = vmax.f32 %v3098, 0.0
      %v3107 = vmax.f32 %v3100, 0.0
      %v3108 = vadd.f32 %v3104, 0.0
      %v3109 = vadd.f32 %v3105, 0.0
      %v3110 = vadd.f32 %v3106, 0.0
      %v3111 = vadd.f32 %v3107, 0.0
      %s3112 = scalar_lea.vmem [#allocation10], 256
      %v3113 = vld [vmem:[%s3112] sm:$0xff]
      %v3114 = vld [vmem:[%s3112 + $0x8] sm:$0xff]
      %v3115 = vld [vmem:[%s3112 + $0x10] sm:$0xff]
      %v3116 = vld [vmem:[%s3112 + $0x18] sm:$0xff]
      %v3117 = vld [vmem:[%s3112 + $0x20] sm:$0xff]
      %v3118 = vld [vmem:[%s3112 + $0x28] sm:$0xff]
      %v3119 = vld [vmem:[%s3112 + $0x30] sm:$0xff]
      %v3120 = vld [vmem:[%s3112 + $0x38] sm:$0xff]
      %v3121 = vld [vmem:[%s3112 + $0x40] sm:$0xff]
      %v3122 = vld [vmem:[%s3112 + $0x48] sm:$0xff]
      %v3123 = vld [vmem:[%s3112 + $0x50] sm:$0xff]
      %v3124 = vld [vmem:[%s3112 + $0x58] sm:$0xff]
      %v3125 = vld [vmem:[%s3112 + $0x60] sm:$0xff]
      %v3126 = vld [vmem:[%s3112 + $0x68] sm:$0xff]
      %v3127 = vld [vmem:[%s3112 + $0x70] sm:$0xff]
      %v3128 = vld [vmem:[%s3112 + $0x78] sm:$0xff]
      %v3129 = vld [vmem:[%s3112 + $0x80] sm:$0xff]
      %v3130 = vld [vmem:[%s3112 + $0x88] sm:$0xff]
      %v3131 = vld [vmem:[%s3112 + $0x90] sm:$0xff]
      %v3132 = vld [vmem:[%s3112 + $0x98] sm:$0xff]
      %v3133 = vld [vmem:[%s3112 + $0xa0] sm:$0xff]
      %v3134 = vld [vmem:[%s3112 + $0xa8] sm:$0xff]
      %v3135 = vld [vmem:[%s3112 + $0xb0] sm:$0xff]
      %v3136 = vld [vmem:[%s3112 + $0xb8] sm:$0xff]
      %v3137 = vld [vmem:[%s3112 + $0xc0] sm:$0xff]
      %v3138 = vld [vmem:[%s3112 + $0xc8] sm:$0xff]
      %v3139 = vld [vmem:[%s3112 + $0xd0] sm:$0xff]
      %v3140 = vld [vmem:[%s3112 + $0xd8] sm:$0xff]
      %v3141 = vld [vmem:[%s3112 + $0xe0] sm:$0xff]
      %v3142 = vld [vmem:[%s3112 + $0xe8] sm:$0xff]
      %v3143 = vld [vmem:[%s3112 + $0xf0] sm:$0xff]
      %v3144 = vld [vmem:[%s3112 + $0xf8] sm:$0xff]
      %v3177 = vunpack.c.l.b16 %v3113
      %v3178 = vunpack.c.h.b16 %v3113
      %v3179 = vunpack.c.l.b16 %v3114
      %v3180 = vunpack.c.h.b16 %v3114
      %v3181 = vunpack.c.l.b16 %v3115
      %v3182 = vunpack.c.h.b16 %v3115
      %v3183 = vunpack.c.l.b16 %v3116
      %v3184 = vunpack.c.h.b16 %v3116
      %v3185 = vunpack.c.l.b16 %v3117
      %v3186 = vunpack.c.h.b16 %v3117
      %v3187 = vunpack.c.l.b16 %v3118
      %v3188 = vunpack.c.h.b16 %v3118
      %v3189 = vunpack.c.l.b16 %v3119
      %v3190 = vunpack.c.h.b16 %v3119
      %v3191 = vunpack.c.l.b16 %v3120
      %v3192 = vunpack.c.h.b16 %v3120
      %v3193 = vunpack.c.l.b16 %v3121
      %v3194 = vunpack.c.h.b16 %v3121
      %v3195 = vunpack.c.l.b16 %v3122
      %v3196 = vunpack.c.h.b16 %v3122
      %v3197 = vunpack.c.l.b16 %v3123
      %v3198 = vunpack.c.h.b16 %v3123
      %v3199 = vunpack.c.l.b16 %v3124
      %v3200 = vunpack.c.h.b16 %v3124
      %v3201 = vunpack.c.l.b16 %v3125
      %v3202 = vunpack.c.h.b16 %v3125
      %v3203 = vunpack.c.l.b16 %v3126
      %v3204 = vunpack.c.h.b16 %v3126
      %v3205 = vunpack.c.l.b16 %v3127
      %v3206 = vunpack.c.h.b16 %v3127
      %v3207 = vunpack.c.l.b16 %v3128
      %v3208 = vunpack.c.h.b16 %v3128
      %v3209 = vunpack.c.l.b16 %v3129
      %v3210 = vunpack.c.h.b16 %v3129
      %v3211 = vunpack.c.l.b16 %v3130
      %v3212 = vunpack.c.h.b16 %v3130
      %v3213 = vunpack.c.l.b16 %v3131
      %v3214 = vunpack.c.h.b16 %v3131
      %v3215 = vunpack.c.l.b16 %v3132
      %v3216 = vunpack.c.h.b16 %v3132
      %v3217 = vunpack.c.l.b16 %v3133
      %v3218 = vunpack.c.h.b16 %v3133
      %v3219 = vunpack.c.l.b16 %v3134
      %v3220 = vunpack.c.h.b16 %v3134
      %v3221 = vunpack.c.l.b16 %v3135
      %v3222 = vunpack.c.h.b16 %v3135
      %v3223 = vunpack.c.l.b16 %v3136
      %v3224 = vunpack.c.h.b16 %v3136
      %v3225 = vunpack.c.l.b16 %v3137
      %v3226 = vunpack.c.h.b16 %v3137
      %v3227 = vunpack.c.l.b16 %v3138
      %v3228 = vunpack.c.h.b16 %v3138
      %v3229 = vunpack.c.l.b16 %v3139
      %v3230 = vunpack.c.h.b16 %v3139
      %v3231 = vunpack.c.l.b16 %v3140
      %v3232 = vunpack.c.h.b16 %v3140
      %v3233 = vunpack.c.l.b16 %v3141
      %v3234 = vunpack.c.h.b16 %v3141
      %v3235 = vunpack.c.l.b16 %v3142
      %v3236 = vunpack.c.h.b16 %v3142
      %v3237 = vunpack.c.l.b16 %v3143
      %v3238 = vunpack.c.h.b16 %v3143
      %v3239 = vunpack.c.l.b16 %v3144
      %v3240 = vunpack.c.h.b16 %v3144
      %v3241 = vpack.c.b16 %v3181, %v3177
      %v3242 = vpack.c.b16 %v3182, %v3178
      %v3243 = vpack.c.b16 %v3183, %v3179
      %v3244 = vpack.c.b16 %v3184, %v3180
      %v3245 = vpack.c.b16 %v3189, %v3185
      %v3246 = vpack.c.b16 %v3190, %v3186
      %v3247 = vpack.c.b16 %v3191, %v3187
      %v3248 = vpack.c.b16 %v3192, %v3188
      %v3249 = vpack.c.b16 %v3197, %v3193
      %v3250 = vpack.c.b16 %v3198, %v3194
      %v3251 = vpack.c.b16 %v3199, %v3195
      %v3252 = vpack.c.b16 %v3200, %v3196
      %v3253 = vpack.c.b16 %v3205, %v3201
      %v3254 = vpack.c.b16 %v3206, %v3202
      %v3255 = vpack.c.b16 %v3207, %v3203
      %v3256 = vpack.c.b16 %v3208, %v3204
      %v3257 = vpack.c.b16 %v3213, %v3209
      %v3258 = vpack.c.b16 %v3214, %v3210
      %v3259 = vpack.c.b16 %v3215, %v3211
      %v3260 = vpack.c.b16 %v3216, %v3212
      %v3261 = vpack.c.b16 %v3221, %v3217
      %v3262 = vpack.c.b16 %v3222, %v3218
      %v3263 = vpack.c.b16 %v3223, %v3219
      %v3264 = vpack.c.b16 %v3224, %v3220
      %v3265 = vpack.c.b16 %v3229, %v3225
      %v3266 = vpack.c.b16 %v3230, %v3226
      %v3267 = vpack.c.b16 %v3231, %v3227
      %v3268 = vpack.c.b16 %v3232, %v3228
      %v3269 = vpack.c.b16 %v3237, %v3233
      %v3270 = vpack.c.b16 %v3238, %v3234
      %v3271 = vpack.c.b16 %v3239, %v3235
      %v3272 = vpack.c.b16 %v3240, %v3236
      %3305 = vmatprep.subr.bf16.mxu0 %v3242
      %3306 = vmatpush1.bf16.msra.mxu0 %v3241
      %3307 = vmatprep.subr.bf16.mxu0 %v3246
      %3308 = vmatpush1.bf16.msra.mxu0 %v3245
      %3309 = vmatprep.subr.bf16.mxu0 %v3250
      %3310 = vmatpush1.bf16.msra.mxu0 %v3249
      %3311 = vmatprep.subr.bf16.mxu0 %v3254
      %3312 = vmatpush1.bf16.msra.mxu0 %v3253
      %3313 = vmatprep.subr.bf16.mxu0 %v3258
      %3314 = vmatpush1.bf16.msra.mxu0 %v3257
      %3315 = vmatprep.subr.bf16.mxu0 %v3262
      %3316 = vmatpush1.bf16.msra.mxu0 %v3261
      %3317 = vmatprep.subr.bf16.mxu0 %v3266
      %3318 = vmatpush1.bf16.msra.mxu0 %v3265
      %3319 = vmatprep.subr.bf16.mxu0 %v3270
      %3320 = vmatpush1.bf16.msra.mxu0 %v3269
      %3321 = vmatprep.subr.bf16.mxu0 0
      %3322 = vmatpush1.bf16.msra.mxu0 0
      %3323 = vmatprep.subr.bf16.mxu0 0
      %3324 = vmatpush1.bf16.msra.mxu0 0
      %3325 = vmatprep.subr.bf16.mxu0 0
      %3326 = vmatpush1.bf16.msra.mxu0 0
      %3327 = vmatprep.subr.bf16.mxu0 0
      %3328 = vmatpush1.bf16.msra.mxu0 0
      %3329 = vmatprep.subr.bf16.mxu0 0
      %3330 = vmatpush1.bf16.msra.mxu0 0
      %3331 = vmatprep.subr.bf16.mxu0 0
      %3332 = vmatpush1.bf16.msra.mxu0 0
      %3333 = vmatprep.subr.bf16.mxu0 0
      %3334 = vmatpush1.bf16.msra.mxu0 0
      %3335 = vmatprep.subr.bf16.mxu0 0
      %3336 = vmatpush1.bf16.msra.mxu0 0
      %3337 = vmatprep.mubr.bf16.mxu0 0
      %3338 = vmatmul.mubr.bf16.gmra.mrb[0].mxu0 %v2828
      %v3339 = vpop.f32.mrb[0].mxu0
      %v3340 = vadd.f32 0.0, %v3339
      %v3341 = vpop.f32.mrb[0].mxu0
      %v3342 = vadd.f32 0.0, %v3341
      %v3343 = vpop.f32.mrb[0].mxu0
      %v3344 = vpop.f32.mrb[0].mxu0
      %3345 = vdwg.mxu0
      %3346 = vmatprep.subr.bf16.mxu0 %v3244
      %3347 = vmatpush1.bf16.msra.mxu0 %v3243
      %3348 = vmatprep.subr.bf16.mxu0 %v3248
      %3349 = vmatpush1.bf16.msra.mxu0 %v3247
      %3350 = vmatprep.subr.bf16.mxu0 %v3252
      %3351 = vmatpush1.bf16.msra.mxu0 %v3251
      %3352 = vmatprep.subr.bf16.mxu0 %v3256
      %3353 = vmatpush1.bf16.msra.mxu0 %v3255
      %3354 = vmatprep.subr.bf16.mxu0 %v3260
      %3355 = vmatpush1.bf16.msra.mxu0 %v3259
      %3356 = vmatprep.subr.bf16.mxu0 %v3264
      %3357 = vmatpush1.bf16.msra.mxu0 %v3263
      %3358 = vmatprep.subr.bf16.mxu0 %v3268
      %3359 = vmatpush1.bf16.msra.mxu0 %v3267
      %3360 = vmatprep.subr.bf16.mxu0 %v3272
      %3361 = vmatpush1.bf16.msra.mxu0 %v3271
      %3362 = vmatprep.subr.bf16.mxu0 0
      %3363 = vmatpush1.bf16.msra.mxu0 0
      %3364 = vmatprep.subr.bf16.mxu0 0
      %3365 = vmatpush1.bf16.msra.mxu0 0
      %3366 = vmatprep.subr.bf16.mxu0 0
      %3367 = vmatpush1.bf16.msra.mxu0 0
      %3368 = vmatprep.subr.bf16.mxu0 0
      %3369 = vmatpush1.bf16.msra.mxu0 0
      %3370 = vmatprep.subr.bf16.mxu0 0
      %3371 = vmatpush1.bf16.msra.mxu0 0
      %3372 = vmatprep.subr.bf16.mxu0 0
      %3373 = vmatpush1.bf16.msra.mxu0 0
      %3374 = vmatprep.subr.bf16.mxu0 0
      %3375 = vmatpush1.bf16.msra.mxu0 0
      %3376 = vmatprep.subr.bf16.mxu0 0
      %3377 = vmatpush1.bf16.msra.mxu0 0
      %3378 = vmatprep.mubr.bf16.mxu0 0
      %3379 = vmatmul.mubr.bf16.gmra.mrb[0].mxu0 %v2828
      %v3380 = vpop.f32.mrb[0].mxu0
      %v3381 = vadd.f32 0.0, %v3380
      %v3382 = vpop.f32.mrb[0].mxu0
      %v3383 = vadd.f32 0.0, %v3382
      %v3384 = vpop.f32.mrb[0].mxu0
      %v3385 = vpop.f32.mrb[0].mxu0
      %3386 = vdwg.mxu0
      %v3387 = vmax.f32 %v3340, 0.0
      %v3388 = vmax.f32 %v3342, 0.0
      %v3389 = vmax.f32 %v3381, 0.0
      %v3390 = vmax.f32 %v3383, 0.0
      %v3391 = vadd.f32 %v3108, %v3387
      %v3392 = vadd.f32 %v3109, %v3388
      %v3393 = vadd.f32 %v3110, %v3389
      %v3394 = vadd.f32 %v3111, %v3390
      %s3395 = scalar_lea.vmem [#allocation10], 512
      %v3396 = vld [vmem:[%s3395] sm:$0xff]
      %v3397 = vld [vmem:[%s3395 + $0x8] sm:$0xff]
      %v3398 = vld [vmem:[%s3395 + $0x10] sm:$0xff]
      %v3399 = vld [vmem:[%s3395 + $0x18] sm:$0xff]
      %v3400 = vld [vmem:[%s3395 + $0x20] sm:$0xff]
      %v3401 = vld [vmem:[%s3395 + $0x28] sm:$0xff]
      %v3402 = vld [vmem:[%s3395 + $0x30] sm:$0xff]
      %v3403 = vld [vmem:[%s3395 + $0x38] sm:$0xff]
      %v3404 = vld [vmem:[%s3395 + $0x40] sm:$0xff]
      %v3405 = vld [vmem:[%s3395 + $0x48] sm:$0xff]
      %v3406 = vld [vmem:[%s3395 + $0x50] sm:$0xff]
      %v3407 = vld [vmem:[%s3395 + $0x58] sm:$0xff]
      %v3408 = vld [vmem:[%s3395 + $0x60] sm:$0xff]
      %v3409 = vld [vmem:[%s3395 + $0x68] sm:$0xff]
      %v3410 = vld [vmem:[%s3395 + $0x70] sm:$0xff]
      %v3411 = vld [vmem:[%s3395 + $0x78] sm:$0xff]
      %v3412 = vld [vmem:[%s3395 + $0x80] sm:$0xff]
      %v3413 = vld [vmem:[%s3395 + $0x88] sm:$0xff]
      %v3414 = vld [vmem:[%s3395 + $0x90] sm:$0xff]
      %v3415 = vld [vmem:[%s3395 + $0x98] sm:$0xff]
      %v3416 = vld [vmem:[%s3395 + $0xa0] sm:$0xff]
      %v3417 = vld [vmem:[%s3395 + $0xa8] sm:$0xff]
      %v3418 = vld [vmem:[%s3395 + $0xb0] sm:$0xff]
      %v3419 = vld [vmem:[%s3395 + $0xb8] sm:$0xff]
      %v3420 = vld [vmem:[%s3395 + $0xc0] sm:$0xff]
      %v3421 = vld [vmem:[%s3395 + $0xc8] sm:$0xff]
      %v3422 = vld [vmem:[%s3395 + $0xd0] sm:$0xff]
      %v3423 = vld [vmem:[%s3395 + $0xd8] sm:$0xff]
      %v3424 = vld [vmem:[%s3395 + $0xe0] sm:$0xff]
      %v3425 = vld [vmem:[%s3395 + $0xe8] sm:$0xff]
      %v3426 = vld [vmem:[%s3395 + $0xf0] sm:$0xff]
      %v3427 = vld [vmem:[%s3395 + $0xf8] sm:$0xff]
      %v3460 = vunpack.c.l.b16 %v3396
      %v3461 = vunpack.c.h.b16 %v3396
      %v3462 = vunpack.c.l.b16 %v3397
      %v3463 = vunpack.c.h.b16 %v3397
      %v3464 = vunpack.c.l.b16 %v3398
      %v3465 = vunpack.c.h.b16 %v3398
      %v3466 = vunpack.c.l.b16 %v3399
      %v3467 = vunpack.c.h.b16 %v3399
      %v3468 = vunpack.c.l.b16 %v3400
      %v3469 = vunpack.c.h.b16 %v3400
      %v3470 = vunpack.c.l.b16 %v3401
      %v3471 = vunpack.c.h.b16 %v3401
      %v3472 = vunpack.c.l.b16 %v3402
      %v3473 = vunpack.c.h.b16 %v3402
      %v3474 = vunpack.c.l.b16 %v3403
      %v3475 = vunpack.c.h.b16 %v3403
      %v3476 = vunpack.c.l.b16 %v3404
      %v3477 = vunpack.c.h.b16 %v3404
      %v3478 = vunpack.c.l.b16 %v3405
      %v3479 = vunpack.c.h.b16 %v3405
      %v3480 = vunpack.c.l.b16 %v3406
      %v3481 = vunpack.c.h.b16 %v3406
      %v3482 = vunpack.c.l.b16 %v3407
      %v3483 = vunpack.c.h.b16 %v3407
      %v3484 = vunpack.c.l.b16 %v3408
      %v3485 = vunpack.c.h.b16 %v3408
      %v3486 = vunpack.c.l.b16 %v3409
      %v3487 = vunpack.c.h.b16 %v3409
      %v3488 = vunpack.c.l.b16 %v3410
      %v3489 = vunpack.c.h.b16 %v3410
      %v3490 = vunpack.c.l.b16 %v3411
      %v3491 = vunpack.c.h.b16 %v3411
      %v3492 = vunpack.c.l.b16 %v3412
      %v3493 = vunpack.c.h.b16 %v3412
      %v3494 = vunpack.c.l.b16 %v3413
      %v3495 = vunpack.c.h.b16 %v3413
      %v3496 = vunpack.c.l.b16 %v3414
      %v3497 = vunpack.c.h.b16 %v3414
      %v3498 = vunpack.c.l.b16 %v3415
      %v3499 = vunpack.c.h.b16 %v3415
      %v3500 = vunpack.c.l.b16 %v3416
      %v3501 = vunpack.c.h.b16 %v3416
      %v3502 = vunpack.c.l.b16 %v3417
      %v3503 = vunpack.c.h.b16 %v3417
      %v3504 = vunpack.c.l.b16 %v3418
      %v3505 = vunpack.c.h.b16 %v3418
      %v3506 = vunpack.c.l.b16 %v3419
      %v3507 = vunpack.c.h.b16 %v3419
      %v3508 = vunpack.c.l.b16 %v3420
      %v3509 = vunpack.c.h.b16 %v3420
      %v3510 = vunpack.c.l.b16 %v3421
      %v3511 = vunpack.c.h.b16 %v3421
      %v3512 = vunpack.c.l.b16 %v3422
      %v3513 = vunpack.c.h.b16 %v3422
      %v3514 = vunpack.c.l.b16 %v3423
      %v3515 = vunpack.c.h.b16 %v3423
      %v3516 = vunpack.c.l.b16 %v3424
      %v3517 = vunpack.c.h.b16 %v3424
      %v3518 = vunpack.c.l.b16 %v3425
      %v3519 = vunpack.c.h.b16 %v3425
      %v3520 = vunpack.c.l.b16 %v3426
      %v3521 = vunpack.c.h.b16 %v3426
      %v3522 = vunpack.c.l.b16 %v3427
      %v3523 = vunpack.c.h.b16 %v3427
      %v3524 = vpack.c.b16 %v3464, %v3460
      %v3525 = vpack.c.b16 %v3465, %v3461
      %v3526 = vpack.c.b16 %v3466, %v3462
      %v3527 = vpack.c.b16 %v3467, %v3463
      %v3528 = vpack.c.b16 %v3472, %v3468
      %v3529 = vpack.c.b16 %v3473, %v3469
      %v3530 = vpack.c.b16 %v3474, %v3470
      %v3531 = vpack.c.b16 %v3475, %v3471
      %v3532 = vpack.c.b16 %v3480, %v3476
      %v3533 = vpack.c.b16 %v3481, %v3477
      %v3534 = vpack.c.b16 %v3482, %v3478
      %v3535 = vpack.c.b16 %v3483, %v3479
      %v3536 = vpack.c.b16 %v3488, %v3484
      %v3537 = vpack.c.b16 %v3489, %v3485
      %v3538 = vpack.c.b16 %v3490, %v3486
      %v3539 = vpack.c.b16 %v3491, %v3487
      %v3540 = vpack.c.b16 %v3496, %v3492
      %v3541 = vpack.c.b16 %v3497, %v3493
      %v3542 = vpack.c.b16 %v3498, %v3494
      %v3543 = vpack.c.b16 %v3499, %v3495
      %v3544 = vpack.c.b16 %v3504, %v3500
      %v3545 = vpack.c.b16 %v3505, %v3501
      %v3546 = vpack.c.b16 %v3506, %v3502
      %v3547 = vpack.c.b16 %v3507, %v3503
      %v3548 = vpack.c.b16 %v3512, %v3508
      %v3549 = vpack.c.b16 %v3513, %v3509
      %v3550 = vpack.c.b16 %v3514, %v3510
      %v3551 = vpack.c.b16 %v3515, %v3511
      %v3552 = vpack.c.b16 %v3520, %v3516
      %v3553 = vpack.c.b16 %v3521, %v3517
      %v3554 = vpack.c.b16 %v3522, %v3518
      %v3555 = vpack.c.b16 %v3523, %v3519
      %3588 = vmatprep.subr.bf16.mxu0 %v3525
      %3589 = vmatpush1.bf16.msra.mxu0 %v3524
      %3590 = vmatprep.subr.bf16.mxu0 %v3529
      %3591 = vmatpush1.bf16.msra.mxu0 %v3528
      %3592 = vmatprep.subr.bf16.mxu0 %v3533
      %3593 = vmatpush1.bf16.msra.mxu0 %v3532
      %3594 = vmatprep.subr.bf16.mxu0 %v3537
      %3595 = vmatpush1.bf16.msra.mxu0 %v3536
      %3596 = vmatprep.subr.bf16.mxu0 %v3541
      %3597 = vmatpush1.bf16.msra.mxu0 %v3540
      %3598 = vmatprep.subr.bf16.mxu0 %v3545
      %3599 = vmatpush1.bf16.msra.mxu0 %v3544
      %3600 = vmatprep.subr.bf16.mxu0 %v3549
      %3601 = vmatpush1.bf16.msra.mxu0 %v3548
      %3602 = vmatprep.subr.bf16.mxu0 %v3553
      %3603 = vmatpush1.bf16.msra.mxu0 %v3552
      %3604 = vmatprep.subr.bf16.mxu0 0
      %3605 = vmatpush1.bf16.msra.mxu0 0
      %3606 = vmatprep.subr.bf16.mxu0 0
      %3607 = vmatpush1.bf16.msra.mxu0 0
      %3608 = vmatprep.subr.bf16.mxu0 0
      %3609 = vmatpush1.bf16.msra.mxu0 0
      %3610 = vmatprep.subr.bf16.mxu0 0
      %3611 = vmatpush1.bf16.msra.mxu0 0
      %3612 = vmatprep.subr.bf16.mxu0 0
      %3613 = vmatpush1.bf16.msra.mxu0 0
      %3614 = vmatprep.subr.bf16.mxu0 0
      %3615 = vmatpush1.bf16.msra.mxu0 0
      %3616 = vmatprep.subr.bf16.mxu0 0
      %3617 = vmatpush1.bf16.msra.mxu0 0
      %3618 = vmatprep.subr.bf16.mxu0 0
      %3619 = vmatpush1.bf16.msra.mxu0 0
      %3620 = vmatprep.mubr.bf16.mxu0 0
      %3621 = vmatmul.mubr.bf16.gmra.mrb[0].mxu0 %v2829
      %v3622 = vpop.f32.mrb[0].mxu0
      %v3623 = vadd.f32 0.0, %v3622
      %v3624 = vpop.f32.mrb[0].mxu0
      %v3625 = vadd.f32 0.0, %v3624
      %v3626 = vpop.f32.mrb[0].mxu0
      %v3627 = vpop.f32.mrb[0].mxu0
      %3628 = vdwg.mxu0
      %3629 = vmatprep.subr.bf16.mxu0 %v3527
      %3630 = vmatpush1.bf16.msra.mxu0 %v3526
      %3631 = vmatprep.subr.bf16.mxu0 %v3531
      %3632 = vmatpush1.bf16.msra.mxu0 %v3530
      %3633 = vmatprep.subr.bf16.mxu0 %v3535
      %3634 = vmatpush1.bf16.msra.mxu0 %v3534
      %3635 = vmatprep.subr.bf16.mxu0 %v3539
      %3636 = vmatpush1.bf16.msra.mxu0 %v3538
      %3637 = vmatprep.subr.bf16.mxu0 %v3543
      %3638 = vmatpush1.bf16.msra.mxu0 %v3542
      %3639 = vmatprep.subr.bf16.mxu0 %v3547
      %3640 = vmatpush1.bf16.msra.mxu0 %v3546
      %3641 = vmatprep.subr.bf16.mxu0 %v3551
      %3642 = vmatpush1.bf16.msra.mxu0 %v3550
      %3643 = vmatprep.subr.bf16.mxu0 %v3555
      %3644 = vmatpush1.bf16.msra.mxu0 %v3554
      %3645 = vmatprep.subr.bf16.mxu0 0
      %3646 = vmatpush1.bf16.msra.mxu0 0
      %3647 = vmatprep.subr.bf16.mxu0 0
      %3648 = vmatpush1.bf16.msra.mxu0 0
      %3649 = vmatprep.subr.bf16.mxu0 0
      %3650 = vmatpush1.bf16.msra.mxu0 0
      %3651 = vmatprep.subr.bf16.mxu0 0
      %3652 = vmatpush1.bf16.msra.mxu0 0
      %3653 = vmatprep.subr.bf16.mxu0 0
      %3654 = vmatpush1.bf16.msra.mxu0 0
      %3655 = vmatprep.subr.bf16.mxu0 0
      %3656 = vmatpush1.bf16.msra.mxu0 0
      %3657 = vmatprep.subr.bf16.mxu0 0
      %3658 = vmatpush1.bf16.msra.mxu0 0
      %3659 = vmatprep.subr.bf16.mxu0 0
      %3660 = vmatpush1.bf16.msra.mxu0 0
      %3661 = vmatprep.mubr.bf16.mxu0 0
      %3662 = vmatmul.mubr.bf16.gmra.mrb[0].mxu0 %v2829
      %v3663 = vpop.f32.mrb[0].mxu0
      %v3664 = vadd.f32 0.0, %v3663
      %v3665 = vpop.f32.mrb[0].mxu0
      %v3666 = vadd.f32 0.0, %v3665
      %v3667 = vpop.f32.mrb[0].mxu0
      %v3668 = vpop.f32.mrb[0].mxu0
      %3669 = vdwg.mxu0
      %v3670 = vmax.f32 %v3623, 0.0
      %v3671 = vmax.f32 %v3625, 0.0
      %v3672 = vmax.f32 %v3664, 0.0
      %v3673 = vmax.f32 %v3666, 0.0
      %v3674 = vadd.f32 %v3391, %v3670
      %v3675 = vadd.f32 %v3392, %v3671
      %v3676 = vadd.f32 %v3393, %v3672
      %v3677 = vadd.f32 %v3394, %v3673
      %v3678 = vstv %s1995
      %v3679 = vmul.f32 %v3678, %v3674
      %v3680 = vmul.f32 %v3678, %v3675
      %v3681 = vmul.f32 %v3678, %v3676
      %v3682 = vmul.f32 %v3678, %v3677
      %v3683 = vmul.f32 %v2014, 0.8
      %v3684 = vmul.f32 %v2015, 0.8
      %v3685 = vmul.f32 %v2016, 0.8
      %v3686 = vmul.f32 %v2017, 0.8
      %v3687 = vadd.f32 %v3679, %v3683
      %v3688 = vadd.f32 %v3680, %v3684
      %v3689 = vadd.f32 %v3681, %v3685
      %v3690 = vadd.f32 %v3682, %v3686
      %v3691 = vmul.f32 %v3687, %v3687
      %v3692 = vmul.f32 %v3688, %v3688
      %v3693 = vmul.f32 %v3689, %v3689
      %v3694 = vmul.f32 %v3690, %v3690
      %v3695 = vadd.f32 %v3691, %v3692
      %v3696 = vadd.f32 %v3695, %v3693
      %v3697 = vadd.f32 %v3696, %v3694
      %3698 = vadd.xlane.f32.xlu0 %v3697
      %v3699 = vpop.xlane.xlu0 %3698
      %v3700 = vadd.f32 %v3699, 1e-12
      %v3701 = vrsqrt.pop %v3700
      %v3702 = vmul.f32 %v3687, %v3701
      %v3703 = vmul.f32 %v3688, %v3701
      %v3704 = vmul.f32 %v3689, %v3701
      %v3705 = vmul.f32 %v3690, %v3701
      %v3706 = vpack.c.bf16 %v3702, %v3702
      %v3707 = vpack.c.bf16 %v3703, %v3703
      %v3708 = vpack.c.bf16 %v3704, %v3704
      %v3709 = vpack.c.bf16 %v3705, %v3705
      %v3710 = vld [vmem:[#allocation12] sm:$0xf]
      %v3711 = vld [vmem:[#allocation12 + $0x4] sm:$0xf]
      %v3712 = vld [vmem:[#allocation12 + $0x8] sm:$0xf]
      %v3713 = vld [vmem:[#allocation12 + $0xc] sm:$0xf]
      %v3714 = vld [vmem:[#allocation12 + $0x10] sm:$0xf]
      %v3715 = vld [vmem:[#allocation12 + $0x14] sm:$0xf]
      %v3716 = vld [vmem:[#allocation12 + $0x18] sm:$0xf]
      %v3717 = vld [vmem:[#allocation12 + $0x1c] sm:$0xf]
      %v3718 = vld [vmem:[#allocation12 + $0x20] sm:$0xf]
      %v3719 = vld [vmem:[#allocation12 + $0x24] sm:$0xf]
      %v3720 = vld [vmem:[#allocation12 + $0x28] sm:$0xf]
      %v3721 = vld [vmem:[#allocation12 + $0x2c] sm:$0xf]
      %v3722 = vld [vmem:[#allocation12 + $0x30] sm:$0xf]
      %v3723 = vld [vmem:[#allocation12 + $0x34] sm:$0xf]
      %v3724 = vld [vmem:[#allocation12 + $0x38] sm:$0xf]
      %v3725 = vld [vmem:[#allocation12 + $0x3c] sm:$0xf]
      %v3726 = vld [vmem:[#allocation12 + $0x40] sm:$0xf]
      %v3727 = vld [vmem:[#allocation12 + $0x44] sm:$0xf]
      %v3728 = vld [vmem:[#allocation12 + $0x48] sm:$0xf]
      %v3729 = vld [vmem:[#allocation12 + $0x4c] sm:$0xf]
      %v3730 = vld [vmem:[#allocation12 + $0x50] sm:$0xf]
      %v3731 = vld [vmem:[#allocation12 + $0x54] sm:$0xf]
      %v3732 = vld [vmem:[#allocation12 + $0x58] sm:$0xf]
      %v3733 = vld [vmem:[#allocation12 + $0x5c] sm:$0xf]
      %v3734 = vld [vmem:[#allocation12 + $0x60] sm:$0xf]
      %v3735 = vld [vmem:[#allocation12 + $0x64] sm:$0xf]
      %v3736 = vld [vmem:[#allocation12 + $0x68] sm:$0xf]
      %v3737 = vld [vmem:[#allocation12 + $0x6c] sm:$0xf]
      %v3738 = vld [vmem:[#allocation12 + $0x70] sm:$0xf]
      %v3739 = vld [vmem:[#allocation12 + $0x74] sm:$0xf]
      %v3740 = vld [vmem:[#allocation12 + $0x78] sm:$0xf]
      %v3741 = vld [vmem:[#allocation12 + $0x7c] sm:$0xf]
      %v3742 = vld [vmem:[#allocation12 + $0x80] sm:$0xf]
      %v3743 = vld [vmem:[#allocation12 + $0x84] sm:$0xf]
      %v3744 = vld [vmem:[#allocation12 + $0x88] sm:$0xf]
      %v3745 = vld [vmem:[#allocation12 + $0x8c] sm:$0xf]
      %v3746 = vld [vmem:[#allocation12 + $0x90] sm:$0xf]
      %v3747 = vld [vmem:[#allocation12 + $0x94] sm:$0xf]
      %v3748 = vld [vmem:[#allocation12 + $0x98] sm:$0xf]
      %v3749 = vld [vmem:[#allocation12 + $0x9c] sm:$0xf]
      %v3750 = vld [vmem:[#allocation12 + $0xa0] sm:$0xf]
      %v3751 = vld [vmem:[#allocation12 + $0xa4] sm:$0xf]
      %v3752 = vld [vmem:[#allocation12 + $0xa8] sm:$0xf]
      %v3753 = vld [vmem:[#allocation12 + $0xac] sm:$0xf]
      %v3754 = vld [vmem:[#allocation12 + $0xb0] sm:$0xf]
      %v3755 = vld [vmem:[#allocation12 + $0xb4] sm:$0xf]
      %v3756 = vld [vmem:[#allocation12 + $0xb8] sm:$0xf]
      %v3757 = vld [vmem:[#allocation12 + $0xbc] sm:$0xf]
      %v3758 = vld [vmem:[#allocation12 + $0xc0] sm:$0xf]
      %v3759 = vld [vmem:[#allocation12 + $0xc4] sm:$0xf]
      %v3760 = vld [vmem:[#allocation12 + $0xc8] sm:$0xf]
      %v3761 = vld [vmem:[#allocation12 + $0xcc] sm:$0xf]
      %v3762 = vld [vmem:[#allocation12 + $0xd0] sm:$0xf]
      %v3763 = vld [vmem:[#allocation12 + $0xd4] sm:$0xf]
      %v3764 = vld [vmem:[#allocation12 + $0xd8] sm:$0xf]
      %v3765 = vld [vmem:[#allocation12 + $0xdc] sm:$0xf]
      %v3766 = vld [vmem:[#allocation12 + $0xe0] sm:$0xf]
      %v3767 = vld [vmem:[#allocation12 + $0xe4] sm:$0xf]
      %v3768 = vld [vmem:[#allocation12 + $0xe8] sm:$0xf]
      %v3769 = vld [vmem:[#allocation12 + $0xec] sm:$0xf]
      %v3770 = vld [vmem:[#allocation12 + $0xf0] sm:$0xf]
      %v3771 = vld [vmem:[#allocation12 + $0xf4] sm:$0xf]
      %v3772 = vld [vmem:[#allocation12 + $0xf8] sm:$0xf]
      %v3773 = vld [vmem:[#allocation12 + $0xfc] sm:$0xf]
      %v3838 = vunpack.c.l.b16 %v3710
      %v3839 = vunpack.c.l.b16 %v3711
      %v3840 = vunpack.c.l.b16 %v3712
      %v3841 = vunpack.c.l.b16 %v3713
      %v3842 = vunpack.c.l.b16 %v3714
      %v3843 = vunpack.c.l.b16 %v3715
      %v3844 = vunpack.c.l.b16 %v3716
      %v3845 = vunpack.c.l.b16 %v3717
      %v3846 = vunpack.c.l.b16 %v3718
      %v3847 = vunpack.c.l.b16 %v3719
      %v3848 = vunpack.c.l.b16 %v3720
      %v3849 = vunpack.c.l.b16 %v3721
      %v3850 = vunpack.c.l.b16 %v3722
      %v3851 = vunpack.c.l.b16 %v3723
      %v3852 = vunpack.c.l.b16 %v3724
      %v3853 = vunpack.c.l.b16 %v3725
      %v3854 = vunpack.c.l.b16 %v3726
      %v3855 = vunpack.c.l.b16 %v3727
      %v3856 = vunpack.c.l.b16 %v3728
      %v3857 = vunpack.c.l.b16 %v3729
      %v3858 = vunpack.c.l.b16 %v3730
      %v3859 = vunpack.c.l.b16 %v3731
      %v3860 = vunpack.c.l.b16 %v3732
      %v3861 = vunpack.c.l.b16 %v3733
      %v3862 = vunpack.c.l.b16 %v3734
      %v3863 = vunpack.c.l.b16 %v3735
      %v3864 = vunpack.c.l.b16 %v3736
      %v3865 = vunpack.c.l.b16 %v3737
      %v3866 = vunpack.c.l.b16 %v3738
      %v3867 = vunpack.c.l.b16 %v3739
      %v3868 = vunpack.c.l.b16 %v3740
      %v3869 = vunpack.c.l.b16 %v3741
      %v3870 = vunpack.c.l.b16 %v3742
      %v3871 = vunpack.c.l.b16 %v3743
      %v3872 = vunpack.c.l.b16 %v3744
      %v3873 = vunpack.c.l.b16 %v3745
      %v3874 = vunpack.c.l.b16 %v3746
      %v3875 = vunpack.c.l.b16 %v3747
      %v3876 = vunpack.c.l.b16 %v3748
      %v3877 = vunpack.c.l.b16 %v3749
      %v3878 = vunpack.c.l.b16 %v3750
      %v3879 = vunpack.c.l.b16 %v3751
      %v3880 = vunpack.c.l.b16 %v3752
      %v3881 = vunpack.c.l.b16 %v3753
      %v3882 = vunpack.c.l.b16 %v3754
      %v3883 = vunpack.c.l.b16 %v3755
      %v3884 = vunpack.c.l.b16 %v3756
      %v3885 = vunpack.c.l.b16 %v3757
      %v3886 = vunpack.c.l.b16 %v3758
      %v3887 = vunpack.c.l.b16 %v3759
      %v3888 = vunpack.c.l.b16 %v3760
      %v3889 = vunpack.c.l.b16 %v3761
      %v3890 = vunpack.c.l.b16 %v3762
      %v3891 = vunpack.c.l.b16 %v3763
      %v3892 = vunpack.c.l.b16 %v3764
      %v3893 = vunpack.c.l.b16 %v3765
      %v3894 = vunpack.c.l.b16 %v3766
      %v3895 = vunpack.c.l.b16 %v3767
      %v3896 = vunpack.c.l.b16 %v3768
      %v3897 = vunpack.c.l.b16 %v3769
      %v3898 = vunpack.c.l.b16 %v3770
      %v3899 = vunpack.c.l.b16 %v3771
      %v3900 = vunpack.c.l.b16 %v3772
      %v3901 = vunpack.c.l.b16 %v3773
      %v3902 = vpack.c.b16 %v3839, %v3838
      %v3903 = vpack.c.b16 %v3841, %v3840
      %v3904 = vpack.c.b16 %v3843, %v3842
      %v3905 = vpack.c.b16 %v3845, %v3844
      %v3906 = vpack.c.b16 %v3847, %v3846
      %v3907 = vpack.c.b16 %v3849, %v3848
      %v3908 = vpack.c.b16 %v3851, %v3850
      %v3909 = vpack.c.b16 %v3853, %v3852
      %v3910 = vpack.c.b16 %v3855, %v3854
      %v3911 = vpack.c.b16 %v3857, %v3856
      %v3912 = vpack.c.b16 %v3859, %v3858
      %v3913 = vpack.c.b16 %v3861, %v3860
      %v3914 = vpack.c.b16 %v3863, %v3862
      %v3915 = vpack.c.b16 %v3865, %v3864
      %v3916 = vpack.c.b16 %v3867, %v3866
      %v3917 = vpack.c.b16 %v3869, %v3868
      %v3918 = vpack.c.b16 %v3871, %v3870
      %v3919 = vpack.c.b16 %v3873, %v3872
      %v3920 = vpack.c.b16 %v3875, %v3874
      %v3921 = vpack.c.b16 %v3877, %v3876
      %v3922 = vpack.c.b16 %v3879, %v3878
      %v3923 = vpack.c.b16 %v3881, %v3880
      %v3924 = vpack.c.b16 %v3883, %v3882
      %v3925 = vpack.c.b16 %v3885, %v3884
      %v3926 = vpack.c.b16 %v3887, %v3886
      %v3927 = vpack.c.b16 %v3889, %v3888
      %v3928 = vpack.c.b16 %v3891, %v3890
      %v3929 = vpack.c.b16 %v3893, %v3892
      %v3930 = vpack.c.b16 %v3895, %v3894
      %v3931 = vpack.c.b16 %v3897, %v3896
      %v3932 = vpack.c.b16 %v3899, %v3898
      %v3933 = vpack.c.b16 %v3901, %v3900
      %3966 = vmatprep.subr.bf16.mxu0 0
      %3967 = vmatpush1.bf16.msra.mxu0 %v3902
      %3968 = vmatprep.subr.bf16.mxu0 0
      %3969 = vmatpush1.bf16.msra.mxu0 %v3903
      %3970 = vmatprep.subr.bf16.mxu0 0
      %3971 = vmatpush1.bf16.msra.mxu0 %v3904
      %3972 = vmatprep.subr.bf16.mxu0 0
      %3973 = vmatpush1.bf16.msra.mxu0 %v3905
      %3974 = vmatprep.subr.bf16.mxu0 0
      %3975 = vmatpush1.bf16.msra.mxu0 %v3906
      %3976 = vmatprep.subr.bf16.mxu0 0
      %3977 = vmatpush1.bf16.msra.mxu0 %v3907
      %3978 = vmatprep.subr.bf16.mxu0 0
      %3979 = vmatpush1.bf16.msra.mxu0 %v3908
      %3980 = vmatprep.subr.bf16.mxu0 0
      %3981 = vmatpush1.bf16.msra.mxu0 %v3909
      %3982 = vmatprep.subr.bf16.mxu0 0
      %3983 = vmatpush1.bf16.msra.mxu0 %v3910
      %3984 = vmatprep.subr.bf16.mxu0 0
      %3985 = vmatpush1.bf16.msra.mxu0 %v3911
      %3986 = vmatprep.subr.bf16.mxu0 0
      %3987 = vmatpush1.bf16.msra.mxu0 %v3912
      %3988 = vmatprep.subr.bf16.mxu0 0
      %3989 = vmatpush1.bf16.msra.mxu0 %v3913
      %3990 = vmatprep.subr.bf16.mxu0 0
      %3991 = vmatpush1.bf16.msra.mxu0 %v3914
      %3992 = vmatprep.subr.bf16.mxu0 0
      %3993 = vmatpush1.bf16.msra.mxu0 %v3915
      %3994 = vmatprep.subr.bf16.mxu0 0
      %3995 = vmatpush1.bf16.msra.mxu0 %v3916
      %3996 = vmatprep.subr.bf16.mxu0 0
      %3997 = vmatpush1.bf16.msra.mxu0 %v3917
      %3998 = vmatprep.mubr.bf16.mxu0 %v3707
      %3999 = vmatmul.mubr.bf16.gmra.mrb[0].mxu0 %v3706
      %v4000 = vpop.f32.mrb[0].mxu0
      %v4001 = vadd.f32 0.0, %v4000
      %v4002 = vpop.f32.mrb[0].mxu0
      %v4003 = vpop.f32.mrb[0].mxu0
      %v4004 = vpop.f32.mrb[0].mxu0
      %4005 = vdwg.mxu0
      %4006 = vmatprep.subr.bf16.mxu0 0
      %4007 = vmatpush1.bf16.msra.mxu0 %v3918
      %4008 = vmatprep.subr.bf16.mxu0 0
      %4009 = vmatpush1.bf16.msra.mxu0 %v3919
      %4010 = vmatprep.subr.bf16.mxu0 0
      %4011 = vmatpush1.bf16.msra.mxu0 %v3920
      %4012 = vmatprep.subr.bf16.mxu0 0
      %4013 = vmatpush1.bf16.msra.mxu0 %v3921
      %4014 = vmatprep.subr.bf16.mxu0 0
      %4015 = vmatpush1.bf16.msra.mxu0 %v3922
      %4016 = vmatprep.subr.bf16.mxu0 0
      %4017 = vmatpush1.bf16.msra.mxu0 %v3923
      %4018 = vmatprep.subr.bf16.mxu0 0
      %4019 = vmatpush1.bf16.msra.mxu0 %v3924
      %4020 = vmatprep.subr.bf16.mxu0 0
      %4021 = vmatpush1.bf16.msra.mxu0 %v3925
      %4022 = vmatprep.subr.bf16.mxu0 0
      %4023 = vmatpush1.bf16.msra.mxu0 %v3926
      %4024 = vmatprep.subr.bf16.mxu0 0
      %4025 = vmatpush1.bf16.msra.mxu0 %v3927
      %4026 = vmatprep.subr.bf16.mxu0 0
      %4027 = vmatpush1.bf16.msra.mxu0 %v3928
      %4028 = vmatprep.subr.bf16.mxu0 0
      %4029 = vmatpush1.bf16.msra.mxu0 %v3929
      %4030 = vmatprep.subr.bf16.mxu0 0
      %4031 = vmatpush1.bf16.msra.mxu0 %v3930
      %4032 = vmatprep.subr.bf16.mxu0 0
      %4033 = vmatpush1.bf16.msra.mxu0 %v3931
      %4034 = vmatprep.subr.bf16.mxu0 0
      %4035 = vmatpush1.bf16.msra.mxu0 %v3932
      %4036 = vmatprep.subr.bf16.mxu0 0
      %4037 = vmatpush1.bf16.msra.mxu0 %v3933
      %4038 = vmatprep.mubr.bf16.mxu0 %v3709
      %4039 = vmatmul.mubr.bf16.gmra.mrb[0].mxu0 %v3708
      %v4040 = vpop.f32.mrb[0].mxu0
      %v4041 = vadd.f32 %v4001, %v4040
      %v4042 = vpop.f32.mrb[0].mxu0
      %v4043 = vpop.f32.mrb[0].mxu0
      %v4044 = vpop.f32.mrb[0].mxu0
      %4045 = vdwg.mxu0
      %4046 = vst [vmem:[#allocation13] sm:$0xff] %v4041
    $region53: #{tpu_custom_call.1} parent=1 // pred_fallthru
      _
    // Predicated region
    $region54: #{tpu_custom_call.1} parent=1 // pred_check
      _
    $region55: #{tpu_custom_call.1} parent=1 // pred_check_branch
      %4048 = sbr.rel (0) target = $region57
    $region56: #{tpu_custom_call.1} parent=1 // pred_region
      %s4050 = ssub.s32 128, 128
      %4051 = vsyncadd [#allocation6], %s4050
      %s4053 = sshll.u32 [#allocation13], 4
      %s4054 = int_to_ptr.vmem [resolvable:$true] %s4053
      %4056 = dma.vmem_to_hbm [thread:$0]  %s4054, 128, %s6, [#allocation6]
    $region57: #{tpu_custom_call.1} parent=1 // pred_fallthru
      _
    // Predicated region
    $region58: #{tpu_custom_call.1} parent=1 // pred_check
      _
    $region59: #{tpu_custom_call.1} parent=1 // pred_check_branch
      %4058 = sbr.rel (0) target = $region61
    $region60: #{tpu_custom_call.1} parent=1 // pred_region
      %4059 = dma.done [#allocation6], 128
    $region61: #{tpu_custom_call.1} parent=1 // pred_fallthru
      _
    %4060 = vsyncpa [#allocation5], 1
    %4061 = vsyncpa [#allocation8], 1
    %4062 = vsyncpa [#allocation11], 1
    %4063 = vsyncpa [#allocation6], 1

</llo_original>
